<compile_context>
chip_gen: v7x
topology: tpu7x:2x2x1
jax: 0.10.0
libtpu: 0.0.40
codegen_flags: <defaults>
</compile_context>

<pallas_src>
import math
from functools import partial

import jax
import jax.numpy as jnp
from jax.experimental import pallas as pl
from jax.experimental.pallas import tpu as pltpu

NEG_INF = -1e9            # finite stand-in for -inf; exp() underflows to exactly 0 in f32
MXU_DTYPE = jnp.bfloat16  # matmul operand dtype (f32 accumulation); jnp.float32 => exact ref numerics


def _mm(x, w, dims=(((1,), (0,)), ((), ()))):
    """x @ w on the MXU with f32 accumulation (operands cast to MXU_DTYPE)."""
    return jax.lax.dot_general(x.astype(MXU_DTYPE), w.astype(MXU_DTYPE), dims,
                               preferred_element_type=jnp.float32)


# ------------------------------ fused stack kernel ---------------------------------

def decoder_stack_kernel(
        # per-batch activations / masks
        q_ref, c_ref, mem_ref, qmask_ref, cmask_ref, kpm_ref,
        # per-layer LayerNorm params (L, 8, D), rows:
        #   [normq_g, normq_b, normc_g, normc_b, norm1_g, norm1_b, norm2_g, norm2_b]
        ln_ref,
        # self-attention, head-split & pre-transposed:
        #   w{q,k,v}: (L,H,D,dh)  b{q,k,v}: (L,H,1,dh)  wo: (L,H,dh,D)  bo: (L,1,D)
        sa_wq_ref, sa_bq_ref, sa_wk_ref, sa_bk_ref, sa_wv_ref, sa_bv_ref,
        sa_wo_ref, sa_bo_ref,
        # cross-attention (same layout)
        ca_wq_ref, ca_bq_ref, ca_wk_ref, ca_bk_ref, ca_wv_ref, ca_bv_ref,
        ca_wo_ref, ca_bo_ref,
        # feed-forward: w1 (L,D,Dff), b1 (L,1,Dff), w2 (L,Dff,D), b2 (L,1,D)
        w1_ref, b1_ref, w2_ref, b2_ref,
        # final decoder LayerNorm: (2, D) rows [gamma, beta]
        fln_ref,
        # output: final-LayerNorm'd query stream
        o_ref,
        *, num_layers, nhead, eps):
    T = q_ref.shape[1]
    dh = sa_wq_ref.shape[-1]
    scale = 1.0 / math.sqrt(dh)

    def layer_norm(x, g, b):
        mu = jnp.mean(x, axis=-1, keepdims=True)
        xc = x - mu
        var = jnp.mean(xc * xc, axis=-1, keepdims=True)      # biased var (PyTorch LN)
        return xc * jax.lax.rsqrt(var + eps) * g + b

    def gelu(x):
        # tanh-approx GELU (EUP tanh); ~1e-3 max deviation from exact-erf F.gelu
        return 0.5 * x * (1.0 + jnp.tanh(0.7978845608028654 * (x + 0.044715 * x * x * x)))

    def mha(xq, xkv, wq, bq, wk, bk, wv, bv, wo, bo, mask, l):
        """Multi-head attention.  Per-head weight blocks avoid all lane slicing; the
        per-head context goes straight through the output projection into an f32
        accumulator (no ctx scratch, no masked partial stores)."""
        acc = None
        for h in range(nhead):                                # static, unrolled
            q_h = _mm(xq, wq[l, h]) + bq[l, h]                # (M,  dh)
            k_h = _mm(xkv, wk[l, h]) + bk[l, h]               # (Tk, dh)
            v_h = _mm(xkv, wv[l, h]) + bv[l, h]               # (Tk, dh)
            s = _mm(q_h * scale, k_h, (((1,), (1,)), ((), ())))   # (M, Tk) f32
            if mask is not None:                              # static (None for cross-attn)
                s = s + mask
            s = s - jnp.max(s, axis=-1, keepdims=True)
            p = jnp.exp(s)
            p = p * pl.reciprocal(jnp.sum(p, axis=-1, keepdims=True), approx=True)
            o_h = _mm(_mm(p, v_h), wo[l, h])                  # (M, D)
            acc = o_h if acc is None else acc + o_h
        return acc + bo[l]

    def ffn(x, l):
        h = gelu(_mm(x, w1_ref[l]) + b1_ref[l])
        return _mm(h, w2_ref[l]) + b2_ref[l]

    # masks assembled in-kernel: (T,T) additive attn masks + (1,T) key-padding bias
    kpm = kpm_ref[0]                                          # (1, T)
    qmask = qmask_ref[...] + kpm                              # (T, T)   query-stream rows
    both_mask = jnp.concatenate([qmask_ref[...], cmask_ref[...]], axis=0) + kpm   # (2T, T)

    mem = mem_ref[0].astype(jnp.float32)                      # (Tm, D)
    # Both streams stacked along rows: [query; content] -> (2T, D)
    x = jnp.concatenate([q_ref[0].astype(jnp.float32),
                         c_ref[0].astype(jnp.float32)], axis=0)

    # ---- layers 0 .. L-2: update_content=True -> both streams in one (2T, D) block
    for l in range(num_layers - 1):
        lnp = ln_ref[l]                                       # (8, D)
        q_norm = layer_norm(x[:T], lnp[0:1], lnp[1:2])
        c_norm = layer_norm(x[T:], lnp[2:3], lnp[3:4])
        tgt_norm = jnp.concatenate([q_norm, c_norm], axis=0)
        # self-attention: both streams share K/V = content_norm
        x = x + mha(tgt_norm, c_norm,
                    sa_wq_ref, sa_bq_ref, sa_wk_ref, sa_bk_ref,
                    sa_wv_ref, sa_bv_ref, sa_wo_ref, sa_bo_ref, both_mask, l)
        # cross-attention: K/V = memory, no mask
        x = x + mha(layer_norm(x, lnp[4:5], lnp[5:6]), mem,
                    ca_wq_ref, ca_bq_ref, ca_wk_ref, ca_bk_ref,
                    ca_wv_ref, ca_bv_ref, ca_wo_ref, ca_bo_ref, None, l)
        x = x + ffn(layer_norm(x, lnp[6:7], lnp[7:8]), l)

    # ---- last layer: update_content=False -> query stream only
    l = num_layers - 1
    lnp = ln_ref[l]
    q = x[:T]
    q_norm = layer_norm(q, lnp[0:1], lnp[1:2])
    c_norm = layer_norm(x[T:], lnp[2:3], lnp[3:4])            # still the self-attn K/V source
    q = q + mha(q_norm, c_norm,
                sa_wq_ref, sa_bq_ref, sa_wk_ref, sa_bk_ref,
                sa_wv_ref, sa_bv_ref, sa_wo_ref, sa_bo_ref, qmask, l)
    q = q + mha(layer_norm(q, lnp[4:5], lnp[5:6]), mem,
                ca_wq_ref, ca_bq_ref, ca_wk_ref, ca_bk_ref,
                ca_wv_ref, ca_bv_ref, ca_wo_ref, ca_bo_ref, None, l)
    q = q + ffn(layer_norm(q, lnp[6:7], lnp[7:8]), l)

    # final decoder LayerNorm fused into the same kernel
    o_ref[0] = layer_norm(q, fln_ref[0:1], fln_ref[1:2]).astype(o_ref.dtype)


# ------------------------------ pallas_call wrapper ---------------------------------

def decoder_forward(params, query, content, memory,
                    query_mask=None, content_mask=None,
                    content_key_padding_mask=None, *, nhead, eps=1e-5):
    """query/content: (B,T,D); memory: (B,Tm,D).  Returns the final-LN'd query (B,T,D)."""
    B, T, D = query.shape
    Tm = memory.shape[1]
    L = params["sa_wq"].shape[0]
    dh = params["sa_wq"].shape[-1]
    Dff = params["w1"].shape[-1]
    assert nhead * dh == D

    if query_mask is None:
        query_mask = jnp.zeros((T, T), jnp.float32)
    if content_mask is None:
        content_mask = jnp.zeros((T, T), jnp.float32)
    if content_key_padding_mask is None:
        kpm_bias = jnp.zeros((B, 1, T), jnp.float32)
    else:
        kpm_bias = jnp.where(content_key_padding_mask, NEG_INF, 0.0
                             ).astype(jnp.float32)[:, None, :]

    def rep(shape):                    # constant (weight / mask) block, full shape
        n = len(shape)
        return pl.BlockSpec(shape, lambda b: (0,) * n)

    def seq(t):                        # per-batch sequence block
        return pl.BlockSpec((1, t, D), lambda b: (b, 0, 0))

    attn_specs = [rep((L, nhead, D, dh)), rep((L, nhead, 1, dh)),   # wq, bq
                  rep((L, nhead, D, dh)), rep((L, nhead, 1, dh)),   # wk, bk
                  rep((L, nhead, D, dh)), rep((L, nhead, 1, dh)),   # wv, bv
                  rep((L, nhead, dh, D)), rep((L, 1, D))]           # wo, bo

    in_specs = (
        [seq(T), seq(T), seq(Tm),
         rep((T, T)), rep((T, T)),
         pl.BlockSpec((1, 1, T), lambda b: (b, 0, 0)),              # key-padding bias
         rep((L, 8, D))]                                            # stacked LN params
        + attn_specs + attn_specs
        + [rep((L, D, Dff)), rep((L, 1, Dff)), rep((L, Dff, D)), rep((L, 1, D)),
           rep((2, D))]                                             # final LN
    )

    return pl.pallas_call(
        partial(decoder_stack_kernel, num_layers=L, nhead=nhead, eps=eps),
        out_shape=jax.ShapeDtypeStruct((B, T, D), query.dtype),
        grid=(B,),
        in_specs=in_specs,
        out_specs=seq(T),
        compiler_params=pltpu.CompilerParams(
            dimension_semantics=("parallel",),       # B >= 2 keeps both v7x TCs busy
            vmem_limit_bytes=32 * 1024 * 1024),
    )(query, content, memory,
      query_mask.astype(jnp.float32), content_mask.astype(jnp.float32), kpm_bias,
      params["ln"],
      params["sa_wq"], params["sa_bq"], params["sa_wk"], params["sa_bk"],
      params["sa_wv"], params["sa_bv"], params["sa_wo"], params["sa_bo"],
      params["ca_wq"], params["ca_bq"], params["ca_wk"], params["ca_bk"],
      params["ca_wv"], params["ca_bv"], params["ca_wo"], params["ca_bo"],
      params["w1"], params["b1"], params["w2"], params["b2"],
      params["final_ln"])


# --------------------------- deterministic parameters --------------------------------

def init_torch_style_params(key, num_layers, d_model, dim_ff):
    """Parameters in PyTorch nn.MultiheadAttention / nn.Linear / nn.LayerNorm layout."""
    def dense(k, shape, scale=0.02):
        return scale * jax.random.normal(k, shape, jnp.float32)

    ones = jnp.ones((d_model,), jnp.float32)
    zeros = jnp.zeros((d_model,), jnp.float32)
    layers = []
    for _ in range(num_layers):
        key, *ks = jax.random.split(key, 11)
        layers.append(dict(
            sa_in_w=dense(ks[0], (3 * d_model, d_model)),   # in_proj rows [Wq; Wk; Wv]
            sa_in_b=dense(ks[1], (3 * d_model,)),
            sa_out_w=dense(ks[2], (d_model, d_model)), sa_out_b=zeros,
            ca_in_w=dense(ks[3], (3 * d_model, d_model)),
            ca_in_b=dense(ks[4], (3 * d_model,)),
            ca_out_w=dense(ks[5], (d_model, d_model)), ca_out_b=zeros,
            w1=dense(ks[6], (dim_ff, d_model)), b1=dense(ks[7], (dim_ff,)),
            w2=dense(ks[8], (d_model, dim_ff)), b2=dense(ks[9], (d_model,)),
            normq_g=ones, normq_b=zeros, normc_g=ones, normc_b=zeros,
            norm1_g=ones, norm1_b=zeros, norm2_g=ones, norm2_b=zeros,
        ))
    return dict(layers=layers, final_g=ones, final_b=zeros)


def pack_params(tp, nhead):
    """Repack PyTorch-layout params into the kernel layout: head-split, pre-transposed
    to `x @ W`, stacked over layers; matmul weights cast to MXU_DTYPE (biases/LN f32)."""
    layers = tp["layers"]
    D = layers[0]["sa_out_w"].shape[0]
    dh = D // nhead

    def heads_in(w):      # (D_out, D_in) -> (nhead, D_in, dh)  for q/k/v projections
        return jnp.transpose(w.T.reshape(D, nhead, dh), (1, 0, 2))

    def heads_b(b):       # (D,) -> (nhead, 1, dh)
        return b.reshape(nhead, 1, dh)

    def heads_out(w):     # out_proj (D_out, D_in) -> (nhead, dh, D_out)
        return w.T.reshape(nhead, dh, D)

    def attn_parts(lp, p):
        in_w, in_b = lp[p + "_in_w"], lp[p + "_in_b"]
        return (heads_in(in_w[:D]), heads_b(in_b[:D]),
                heads_in(in_w[D:2 * D]), heads_b(in_b[D:2 * D]),
                heads_in(in_w[2 * D:]), heads_b(in_b[2 * D:]),
                heads_out(lp[p + "_out_w"]), lp[p + "_out_b"].reshape(1, D))

    packed = {}
    names = ("wq", "bq", "wk", "bk", "wv", "bv", "wo", "bo")
    for p in ("sa", "ca"):
        parts = [attn_parts(lp, p) for lp in layers]
        for i, n in enumerate(names):
            arr = jnp.stack([pt[i] for pt in parts], axis=0)
            packed[f"{p}_{n}"] = arr.astype(MXU_DTYPE) if n[0] == "w" else arr

    packed["ln"] = jnp.stack(
        [jnp.stack([lp["normq_g"], lp["normq_b"], lp["normc_g"], lp["normc_b"],
                    lp["norm1_g"], lp["norm1_b"], lp["norm2_g"], lp["norm2_b"]], axis=0)
         for lp in layers], axis=0)
    packed["w1"] = jnp.stack([lp["w1"].T for lp in layers], 0).astype(MXU_DTYPE)
    packed["b1"] = jnp.stack([lp["b1"].reshape(1, -1) for lp in layers], 0)
    packed["w2"] = jnp.stack([lp["w2"].T for lp in layers], 0).astype(MXU_DTYPE)
    packed["b2"] = jnp.stack([lp["b2"].reshape(1, -1) for lp in layers], 0)
    packed["final_ln"] = jnp.stack([tp["final_g"], tp["final_b"]], axis=0)
    return packed


# --------------------------------------- main ---------------------------------------

if __name__ == "__main__":
    B, T, Tm, D, NHEAD, DFF, NLAYERS = 2, 8, 16, 32, 4, 64, 2

    key = jax.random.PRNGKey(0)
    kq, kc, km, kp = jax.random.split(key, 4)
    query = jax.random.normal(kq, (B, T, D), jnp.float32)
    content = jax.random.normal(kc, (B, T, D), jnp.float32)
    memory = jax.random.normal(km, (B, Tm, D), jnp.float32)

    # PARSeq-style float additive attention masks (0 = attend, large-neg = masked)
    causal = jnp.where(jnp.triu(jnp.ones((T, T), jnp.bool_), k=1), NEG_INF, 0.0
                       ).astype(jnp.float32)
    query_mask = causal
    content_mask = causal
    # bool key-padding mask over content positions (True = padded)
    content_kpm = jnp.zeros((B, T), jnp.bool_).at[1, T - 1].set(True)

    torch_params = init_torch_style_params(kp, NLAYERS, D, DFF)
    params = pack_params(torch_params, NHEAD)

    @jax.jit
    def run(params, q, c, m, qm, cm, kpm):
        return decoder_forward(params, q, c, m, qm, cm, kpm, nhead=NHEAD)

    out = run(params, query, content, memory, query_mask, content_mask, content_kpm)
    jax.block_until_ready(out)
    assert out.shape == (B, T, D)
    assert bool(jnp.all(jnp.isfinite(out)))
    print("KERNEL_OK")
</pallas_src>

<mosaic_0001>
module attributes {stable_mosaic.version = 11 : i64} {
  func.func @decoder_stack_kernel(%arg0: i32, %arg1: memref<1x8x32xf32, #tpu.memory_space<vmem>>, %arg2: memref<1x8x32xf32, #tpu.memory_space<vmem>>, %arg3: memref<1x16x32xf32, #tpu.memory_space<vmem>>, %arg4: memref<8x8xf32, #tpu.memory_space<vmem>>, %arg5: memref<8x8xf32, #tpu.memory_space<vmem>>, %arg6: memref<1x1x8xf32, #tpu.memory_space<vmem>>, %arg7: memref<2x8x32xf32, #tpu.memory_space<vmem>>, %arg8: memref<2x4x32x8xbf16, #tpu.memory_space<vmem>>, %arg9: memref<2x4x1x8xf32, #tpu.memory_space<vmem>>, %arg10: memref<2x4x32x8xbf16, #tpu.memory_space<vmem>>, %arg11: memref<2x4x1x8xf32, #tpu.memory_space<vmem>>, %arg12: memref<2x4x32x8xbf16, #tpu.memory_space<vmem>>, %arg13: memref<2x4x1x8xf32, #tpu.memory_space<vmem>>, %arg14: memref<2x4x8x32xbf16, #tpu.memory_space<vmem>>, %arg15: memref<2x1x32xf32, #tpu.memory_space<vmem>>, %arg16: memref<2x4x32x8xbf16, #tpu.memory_space<vmem>>, %arg17: memref<2x4x1x8xf32, #tpu.memory_space<vmem>>, %arg18: memref<2x4x32x8xbf16, #tpu.memory_space<vmem>>, %arg19: memref<2x4x1x8xf32, #tpu.memory_space<vmem>>, %arg20: memref<2x4x32x8xbf16, #tpu.memory_space<vmem>>, %arg21: memref<2x4x1x8xf32, #tpu.memory_space<vmem>>, %arg22: memref<2x4x8x32xbf16, #tpu.memory_space<vmem>>, %arg23: memref<2x1x32xf32, #tpu.memory_space<vmem>>, %arg24: memref<2x32x64xbf16, #tpu.memory_space<vmem>>, %arg25: memref<2x1x64xf32, #tpu.memory_space<vmem>>, %arg26: memref<2x64x32xbf16, #tpu.memory_space<vmem>>, %arg27: memref<2x1x32xf32, #tpu.memory_space<vmem>>, %arg28: memref<2x32xf32, #tpu.memory_space<vmem>>, %arg29: memref<1x8x32xf32, #tpu.memory_space<vmem>>) attributes {dimension_semantics = [#tpu.dimension_semantics<parallel>], iteration_bounds = array<i64: 2>, scalar_prefetch = 0 : i64, scratch_operands = 0 : i64, tpu.core_type = #tpu.core_type<tc>, window_params = [{transform_indices = @transform_0, window_bounds = array<i64: 1, 8, 32>}, {transform_indices = @transform_1, window_bounds = array<i64: 1, 8, 32>}, {transform_indices = @transform_2, window_bounds = array<i64: 1, 16, 32>}, {pipeline_mode = #tpu.pipeline_mode<synchronous>, transform_indices = @transform_3, window_bounds = array<i64: 8, 8>}, {pipeline_mode = #tpu.pipeline_mode<synchronous>, transform_indices = @transform_4, window_bounds = array<i64: 8, 8>}, {transform_indices = @transform_5, window_bounds = array<i64: 1, 1, 8>}, {pipeline_mode = #tpu.pipeline_mode<synchronous>, transform_indices = @transform_6, window_bounds = array<i64: 2, 8, 32>}, {pipeline_mode = #tpu.pipeline_mode<synchronous>, transform_indices = @transform_7, window_bounds = array<i64: 2, 4, 32, 8>}, {pipeline_mode = #tpu.pipeline_mode<synchronous>, transform_indices = @transform_8, window_bounds = array<i64: 2, 4, 1, 8>}, {pipeline_mode = #tpu.pipeline_mode<synchronous>, transform_indices = @transform_9, window_bounds = array<i64: 2, 4, 32, 8>}, {pipeline_mode = #tpu.pipeline_mode<synchronous>, transform_indices = @transform_10, window_bounds = array<i64: 2, 4, 1, 8>}, {pipeline_mode = #tpu.pipeline_mode<synchronous>, transform_indices = @transform_11, window_bounds = array<i64: 2, 4, 32, 8>}, {pipeline_mode = #tpu.pipeline_mode<synchronous>, transform_indices = @transform_12, window_bounds = array<i64: 2, 4, 1, 8>}, {pipeline_mode = #tpu.pipeline_mode<synchronous>, transform_indices = @transform_13, window_bounds = array<i64: 2, 4, 8, 32>}, {pipeline_mode = #tpu.pipeline_mode<synchronous>, transform_indices = @transform_14, window_bounds = array<i64: 2, 1, 32>}, {pipeline_mode = #tpu.pipeline_mode<synchronous>, transform_indices = @transform_15, window_bounds = array<i64: 2, 4, 32, 8>}, {pipeline_mode = #tpu.pipeline_mode<synchronous>, transform_indices = @transform_16, window_bounds = array<i64: 2, 4, 1, 8>}, {pipeline_mode = #tpu.pipeline_mode<synchronous>, transform_indices = @transform_17, window_bounds = array<i64: 2, 4, 32, 8>}, {pipeline_mode = #tpu.pipeline_mode<synchronous>, transform_indices = @transform_18, window_bounds = array<i64: 2, 4, 1, 8>}, {pipeline_mode = #tpu.pipeline_mode<synchronous>, transform_indices = @transform_19, window_bounds = array<i64: 2, 4, 32, 8>}, {pipeline_mode = #tpu.pipeline_mode<synchronous>, transform_indices = @transform_20, window_bounds = array<i64: 2, 4, 1, 8>}, {pipeline_mode = #tpu.pipeline_mode<synchronous>, transform_indices = @transform_21, window_bounds = array<i64: 2, 4, 8, 32>}, {pipeline_mode = #tpu.pipeline_mode<synchronous>, transform_indices = @transform_22, window_bounds = array<i64: 2, 1, 32>}, {pipeline_mode = #tpu.pipeline_mode<synchronous>, transform_indices = @transform_23, window_bounds = array<i64: 2, 32, 64>}, {pipeline_mode = #tpu.pipeline_mode<synchronous>, transform_indices = @transform_24, window_bounds = array<i64: 2, 1, 64>}, {pipeline_mode = #tpu.pipeline_mode<synchronous>, transform_indices = @transform_25, window_bounds = array<i64: 2, 64, 32>}, {pipeline_mode = #tpu.pipeline_mode<synchronous>, transform_indices = @transform_26, window_bounds = array<i64: 2, 1, 32>}, {pipeline_mode = #tpu.pipeline_mode<synchronous>, transform_indices = @transform_27, window_bounds = array<i64: 2, 32>}, {transform_indices = @transform_28, window_bounds = array<i64: 1, 8, 32>}]} {
    %c0 = arith.constant 0 : index
    %c0_0 = arith.constant 0 : index
    %c0_1 = arith.constant 0 : index
    %0 = vector.load %arg6[%c0, %c0_0, %c0_1] : memref<1x1x8xf32, #tpu.memory_space<vmem>>, vector<1x1x8xf32>
    %1 = vector.shape_cast %0 : vector<1x1x8xf32> to vector<1x8xf32>
    %c0_2 = arith.constant 0 : index
    %c0_3 = arith.constant 0 : index
    %2 = vector.load %arg4[%c0_2, %c0_3] : memref<8x8xf32, #tpu.memory_space<vmem>>, vector<8x8xf32>
    %3 = vector.broadcast %1 : vector<1x8xf32> to vector<8x8xf32>
    %4 = arith.addf %2, %3 : vector<8x8xf32>
    %c0_4 = arith.constant 0 : index
    %c0_5 = arith.constant 0 : index
    %5 = vector.load %arg4[%c0_4, %c0_5] : memref<8x8xf32, #tpu.memory_space<vmem>>, vector<8x8xf32>
    %c0_6 = arith.constant 0 : index
    %c0_7 = arith.constant 0 : index
    %6 = vector.load %arg5[%c0_6, %c0_7] : memref<8x8xf32, #tpu.memory_space<vmem>>, vector<8x8xf32>
    %7 = tpu.concatenate %5, %6 in 0 : vector<8x8xf32>, vector<8x8xf32> -> vector<16x8xf32>
    %8 = vector.broadcast %1 : vector<1x8xf32> to vector<16x8xf32>
    %9 = arith.addf %7, %8 : vector<16x8xf32>
    %c0_8 = arith.constant 0 : index
    %c0_9 = arith.constant 0 : index
    %c0_10 = arith.constant 0 : index
    %10 = vector.load %arg3[%c0_8, %c0_9, %c0_10] : memref<1x16x32xf32, #tpu.memory_space<vmem>>, vector<1x16x32xf32>
    %11 = vector.shape_cast %10 : vector<1x16x32xf32> to vector<16x32xf32>
    %c0_11 = arith.constant 0 : index
    %c0_12 = arith.constant 0 : index
    %c0_13 = arith.constant 0 : index
    %12 = vector.load %arg1[%c0_11, %c0_12, %c0_13] : memref<1x8x32xf32, #tpu.memory_space<vmem>>, vector<1x8x32xf32>
    %13 = vector.shape_cast %12 : vector<1x8x32xf32> to vector<8x32xf32>
    %c0_14 = arith.constant 0 : index
    %c0_15 = arith.constant 0 : index
    %c0_16 = arith.constant 0 : index
    %14 = vector.load %arg2[%c0_14, %c0_15, %c0_16] : memref<1x8x32xf32, #tpu.memory_space<vmem>>, vector<1x8x32xf32>
    %15 = vector.shape_cast %14 : vector<1x8x32xf32> to vector<8x32xf32>
    %16 = tpu.concatenate %13, %15 in 0 : vector<8x32xf32>, vector<8x32xf32> -> vector<16x32xf32>
    %c0_17 = arith.constant 0 : index
    %c0_18 = arith.constant 0 : index
    %c0_19 = arith.constant 0 : index
    %17 = vector.load %arg7[%c0_17, %c0_18, %c0_19] : memref<2x8x32xf32, #tpu.memory_space<vmem>>, vector<1x8x32xf32>
    %18 = vector.shape_cast %17 : vector<1x8x32xf32> to vector<8x32xf32>
    %19 = vector.extract_strided_slice %16 {offsets = [0, 0], sizes = [8, 32], strides = [1, 1]} : vector<16x32xf32> to vector<8x32xf32>
    %20 = vector.extract_strided_slice %18 {offsets = [0, 0], sizes = [1, 32], strides = [1, 1]} : vector<8x32xf32> to vector<1x32xf32>
    %21 = vector.extract_strided_slice %18 {offsets = [1, 0], sizes = [1, 32], strides = [1, 1]} : vector<8x32xf32> to vector<1x32xf32>
    %cst = arith.constant dense<0.000000e+00> : vector<8xf32>
    %22 = vector.multi_reduction <add>, %19, %cst [1] : vector<8x32xf32> to vector<8xf32>
    %23 = vector.shape_cast %22 : vector<8xf32> to vector<8x1xf32>
    %cst_20 = arith.constant 3.200000e+01 : f32
    %24 = vector.broadcast %cst_20 : f32 to vector<8x1xf32>
    %25 = arith.divf %23, %24 : vector<8x1xf32>
    %26 = vector.broadcast %25 : vector<8x1xf32> to vector<8x32xf32>
    %27 = arith.subf %19, %26 : vector<8x32xf32>
    %28 = arith.mulf %27, %27 : vector<8x32xf32>
    %cst_21 = arith.constant dense<0.000000e+00> : vector<8xf32>
    %29 = vector.multi_reduction <add>, %28, %cst_21 [1] : vector<8x32xf32> to vector<8xf32>
    %30 = vector.shape_cast %29 : vector<8xf32> to vector<8x1xf32>
    %cst_22 = arith.constant 3.200000e+01 : f32
    %31 = vector.broadcast %cst_22 : f32 to vector<8x1xf32>
    %32 = arith.divf %30, %31 : vector<8x1xf32>
    %cst_23 = arith.constant 9.99999974E-6 : f32
    %33 = vector.broadcast %cst_23 : f32 to vector<8x1xf32>
    %34 = arith.addf %32, %33 : vector<8x1xf32>
    %35 = math.rsqrt %34 : vector<8x1xf32>
    %36 = vector.broadcast %35 : vector<8x1xf32> to vector<8x32xf32>
    %37 = arith.mulf %27, %36 : vector<8x32xf32>
    %38 = vector.broadcast %20 : vector<1x32xf32> to vector<8x32xf32>
    %39 = arith.mulf %37, %38 : vector<8x32xf32>
    %40 = vector.broadcast %21 : vector<1x32xf32> to vector<8x32xf32>
    %41 = arith.addf %39, %40 : vector<8x32xf32>
    %42 = vector.extract_strided_slice %16 {offsets = [8, 0], sizes = [8, 32], strides = [1, 1]} : vector<16x32xf32> to vector<8x32xf32>
    %43 = vector.extract_strided_slice %18 {offsets = [2, 0], sizes = [1, 32], strides = [1, 1]} : vector<8x32xf32> to vector<1x32xf32>
    %44 = vector.extract_strided_slice %18 {offsets = [3, 0], sizes = [1, 32], strides = [1, 1]} : vector<8x32xf32> to vector<1x32xf32>
    %cst_24 = arith.constant dense<0.000000e+00> : vector<8xf32>
    %45 = vector.multi_reduction <add>, %42, %cst_24 [1] : vector<8x32xf32> to vector<8xf32>
    %46 = vector.shape_cast %45 : vector<8xf32> to vector<8x1xf32>
    %cst_25 = arith.constant 3.200000e+01 : f32
    %47 = vector.broadcast %cst_25 : f32 to vector<8x1xf32>
    %48 = arith.divf %46, %47 : vector<8x1xf32>
    %49 = vector.broadcast %48 : vector<8x1xf32> to vector<8x32xf32>
    %50 = arith.subf %42, %49 : vector<8x32xf32>
    %51 = arith.mulf %50, %50 : vector<8x32xf32>
    %cst_26 = arith.constant dense<0.000000e+00> : vector<8xf32>
    %52 = vector.multi_reduction <add>, %51, %cst_26 [1] : vector<8x32xf32> to vector<8xf32>
    %53 = vector.shape_cast %52 : vector<8xf32> to vector<8x1xf32>
    %cst_27 = arith.constant 3.200000e+01 : f32
    %54 = vector.broadcast %cst_27 : f32 to vector<8x1xf32>
    %55 = arith.divf %53, %54 : vector<8x1xf32>
    %cst_28 = arith.constant 9.99999974E-6 : f32
    %56 = vector.broadcast %cst_28 : f32 to vector<8x1xf32>
    %57 = arith.addf %55, %56 : vector<8x1xf32>
    %58 = math.rsqrt %57 : vector<8x1xf32>
    %59 = vector.broadcast %58 : vector<8x1xf32> to vector<8x32xf32>
    %60 = arith.mulf %50, %59 : vector<8x32xf32>
    %61 = vector.broadcast %43 : vector<1x32xf32> to vector<8x32xf32>
    %62 = arith.mulf %60, %61 : vector<8x32xf32>
    %63 = vector.broadcast %44 : vector<1x32xf32> to vector<8x32xf32>
    %64 = arith.addf %62, %63 : vector<8x32xf32>
    %65 = tpu.concatenate %41, %64 in 0 : vector<8x32xf32>, vector<8x32xf32> -> vector<16x32xf32>
    %c0_29 = arith.constant 0 : index
    %c0_30 = arith.constant 0 : index
    %c0_31 = arith.constant 0 : index
    %c0_32 = arith.constant 0 : index
    %66 = vector.load %arg8[%c0_29, %c0_30, %c0_31, %c0_32] : memref<2x4x32x8xbf16, #tpu.memory_space<vmem>>, vector<1x1x32x8xbf16>
    %67 = vector.shape_cast %66 : vector<1x1x32x8xbf16> to vector<32x8xbf16>
    %68 = arith.truncf %65 : vector<16x32xf32> to vector<16x32xbf16>
    %cst_33 = arith.constant dense<0.000000e+00> : vector<16x8xf32>
    %69 = tpu.matmul %68, %67, %cst_33 {dimension_numbers = #tpu.dot_dimension_numbers<[1], [0], [0], [1], [0, 0, 1, 1], [], []>} : vector<16x32xbf16>, vector<32x8xbf16>, vector<16x8xf32> -> vector<16x8xf32>
    %c0_34 = arith.constant 0 : index
    %c0_35 = arith.constant 0 : index
    %c0_36 = arith.constant 0 : index
    %c0_37 = arith.constant 0 : index
    %70 = vector.load %arg9[%c0_34, %c0_35, %c0_36, %c0_37] : memref<2x4x1x8xf32, #tpu.memory_space<vmem>>, vector<1x1x1x8xf32>
    %71 = vector.shape_cast %70 : vector<1x1x1x8xf32> to vector<1x8xf32>
    %72 = vector.broadcast %71 : vector<1x8xf32> to vector<16x8xf32>
    %73 = arith.addf %69, %72 : vector<16x8xf32>
    %c0_38 = arith.constant 0 : index
    %c0_39 = arith.constant 0 : index
    %c0_40 = arith.constant 0 : index
    %c0_41 = arith.constant 0 : index
    %74 = vector.load %arg10[%c0_38, %c0_39, %c0_40, %c0_41] : memref<2x4x32x8xbf16, #tpu.memory_space<vmem>>, vector<1x1x32x8xbf16>
    %75 = vector.shape_cast %74 : vector<1x1x32x8xbf16> to vector<32x8xbf16>
    %76 = arith.truncf %64 : vector<8x32xf32> to vector<8x32xbf16>
    %cst_42 = arith.constant dense<0.000000e+00> : vector<8x8xf32>
    %77 = tpu.matmul %76, %75, %cst_42 {dimension_numbers = #tpu.dot_dimension_numbers<[1], [0], [0], [1], [0, 0, 1, 1], [], []>} : vector<8x32xbf16>, vector<32x8xbf16>, vector<8x8xf32> -> vector<8x8xf32>
    %c0_43 = arith.constant 0 : index
    %c0_44 = arith.constant 0 : index
    %c0_45 = arith.constant 0 : index
    %c0_46 = arith.constant 0 : index
    %78 = vector.load %arg11[%c0_43, %c0_44, %c0_45, %c0_46] : memref<2x4x1x8xf32, #tpu.memory_space<vmem>>, vector<1x1x1x8xf32>
    %79 = vector.shape_cast %78 : vector<1x1x1x8xf32> to vector<1x8xf32>
    %80 = vector.broadcast %79 : vector<1x8xf32> to vector<8x8xf32>
    %81 = arith.addf %77, %80 : vector<8x8xf32>
    %c0_47 = arith.constant 0 : index
    %c0_48 = arith.constant 0 : index
    %c0_49 = arith.constant 0 : index
    %c0_50 = arith.constant 0 : index
    %82 = vector.load %arg12[%c0_47, %c0_48, %c0_49, %c0_50] : memref<2x4x32x8xbf16, #tpu.memory_space<vmem>>, vector<1x1x32x8xbf16>
    %83 = vector.shape_cast %82 : vector<1x1x32x8xbf16> to vector<32x8xbf16>
    %84 = arith.truncf %64 : vector<8x32xf32> to vector<8x32xbf16>
    %cst_51 = arith.constant dense<0.000000e+00> : vector<8x8xf32>
    %85 = tpu.matmul %84, %83, %cst_51 {dimension_numbers = #tpu.dot_dimension_numbers<[1], [0], [0], [1], [0, 0, 1, 1], [], []>} : vector<8x32xbf16>, vector<32x8xbf16>, vector<8x8xf32> -> vector<8x8xf32>
    %c0_52 = arith.constant 0 : index
    %c0_53 = arith.constant 0 : index
    %c0_54 = arith.constant 0 : index
    %c0_55 = arith.constant 0 : index
    %86 = vector.load %arg13[%c0_52, %c0_53, %c0_54, %c0_55] : memref<2x4x1x8xf32, #tpu.memory_space<vmem>>, vector<1x1x1x8xf32>
    %87 = vector.shape_cast %86 : vector<1x1x1x8xf32> to vector<1x8xf32>
    %88 = vector.broadcast %87 : vector<1x8xf32> to vector<8x8xf32>
    %89 = arith.addf %85, %88 : vector<8x8xf32>
    %cst_56 = arith.constant 0.353553385 : f32
    %90 = vector.broadcast %cst_56 : f32 to vector<16x8xf32>
    %91 = arith.mulf %73, %90 : vector<16x8xf32>
    %92 = arith.truncf %91 : vector<16x8xf32> to vector<16x8xbf16>
    %93 = arith.truncf %81 : vector<8x8xf32> to vector<8x8xbf16>
    %cst_57 = arith.constant dense<0.000000e+00> : vector<16x8xf32>
    %94 = tpu.matmul %92, %93, %cst_57 {dimension_numbers = #tpu.dot_dimension_numbers<[1], [1], [0], [0], [0, 0, 1, 0], [], []>} : vector<16x8xbf16>, vector<8x8xbf16>, vector<16x8xf32> -> vector<16x8xf32>
    %95 = arith.addf %94, %9 : vector<16x8xf32>
    %cst_58 = arith.constant dense<0xFF800000> : vector<16xf32>
    %96 = vector.multi_reduction <maximumf>, %95, %cst_58 [1] : vector<16x8xf32> to vector<16xf32>
    %97 = vector.shape_cast %96 : vector<16xf32> to vector<16x1xf32>
    %98 = vector.broadcast %97 : vector<16x1xf32> to vector<16x8xf32>
    %99 = arith.subf %95, %98 : vector<16x8xf32>
    %100 = math.exp %99 : vector<16x8xf32>
    %cst_59 = arith.constant dense<0.000000e+00> : vector<16xf32>
    %101 = vector.multi_reduction <add>, %100, %cst_59 [1] : vector<16x8xf32> to vector<16xf32>
    %102 = vector.shape_cast %101 : vector<16xf32> to vector<16x1xf32>
    %103 = tpu.reciprocal %102 {approx = true} : vector<16x1xf32> -> vector<16x1xf32>
    %104 = vector.broadcast %103 : vector<16x1xf32> to vector<16x8xf32>
    %105 = arith.mulf %100, %104 : vector<16x8xf32>
    %106 = arith.truncf %105 : vector<16x8xf32> to vector<16x8xbf16>
    %107 = arith.truncf %89 : vector<8x8xf32> to vector<8x8xbf16>
    %cst_60 = arith.constant dense<0.000000e+00> : vector<16x8xf32>
    %108 = tpu.matmul %106, %107, %cst_60 {dimension_numbers = #tpu.dot_dimension_numbers<[1], [0], [0], [1], [0, 0, 1, 1], [], []>} : vector<16x8xbf16>, vector<8x8xbf16>, vector<16x8xf32> -> vector<16x8xf32>
    %c0_61 = arith.constant 0 : index
    %c0_62 = arith.constant 0 : index
    %c0_63 = arith.constant 0 : index
    %c0_64 = arith.constant 0 : index
    %109 = vector.load %arg14[%c0_61, %c0_62, %c0_63, %c0_64] : memref<2x4x8x32xbf16, #tpu.memory_space<vmem>>, vector<1x1x8x32xbf16>
    %110 = vector.shape_cast %109 : vector<1x1x8x32xbf16> to vector<8x32xbf16>
    %111 = arith.truncf %108 : vector<16x8xf32> to vector<16x8xbf16>
    %cst_65 = arith.constant dense<0.000000e+00> : vector<16x32xf32>
    %112 = tpu.matmul %111, %110, %cst_65 {dimension_numbers = #tpu.dot_dimension_numbers<[1], [0], [0], [1], [0, 0, 1, 1], [], []>} : vector<16x8xbf16>, vector<8x32xbf16>, vector<16x32xf32> -> vector<16x32xf32>
    %c0_66 = arith.constant 0 : index
    %c1 = arith.constant 1 : index
    %c0_67 = arith.constant 0 : index
    %c0_68 = arith.constant 0 : index
    %113 = vector.load %arg8[%c0_66, %c1, %c0_67, %c0_68] : memref<2x4x32x8xbf16, #tpu.memory_space<vmem>>, vector<1x1x32x8xbf16>
    %114 = vector.shape_cast %113 : vector<1x1x32x8xbf16> to vector<32x8xbf16>
    %115 = arith.truncf %65 : vector<16x32xf32> to vector<16x32xbf16>
    %cst_69 = arith.constant dense<0.000000e+00> : vector<16x8xf32>
    %116 = tpu.matmul %115, %114, %cst_69 {dimension_numbers = #tpu.dot_dimension_numbers<[1], [0], [0], [1], [0, 0, 1, 1], [], []>} : vector<16x32xbf16>, vector<32x8xbf16>, vector<16x8xf32> -> vector<16x8xf32>
    %c0_70 = arith.constant 0 : index
    %c1_71 = arith.constant 1 : index
    %c0_72 = arith.constant 0 : index
    %c0_73 = arith.constant 0 : index
    %117 = vector.load %arg9[%c0_70, %c1_71, %c0_72, %c0_73] : memref<2x4x1x8xf32, #tpu.memory_space<vmem>>, vector<1x1x1x8xf32>
    %118 = vector.shape_cast %117 : vector<1x1x1x8xf32> to vector<1x8xf32>
    %119 = vector.broadcast %118 : vector<1x8xf32> to vector<16x8xf32>
    %120 = arith.addf %116, %119 : vector<16x8xf32>
    %c0_74 = arith.constant 0 : index
    %c1_75 = arith.constant 1 : index
    %c0_76 = arith.constant 0 : index
    %c0_77 = arith.constant 0 : index
    %121 = vector.load %arg10[%c0_74, %c1_75, %c0_76, %c0_77] : memref<2x4x32x8xbf16, #tpu.memory_space<vmem>>, vector<1x1x32x8xbf16>
    %122 = vector.shape_cast %121 : vector<1x1x32x8xbf16> to vector<32x8xbf16>
    %123 = arith.truncf %64 : vector<8x32xf32> to vector<8x32xbf16>
    %cst_78 = arith.constant dense<0.000000e+00> : vector<8x8xf32>
    %124 = tpu.matmul %123, %122, %cst_78 {dimension_numbers = #tpu.dot_dimension_numbers<[1], [0], [0], [1], [0, 0, 1, 1], [], []>} : vector<8x32xbf16>, vector<32x8xbf16>, vector<8x8xf32> -> vector<8x8xf32>
    %c0_79 = arith.constant 0 : index
    %c1_80 = arith.constant 1 : index
    %c0_81 = arith.constant 0 : index
    %c0_82 = arith.constant 0 : index
    %125 = vector.load %arg11[%c0_79, %c1_80, %c0_81, %c0_82] : memref<2x4x1x8xf32, #tpu.memory_space<vmem>>, vector<1x1x1x8xf32>
    %126 = vector.shape_cast %125 : vector<1x1x1x8xf32> to vector<1x8xf32>
    %127 = vector.broadcast %126 : vector<1x8xf32> to vector<8x8xf32>
    %128 = arith.addf %124, %127 : vector<8x8xf32>
    %c0_83 = arith.constant 0 : index
    %c1_84 = arith.constant 1 : index
    %c0_85 = arith.constant 0 : index
    %c0_86 = arith.constant 0 : index
    %129 = vector.load %arg12[%c0_83, %c1_84, %c0_85, %c0_86] : memref<2x4x32x8xbf16, #tpu.memory_space<vmem>>, vector<1x1x32x8xbf16>
    %130 = vector.shape_cast %129 : vector<1x1x32x8xbf16> to vector<32x8xbf16>
    %131 = arith.truncf %64 : vector<8x32xf32> to vector<8x32xbf16>
    %cst_87 = arith.constant dense<0.000000e+00> : vector<8x8xf32>
    %132 = tpu.matmul %131, %130, %cst_87 {dimension_numbers = #tpu.dot_dimension_numbers<[1], [0], [0], [1], [0, 0, 1, 1], [], []>} : vector<8x32xbf16>, vector<32x8xbf16>, vector<8x8xf32> -> vector<8x8xf32>
    %c0_88 = arith.constant 0 : index
    %c1_89 = arith.constant 1 : index
    %c0_90 = arith.constant 0 : index
    %c0_91 = arith.constant 0 : index
    %133 = vector.load %arg13[%c0_88, %c1_89, %c0_90, %c0_91] : memref<2x4x1x8xf32, #tpu.memory_space<vmem>>, vector<1x1x1x8xf32>
    %134 = vector.shape_cast %133 : vector<1x1x1x8xf32> to vector<1x8xf32>
    %135 = vector.broadcast %134 : vector<1x8xf32> to vector<8x8xf32>
    %136 = arith.addf %132, %135 : vector<8x8xf32>
    %cst_92 = arith.constant 0.353553385 : f32
    %137 = vector.broadcast %cst_92 : f32 to vector<16x8xf32>
    %138 = arith.mulf %120, %137 : vector<16x8xf32>
    %139 = arith.truncf %138 : vector<16x8xf32> to vector<16x8xbf16>
    %140 = arith.truncf %128 : vector<8x8xf32> to vector<8x8xbf16>
    %cst_93 = arith.constant dense<0.000000e+00> : vector<16x8xf32>
    %141 = tpu.matmul %139, %140, %cst_93 {dimension_numbers = #tpu.dot_dimension_numbers<[1], [1], [0], [0], [0, 0, 1, 0], [], []>} : vector<16x8xbf16>, vector<8x8xbf16>, vector<16x8xf32> -> vector<16x8xf32>
    %142 = arith.addf %141, %9 : vector<16x8xf32>
    %cst_94 = arith.constant dense<0xFF800000> : vector<16xf32>
    %143 = vector.multi_reduction <maximumf>, %142, %cst_94 [1] : vector<16x8xf32> to vector<16xf32>
    %144 = vector.shape_cast %143 : vector<16xf32> to vector<16x1xf32>
    %145 = vector.broadcast %144 : vector<16x1xf32> to vector<16x8xf32>
    %146 = arith.subf %142, %145 : vector<16x8xf32>
    %147 = math.exp %146 : vector<16x8xf32>
    %cst_95 = arith.constant dense<0.000000e+00> : vector<16xf32>
    %148 = vector.multi_reduction <add>, %147, %cst_95 [1] : vector<16x8xf32> to vector<16xf32>
    %149 = vector.shape_cast %148 : vector<16xf32> to vector<16x1xf32>
    %150 = tpu.reciprocal %149 {approx = true} : vector<16x1xf32> -> vector<16x1xf32>
    %151 = vector.broadcast %150 : vector<16x1xf32> to vector<16x8xf32>
    %152 = arith.mulf %147, %151 : vector<16x8xf32>
    %153 = arith.truncf %152 : vector<16x8xf32> to vector<16x8xbf16>
    %154 = arith.truncf %136 : vector<8x8xf32> to vector<8x8xbf16>
    %cst_96 = arith.constant dense<0.000000e+00> : vector<16x8xf32>
    %155 = tpu.matmul %153, %154, %cst_96 {dimension_numbers = #tpu.dot_dimension_numbers<[1], [0], [0], [1], [0, 0, 1, 1], [], []>} : vector<16x8xbf16>, vector<8x8xbf16>, vector<16x8xf32> -> vector<16x8xf32>
    %c0_97 = arith.constant 0 : index
    %c1_98 = arith.constant 1 : index
    %c0_99 = arith.constant 0 : index
    %c0_100 = arith.constant 0 : index
    %156 = vector.load %arg14[%c0_97, %c1_98, %c0_99, %c0_100] : memref<2x4x8x32xbf16, #tpu.memory_space<vmem>>, vector<1x1x8x32xbf16>
    %157 = vector.shape_cast %156 : vector<1x1x8x32xbf16> to vector<8x32xbf16>
    %158 = arith.truncf %155 : vector<16x8xf32> to vector<16x8xbf16>
    %cst_101 = arith.constant dense<0.000000e+00> : vector<16x32xf32>
    %159 = tpu.matmul %158, %157, %cst_101 {dimension_numbers = #tpu.dot_dimension_numbers<[1], [0], [0], [1], [0, 0, 1, 1], [], []>} : vector<16x8xbf16>, vector<8x32xbf16>, vector<16x32xf32> -> vector<16x32xf32>
    %160 = arith.addf %112, %159 : vector<16x32xf32>
    %c0_102 = arith.constant 0 : index
    %c2 = arith.constant 2 : index
    %c0_103 = arith.constant 0 : index
    %c0_104 = arith.constant 0 : index
    %161 = vector.load %arg8[%c0_102, %c2, %c0_103, %c0_104] : memref<2x4x32x8xbf16, #tpu.memory_space<vmem>>, vector<1x1x32x8xbf16>
    %162 = vector.shape_cast %161 : vector<1x1x32x8xbf16> to vector<32x8xbf16>
    %163 = arith.truncf %65 : vector<16x32xf32> to vector<16x32xbf16>
    %cst_105 = arith.constant dense<0.000000e+00> : vector<16x8xf32>
    %164 = tpu.matmul %163, %162, %cst_105 {dimension_numbers = #tpu.dot_dimension_numbers<[1], [0], [0], [1], [0, 0, 1, 1], [], []>} : vector<16x32xbf16>, vector<32x8xbf16>, vector<16x8xf32> -> vector<16x8xf32>
    %c0_106 = arith.constant 0 : index
    %c2_107 = arith.constant 2 : index
    %c0_108 = arith.constant 0 : index
    %c0_109 = arith.constant 0 : index
    %165 = vector.load %arg9[%c0_106, %c2_107, %c0_108, %c0_109] : memref<2x4x1x8xf32, #tpu.memory_space<vmem>>, vector<1x1x1x8xf32>
    %166 = vector.shape_cast %165 : vector<1x1x1x8xf32> to vector<1x8xf32>
    %167 = vector.broadcast %166 : vector<1x8xf32> to vector<16x8xf32>
    %168 = arith.addf %164, %167 : vector<16x8xf32>
    %c0_110 = arith.constant 0 : index
    %c2_111 = arith.constant 2 : index
    %c0_112 = arith.constant 0 : index
    %c0_113 = arith.constant 0 : index
    %169 = vector.load %arg10[%c0_110, %c2_111, %c0_112, %c0_113] : memref<2x4x32x8xbf16, #tpu.memory_space<vmem>>, vector<1x1x32x8xbf16>
    %170 = vector.shape_cast %169 : vector<1x1x32x8xbf16> to vector<32x8xbf16>
    %171 = arith.truncf %64 : vector<8x32xf32> to vector<8x32xbf16>
    %cst_114 = arith.constant dense<0.000000e+00> : vector<8x8xf32>
    %172 = tpu.matmul %171, %170, %cst_114 {dimension_numbers = #tpu.dot_dimension_numbers<[1], [0], [0], [1], [0, 0, 1, 1], [], []>} : vector<8x32xbf16>, vector<32x8xbf16>, vector<8x8xf32> -> vector<8x8xf32>
    %c0_115 = arith.constant 0 : index
    %c2_116 = arith.constant 2 : index
    %c0_117 = arith.constant 0 : index
    %c0_118 = arith.constant 0 : index
    %173 = vector.load %arg11[%c0_115, %c2_116, %c0_117, %c0_118] : memref<2x4x1x8xf32, #tpu.memory_space<vmem>>, vector<1x1x1x8xf32>
    %174 = vector.shape_cast %173 : vector<1x1x1x8xf32> to vector<1x8xf32>
    %175 = vector.broadcast %174 : vector<1x8xf32> to vector<8x8xf32>
    %176 = arith.addf %172, %175 : vector<8x8xf32>
    %c0_119 = arith.constant 0 : index
    %c2_120 = arith.constant 2 : index
    %c0_121 = arith.constant 0 : index
    %c0_122 = arith.constant 0 : index
    %177 = vector.load %arg12[%c0_119, %c2_120, %c0_121, %c0_122] : memref<2x4x32x8xbf16, #tpu.memory_space<vmem>>, vector<1x1x32x8xbf16>
    %178 = vector.shape_cast %177 : vector<1x1x32x8xbf16> to vector<32x8xbf16>
    %179 = arith.truncf %64 : vector<8x32xf32> to vector<8x32xbf16>
    %cst_123 = arith.constant dense<0.000000e+00> : vector<8x8xf32>
    %180 = tpu.matmul %179, %178, %cst_123 {dimension_numbers = #tpu.dot_dimension_numbers<[1], [0], [0], [1], [0, 0, 1, 1], [], []>} : vector<8x32xbf16>, vector<32x8xbf16>, vector<8x8xf32> -> vector<8x8xf32>
    %c0_124 = arith.constant 0 : index
    %c2_125 = arith.constant 2 : index
    %c0_126 = arith.constant 0 : index
    %c0_127 = arith.constant 0 : index
    %181 = vector.load %arg13[%c0_124, %c2_125, %c0_126, %c0_127] : memref<2x4x1x8xf32, #tpu.memory_space<vmem>>, vector<1x1x1x8xf32>
    %182 = vector.shape_cast %181 : vector<1x1x1x8xf32> to vector<1x8xf32>
    %183 = vector.broadcast %182 : vector<1x8xf32> to vector<8x8xf32>
    %184 = arith.addf %180, %183 : vector<8x8xf32>
    %cst_128 = arith.constant 0.353553385 : f32
    %185 = vector.broadcast %cst_128 : f32 to vector<16x8xf32>
    %186 = arith.mulf %168, %185 : vector<16x8xf32>
    %187 = arith.truncf %186 : vector<16x8xf32> to vector<16x8xbf16>
    %188 = arith.truncf %176 : vector<8x8xf32> to vector<8x8xbf16>
    %cst_129 = arith.constant dense<0.000000e+00> : vector<16x8xf32>
    %189 = tpu.matmul %187, %188, %cst_129 {dimension_numbers = #tpu.dot_dimension_numbers<[1], [1], [0], [0], [0, 0, 1, 0], [], []>} : vector<16x8xbf16>, vector<8x8xbf16>, vector<16x8xf32> -> vector<16x8xf32>
    %190 = arith.addf %189, %9 : vector<16x8xf32>
    %cst_130 = arith.constant dense<0xFF800000> : vector<16xf32>
    %191 = vector.multi_reduction <maximumf>, %190, %cst_130 [1] : vector<16x8xf32> to vector<16xf32>
    %192 = vector.shape_cast %191 : vector<16xf32> to vector<16x1xf32>
    %193 = vector.broadcast %192 : vector<16x1xf32> to vector<16x8xf32>
    %194 = arith.subf %190, %193 : vector<16x8xf32>
    %195 = math.exp %194 : vector<16x8xf32>
    %cst_131 = arith.constant dense<0.000000e+00> : vector<16xf32>
    %196 = vector.multi_reduction <add>, %195, %cst_131 [1] : vector<16x8xf32> to vector<16xf32>
    %197 = vector.shape_cast %196 : vector<16xf32> to vector<16x1xf32>
    %198 = tpu.reciprocal %197 {approx = true} : vector<16x1xf32> -> vector<16x1xf32>
    %199 = vector.broadcast %198 : vector<16x1xf32> to vector<16x8xf32>
    %200 = arith.mulf %195, %199 : vector<16x8xf32>
    %201 = arith.truncf %200 : vector<16x8xf32> to vector<16x8xbf16>
    %202 = arith.truncf %184 : vector<8x8xf32> to vector<8x8xbf16>
    %cst_132 = arith.constant dense<0.000000e+00> : vector<16x8xf32>
    %203 = tpu.matmul %201, %202, %cst_132 {dimension_numbers = #tpu.dot_dimension_numbers<[1], [0], [0], [1], [0, 0, 1, 1], [], []>} : vector<16x8xbf16>, vector<8x8xbf16>, vector<16x8xf32> -> vector<16x8xf32>
    %c0_133 = arith.constant 0 : index
    %c2_134 = arith.constant 2 : index
    %c0_135 = arith.constant 0 : index
    %c0_136 = arith.constant 0 : index
    %204 = vector.load %arg14[%c0_133, %c2_134, %c0_135, %c0_136] : memref<2x4x8x32xbf16, #tpu.memory_space<vmem>>, vector<1x1x8x32xbf16>
    %205 = vector.shape_cast %204 : vector<1x1x8x32xbf16> to vector<8x32xbf16>
    %206 = arith.truncf %203 : vector<16x8xf32> to vector<16x8xbf16>
    %cst_137 = arith.constant dense<0.000000e+00> : vector<16x32xf32>
    %207 = tpu.matmul %206, %205, %cst_137 {dimension_numbers = #tpu.dot_dimension_numbers<[1], [0], [0], [1], [0, 0, 1, 1], [], []>} : vector<16x8xbf16>, vector<8x32xbf16>, vector<16x32xf32> -> vector<16x32xf32>
    %208 = arith.addf %160, %207 : vector<16x32xf32>
    %c0_138 = arith.constant 0 : index
    %c3 = arith.constant 3 : index
    %c0_139 = arith.constant 0 : index
    %c0_140 = arith.constant 0 : index
    %209 = vector.load %arg8[%c0_138, %c3, %c0_139, %c0_140] : memref<2x4x32x8xbf16, #tpu.memory_space<vmem>>, vector<1x1x32x8xbf16>
    %210 = vector.shape_cast %209 : vector<1x1x32x8xbf16> to vector<32x8xbf16>
    %211 = arith.truncf %65 : vector<16x32xf32> to vector<16x32xbf16>
    %cst_141 = arith.constant dense<0.000000e+00> : vector<16x8xf32>
    %212 = tpu.matmul %211, %210, %cst_141 {dimension_numbers = #tpu.dot_dimension_numbers<[1], [0], [0], [1], [0, 0, 1, 1], [], []>} : vector<16x32xbf16>, vector<32x8xbf16>, vector<16x8xf32> -> vector<16x8xf32>
    %c0_142 = arith.constant 0 : index
    %c3_143 = arith.constant 3 : index
    %c0_144 = arith.constant 0 : index
    %c0_145 = arith.constant 0 : index
    %213 = vector.load %arg9[%c0_142, %c3_143, %c0_144, %c0_145] : memref<2x4x1x8xf32, #tpu.memory_space<vmem>>, vector<1x1x1x8xf32>
    %214 = vector.shape_cast %213 : vector<1x1x1x8xf32> to vector<1x8xf32>
    %215 = vector.broadcast %214 : vector<1x8xf32> to vector<16x8xf32>
    %216 = arith.addf %212, %215 : vector<16x8xf32>
    %c0_146 = arith.constant 0 : index
    %c3_147 = arith.constant 3 : index
    %c0_148 = arith.constant 0 : index
    %c0_149 = arith.constant 0 : index
    %217 = vector.load %arg10[%c0_146, %c3_147, %c0_148, %c0_149] : memref<2x4x32x8xbf16, #tpu.memory_space<vmem>>, vector<1x1x32x8xbf16>
    %218 = vector.shape_cast %217 : vector<1x1x32x8xbf16> to vector<32x8xbf16>
    %219 = arith.truncf %64 : vector<8x32xf32> to vector<8x32xbf16>
    %cst_150 = arith.constant dense<0.000000e+00> : vector<8x8xf32>
    %220 = tpu.matmul %219, %218, %cst_150 {dimension_numbers = #tpu.dot_dimension_numbers<[1], [0], [0], [1], [0, 0, 1, 1], [], []>} : vector<8x32xbf16>, vector<32x8xbf16>, vector<8x8xf32> -> vector<8x8xf32>
    %c0_151 = arith.constant 0 : index
    %c3_152 = arith.constant 3 : index
    %c0_153 = arith.constant 0 : index
    %c0_154 = arith.constant 0 : index
    %221 = vector.load %arg11[%c0_151, %c3_152, %c0_153, %c0_154] : memref<2x4x1x8xf32, #tpu.memory_space<vmem>>, vector<1x1x1x8xf32>
    %222 = vector.shape_cast %221 : vector<1x1x1x8xf32> to vector<1x8xf32>
    %223 = vector.broadcast %222 : vector<1x8xf32> to vector<8x8xf32>
    %224 = arith.addf %220, %223 : vector<8x8xf32>
    %c0_155 = arith.constant 0 : index
    %c3_156 = arith.constant 3 : index
    %c0_157 = arith.constant 0 : index
    %c0_158 = arith.constant 0 : index
    %225 = vector.load %arg12[%c0_155, %c3_156, %c0_157, %c0_158] : memref<2x4x32x8xbf16, #tpu.memory_space<vmem>>, vector<1x1x32x8xbf16>
    %226 = vector.shape_cast %225 : vector<1x1x32x8xbf16> to vector<32x8xbf16>
    %227 = arith.truncf %64 : vector<8x32xf32> to vector<8x32xbf16>
    %cst_159 = arith.constant dense<0.000000e+00> : vector<8x8xf32>
    %228 = tpu.matmul %227, %226, %cst_159 {dimension_numbers = #tpu.dot_dimension_numbers<[1], [0], [0], [1], [0, 0, 1, 1], [], []>} : vector<8x32xbf16>, vector<32x8xbf16>, vector<8x8xf32> -> vector<8x8xf32>
    %c0_160 = arith.constant 0 : index
    %c3_161 = arith.constant 3 : index
    %c0_162 = arith.constant 0 : index
    %c0_163 = arith.constant 0 : index
    %229 = vector.load %arg13[%c0_160, %c3_161, %c0_162, %c0_163] : memref<2x4x1x8xf32, #tpu.memory_space<vmem>>, vector<1x1x1x8xf32>
    %230 = vector.shape_cast %229 : vector<1x1x1x8xf32> to vector<1x8xf32>
    %231 = vector.broadcast %230 : vector<1x8xf32> to vector<8x8xf32>
    %232 = arith.addf %228, %231 : vector<8x8xf32>
    %cst_164 = arith.constant 0.353553385 : f32
    %233 = vector.broadcast %cst_164 : f32 to vector<16x8xf32>
    %234 = arith.mulf %216, %233 : vector<16x8xf32>
    %235 = arith.truncf %234 : vector<16x8xf32> to vector<16x8xbf16>
    %236 = arith.truncf %224 : vector<8x8xf32> to vector<8x8xbf16>
    %cst_165 = arith.constant dense<0.000000e+00> : vector<16x8xf32>
    %237 = tpu.matmul %235, %236, %cst_165 {dimension_numbers = #tpu.dot_dimension_numbers<[1], [1], [0], [0], [0, 0, 1, 0], [], []>} : vector<16x8xbf16>, vector<8x8xbf16>, vector<16x8xf32> -> vector<16x8xf32>
    %238 = arith.addf %237, %9 : vector<16x8xf32>
    %cst_166 = arith.constant dense<0xFF800000> : vector<16xf32>
    %239 = vector.multi_reduction <maximumf>, %238, %cst_166 [1] : vector<16x8xf32> to vector<16xf32>
    %240 = vector.shape_cast %239 : vector<16xf32> to vector<16x1xf32>
    %241 = vector.broadcast %240 : vector<16x1xf32> to vector<16x8xf32>
    %242 = arith.subf %238, %241 : vector<16x8xf32>
    %243 = math.exp %242 : vector<16x8xf32>
    %cst_167 = arith.constant dense<0.000000e+00> : vector<16xf32>
    %244 = vector.multi_reduction <add>, %243, %cst_167 [1] : vector<16x8xf32> to vector<16xf32>
    %245 = vector.shape_cast %244 : vector<16xf32> to vector<16x1xf32>
    %246 = tpu.reciprocal %245 {approx = true} : vector<16x1xf32> -> vector<16x1xf32>
    %247 = vector.broadcast %246 : vector<16x1xf32> to vector<16x8xf32>
    %248 = arith.mulf %243, %247 : vector<16x8xf32>
    %249 = arith.truncf %248 : vector<16x8xf32> to vector<16x8xbf16>
    %250 = arith.truncf %232 : vector<8x8xf32> to vector<8x8xbf16>
    %cst_168 = arith.constant dense<0.000000e+00> : vector<16x8xf32>
    %251 = tpu.matmul %249, %250, %cst_168 {dimension_numbers = #tpu.dot_dimension_numbers<[1], [0], [0], [1], [0, 0, 1, 1], [], []>} : vector<16x8xbf16>, vector<8x8xbf16>, vector<16x8xf32> -> vector<16x8xf32>
    %c0_169 = arith.constant 0 : index
    %c3_170 = arith.constant 3 : index
    %c0_171 = arith.constant 0 : index
    %c0_172 = arith.constant 0 : index
    %252 = vector.load %arg14[%c0_169, %c3_170, %c0_171, %c0_172] : memref<2x4x8x32xbf16, #tpu.memory_space<vmem>>, vector<1x1x8x32xbf16>
    %253 = vector.shape_cast %252 : vector<1x1x8x32xbf16> to vector<8x32xbf16>
    %254 = arith.truncf %251 : vector<16x8xf32> to vector<16x8xbf16>
    %cst_173 = arith.constant dense<0.000000e+00> : vector<16x32xf32>
    %255 = tpu.matmul %254, %253, %cst_173 {dimension_numbers = #tpu.dot_dimension_numbers<[1], [0], [0], [1], [0, 0, 1, 1], [], []>} : vector<16x8xbf16>, vector<8x32xbf16>, vector<16x32xf32> -> vector<16x32xf32>
    %256 = arith.addf %208, %255 : vector<16x32xf32>
    %c0_174 = arith.constant 0 : index
    %c0_175 = arith.constant 0 : index
    %c0_176 = arith.constant 0 : index
    %257 = vector.load %arg15[%c0_174, %c0_175, %c0_176] : memref<2x1x32xf32, #tpu.memory_space<vmem>>, vector<1x1x32xf32>
    %258 = vector.shape_cast %257 : vector<1x1x32xf32> to vector<1x32xf32>
    %259 = vector.broadcast %258 : vector<1x32xf32> to vector<16x32xf32>
    %260 = arith.addf %256, %259 : vector<16x32xf32>
    %261 = arith.addf %16, %260 : vector<16x32xf32>
    %262 = vector.extract_strided_slice %18 {offsets = [4, 0], sizes = [1, 32], strides = [1, 1]} : vector<8x32xf32> to vector<1x32xf32>
    %263 = vector.extract_strided_slice %18 {offsets = [5, 0], sizes = [1, 32], strides = [1, 1]} : vector<8x32xf32> to vector<1x32xf32>
    %cst_177 = arith.constant dense<0.000000e+00> : vector<16xf32>
    %264 = vector.multi_reduction <add>, %261, %cst_177 [1] : vector<16x32xf32> to vector<16xf32>
    %265 = vector.shape_cast %264 : vector<16xf32> to vector<16x1xf32>
    %cst_178 = arith.constant 3.200000e+01 : f32
    %266 = vector.broadcast %cst_178 : f32 to vector<16x1xf32>
    %267 = arith.divf %265, %266 : vector<16x1xf32>
    %268 = vector.broadcast %267 : vector<16x1xf32> to vector<16x32xf32>
    %269 = arith.subf %261, %268 : vector<16x32xf32>
    %270 = arith.mulf %269, %269 : vector<16x32xf32>
    %cst_179 = arith.constant dense<0.000000e+00> : vector<16xf32>
    %271 = vector.multi_reduction <add>, %270, %cst_179 [1] : vector<16x32xf32> to vector<16xf32>
    %272 = vector.shape_cast %271 : vector<16xf32> to vector<16x1xf32>
    %cst_180 = arith.constant 3.200000e+01 : f32
    %273 = vector.broadcast %cst_180 : f32 to vector<16x1xf32>
    %274 = arith.divf %272, %273 : vector<16x1xf32>
    %cst_181 = arith.constant 9.99999974E-6 : f32
    %275 = vector.broadcast %cst_181 : f32 to vector<16x1xf32>
    %276 = arith.addf %274, %275 : vector<16x1xf32>
    %277 = math.rsqrt %276 : vector<16x1xf32>
    %278 = vector.broadcast %277 : vector<16x1xf32> to vector<16x32xf32>
    %279 = arith.mulf %269, %278 : vector<16x32xf32>
    %280 = vector.broadcast %262 : vector<1x32xf32> to vector<16x32xf32>
    %281 = arith.mulf %279, %280 : vector<16x32xf32>
    %282 = vector.broadcast %263 : vector<1x32xf32> to vector<16x32xf32>
    %283 = arith.addf %281, %282 : vector<16x32xf32>
    %c0_182 = arith.constant 0 : index
    %c0_183 = arith.constant 0 : index
    %c0_184 = arith.constant 0 : index
    %c0_185 = arith.constant 0 : index
    %284 = vector.load %arg16[%c0_182, %c0_183, %c0_184, %c0_185] : memref<2x4x32x8xbf16, #tpu.memory_space<vmem>>, vector<1x1x32x8xbf16>
    %285 = vector.shape_cast %284 : vector<1x1x32x8xbf16> to vector<32x8xbf16>
    %286 = arith.truncf %283 : vector<16x32xf32> to vector<16x32xbf16>
    %cst_186 = arith.constant dense<0.000000e+00> : vector<16x8xf32>
    %287 = tpu.matmul %286, %285, %cst_186 {dimension_numbers = #tpu.dot_dimension_numbers<[1], [0], [0], [1], [0, 0, 1, 1], [], []>} : vector<16x32xbf16>, vector<32x8xbf16>, vector<16x8xf32> -> vector<16x8xf32>
    %c0_187 = arith.constant 0 : index
    %c0_188 = arith.constant 0 : index
    %c0_189 = arith.constant 0 : index
    %c0_190 = arith.constant 0 : index
    %288 = vector.load %arg17[%c0_187, %c0_188, %c0_189, %c0_190] : memref<2x4x1x8xf32, #tpu.memory_space<vmem>>, vector<1x1x1x8xf32>
    %289 = vector.shape_cast %288 : vector<1x1x1x8xf32> to vector<1x8xf32>
    %290 = vector.broadcast %289 : vector<1x8xf32> to vector<16x8xf32>
    %291 = arith.addf %287, %290 : vector<16x8xf32>
    %c0_191 = arith.constant 0 : index
    %c0_192 = arith.constant 0 : index
    %c0_193 = arith.constant 0 : index
    %c0_194 = arith.constant 0 : index
    %292 = vector.load %arg18[%c0_191, %c0_192, %c0_193, %c0_194] : memref<2x4x32x8xbf16, #tpu.memory_space<vmem>>, vector<1x1x32x8xbf16>
    %293 = vector.shape_cast %292 : vector<1x1x32x8xbf16> to vector<32x8xbf16>
    %294 = arith.truncf %11 : vector<16x32xf32> to vector<16x32xbf16>
    %cst_195 = arith.constant dense<0.000000e+00> : vector<16x8xf32>
    %295 = tpu.matmul %294, %293, %cst_195 {dimension_numbers = #tpu.dot_dimension_numbers<[1], [0], [0], [1], [0, 0, 1, 1], [], []>} : vector<16x32xbf16>, vector<32x8xbf16>, vector<16x8xf32> -> vector<16x8xf32>
    %c0_196 = arith.constant 0 : index
    %c0_197 = arith.constant 0 : index
    %c0_198 = arith.constant 0 : index
    %c0_199 = arith.constant 0 : index
    %296 = vector.load %arg19[%c0_196, %c0_197, %c0_198, %c0_199] : memref<2x4x1x8xf32, #tpu.memory_space<vmem>>, vector<1x1x1x8xf32>
    %297 = vector.shape_cast %296 : vector<1x1x1x8xf32> to vector<1x8xf32>
    %298 = vector.broadcast %297 : vector<1x8xf32> to vector<16x8xf32>
    %299 = arith.addf %295, %298 : vector<16x8xf32>
    %c0_200 = arith.constant 0 : index
    %c0_201 = arith.constant 0 : index
    %c0_202 = arith.constant 0 : index
    %c0_203 = arith.constant 0 : index
    %300 = vector.load %arg20[%c0_200, %c0_201, %c0_202, %c0_203] : memref<2x4x32x8xbf16, #tpu.memory_space<vmem>>, vector<1x1x32x8xbf16>
    %301 = vector.shape_cast %300 : vector<1x1x32x8xbf16> to vector<32x8xbf16>
    %302 = arith.truncf %11 : vector<16x32xf32> to vector<16x32xbf16>
    %cst_204 = arith.constant dense<0.000000e+00> : vector<16x8xf32>
    %303 = tpu.matmul %302, %301, %cst_204 {dimension_numbers = #tpu.dot_dimension_numbers<[1], [0], [0], [1], [0, 0, 1, 1], [], []>} : vector<16x32xbf16>, vector<32x8xbf16>, vector<16x8xf32> -> vector<16x8xf32>
    %c0_205 = arith.constant 0 : index
    %c0_206 = arith.constant 0 : index
    %c0_207 = arith.constant 0 : index
    %c0_208 = arith.constant 0 : index
    %304 = vector.load %arg21[%c0_205, %c0_206, %c0_207, %c0_208] : memref<2x4x1x8xf32, #tpu.memory_space<vmem>>, vector<1x1x1x8xf32>
    %305 = vector.shape_cast %304 : vector<1x1x1x8xf32> to vector<1x8xf32>
    %306 = vector.broadcast %305 : vector<1x8xf32> to vector<16x8xf32>
    %307 = arith.addf %303, %306 : vector<16x8xf32>
    %cst_209 = arith.constant 0.353553385 : f32
    %308 = vector.broadcast %cst_209 : f32 to vector<16x8xf32>
    %309 = arith.mulf %291, %308 : vector<16x8xf32>
    %310 = arith.truncf %309 : vector<16x8xf32> to vector<16x8xbf16>
    %311 = arith.truncf %299 : vector<16x8xf32> to vector<16x8xbf16>
    %cst_210 = arith.constant dense<0.000000e+00> : vector<16x16xf32>
    %312 = tpu.matmul %310, %311, %cst_210 {dimension_numbers = #tpu.dot_dimension_numbers<[1], [1], [0], [0], [0, 0, 1, 0], [], []>} : vector<16x8xbf16>, vector<16x8xbf16>, vector<16x16xf32> -> vector<16x16xf32>
    %cst_211 = arith.constant dense<0xFF800000> : vector<16xf32>
    %313 = vector.multi_reduction <maximumf>, %312, %cst_211 [1] : vector<16x16xf32> to vector<16xf32>
    %314 = vector.shape_cast %313 : vector<16xf32> to vector<16x1xf32>
    %315 = vector.broadcast %314 : vector<16x1xf32> to vector<16x16xf32>
    %316 = arith.subf %312, %315 : vector<16x16xf32>
    %317 = math.exp %316 : vector<16x16xf32>
    %cst_212 = arith.constant dense<0.000000e+00> : vector<16xf32>
    %318 = vector.multi_reduction <add>, %317, %cst_212 [1] : vector<16x16xf32> to vector<16xf32>
    %319 = vector.shape_cast %318 : vector<16xf32> to vector<16x1xf32>
    %320 = tpu.reciprocal %319 {approx = true} : vector<16x1xf32> -> vector<16x1xf32>
    %321 = vector.broadcast %320 : vector<16x1xf32> to vector<16x16xf32>
    %322 = arith.mulf %317, %321 : vector<16x16xf32>
    %323 = arith.truncf %322 : vector<16x16xf32> to vector<16x16xbf16>
    %324 = arith.truncf %307 : vector<16x8xf32> to vector<16x8xbf16>
    %cst_213 = arith.constant dense<0.000000e+00> : vector<16x8xf32>
    %325 = tpu.matmul %323, %324, %cst_213 {dimension_numbers = #tpu.dot_dimension_numbers<[1], [0], [0], [1], [0, 0, 1, 1], [], []>} : vector<16x16xbf16>, vector<16x8xbf16>, vector<16x8xf32> -> vector<16x8xf32>
    %c0_214 = arith.constant 0 : index
    %c0_215 = arith.constant 0 : index
    %c0_216 = arith.constant 0 : index
    %c0_217 = arith.constant 0 : index
    %326 = vector.load %arg22[%c0_214, %c0_215, %c0_216, %c0_217] : memref<2x4x8x32xbf16, #tpu.memory_space<vmem>>, vector<1x1x8x32xbf16>
    %327 = vector.shape_cast %326 : vector<1x1x8x32xbf16> to vector<8x32xbf16>
    %328 = arith.truncf %325 : vector<16x8xf32> to vector<16x8xbf16>
    %cst_218 = arith.constant dense<0.000000e+00> : vector<16x32xf32>
    %329 = tpu.matmul %328, %327, %cst_218 {dimension_numbers = #tpu.dot_dimension_numbers<[1], [0], [0], [1], [0, 0, 1, 1], [], []>} : vector<16x8xbf16>, vector<8x32xbf16>, vector<16x32xf32> -> vector<16x32xf32>
    %c0_219 = arith.constant 0 : index
    %c1_220 = arith.constant 1 : index
    %c0_221 = arith.constant 0 : index
    %c0_222 = arith.constant 0 : index
    %330 = vector.load %arg16[%c0_219, %c1_220, %c0_221, %c0_222] : memref<2x4x32x8xbf16, #tpu.memory_space<vmem>>, vector<1x1x32x8xbf16>
    %331 = vector.shape_cast %330 : vector<1x1x32x8xbf16> to vector<32x8xbf16>
    %332 = arith.truncf %283 : vector<16x32xf32> to vector<16x32xbf16>
    %cst_223 = arith.constant dense<0.000000e+00> : vector<16x8xf32>
    %333 = tpu.matmul %332, %331, %cst_223 {dimension_numbers = #tpu.dot_dimension_numbers<[1], [0], [0], [1], [0, 0, 1, 1], [], []>} : vector<16x32xbf16>, vector<32x8xbf16>, vector<16x8xf32> -> vector<16x8xf32>
    %c0_224 = arith.constant 0 : index
    %c1_225 = arith.constant 1 : index
    %c0_226 = arith.constant 0 : index
    %c0_227 = arith.constant 0 : index
    %334 = vector.load %arg17[%c0_224, %c1_225, %c0_226, %c0_227] : memref<2x4x1x8xf32, #tpu.memory_space<vmem>>, vector<1x1x1x8xf32>
    %335 = vector.shape_cast %334 : vector<1x1x1x8xf32> to vector<1x8xf32>
    %336 = vector.broadcast %335 : vector<1x8xf32> to vector<16x8xf32>
    %337 = arith.addf %333, %336 : vector<16x8xf32>
    %c0_228 = arith.constant 0 : index
    %c1_229 = arith.constant 1 : index
    %c0_230 = arith.constant 0 : index
    %c0_231 = arith.constant 0 : index
    %338 = vector.load %arg18[%c0_228, %c1_229, %c0_230, %c0_231] : memref<2x4x32x8xbf16, #tpu.memory_space<vmem>>, vector<1x1x32x8xbf16>
    %339 = vector.shape_cast %338 : vector<1x1x32x8xbf16> to vector<32x8xbf16>
    %340 = arith.truncf %11 : vector<16x32xf32> to vector<16x32xbf16>
    %cst_232 = arith.constant dense<0.000000e+00> : vector<16x8xf32>
    %341 = tpu.matmul %340, %339, %cst_232 {dimension_numbers = #tpu.dot_dimension_numbers<[1], [0], [0], [1], [0, 0, 1, 1], [], []>} : vector<16x32xbf16>, vector<32x8xbf16>, vector<16x8xf32> -> vector<16x8xf32>
    %c0_233 = arith.constant 0 : index
    %c1_234 = arith.constant 1 : index
    %c0_235 = arith.constant 0 : index
    %c0_236 = arith.constant 0 : index
    %342 = vector.load %arg19[%c0_233, %c1_234, %c0_235, %c0_236] : memref<2x4x1x8xf32, #tpu.memory_space<vmem>>, vector<1x1x1x8xf32>
    %343 = vector.shape_cast %342 : vector<1x1x1x8xf32> to vector<1x8xf32>
    %344 = vector.broadcast %343 : vector<1x8xf32> to vector<16x8xf32>
    %345 = arith.addf %341, %344 : vector<16x8xf32>
    %c0_237 = arith.constant 0 : index
    %c1_238 = arith.constant 1 : index
    %c0_239 = arith.constant 0 : index
    %c0_240 = arith.constant 0 : index
    %346 = vector.load %arg20[%c0_237, %c1_238, %c0_239, %c0_240] : memref<2x4x32x8xbf16, #tpu.memory_space<vmem>>, vector<1x1x32x8xbf16>
    %347 = vector.shape_cast %346 : vector<1x1x32x8xbf16> to vector<32x8xbf16>
    %348 = arith.truncf %11 : vector<16x32xf32> to vector<16x32xbf16>
    %cst_241 = arith.constant dense<0.000000e+00> : vector<16x8xf32>
    %349 = tpu.matmul %348, %347, %cst_241 {dimension_numbers = #tpu.dot_dimension_numbers<[1], [0], [0], [1], [0, 0, 1, 1], [], []>} : vector<16x32xbf16>, vector<32x8xbf16>, vector<16x8xf32> -> vector<16x8xf32>
    %c0_242 = arith.constant 0 : index
    %c1_243 = arith.constant 1 : index
    %c0_244 = arith.constant 0 : index
    %c0_245 = arith.constant 0 : index
    %350 = vector.load %arg21[%c0_242, %c1_243, %c0_244, %c0_245] : memref<2x4x1x8xf32, #tpu.memory_space<vmem>>, vector<1x1x1x8xf32>
    %351 = vector.shape_cast %350 : vector<1x1x1x8xf32> to vector<1x8xf32>
    %352 = vector.broadcast %351 : vector<1x8xf32> to vector<16x8xf32>
    %353 = arith.addf %349, %352 : vector<16x8xf32>
    %cst_246 = arith.constant 0.353553385 : f32
    %354 = vector.broadcast %cst_246 : f32 to vector<16x8xf32>
    %355 = arith.mulf %337, %354 : vector<16x8xf32>
    %356 = arith.truncf %355 : vector<16x8xf32> to vector<16x8xbf16>
    %357 = arith.truncf %345 : vector<16x8xf32> to vector<16x8xbf16>
    %cst_247 = arith.constant dense<0.000000e+00> : vector<16x16xf32>
    %358 = tpu.matmul %356, %357, %cst_247 {dimension_numbers = #tpu.dot_dimension_numbers<[1], [1], [0], [0], [0, 0, 1, 0], [], []>} : vector<16x8xbf16>, vector<16x8xbf16>, vector<16x16xf32> -> vector<16x16xf32>
    %cst_248 = arith.constant dense<0xFF800000> : vector<16xf32>
    %359 = vector.multi_reduction <maximumf>, %358, %cst_248 [1] : vector<16x16xf32> to vector<16xf32>
    %360 = vector.shape_cast %359 : vector<16xf32> to vector<16x1xf32>
    %361 = vector.broadcast %360 : vector<16x1xf32> to vector<16x16xf32>
    %362 = arith.subf %358, %361 : vector<16x16xf32>
    %363 = math.exp %362 : vector<16x16xf32>
    %cst_249 = arith.constant dense<0.000000e+00> : vector<16xf32>
    %364 = vector.multi_reduction <add>, %363, %cst_249 [1] : vector<16x16xf32> to vector<16xf32>
    %365 = vector.shape_cast %364 : vector<16xf32> to vector<16x1xf32>
    %366 = tpu.reciprocal %365 {approx = true} : vector<16x1xf32> -> vector<16x1xf32>
    %367 = vector.broadcast %366 : vector<16x1xf32> to vector<16x16xf32>
    %368 = arith.mulf %363, %367 : vector<16x16xf32>
    %369 = arith.truncf %368 : vector<16x16xf32> to vector<16x16xbf16>
    %370 = arith.truncf %353 : vector<16x8xf32> to vector<16x8xbf16>
    %cst_250 = arith.constant dense<0.000000e+00> : vector<16x8xf32>
    %371 = tpu.matmul %369, %370, %cst_250 {dimension_numbers = #tpu.dot_dimension_numbers<[1], [0], [0], [1], [0, 0, 1, 1], [], []>} : vector<16x16xbf16>, vector<16x8xbf16>, vector<16x8xf32> -> vector<16x8xf32>
    %c0_251 = arith.constant 0 : index
    %c1_252 = arith.constant 1 : index
    %c0_253 = arith.constant 0 : index
    %c0_254 = arith.constant 0 : index
    %372 = vector.load %arg22[%c0_251, %c1_252, %c0_253, %c0_254] : memref<2x4x8x32xbf16, #tpu.memory_space<vmem>>, vector<1x1x8x32xbf16>
    %373 = vector.shape_cast %372 : vector<1x1x8x32xbf16> to vector<8x32xbf16>
    %374 = arith.truncf %371 : vector<16x8xf32> to vector<16x8xbf16>
    %cst_255 = arith.constant dense<0.000000e+00> : vector<16x32xf32>
    %375 = tpu.matmul %374, %373, %cst_255 {dimension_numbers = #tpu.dot_dimension_numbers<[1], [0], [0], [1], [0, 0, 1, 1], [], []>} : vector<16x8xbf16>, vector<8x32xbf16>, vector<16x32xf32> -> vector<16x32xf32>
    %376 = arith.addf %329, %375 : vector<16x32xf32>
    %c0_256 = arith.constant 0 : index
    %c2_257 = arith.constant 2 : index
    %c0_258 = arith.constant 0 : index
    %c0_259 = arith.constant 0 : index
    %377 = vector.load %arg16[%c0_256, %c2_257, %c0_258, %c0_259] : memref<2x4x32x8xbf16, #tpu.memory_space<vmem>>, vector<1x1x32x8xbf16>
    %378 = vector.shape_cast %377 : vector<1x1x32x8xbf16> to vector<32x8xbf16>
    %379 = arith.truncf %283 : vector<16x32xf32> to vector<16x32xbf16>
    %cst_260 = arith.constant dense<0.000000e+00> : vector<16x8xf32>
    %380 = tpu.matmul %379, %378, %cst_260 {dimension_numbers = #tpu.dot_dimension_numbers<[1], [0], [0], [1], [0, 0, 1, 1], [], []>} : vector<16x32xbf16>, vector<32x8xbf16>, vector<16x8xf32> -> vector<16x8xf32>
    %c0_261 = arith.constant 0 : index
    %c2_262 = arith.constant 2 : index
    %c0_263 = arith.constant 0 : index
    %c0_264 = arith.constant 0 : index
    %381 = vector.load %arg17[%c0_261, %c2_262, %c0_263, %c0_264] : memref<2x4x1x8xf32, #tpu.memory_space<vmem>>, vector<1x1x1x8xf32>
    %382 = vector.shape_cast %381 : vector<1x1x1x8xf32> to vector<1x8xf32>
    %383 = vector.broadcast %382 : vector<1x8xf32> to vector<16x8xf32>
    %384 = arith.addf %380, %383 : vector<16x8xf32>
    %c0_265 = arith.constant 0 : index
    %c2_266 = arith.constant 2 : index
    %c0_267 = arith.constant 0 : index
    %c0_268 = arith.constant 0 : index
    %385 = vector.load %arg18[%c0_265, %c2_266, %c0_267, %c0_268] : memref<2x4x32x8xbf16, #tpu.memory_space<vmem>>, vector<1x1x32x8xbf16>
    %386 = vector.shape_cast %385 : vector<1x1x32x8xbf16> to vector<32x8xbf16>
    %387 = arith.truncf %11 : vector<16x32xf32> to vector<16x32xbf16>
    %cst_269 = arith.constant dense<0.000000e+00> : vector<16x8xf32>
    %388 = tpu.matmul %387, %386, %cst_269 {dimension_numbers = #tpu.dot_dimension_numbers<[1], [0], [0], [1], [0, 0, 1, 1], [], []>} : vector<16x32xbf16>, vector<32x8xbf16>, vector<16x8xf32> -> vector<16x8xf32>
    %c0_270 = arith.constant 0 : index
    %c2_271 = arith.constant 2 : index
    %c0_272 = arith.constant 0 : index
    %c0_273 = arith.constant 0 : index
    %389 = vector.load %arg19[%c0_270, %c2_271, %c0_272, %c0_273] : memref<2x4x1x8xf32, #tpu.memory_space<vmem>>, vector<1x1x1x8xf32>
    %390 = vector.shape_cast %389 : vector<1x1x1x8xf32> to vector<1x8xf32>
    %391 = vector.broadcast %390 : vector<1x8xf32> to vector<16x8xf32>
    %392 = arith.addf %388, %391 : vector<16x8xf32>
    %c0_274 = arith.constant 0 : index
    %c2_275 = arith.constant 2 : index
    %c0_276 = arith.constant 0 : index
    %c0_277 = arith.constant 0 : index
    %393 = vector.load %arg20[%c0_274, %c2_275, %c0_276, %c0_277] : memref<2x4x32x8xbf16, #tpu.memory_space<vmem>>, vector<1x1x32x8xbf16>
    %394 = vector.shape_cast %393 : vector<1x1x32x8xbf16> to vector<32x8xbf16>
    %395 = arith.truncf %11 : vector<16x32xf32> to vector<16x32xbf16>
    %cst_278 = arith.constant dense<0.000000e+00> : vector<16x8xf32>
    %396 = tpu.matmul %395, %394, %cst_278 {dimension_numbers = #tpu.dot_dimension_numbers<[1], [0], [0], [1], [0, 0, 1, 1], [], []>} : vector<16x32xbf16>, vector<32x8xbf16>, vector<16x8xf32> -> vector<16x8xf32>
    %c0_279 = arith.constant 0 : index
    %c2_280 = arith.constant 2 : index
    %c0_281 = arith.constant 0 : index
    %c0_282 = arith.constant 0 : index
    %397 = vector.load %arg21[%c0_279, %c2_280, %c0_281, %c0_282] : memref<2x4x1x8xf32, #tpu.memory_space<vmem>>, vector<1x1x1x8xf32>
    %398 = vector.shape_cast %397 : vector<1x1x1x8xf32> to vector<1x8xf32>
    %399 = vector.broadcast %398 : vector<1x8xf32> to vector<16x8xf32>
    %400 = arith.addf %396, %399 : vector<16x8xf32>
    %cst_283 = arith.constant 0.353553385 : f32
    %401 = vector.broadcast %cst_283 : f32 to vector<16x8xf32>
    %402 = arith.mulf %384, %401 : vector<16x8xf32>
    %403 = arith.truncf %402 : vector<16x8xf32> to vector<16x8xbf16>
    %404 = arith.truncf %392 : vector<16x8xf32> to vector<16x8xbf16>
    %cst_284 = arith.constant dense<0.000000e+00> : vector<16x16xf32>
    %405 = tpu.matmul %403, %404, %cst_284 {dimension_numbers = #tpu.dot_dimension_numbers<[1], [1], [0], [0], [0, 0, 1, 0], [], []>} : vector<16x8xbf16>, vector<16x8xbf16>, vector<16x16xf32> -> vector<16x16xf32>
    %cst_285 = arith.constant dense<0xFF800000> : vector<16xf32>
    %406 = vector.multi_reduction <maximumf>, %405, %cst_285 [1] : vector<16x16xf32> to vector<16xf32>
    %407 = vector.shape_cast %406 : vector<16xf32> to vector<16x1xf32>
    %408 = vector.broadcast %407 : vector<16x1xf32> to vector<16x16xf32>
    %409 = arith.subf %405, %408 : vector<16x16xf32>
    %410 = math.exp %409 : vector<16x16xf32>
    %cst_286 = arith.constant dense<0.000000e+00> : vector<16xf32>
    %411 = vector.multi_reduction <add>, %410, %cst_286 [1] : vector<16x16xf32> to vector<16xf32>
    %412 = vector.shape_cast %411 : vector<16xf32> to vector<16x1xf32>
    %413 = tpu.reciprocal %412 {approx = true} : vector<16x1xf32> -> vector<16x1xf32>
    %414 = vector.broadcast %413 : vector<16x1xf32> to vector<16x16xf32>
    %415 = arith.mulf %410, %414 : vector<16x16xf32>
    %416 = arith.truncf %415 : vector<16x16xf32> to vector<16x16xbf16>
    %417 = arith.truncf %400 : vector<16x8xf32> to vector<16x8xbf16>
    %cst_287 = arith.constant dense<0.000000e+00> : vector<16x8xf32>
    %418 = tpu.matmul %416, %417, %cst_287 {dimension_numbers = #tpu.dot_dimension_numbers<[1], [0], [0], [1], [0, 0, 1, 1], [], []>} : vector<16x16xbf16>, vector<16x8xbf16>, vector<16x8xf32> -> vector<16x8xf32>
    %c0_288 = arith.constant 0 : index
    %c2_289 = arith.constant 2 : index
    %c0_290 = arith.constant 0 : index
    %c0_291 = arith.constant 0 : index
    %419 = vector.load %arg22[%c0_288, %c2_289, %c0_290, %c0_291] : memref<2x4x8x32xbf16, #tpu.memory_space<vmem>>, vector<1x1x8x32xbf16>
    %420 = vector.shape_cast %419 : vector<1x1x8x32xbf16> to vector<8x32xbf16>
    %421 = arith.truncf %418 : vector<16x8xf32> to vector<16x8xbf16>
    %cst_292 = arith.constant dense<0.000000e+00> : vector<16x32xf32>
    %422 = tpu.matmul %421, %420, %cst_292 {dimension_numbers = #tpu.dot_dimension_numbers<[1], [0], [0], [1], [0, 0, 1, 1], [], []>} : vector<16x8xbf16>, vector<8x32xbf16>, vector<16x32xf32> -> vector<16x32xf32>
    %423 = arith.addf %376, %422 : vector<16x32xf32>
    %c0_293 = arith.constant 0 : index
    %c3_294 = arith.constant 3 : index
    %c0_295 = arith.constant 0 : index
    %c0_296 = arith.constant 0 : index
    %424 = vector.load %arg16[%c0_293, %c3_294, %c0_295, %c0_296] : memref<2x4x32x8xbf16, #tpu.memory_space<vmem>>, vector<1x1x32x8xbf16>
    %425 = vector.shape_cast %424 : vector<1x1x32x8xbf16> to vector<32x8xbf16>
    %426 = arith.truncf %283 : vector<16x32xf32> to vector<16x32xbf16>
    %cst_297 = arith.constant dense<0.000000e+00> : vector<16x8xf32>
    %427 = tpu.matmul %426, %425, %cst_297 {dimension_numbers = #tpu.dot_dimension_numbers<[1], [0], [0], [1], [0, 0, 1, 1], [], []>} : vector<16x32xbf16>, vector<32x8xbf16>, vector<16x8xf32> -> vector<16x8xf32>
    %c0_298 = arith.constant 0 : index
    %c3_299 = arith.constant 3 : index
    %c0_300 = arith.constant 0 : index
    %c0_301 = arith.constant 0 : index
    %428 = vector.load %arg17[%c0_298, %c3_299, %c0_300, %c0_301] : memref<2x4x1x8xf32, #tpu.memory_space<vmem>>, vector<1x1x1x8xf32>
    %429 = vector.shape_cast %428 : vector<1x1x1x8xf32> to vector<1x8xf32>
    %430 = vector.broadcast %429 : vector<1x8xf32> to vector<16x8xf32>
    %431 = arith.addf %427, %430 : vector<16x8xf32>
    %c0_302 = arith.constant 0 : index
    %c3_303 = arith.constant 3 : index
    %c0_304 = arith.constant 0 : index
    %c0_305 = arith.constant 0 : index
    %432 = vector.load %arg18[%c0_302, %c3_303, %c0_304, %c0_305] : memref<2x4x32x8xbf16, #tpu.memory_space<vmem>>, vector<1x1x32x8xbf16>
    %433 = vector.shape_cast %432 : vector<1x1x32x8xbf16> to vector<32x8xbf16>
    %434 = arith.truncf %11 : vector<16x32xf32> to vector<16x32xbf16>
    %cst_306 = arith.constant dense<0.000000e+00> : vector<16x8xf32>
    %435 = tpu.matmul %434, %433, %cst_306 {dimension_numbers = #tpu.dot_dimension_numbers<[1], [0], [0], [1], [0, 0, 1, 1], [], []>} : vector<16x32xbf16>, vector<32x8xbf16>, vector<16x8xf32> -> vector<16x8xf32>
    %c0_307 = arith.constant 0 : index
    %c3_308 = arith.constant 3 : index
    %c0_309 = arith.constant 0 : index
    %c0_310 = arith.constant 0 : index
    %436 = vector.load %arg19[%c0_307, %c3_308, %c0_309, %c0_310] : memref<2x4x1x8xf32, #tpu.memory_space<vmem>>, vector<1x1x1x8xf32>
    %437 = vector.shape_cast %436 : vector<1x1x1x8xf32> to vector<1x8xf32>
    %438 = vector.broadcast %437 : vector<1x8xf32> to vector<16x8xf32>
    %439 = arith.addf %435, %438 : vector<16x8xf32>
    %c0_311 = arith.constant 0 : index
    %c3_312 = arith.constant 3 : index
    %c0_313 = arith.constant 0 : index
    %c0_314 = arith.constant 0 : index
    %440 = vector.load %arg20[%c0_311, %c3_312, %c0_313, %c0_314] : memref<2x4x32x8xbf16, #tpu.memory_space<vmem>>, vector<1x1x32x8xbf16>
    %441 = vector.shape_cast %440 : vector<1x1x32x8xbf16> to vector<32x8xbf16>
    %442 = arith.truncf %11 : vector<16x32xf32> to vector<16x32xbf16>
    %cst_315 = arith.constant dense<0.000000e+00> : vector<16x8xf32>
    %443 = tpu.matmul %442, %441, %cst_315 {dimension_numbers = #tpu.dot_dimension_numbers<[1], [0], [0], [1], [0, 0, 1, 1], [], []>} : vector<16x32xbf16>, vector<32x8xbf16>, vector<16x8xf32> -> vector<16x8xf32>
    %c0_316 = arith.constant 0 : index
    %c3_317 = arith.constant 3 : index
    %c0_318 = arith.constant 0 : index
    %c0_319 = arith.constant 0 : index
    %444 = vector.load %arg21[%c0_316, %c3_317, %c0_318, %c0_319] : memref<2x4x1x8xf32, #tpu.memory_space<vmem>>, vector<1x1x1x8xf32>
    %445 = vector.shape_cast %444 : vector<1x1x1x8xf32> to vector<1x8xf32>
    %446 = vector.broadcast %445 : vector<1x8xf32> to vector<16x8xf32>
    %447 = arith.addf %443, %446 : vector<16x8xf32>
    %cst_320 = arith.constant 0.353553385 : f32
    %448 = vector.broadcast %cst_320 : f32 to vector<16x8xf32>
    %449 = arith.mulf %431, %448 : vector<16x8xf32>
    %450 = arith.truncf %449 : vector<16x8xf32> to vector<16x8xbf16>
    %451 = arith.truncf %439 : vector<16x8xf32> to vector<16x8xbf16>
    %cst_321 = arith.constant dense<0.000000e+00> : vector<16x16xf32>
    %452 = tpu.matmul %450, %451, %cst_321 {dimension_numbers = #tpu.dot_dimension_numbers<[1], [1], [0], [0], [0, 0, 1, 0], [], []>} : vector<16x8xbf16>, vector<16x8xbf16>, vector<16x16xf32> -> vector<16x16xf32>
    %cst_322 = arith.constant dense<0xFF800000> : vector<16xf32>
    %453 = vector.multi_reduction <maximumf>, %452, %cst_322 [1] : vector<16x16xf32> to vector<16xf32>
    %454 = vector.shape_cast %453 : vector<16xf32> to vector<16x1xf32>
    %455 = vector.broadcast %454 : vector<16x1xf32> to vector<16x16xf32>
    %456 = arith.subf %452, %455 : vector<16x16xf32>
    %457 = math.exp %456 : vector<16x16xf32>
    %cst_323 = arith.constant dense<0.000000e+00> : vector<16xf32>
    %458 = vector.multi_reduction <add>, %457, %cst_323 [1] : vector<16x16xf32> to vector<16xf32>
    %459 = vector.shape_cast %458 : vector<16xf32> to vector<16x1xf32>
    %460 = tpu.reciprocal %459 {approx = true} : vector<16x1xf32> -> vector<16x1xf32>
    %461 = vector.broadcast %460 : vector<16x1xf32> to vector<16x16xf32>
    %462 = arith.mulf %457, %461 : vector<16x16xf32>
    %463 = arith.truncf %462 : vector<16x16xf32> to vector<16x16xbf16>
    %464 = arith.truncf %447 : vector<16x8xf32> to vector<16x8xbf16>
    %cst_324 = arith.constant dense<0.000000e+00> : vector<16x8xf32>
    %465 = tpu.matmul %463, %464, %cst_324 {dimension_numbers = #tpu.dot_dimension_numbers<[1], [0], [0], [1], [0, 0, 1, 1], [], []>} : vector<16x16xbf16>, vector<16x8xbf16>, vector<16x8xf32> -> vector<16x8xf32>
    %c0_325 = arith.constant 0 : index
    %c3_326 = arith.constant 3 : index
    %c0_327 = arith.constant 0 : index
    %c0_328 = arith.constant 0 : index
    %466 = vector.load %arg22[%c0_325, %c3_326, %c0_327, %c0_328] : memref<2x4x8x32xbf16, #tpu.memory_space<vmem>>, vector<1x1x8x32xbf16>
    %467 = vector.shape_cast %466 : vector<1x1x8x32xbf16> to vector<8x32xbf16>
    %468 = arith.truncf %465 : vector<16x8xf32> to vector<16x8xbf16>
    %cst_329 = arith.constant dense<0.000000e+00> : vector<16x32xf32>
    %469 = tpu.matmul %468, %467, %cst_329 {dimension_numbers = #tpu.dot_dimension_numbers<[1], [0], [0], [1], [0, 0, 1, 1], [], []>} : vector<16x8xbf16>, vector<8x32xbf16>, vector<16x32xf32> -> vector<16x32xf32>
    %470 = arith.addf %423, %469 : vector<16x32xf32>
    %c0_330 = arith.constant 0 : index
    %c0_331 = arith.constant 0 : index
    %c0_332 = arith.constant 0 : index
    %471 = vector.load %arg23[%c0_330, %c0_331, %c0_332] : memref<2x1x32xf32, #tpu.memory_space<vmem>>, vector<1x1x32xf32>
    %472 = vector.shape_cast %471 : vector<1x1x32xf32> to vector<1x32xf32>
    %473 = vector.broadcast %472 : vector<1x32xf32> to vector<16x32xf32>
    %474 = arith.addf %470, %473 : vector<16x32xf32>
    %475 = arith.addf %261, %474 : vector<16x32xf32>
    %476 = vector.extract_strided_slice %18 {offsets = [6, 0], sizes = [1, 32], strides = [1, 1]} : vector<8x32xf32> to vector<1x32xf32>
    %477 = vector.extract_strided_slice %18 {offsets = [7, 0], sizes = [1, 32], strides = [1, 1]} : vector<8x32xf32> to vector<1x32xf32>
    %cst_333 = arith.constant dense<0.000000e+00> : vector<16xf32>
    %478 = vector.multi_reduction <add>, %475, %cst_333 [1] : vector<16x32xf32> to vector<16xf32>
    %479 = vector.shape_cast %478 : vector<16xf32> to vector<16x1xf32>
    %cst_334 = arith.constant 3.200000e+01 : f32
    %480 = vector.broadcast %cst_334 : f32 to vector<16x1xf32>
    %481 = arith.divf %479, %480 : vector<16x1xf32>
    %482 = vector.broadcast %481 : vector<16x1xf32> to vector<16x32xf32>
    %483 = arith.subf %475, %482 : vector<16x32xf32>
    %484 = arith.mulf %483, %483 : vector<16x32xf32>
    %cst_335 = arith.constant dense<0.000000e+00> : vector<16xf32>
    %485 = vector.multi_reduction <add>, %484, %cst_335 [1] : vector<16x32xf32> to vector<16xf32>
    %486 = vector.shape_cast %485 : vector<16xf32> to vector<16x1xf32>
    %cst_336 = arith.constant 3.200000e+01 : f32
    %487 = vector.broadcast %cst_336 : f32 to vector<16x1xf32>
    %488 = arith.divf %486, %487 : vector<16x1xf32>
    %cst_337 = arith.constant 9.99999974E-6 : f32
    %489 = vector.broadcast %cst_337 : f32 to vector<16x1xf32>
    %490 = arith.addf %488, %489 : vector<16x1xf32>
    %491 = math.rsqrt %490 : vector<16x1xf32>
    %492 = vector.broadcast %491 : vector<16x1xf32> to vector<16x32xf32>
    %493 = arith.mulf %483, %492 : vector<16x32xf32>
    %494 = vector.broadcast %476 : vector<1x32xf32> to vector<16x32xf32>
    %495 = arith.mulf %493, %494 : vector<16x32xf32>
    %496 = vector.broadcast %477 : vector<1x32xf32> to vector<16x32xf32>
    %497 = arith.addf %495, %496 : vector<16x32xf32>
    %c0_338 = arith.constant 0 : index
    %c0_339 = arith.constant 0 : index
    %c0_340 = arith.constant 0 : index
    %498 = vector.load %arg24[%c0_338, %c0_339, %c0_340] : memref<2x32x64xbf16, #tpu.memory_space<vmem>>, vector<1x32x64xbf16>
    %499 = vector.shape_cast %498 : vector<1x32x64xbf16> to vector<32x64xbf16>
    %500 = arith.truncf %497 : vector<16x32xf32> to vector<16x32xbf16>
    %cst_341 = arith.constant dense<0.000000e+00> : vector<16x64xf32>
    %501 = tpu.matmul %500, %499, %cst_341 {dimension_numbers = #tpu.dot_dimension_numbers<[1], [0], [0], [1], [0, 0, 1, 1], [], []>} : vector<16x32xbf16>, vector<32x64xbf16>, vector<16x64xf32> -> vector<16x64xf32>
    %c0_342 = arith.constant 0 : index
    %c0_343 = arith.constant 0 : index
    %c0_344 = arith.constant 0 : index
    %502 = vector.load %arg25[%c0_342, %c0_343, %c0_344] : memref<2x1x64xf32, #tpu.memory_space<vmem>>, vector<1x1x64xf32>
    %503 = vector.shape_cast %502 : vector<1x1x64xf32> to vector<1x64xf32>
    %504 = vector.broadcast %503 : vector<1x64xf32> to vector<16x64xf32>
    %505 = arith.addf %501, %504 : vector<16x64xf32>
    %cst_345 = arith.constant 5.000000e-01 : f32
    %506 = vector.broadcast %cst_345 : f32 to vector<16x64xf32>
    %507 = arith.mulf %506, %505 : vector<16x64xf32>
    %cst_346 = arith.constant 4.471500e-02 : f32
    %508 = vector.broadcast %cst_346 : f32 to vector<16x64xf32>
    %509 = arith.mulf %508, %505 : vector<16x64xf32>
    %510 = arith.mulf %509, %505 : vector<16x64xf32>
    %511 = arith.mulf %510, %505 : vector<16x64xf32>
    %512 = arith.addf %505, %511 : vector<16x64xf32>
    %cst_347 = arith.constant 0.797884583 : f32
    %513 = vector.broadcast %cst_347 : f32 to vector<16x64xf32>
    %514 = arith.mulf %513, %512 : vector<16x64xf32>
    %515 = math.tanh %514 : vector<16x64xf32>
    %cst_348 = arith.constant 1.000000e+00 : f32
    %516 = vector.broadcast %cst_348 : f32 to vector<16x64xf32>
    %517 = arith.addf %516, %515 : vector<16x64xf32>
    %518 = arith.mulf %507, %517 : vector<16x64xf32>
    %c0_349 = arith.constant 0 : index
    %c0_350 = arith.constant 0 : index
    %c0_351 = arith.constant 0 : index
    %519 = vector.load %arg26[%c0_349, %c0_350, %c0_351] : memref<2x64x32xbf16, #tpu.memory_space<vmem>>, vector<1x64x32xbf16>
    %520 = vector.shape_cast %519 : vector<1x64x32xbf16> to vector<64x32xbf16>
    %521 = arith.truncf %518 : vector<16x64xf32> to vector<16x64xbf16>
    %cst_352 = arith.constant dense<0.000000e+00> : vector<16x32xf32>
    %522 = tpu.matmul %521, %520, %cst_352 {dimension_numbers = #tpu.dot_dimension_numbers<[1], [0], [0], [1], [0, 0, 1, 1], [], []>} : vector<16x64xbf16>, vector<64x32xbf16>, vector<16x32xf32> -> vector<16x32xf32>
    %c0_353 = arith.constant 0 : index
    %c0_354 = arith.constant 0 : index
    %c0_355 = arith.constant 0 : index
    %523 = vector.load %arg27[%c0_353, %c0_354, %c0_355] : memref<2x1x32xf32, #tpu.memory_space<vmem>>, vector<1x1x32xf32>
    %524 = vector.shape_cast %523 : vector<1x1x32xf32> to vector<1x32xf32>
    %525 = vector.broadcast %524 : vector<1x32xf32> to vector<16x32xf32>
    %526 = arith.addf %522, %525 : vector<16x32xf32>
    %527 = arith.addf %475, %526 : vector<16x32xf32>
    %c1_356 = arith.constant 1 : index
    %c0_357 = arith.constant 0 : index
    %c0_358 = arith.constant 0 : index
    %528 = vector.load %arg7[%c1_356, %c0_357, %c0_358] : memref<2x8x32xf32, #tpu.memory_space<vmem>>, vector<1x8x32xf32>
    %529 = vector.shape_cast %528 : vector<1x8x32xf32> to vector<8x32xf32>
    %530 = vector.extract_strided_slice %527 {offsets = [0, 0], sizes = [8, 32], strides = [1, 1]} : vector<16x32xf32> to vector<8x32xf32>
    %531 = vector.extract_strided_slice %529 {offsets = [0, 0], sizes = [1, 32], strides = [1, 1]} : vector<8x32xf32> to vector<1x32xf32>
    %532 = vector.extract_strided_slice %529 {offsets = [1, 0], sizes = [1, 32], strides = [1, 1]} : vector<8x32xf32> to vector<1x32xf32>
    %cst_359 = arith.constant dense<0.000000e+00> : vector<8xf32>
    %533 = vector.multi_reduction <add>, %530, %cst_359 [1] : vector<8x32xf32> to vector<8xf32>
    %534 = vector.shape_cast %533 : vector<8xf32> to vector<8x1xf32>
    %cst_360 = arith.constant 3.200000e+01 : f32
    %535 = vector.broadcast %cst_360 : f32 to vector<8x1xf32>
    %536 = arith.divf %534, %535 : vector<8x1xf32>
    %537 = vector.broadcast %536 : vector<8x1xf32> to vector<8x32xf32>
    %538 = arith.subf %530, %537 : vector<8x32xf32>
    %539 = arith.mulf %538, %538 : vector<8x32xf32>
    %cst_361 = arith.constant dense<0.000000e+00> : vector<8xf32>
    %540 = vector.multi_reduction <add>, %539, %cst_361 [1] : vector<8x32xf32> to vector<8xf32>
    %541 = vector.shape_cast %540 : vector<8xf32> to vector<8x1xf32>
    %cst_362 = arith.constant 3.200000e+01 : f32
    %542 = vector.broadcast %cst_362 : f32 to vector<8x1xf32>
    %543 = arith.divf %541, %542 : vector<8x1xf32>
    %cst_363 = arith.constant 9.99999974E-6 : f32
    %544 = vector.broadcast %cst_363 : f32 to vector<8x1xf32>
    %545 = arith.addf %543, %544 : vector<8x1xf32>
    %546 = math.rsqrt %545 : vector<8x1xf32>
    %547 = vector.broadcast %546 : vector<8x1xf32> to vector<8x32xf32>
    %548 = arith.mulf %538, %547 : vector<8x32xf32>
    %549 = vector.broadcast %531 : vector<1x32xf32> to vector<8x32xf32>
    %550 = arith.mulf %548, %549 : vector<8x32xf32>
    %551 = vector.broadcast %532 : vector<1x32xf32> to vector<8x32xf32>
    %552 = arith.addf %550, %551 : vector<8x32xf32>
    %553 = vector.extract_strided_slice %527 {offsets = [8, 0], sizes = [8, 32], strides = [1, 1]} : vector<16x32xf32> to vector<8x32xf32>
    %554 = vector.extract_strided_slice %529 {offsets = [2, 0], sizes = [1, 32], strides = [1, 1]} : vector<8x32xf32> to vector<1x32xf32>
    %555 = vector.extract_strided_slice %529 {offsets = [3, 0], sizes = [1, 32], strides = [1, 1]} : vector<8x32xf32> to vector<1x32xf32>
    %cst_364 = arith.constant dense<0.000000e+00> : vector<8xf32>
    %556 = vector.multi_reduction <add>, %553, %cst_364 [1] : vector<8x32xf32> to vector<8xf32>
    %557 = vector.shape_cast %556 : vector<8xf32> to vector<8x1xf32>
    %cst_365 = arith.constant 3.200000e+01 : f32
    %558 = vector.broadcast %cst_365 : f32 to vector<8x1xf32>
    %559 = arith.divf %557, %558 : vector<8x1xf32>
    %560 = vector.broadcast %559 : vector<8x1xf32> to vector<8x32xf32>
    %561 = arith.subf %553, %560 : vector<8x32xf32>
    %562 = arith.mulf %561, %561 : vector<8x32xf32>
    %cst_366 = arith.constant dense<0.000000e+00> : vector<8xf32>
    %563 = vector.multi_reduction <add>, %562, %cst_366 [1] : vector<8x32xf32> to vector<8xf32>
    %564 = vector.shape_cast %563 : vector<8xf32> to vector<8x1xf32>
    %cst_367 = arith.constant 3.200000e+01 : f32
    %565 = vector.broadcast %cst_367 : f32 to vector<8x1xf32>
    %566 = arith.divf %564, %565 : vector<8x1xf32>
    %cst_368 = arith.constant 9.99999974E-6 : f32
    %567 = vector.broadcast %cst_368 : f32 to vector<8x1xf32>
    %568 = arith.addf %566, %567 : vector<8x1xf32>
    %569 = math.rsqrt %568 : vector<8x1xf32>
    %570 = vector.broadcast %569 : vector<8x1xf32> to vector<8x32xf32>
    %571 = arith.mulf %561, %570 : vector<8x32xf32>
    %572 = vector.broadcast %554 : vector<1x32xf32> to vector<8x32xf32>
    %573 = arith.mulf %571, %572 : vector<8x32xf32>
    %574 = vector.broadcast %555 : vector<1x32xf32> to vector<8x32xf32>
    %575 = arith.addf %573, %574 : vector<8x32xf32>
    %c1_369 = arith.constant 1 : index
    %c0_370 = arith.constant 0 : index
    %c0_371 = arith.constant 0 : index
    %c0_372 = arith.constant 0 : index
    %576 = vector.load %arg8[%c1_369, %c0_370, %c0_371, %c0_372] : memref<2x4x32x8xbf16, #tpu.memory_space<vmem>>, vector<1x1x32x8xbf16>
    %577 = vector.shape_cast %576 : vector<1x1x32x8xbf16> to vector<32x8xbf16>
    %578 = arith.truncf %552 : vector<8x32xf32> to vector<8x32xbf16>
    %cst_373 = arith.constant dense<0.000000e+00> : vector<8x8xf32>
    %579 = tpu.matmul %578, %577, %cst_373 {dimension_numbers = #tpu.dot_dimension_numbers<[1], [0], [0], [1], [0, 0, 1, 1], [], []>} : vector<8x32xbf16>, vector<32x8xbf16>, vector<8x8xf32> -> vector<8x8xf32>
    %c1_374 = arith.constant 1 : index
    %c0_375 = arith.constant 0 : index
    %c0_376 = arith.constant 0 : index
    %c0_377 = arith.constant 0 : index
    %580 = vector.load %arg9[%c1_374, %c0_375, %c0_376, %c0_377] : memref<2x4x1x8xf32, #tpu.memory_space<vmem>>, vector<1x1x1x8xf32>
    %581 = vector.shape_cast %580 : vector<1x1x1x8xf32> to vector<1x8xf32>
    %582 = vector.broadcast %581 : vector<1x8xf32> to vector<8x8xf32>
    %583 = arith.addf %579, %582 : vector<8x8xf32>
    %c1_378 = arith.constant 1 : index
    %c0_379 = arith.constant 0 : index
    %c0_380 = arith.constant 0 : index
    %c0_381 = arith.constant 0 : index
    %584 = vector.load %arg10[%c1_378, %c0_379, %c0_380, %c0_381] : memref<2x4x32x8xbf16, #tpu.memory_space<vmem>>, vector<1x1x32x8xbf16>
    %585 = vector.shape_cast %584 : vector<1x1x32x8xbf16> to vector<32x8xbf16>
    %586 = arith.truncf %575 : vector<8x32xf32> to vector<8x32xbf16>
    %cst_382 = arith.constant dense<0.000000e+00> : vector<8x8xf32>
    %587 = tpu.matmul %586, %585, %cst_382 {dimension_numbers = #tpu.dot_dimension_numbers<[1], [0], [0], [1], [0, 0, 1, 1], [], []>} : vector<8x32xbf16>, vector<32x8xbf16>, vector<8x8xf32> -> vector<8x8xf32>
    %c1_383 = arith.constant 1 : index
    %c0_384 = arith.constant 0 : index
    %c0_385 = arith.constant 0 : index
    %c0_386 = arith.constant 0 : index
    %588 = vector.load %arg11[%c1_383, %c0_384, %c0_385, %c0_386] : memref<2x4x1x8xf32, #tpu.memory_space<vmem>>, vector<1x1x1x8xf32>
    %589 = vector.shape_cast %588 : vector<1x1x1x8xf32> to vector<1x8xf32>
    %590 = vector.broadcast %589 : vector<1x8xf32> to vector<8x8xf32>
    %591 = arith.addf %587, %590 : vector<8x8xf32>
    %c1_387 = arith.constant 1 : index
    %c0_388 = arith.constant 0 : index
    %c0_389 = arith.constant 0 : index
    %c0_390 = arith.constant 0 : index
    %592 = vector.load %arg12[%c1_387, %c0_388, %c0_389, %c0_390] : memref<2x4x32x8xbf16, #tpu.memory_space<vmem>>, vector<1x1x32x8xbf16>
    %593 = vector.shape_cast %592 : vector<1x1x32x8xbf16> to vector<32x8xbf16>
    %594 = arith.truncf %575 : vector<8x32xf32> to vector<8x32xbf16>
    %cst_391 = arith.constant dense<0.000000e+00> : vector<8x8xf32>
    %595 = tpu.matmul %594, %593, %cst_391 {dimension_numbers = #tpu.dot_dimension_numbers<[1], [0], [0], [1], [0, 0, 1, 1], [], []>} : vector<8x32xbf16>, vector<32x8xbf16>, vector<8x8xf32> -> vector<8x8xf32>
    %c1_392 = arith.constant 1 : index
    %c0_393 = arith.constant 0 : index
    %c0_394 = arith.constant 0 : index
    %c0_395 = arith.constant 0 : index
    %596 = vector.load %arg13[%c1_392, %c0_393, %c0_394, %c0_395] : memref<2x4x1x8xf32, #tpu.memory_space<vmem>>, vector<1x1x1x8xf32>
    %597 = vector.shape_cast %596 : vector<1x1x1x8xf32> to vector<1x8xf32>
    %598 = vector.broadcast %597 : vector<1x8xf32> to vector<8x8xf32>
    %599 = arith.addf %595, %598 : vector<8x8xf32>
    %cst_396 = arith.constant 0.353553385 : f32
    %600 = vector.broadcast %cst_396 : f32 to vector<8x8xf32>
    %601 = arith.mulf %583, %600 : vector<8x8xf32>
    %602 = arith.truncf %601 : vector<8x8xf32> to vector<8x8xbf16>
    %603 = arith.truncf %591 : vector<8x8xf32> to vector<8x8xbf16>
    %cst_397 = arith.constant dense<0.000000e+00> : vector<8x8xf32>
    %604 = tpu.matmul %602, %603, %cst_397 {dimension_numbers = #tpu.dot_dimension_numbers<[1], [1], [0], [0], [0, 0, 1, 0], [], []>} : vector<8x8xbf16>, vector<8x8xbf16>, vector<8x8xf32> -> vector<8x8xf32>
    %605 = arith.addf %604, %4 : vector<8x8xf32>
    %cst_398 = arith.constant dense<0xFF800000> : vector<8xf32>
    %606 = vector.multi_reduction <maximumf>, %605, %cst_398 [1] : vector<8x8xf32> to vector<8xf32>
    %607 = vector.shape_cast %606 : vector<8xf32> to vector<8x1xf32>
    %608 = vector.broadcast %607 : vector<8x1xf32> to vector<8x8xf32>
    %609 = arith.subf %605, %608 : vector<8x8xf32>
    %610 = math.exp %609 : vector<8x8xf32>
    %cst_399 = arith.constant dense<0.000000e+00> : vector<8xf32>
    %611 = vector.multi_reduction <add>, %610, %cst_399 [1] : vector<8x8xf32> to vector<8xf32>
    %612 = vector.shape_cast %611 : vector<8xf32> to vector<8x1xf32>
    %613 = tpu.reciprocal %612 {approx = true} : vector<8x1xf32> -> vector<8x1xf32>
    %614 = vector.broadcast %613 : vector<8x1xf32> to vector<8x8xf32>
    %615 = arith.mulf %610, %614 : vector<8x8xf32>
    %616 = arith.truncf %615 : vector<8x8xf32> to vector<8x8xbf16>
    %617 = arith.truncf %599 : vector<8x8xf32> to vector<8x8xbf16>
    %cst_400 = arith.constant dense<0.000000e+00> : vector<8x8xf32>
    %618 = tpu.matmul %616, %617, %cst_400 {dimension_numbers = #tpu.dot_dimension_numbers<[1], [0], [0], [1], [0, 0, 1, 1], [], []>} : vector<8x8xbf16>, vector<8x8xbf16>, vector<8x8xf32> -> vector<8x8xf32>
    %c1_401 = arith.constant 1 : index
    %c0_402 = arith.constant 0 : index
    %c0_403 = arith.constant 0 : index
    %c0_404 = arith.constant 0 : index
    %619 = vector.load %arg14[%c1_401, %c0_402, %c0_403, %c0_404] : memref<2x4x8x32xbf16, #tpu.memory_space<vmem>>, vector<1x1x8x32xbf16>
    %620 = vector.shape_cast %619 : vector<1x1x8x32xbf16> to vector<8x32xbf16>
    %621 = arith.truncf %618 : vector<8x8xf32> to vector<8x8xbf16>
    %cst_405 = arith.constant dense<0.000000e+00> : vector<8x32xf32>
    %622 = tpu.matmul %621, %620, %cst_405 {dimension_numbers = #tpu.dot_dimension_numbers<[1], [0], [0], [1], [0, 0, 1, 1], [], []>} : vector<8x8xbf16>, vector<8x32xbf16>, vector<8x32xf32> -> vector<8x32xf32>
    %c1_406 = arith.constant 1 : index
    %c1_407 = arith.constant 1 : index
    %c0_408 = arith.constant 0 : index
    %c0_409 = arith.constant 0 : index
    %623 = vector.load %arg8[%c1_406, %c1_407, %c0_408, %c0_409] : memref<2x4x32x8xbf16, #tpu.memory_space<vmem>>, vector<1x1x32x8xbf16>
    %624 = vector.shape_cast %623 : vector<1x1x32x8xbf16> to vector<32x8xbf16>
    %625 = arith.truncf %552 : vector<8x32xf32> to vector<8x32xbf16>
    %cst_410 = arith.constant dense<0.000000e+00> : vector<8x8xf32>
    %626 = tpu.matmul %625, %624, %cst_410 {dimension_numbers = #tpu.dot_dimension_numbers<[1], [0], [0], [1], [0, 0, 1, 1], [], []>} : vector<8x32xbf16>, vector<32x8xbf16>, vector<8x8xf32> -> vector<8x8xf32>
    %c1_411 = arith.constant 1 : index
    %c1_412 = arith.constant 1 : index
    %c0_413 = arith.constant 0 : index
    %c0_414 = arith.constant 0 : index
    %627 = vector.load %arg9[%c1_411, %c1_412, %c0_413, %c0_414] : memref<2x4x1x8xf32, #tpu.memory_space<vmem>>, vector<1x1x1x8xf32>
    %628 = vector.shape_cast %627 : vector<1x1x1x8xf32> to vector<1x8xf32>
    %629 = vector.broadcast %628 : vector<1x8xf32> to vector<8x8xf32>
    %630 = arith.addf %626, %629 : vector<8x8xf32>
    %c1_415 = arith.constant 1 : index
    %c1_416 = arith.constant 1 : index
    %c0_417 = arith.constant 0 : index
    %c0_418 = arith.constant 0 : index
    %631 = vector.load %arg10[%c1_415, %c1_416, %c0_417, %c0_418] : memref<2x4x32x8xbf16, #tpu.memory_space<vmem>>, vector<1x1x32x8xbf16>
    %632 = vector.shape_cast %631 : vector<1x1x32x8xbf16> to vector<32x8xbf16>
    %633 = arith.truncf %575 : vector<8x32xf32> to vector<8x32xbf16>
    %cst_419 = arith.constant dense<0.000000e+00> : vector<8x8xf32>
    %634 = tpu.matmul %633, %632, %cst_419 {dimension_numbers = #tpu.dot_dimension_numbers<[1], [0], [0], [1], [0, 0, 1, 1], [], []>} : vector<8x32xbf16>, vector<32x8xbf16>, vector<8x8xf32> -> vector<8x8xf32>
    %c1_420 = arith.constant 1 : index
    %c1_421 = arith.constant 1 : index
    %c0_422 = arith.constant 0 : index
    %c0_423 = arith.constant 0 : index
    %635 = vector.load %arg11[%c1_420, %c1_421, %c0_422, %c0_423] : memref<2x4x1x8xf32, #tpu.memory_space<vmem>>, vector<1x1x1x8xf32>
    %636 = vector.shape_cast %635 : vector<1x1x1x8xf32> to vector<1x8xf32>
    %637 = vector.broadcast %636 : vector<1x8xf32> to vector<8x8xf32>
    %638 = arith.addf %634, %637 : vector<8x8xf32>
    %c1_424 = arith.constant 1 : index
    %c1_425 = arith.constant 1 : index
    %c0_426 = arith.constant 0 : index
    %c0_427 = arith.constant 0 : index
    %639 = vector.load %arg12[%c1_424, %c1_425, %c0_426, %c0_427] : memref<2x4x32x8xbf16, #tpu.memory_space<vmem>>, vector<1x1x32x8xbf16>
    %640 = vector.shape_cast %639 : vector<1x1x32x8xbf16> to vector<32x8xbf16>
    %641 = arith.truncf %575 : vector<8x32xf32> to vector<8x32xbf16>
    %cst_428 = arith.constant dense<0.000000e+00> : vector<8x8xf32>
    %642 = tpu.matmul %641, %640, %cst_428 {dimension_numbers = #tpu.dot_dimension_numbers<[1], [0], [0], [1], [0, 0, 1, 1], [], []>} : vector<8x32xbf16>, vector<32x8xbf16>, vector<8x8xf32> -> vector<8x8xf32>
    %c1_429 = arith.constant 1 : index
    %c1_430 = arith.constant 1 : index
    %c0_431 = arith.constant 0 : index
    %c0_432 = arith.constant 0 : index
    %643 = vector.load %arg13[%c1_429, %c1_430, %c0_431, %c0_432] : memref<2x4x1x8xf32, #tpu.memory_space<vmem>>, vector<1x1x1x8xf32>
    %644 = vector.shape_cast %643 : vector<1x1x1x8xf32> to vector<1x8xf32>
    %645 = vector.broadcast %644 : vector<1x8xf32> to vector<8x8xf32>
    %646 = arith.addf %642, %645 : vector<8x8xf32>
    %cst_433 = arith.constant 0.353553385 : f32
    %647 = vector.broadcast %cst_433 : f32 to vector<8x8xf32>
    %648 = arith.mulf %630, %647 : vector<8x8xf32>
    %649 = arith.truncf %648 : vector<8x8xf32> to vector<8x8xbf16>
    %650 = arith.truncf %638 : vector<8x8xf32> to vector<8x8xbf16>
    %cst_434 = arith.constant dense<0.000000e+00> : vector<8x8xf32>
    %651 = tpu.matmul %649, %650, %cst_434 {dimension_numbers = #tpu.dot_dimension_numbers<[1], [1], [0], [0], [0, 0, 1, 0], [], []>} : vector<8x8xbf16>, vector<8x8xbf16>, vector<8x8xf32> -> vector<8x8xf32>
    %652 = arith.addf %651, %4 : vector<8x8xf32>
    %cst_435 = arith.constant dense<0xFF800000> : vector<8xf32>
    %653 = vector.multi_reduction <maximumf>, %652, %cst_435 [1] : vector<8x8xf32> to vector<8xf32>
    %654 = vector.shape_cast %653 : vector<8xf32> to vector<8x1xf32>
    %655 = vector.broadcast %654 : vector<8x1xf32> to vector<8x8xf32>
    %656 = arith.subf %652, %655 : vector<8x8xf32>
    %657 = math.exp %656 : vector<8x8xf32>
    %cst_436 = arith.constant dense<0.000000e+00> : vector<8xf32>
    %658 = vector.multi_reduction <add>, %657, %cst_436 [1] : vector<8x8xf32> to vector<8xf32>
    %659 = vector.shape_cast %658 : vector<8xf32> to vector<8x1xf32>
    %660 = tpu.reciprocal %659 {approx = true} : vector<8x1xf32> -> vector<8x1xf32>
    %661 = vector.broadcast %660 : vector<8x1xf32> to vector<8x8xf32>
    %662 = arith.mulf %657, %661 : vector<8x8xf32>
    %663 = arith.truncf %662 : vector<8x8xf32> to vector<8x8xbf16>
    %664 = arith.truncf %646 : vector<8x8xf32> to vector<8x8xbf16>
    %cst_437 = arith.constant dense<0.000000e+00> : vector<8x8xf32>
    %665 = tpu.matmul %663, %664, %cst_437 {dimension_numbers = #tpu.dot_dimension_numbers<[1], [0], [0], [1], [0, 0, 1, 1], [], []>} : vector<8x8xbf16>, vector<8x8xbf16>, vector<8x8xf32> -> vector<8x8xf32>
    %c1_438 = arith.constant 1 : index
    %c1_439 = arith.constant 1 : index
    %c0_440 = arith.constant 0 : index
    %c0_441 = arith.constant 0 : index
    %666 = vector.load %arg14[%c1_438, %c1_439, %c0_440, %c0_441] : memref<2x4x8x32xbf16, #tpu.memory_space<vmem>>, vector<1x1x8x32xbf16>
    %667 = vector.shape_cast %666 : vector<1x1x8x32xbf16> to vector<8x32xbf16>
    %668 = arith.truncf %665 : vector<8x8xf32> to vector<8x8xbf16>
    %cst_442 = arith.constant dense<0.000000e+00> : vector<8x32xf32>
    %669 = tpu.matmul %668, %667, %cst_442 {dimension_numbers = #tpu.dot_dimension_numbers<[1], [0], [0], [1], [0, 0, 1, 1], [], []>} : vector<8x8xbf16>, vector<8x32xbf16>, vector<8x32xf32> -> vector<8x32xf32>
    %670 = arith.addf %622, %669 : vector<8x32xf32>
    %c1_443 = arith.constant 1 : index
    %c2_444 = arith.constant 2 : index
    %c0_445 = arith.constant 0 : index
    %c0_446 = arith.constant 0 : index
    %671 = vector.load %arg8[%c1_443, %c2_444, %c0_445, %c0_446] : memref<2x4x32x8xbf16, #tpu.memory_space<vmem>>, vector<1x1x32x8xbf16>
    %672 = vector.shape_cast %671 : vector<1x1x32x8xbf16> to vector<32x8xbf16>
    %673 = arith.truncf %552 : vector<8x32xf32> to vector<8x32xbf16>
    %cst_447 = arith.constant dense<0.000000e+00> : vector<8x8xf32>
    %674 = tpu.matmul %673, %672, %cst_447 {dimension_numbers = #tpu.dot_dimension_numbers<[1], [0], [0], [1], [0, 0, 1, 1], [], []>} : vector<8x32xbf16>, vector<32x8xbf16>, vector<8x8xf32> -> vector<8x8xf32>
    %c1_448 = arith.constant 1 : index
    %c2_449 = arith.constant 2 : index
    %c0_450 = arith.constant 0 : index
    %c0_451 = arith.constant 0 : index
    %675 = vector.load %arg9[%c1_448, %c2_449, %c0_450, %c0_451] : memref<2x4x1x8xf32, #tpu.memory_space<vmem>>, vector<1x1x1x8xf32>
    %676 = vector.shape_cast %675 : vector<1x1x1x8xf32> to vector<1x8xf32>
    %677 = vector.broadcast %676 : vector<1x8xf32> to vector<8x8xf32>
    %678 = arith.addf %674, %677 : vector<8x8xf32>
    %c1_452 = arith.constant 1 : index
    %c2_453 = arith.constant 2 : index
    %c0_454 = arith.constant 0 : index
    %c0_455 = arith.constant 0 : index
    %679 = vector.load %arg10[%c1_452, %c2_453, %c0_454, %c0_455] : memref<2x4x32x8xbf16, #tpu.memory_space<vmem>>, vector<1x1x32x8xbf16>
    %680 = vector.shape_cast %679 : vector<1x1x32x8xbf16> to vector<32x8xbf16>
    %681 = arith.truncf %575 : vector<8x32xf32> to vector<8x32xbf16>
    %cst_456 = arith.constant dense<0.000000e+00> : vector<8x8xf32>
    %682 = tpu.matmul %681, %680, %cst_456 {dimension_numbers = #tpu.dot_dimension_numbers<[1], [0], [0], [1], [0, 0, 1, 1], [], []>} : vector<8x32xbf16>, vector<32x8xbf16>, vector<8x8xf32> -> vector<8x8xf32>
    %c1_457 = arith.constant 1 : index
    %c2_458 = arith.constant 2 : index
    %c0_459 = arith.constant 0 : index
    %c0_460 = arith.constant 0 : index
    %683 = vector.load %arg11[%c1_457, %c2_458, %c0_459, %c0_460] : memref<2x4x1x8xf32, #tpu.memory_space<vmem>>, vector<1x1x1x8xf32>
    %684 = vector.shape_cast %683 : vector<1x1x1x8xf32> to vector<1x8xf32>
    %685 = vector.broadcast %684 : vector<1x8xf32> to vector<8x8xf32>
    %686 = arith.addf %682, %685 : vector<8x8xf32>
    %c1_461 = arith.constant 1 : index
    %c2_462 = arith.constant 2 : index
    %c0_463 = arith.constant 0 : index
    %c0_464 = arith.constant 0 : index
    %687 = vector.load %arg12[%c1_461, %c2_462, %c0_463, %c0_464] : memref<2x4x32x8xbf16, #tpu.memory_space<vmem>>, vector<1x1x32x8xbf16>
    %688 = vector.shape_cast %687 : vector<1x1x32x8xbf16> to vector<32x8xbf16>
    %689 = arith.truncf %575 : vector<8x32xf32> to vector<8x32xbf16>
    %cst_465 = arith.constant dense<0.000000e+00> : vector<8x8xf32>
    %690 = tpu.matmul %689, %688, %cst_465 {dimension_numbers = #tpu.dot_dimension_numbers<[1], [0], [0], [1], [0, 0, 1, 1], [], []>} : vector<8x32xbf16>, vector<32x8xbf16>, vector<8x8xf32> -> vector<8x8xf32>
    %c1_466 = arith.constant 1 : index
    %c2_467 = arith.constant 2 : index
    %c0_468 = arith.constant 0 : index
    %c0_469 = arith.constant 0 : index
    %691 = vector.load %arg13[%c1_466, %c2_467, %c0_468, %c0_469] : memref<2x4x1x8xf32, #tpu.memory_space<vmem>>, vector<1x1x1x8xf32>
    %692 = vector.shape_cast %691 : vector<1x1x1x8xf32> to vector<1x8xf32>
    %693 = vector.broadcast %692 : vector<1x8xf32> to vector<8x8xf32>
    %694 = arith.addf %690, %693 : vector<8x8xf32>
    %cst_470 = arith.constant 0.353553385 : f32
    %695 = vector.broadcast %cst_470 : f32 to vector<8x8xf32>
    %696 = arith.mulf %678, %695 : vector<8x8xf32>
    %697 = arith.truncf %696 : vector<8x8xf32> to vector<8x8xbf16>
    %698 = arith.truncf %686 : vector<8x8xf32> to vector<8x8xbf16>
    %cst_471 = arith.constant dense<0.000000e+00> : vector<8x8xf32>
    %699 = tpu.matmul %697, %698, %cst_471 {dimension_numbers = #tpu.dot_dimension_numbers<[1], [1], [0], [0], [0, 0, 1, 0], [], []>} : vector<8x8xbf16>, vector<8x8xbf16>, vector<8x8xf32> -> vector<8x8xf32>
    %700 = arith.addf %699, %4 : vector<8x8xf32>
    %cst_472 = arith.constant dense<0xFF800000> : vector<8xf32>
    %701 = vector.multi_reduction <maximumf>, %700, %cst_472 [1] : vector<8x8xf32> to vector<8xf32>
    %702 = vector.shape_cast %701 : vector<8xf32> to vector<8x1xf32>
    %703 = vector.broadcast %702 : vector<8x1xf32> to vector<8x8xf32>
    %704 = arith.subf %700, %703 : vector<8x8xf32>
    %705 = math.exp %704 : vector<8x8xf32>
    %cst_473 = arith.constant dense<0.000000e+00> : vector<8xf32>
    %706 = vector.multi_reduction <add>, %705, %cst_473 [1] : vector<8x8xf32> to vector<8xf32>
    %707 = vector.shape_cast %706 : vector<8xf32> to vector<8x1xf32>
    %708 = tpu.reciprocal %707 {approx = true} : vector<8x1xf32> -> vector<8x1xf32>
    %709 = vector.broadcast %708 : vector<8x1xf32> to vector<8x8xf32>
    %710 = arith.mulf %705, %709 : vector<8x8xf32>
    %711 = arith.truncf %710 : vector<8x8xf32> to vector<8x8xbf16>
    %712 = arith.truncf %694 : vector<8x8xf32> to vector<8x8xbf16>
    %cst_474 = arith.constant dense<0.000000e+00> : vector<8x8xf32>
    %713 = tpu.matmul %711, %712, %cst_474 {dimension_numbers = #tpu.dot_dimension_numbers<[1], [0], [0], [1], [0, 0, 1, 1], [], []>} : vector<8x8xbf16>, vector<8x8xbf16>, vector<8x8xf32> -> vector<8x8xf32>
    %c1_475 = arith.constant 1 : index
    %c2_476 = arith.constant 2 : index
    %c0_477 = arith.constant 0 : index
    %c0_478 = arith.constant 0 : index
    %714 = vector.load %arg14[%c1_475, %c2_476, %c0_477, %c0_478] : memref<2x4x8x32xbf16, #tpu.memory_space<vmem>>, vector<1x1x8x32xbf16>
    %715 = vector.shape_cast %714 : vector<1x1x8x32xbf16> to vector<8x32xbf16>
    %716 = arith.truncf %713 : vector<8x8xf32> to vector<8x8xbf16>
    %cst_479 = arith.constant dense<0.000000e+00> : vector<8x32xf32>
    %717 = tpu.matmul %716, %715, %cst_479 {dimension_numbers = #tpu.dot_dimension_numbers<[1], [0], [0], [1], [0, 0, 1, 1], [], []>} : vector<8x8xbf16>, vector<8x32xbf16>, vector<8x32xf32> -> vector<8x32xf32>
    %718 = arith.addf %670, %717 : vector<8x32xf32>
    %c1_480 = arith.constant 1 : index
    %c3_481 = arith.constant 3 : index
    %c0_482 = arith.constant 0 : index
    %c0_483 = arith.constant 0 : index
    %719 = vector.load %arg8[%c1_480, %c3_481, %c0_482, %c0_483] : memref<2x4x32x8xbf16, #tpu.memory_space<vmem>>, vector<1x1x32x8xbf16>
    %720 = vector.shape_cast %719 : vector<1x1x32x8xbf16> to vector<32x8xbf16>
    %721 = arith.truncf %552 : vector<8x32xf32> to vector<8x32xbf16>
    %cst_484 = arith.constant dense<0.000000e+00> : vector<8x8xf32>
    %722 = tpu.matmul %721, %720, %cst_484 {dimension_numbers = #tpu.dot_dimension_numbers<[1], [0], [0], [1], [0, 0, 1, 1], [], []>} : vector<8x32xbf16>, vector<32x8xbf16>, vector<8x8xf32> -> vector<8x8xf32>
    %c1_485 = arith.constant 1 : index
    %c3_486 = arith.constant 3 : index
    %c0_487 = arith.constant 0 : index
    %c0_488 = arith.constant 0 : index
    %723 = vector.load %arg9[%c1_485, %c3_486, %c0_487, %c0_488] : memref<2x4x1x8xf32, #tpu.memory_space<vmem>>, vector<1x1x1x8xf32>
    %724 = vector.shape_cast %723 : vector<1x1x1x8xf32> to vector<1x8xf32>
    %725 = vector.broadcast %724 : vector<1x8xf32> to vector<8x8xf32>
    %726 = arith.addf %722, %725 : vector<8x8xf32>
    %c1_489 = arith.constant 1 : index
    %c3_490 = arith.constant 3 : index
    %c0_491 = arith.constant 0 : index
    %c0_492 = arith.constant 0 : index
    %727 = vector.load %arg10[%c1_489, %c3_490, %c0_491, %c0_492] : memref<2x4x32x8xbf16, #tpu.memory_space<vmem>>, vector<1x1x32x8xbf16>
    %728 = vector.shape_cast %727 : vector<1x1x32x8xbf16> to vector<32x8xbf16>
    %729 = arith.truncf %575 : vector<8x32xf32> to vector<8x32xbf16>
    %cst_493 = arith.constant dense<0.000000e+00> : vector<8x8xf32>
    %730 = tpu.matmul %729, %728, %cst_493 {dimension_numbers = #tpu.dot_dimension_numbers<[1], [0], [0], [1], [0, 0, 1, 1], [], []>} : vector<8x32xbf16>, vector<32x8xbf16>, vector<8x8xf32> -> vector<8x8xf32>
    %c1_494 = arith.constant 1 : index
    %c3_495 = arith.constant 3 : index
    %c0_496 = arith.constant 0 : index
    %c0_497 = arith.constant 0 : index
    %731 = vector.load %arg11[%c1_494, %c3_495, %c0_496, %c0_497] : memref<2x4x1x8xf32, #tpu.memory_space<vmem>>, vector<1x1x1x8xf32>
    %732 = vector.shape_cast %731 : vector<1x1x1x8xf32> to vector<1x8xf32>
    %733 = vector.broadcast %732 : vector<1x8xf32> to vector<8x8xf32>
    %734 = arith.addf %730, %733 : vector<8x8xf32>
    %c1_498 = arith.constant 1 : index
    %c3_499 = arith.constant 3 : index
    %c0_500 = arith.constant 0 : index
    %c0_501 = arith.constant 0 : index
    %735 = vector.load %arg12[%c1_498, %c3_499, %c0_500, %c0_501] : memref<2x4x32x8xbf16, #tpu.memory_space<vmem>>, vector<1x1x32x8xbf16>
    %736 = vector.shape_cast %735 : vector<1x1x32x8xbf16> to vector<32x8xbf16>
    %737 = arith.truncf %575 : vector<8x32xf32> to vector<8x32xbf16>
    %cst_502 = arith.constant dense<0.000000e+00> : vector<8x8xf32>
    %738 = tpu.matmul %737, %736, %cst_502 {dimension_numbers = #tpu.dot_dimension_numbers<[1], [0], [0], [1], [0, 0, 1, 1], [], []>} : vector<8x32xbf16>, vector<32x8xbf16>, vector<8x8xf32> -> vector<8x8xf32>
    %c1_503 = arith.constant 1 : index
    %c3_504 = arith.constant 3 : index
    %c0_505 = arith.constant 0 : index
    %c0_506 = arith.constant 0 : index
    %739 = vector.load %arg13[%c1_503, %c3_504, %c0_505, %c0_506] : memref<2x4x1x8xf32, #tpu.memory_space<vmem>>, vector<1x1x1x8xf32>
    %740 = vector.shape_cast %739 : vector<1x1x1x8xf32> to vector<1x8xf32>
    %741 = vector.broadcast %740 : vector<1x8xf32> to vector<8x8xf32>
    %742 = arith.addf %738, %741 : vector<8x8xf32>
    %cst_507 = arith.constant 0.353553385 : f32
    %743 = vector.broadcast %cst_507 : f32 to vector<8x8xf32>
    %744 = arith.mulf %726, %743 : vector<8x8xf32>
    %745 = arith.truncf %744 : vector<8x8xf32> to vector<8x8xbf16>
    %746 = arith.truncf %734 : vector<8x8xf32> to vector<8x8xbf16>
    %cst_508 = arith.constant dense<0.000000e+00> : vector<8x8xf32>
    %747 = tpu.matmul %745, %746, %cst_508 {dimension_numbers = #tpu.dot_dimension_numbers<[1], [1], [0], [0], [0, 0, 1, 0], [], []>} : vector<8x8xbf16>, vector<8x8xbf16>, vector<8x8xf32> -> vector<8x8xf32>
    %748 = arith.addf %747, %4 : vector<8x8xf32>
    %cst_509 = arith.constant dense<0xFF800000> : vector<8xf32>
    %749 = vector.multi_reduction <maximumf>, %748, %cst_509 [1] : vector<8x8xf32> to vector<8xf32>
    %750 = vector.shape_cast %749 : vector<8xf32> to vector<8x1xf32>
    %751 = vector.broadcast %750 : vector<8x1xf32> to vector<8x8xf32>
    %752 = arith.subf %748, %751 : vector<8x8xf32>
    %753 = math.exp %752 : vector<8x8xf32>
    %cst_510 = arith.constant dense<0.000000e+00> : vector<8xf32>
    %754 = vector.multi_reduction <add>, %753, %cst_510 [1] : vector<8x8xf32> to vector<8xf32>
    %755 = vector.shape_cast %754 : vector<8xf32> to vector<8x1xf32>
    %756 = tpu.reciprocal %755 {approx = true} : vector<8x1xf32> -> vector<8x1xf32>
    %757 = vector.broadcast %756 : vector<8x1xf32> to vector<8x8xf32>
    %758 = arith.mulf %753, %757 : vector<8x8xf32>
    %759 = arith.truncf %758 : vector<8x8xf32> to vector<8x8xbf16>
    %760 = arith.truncf %742 : vector<8x8xf32> to vector<8x8xbf16>
    %cst_511 = arith.constant dense<0.000000e+00> : vector<8x8xf32>
    %761 = tpu.matmul %759, %760, %cst_511 {dimension_numbers = #tpu.dot_dimension_numbers<[1], [0], [0], [1], [0, 0, 1, 1], [], []>} : vector<8x8xbf16>, vector<8x8xbf16>, vector<8x8xf32> -> vector<8x8xf32>
    %c1_512 = arith.constant 1 : index
    %c3_513 = arith.constant 3 : index
    %c0_514 = arith.constant 0 : index
    %c0_515 = arith.constant 0 : index
    %762 = vector.load %arg14[%c1_512, %c3_513, %c0_514, %c0_515] : memref<2x4x8x32xbf16, #tpu.memory_space<vmem>>, vector<1x1x8x32xbf16>
    %763 = vector.shape_cast %762 : vector<1x1x8x32xbf16> to vector<8x32xbf16>
    %764 = arith.truncf %761 : vector<8x8xf32> to vector<8x8xbf16>
    %cst_516 = arith.constant dense<0.000000e+00> : vector<8x32xf32>
    %765 = tpu.matmul %764, %763, %cst_516 {dimension_numbers = #tpu.dot_dimension_numbers<[1], [0], [0], [1], [0, 0, 1, 1], [], []>} : vector<8x8xbf16>, vector<8x32xbf16>, vector<8x32xf32> -> vector<8x32xf32>
    %766 = arith.addf %718, %765 : vector<8x32xf32>
    %c1_517 = arith.constant 1 : index
    %c0_518 = arith.constant 0 : index
    %c0_519 = arith.constant 0 : index
    %767 = vector.load %arg15[%c1_517, %c0_518, %c0_519] : memref<2x1x32xf32, #tpu.memory_space<vmem>>, vector<1x1x32xf32>
    %768 = vector.shape_cast %767 : vector<1x1x32xf32> to vector<1x32xf32>
    %769 = vector.broadcast %768 : vector<1x32xf32> to vector<8x32xf32>
    %770 = arith.addf %766, %769 : vector<8x32xf32>
    %771 = arith.addf %530, %770 : vector<8x32xf32>
    %772 = vector.extract_strided_slice %529 {offsets = [4, 0], sizes = [1, 32], strides = [1, 1]} : vector<8x32xf32> to vector<1x32xf32>
    %773 = vector.extract_strided_slice %529 {offsets = [5, 0], sizes = [1, 32], strides = [1, 1]} : vector<8x32xf32> to vector<1x32xf32>
    %cst_520 = arith.constant dense<0.000000e+00> : vector<8xf32>
    %774 = vector.multi_reduction <add>, %771, %cst_520 [1] : vector<8x32xf32> to vector<8xf32>
    %775 = vector.shape_cast %774 : vector<8xf32> to vector<8x1xf32>
    %cst_521 = arith.constant 3.200000e+01 : f32
    %776 = vector.broadcast %cst_521 : f32 to vector<8x1xf32>
    %777 = arith.divf %775, %776 : vector<8x1xf32>
    %778 = vector.broadcast %777 : vector<8x1xf32> to vector<8x32xf32>
    %779 = arith.subf %771, %778 : vector<8x32xf32>
    %780 = arith.mulf %779, %779 : vector<8x32xf32>
    %cst_522 = arith.constant dense<0.000000e+00> : vector<8xf32>
    %781 = vector.multi_reduction <add>, %780, %cst_522 [1] : vector<8x32xf32> to vector<8xf32>
    %782 = vector.shape_cast %781 : vector<8xf32> to vector<8x1xf32>
    %cst_523 = arith.constant 3.200000e+01 : f32
    %783 = vector.broadcast %cst_523 : f32 to vector<8x1xf32>
    %784 = arith.divf %782, %783 : vector<8x1xf32>
    %cst_524 = arith.constant 9.99999974E-6 : f32
    %785 = vector.broadcast %cst_524 : f32 to vector<8x1xf32>
    %786 = arith.addf %784, %785 : vector<8x1xf32>
    %787 = math.rsqrt %786 : vector<8x1xf32>
    %788 = vector.broadcast %787 : vector<8x1xf32> to vector<8x32xf32>
    %789 = arith.mulf %779, %788 : vector<8x32xf32>
    %790 = vector.broadcast %772 : vector<1x32xf32> to vector<8x32xf32>
    %791 = arith.mulf %789, %790 : vector<8x32xf32>
    %792 = vector.broadcast %773 : vector<1x32xf32> to vector<8x32xf32>
    %793 = arith.addf %791, %792 : vector<8x32xf32>
    %c1_525 = arith.constant 1 : index
    %c0_526 = arith.constant 0 : index
    %c0_527 = arith.constant 0 : index
    %c0_528 = arith.constant 0 : index
    %794 = vector.load %arg16[%c1_525, %c0_526, %c0_527, %c0_528] : memref<2x4x32x8xbf16, #tpu.memory_space<vmem>>, vector<1x1x32x8xbf16>
    %795 = vector.shape_cast %794 : vector<1x1x32x8xbf16> to vector<32x8xbf16>
    %796 = arith.truncf %793 : vector<8x32xf32> to vector<8x32xbf16>
    %cst_529 = arith.constant dense<0.000000e+00> : vector<8x8xf32>
    %797 = tpu.matmul %796, %795, %cst_529 {dimension_numbers = #tpu.dot_dimension_numbers<[1], [0], [0], [1], [0, 0, 1, 1], [], []>} : vector<8x32xbf16>, vector<32x8xbf16>, vector<8x8xf32> -> vector<8x8xf32>
    %c1_530 = arith.constant 1 : index
    %c0_531 = arith.constant 0 : index
    %c0_532 = arith.constant 0 : index
    %c0_533 = arith.constant 0 : index
    %798 = vector.load %arg17[%c1_530, %c0_531, %c0_532, %c0_533] : memref<2x4x1x8xf32, #tpu.memory_space<vmem>>, vector<1x1x1x8xf32>
    %799 = vector.shape_cast %798 : vector<1x1x1x8xf32> to vector<1x8xf32>
    %800 = vector.broadcast %799 : vector<1x8xf32> to vector<8x8xf32>
    %801 = arith.addf %797, %800 : vector<8x8xf32>
    %c1_534 = arith.constant 1 : index
    %c0_535 = arith.constant 0 : index
    %c0_536 = arith.constant 0 : index
    %c0_537 = arith.constant 0 : index
    %802 = vector.load %arg18[%c1_534, %c0_535, %c0_536, %c0_537] : memref<2x4x32x8xbf16, #tpu.memory_space<vmem>>, vector<1x1x32x8xbf16>
    %803 = vector.shape_cast %802 : vector<1x1x32x8xbf16> to vector<32x8xbf16>
    %804 = arith.truncf %11 : vector<16x32xf32> to vector<16x32xbf16>
    %cst_538 = arith.constant dense<0.000000e+00> : vector<16x8xf32>
    %805 = tpu.matmul %804, %803, %cst_538 {dimension_numbers = #tpu.dot_dimension_numbers<[1], [0], [0], [1], [0, 0, 1, 1], [], []>} : vector<16x32xbf16>, vector<32x8xbf16>, vector<16x8xf32> -> vector<16x8xf32>
    %c1_539 = arith.constant 1 : index
    %c0_540 = arith.constant 0 : index
    %c0_541 = arith.constant 0 : index
    %c0_542 = arith.constant 0 : index
    %806 = vector.load %arg19[%c1_539, %c0_540, %c0_541, %c0_542] : memref<2x4x1x8xf32, #tpu.memory_space<vmem>>, vector<1x1x1x8xf32>
    %807 = vector.shape_cast %806 : vector<1x1x1x8xf32> to vector<1x8xf32>
    %808 = vector.broadcast %807 : vector<1x8xf32> to vector<16x8xf32>
    %809 = arith.addf %805, %808 : vector<16x8xf32>
    %c1_543 = arith.constant 1 : index
    %c0_544 = arith.constant 0 : index
    %c0_545 = arith.constant 0 : index
    %c0_546 = arith.constant 0 : index
    %810 = vector.load %arg20[%c1_543, %c0_544, %c0_545, %c0_546] : memref<2x4x32x8xbf16, #tpu.memory_space<vmem>>, vector<1x1x32x8xbf16>
    %811 = vector.shape_cast %810 : vector<1x1x32x8xbf16> to vector<32x8xbf16>
    %812 = arith.truncf %11 : vector<16x32xf32> to vector<16x32xbf16>
    %cst_547 = arith.constant dense<0.000000e+00> : vector<16x8xf32>
    %813 = tpu.matmul %812, %811, %cst_547 {dimension_numbers = #tpu.dot_dimension_numbers<[1], [0], [0], [1], [0, 0, 1, 1], [], []>} : vector<16x32xbf16>, vector<32x8xbf16>, vector<16x8xf32> -> vector<16x8xf32>
    %c1_548 = arith.constant 1 : index
    %c0_549 = arith.constant 0 : index
    %c0_550 = arith.constant 0 : index
    %c0_551 = arith.constant 0 : index
    %814 = vector.load %arg21[%c1_548, %c0_549, %c0_550, %c0_551] : memref<2x4x1x8xf32, #tpu.memory_space<vmem>>, vector<1x1x1x8xf32>
    %815 = vector.shape_cast %814 : vector<1x1x1x8xf32> to vector<1x8xf32>
    %816 = vector.broadcast %815 : vector<1x8xf32> to vector<16x8xf32>
    %817 = arith.addf %813, %816 : vector<16x8xf32>
    %cst_552 = arith.constant 0.353553385 : f32
    %818 = vector.broadcast %cst_552 : f32 to vector<8x8xf32>
    %819 = arith.mulf %801, %818 : vector<8x8xf32>
    %820 = arith.truncf %819 : vector<8x8xf32> to vector<8x8xbf16>
    %821 = arith.truncf %809 : vector<16x8xf32> to vector<16x8xbf16>
    %cst_553 = arith.constant dense<0.000000e+00> : vector<8x16xf32>
    %822 = tpu.matmul %820, %821, %cst_553 {dimension_numbers = #tpu.dot_dimension_numbers<[1], [1], [0], [0], [0, 0, 1, 0], [], []>} : vector<8x8xbf16>, vector<16x8xbf16>, vector<8x16xf32> -> vector<8x16xf32>
    %cst_554 = arith.constant dense<0xFF800000> : vector<8xf32>
    %823 = vector.multi_reduction <maximumf>, %822, %cst_554 [1] : vector<8x16xf32> to vector<8xf32>
    %824 = vector.shape_cast %823 : vector<8xf32> to vector<8x1xf32>
    %825 = vector.broadcast %824 : vector<8x1xf32> to vector<8x16xf32>
    %826 = arith.subf %822, %825 : vector<8x16xf32>
    %827 = math.exp %826 : vector<8x16xf32>
    %cst_555 = arith.constant dense<0.000000e+00> : vector<8xf32>
    %828 = vector.multi_reduction <add>, %827, %cst_555 [1] : vector<8x16xf32> to vector<8xf32>
    %829 = vector.shape_cast %828 : vector<8xf32> to vector<8x1xf32>
    %830 = tpu.reciprocal %829 {approx = true} : vector<8x1xf32> -> vector<8x1xf32>
    %831 = vector.broadcast %830 : vector<8x1xf32> to vector<8x16xf32>
    %832 = arith.mulf %827, %831 : vector<8x16xf32>
    %833 = arith.truncf %832 : vector<8x16xf32> to vector<8x16xbf16>
    %834 = arith.truncf %817 : vector<16x8xf32> to vector<16x8xbf16>
    %cst_556 = arith.constant dense<0.000000e+00> : vector<8x8xf32>
    %835 = tpu.matmul %833, %834, %cst_556 {dimension_numbers = #tpu.dot_dimension_numbers<[1], [0], [0], [1], [0, 0, 1, 1], [], []>} : vector<8x16xbf16>, vector<16x8xbf16>, vector<8x8xf32> -> vector<8x8xf32>
    %c1_557 = arith.constant 1 : index
    %c0_558 = arith.constant 0 : index
    %c0_559 = arith.constant 0 : index
    %c0_560 = arith.constant 0 : index
    %836 = vector.load %arg22[%c1_557, %c0_558, %c0_559, %c0_560] : memref<2x4x8x32xbf16, #tpu.memory_space<vmem>>, vector<1x1x8x32xbf16>
    %837 = vector.shape_cast %836 : vector<1x1x8x32xbf16> to vector<8x32xbf16>
    %838 = arith.truncf %835 : vector<8x8xf32> to vector<8x8xbf16>
    %cst_561 = arith.constant dense<0.000000e+00> : vector<8x32xf32>
    %839 = tpu.matmul %838, %837, %cst_561 {dimension_numbers = #tpu.dot_dimension_numbers<[1], [0], [0], [1], [0, 0, 1, 1], [], []>} : vector<8x8xbf16>, vector<8x32xbf16>, vector<8x32xf32> -> vector<8x32xf32>
    %c1_562 = arith.constant 1 : index
    %c1_563 = arith.constant 1 : index
    %c0_564 = arith.constant 0 : index
    %c0_565 = arith.constant 0 : index
    %840 = vector.load %arg16[%c1_562, %c1_563, %c0_564, %c0_565] : memref<2x4x32x8xbf16, #tpu.memory_space<vmem>>, vector<1x1x32x8xbf16>
    %841 = vector.shape_cast %840 : vector<1x1x32x8xbf16> to vector<32x8xbf16>
    %842 = arith.truncf %793 : vector<8x32xf32> to vector<8x32xbf16>
    %cst_566 = arith.constant dense<0.000000e+00> : vector<8x8xf32>
    %843 = tpu.matmul %842, %841, %cst_566 {dimension_numbers = #tpu.dot_dimension_numbers<[1], [0], [0], [1], [0, 0, 1, 1], [], []>} : vector<8x32xbf16>, vector<32x8xbf16>, vector<8x8xf32> -> vector<8x8xf32>
    %c1_567 = arith.constant 1 : index
    %c1_568 = arith.constant 1 : index
    %c0_569 = arith.constant 0 : index
    %c0_570 = arith.constant 0 : index
    %844 = vector.load %arg17[%c1_567, %c1_568, %c0_569, %c0_570] : memref<2x4x1x8xf32, #tpu.memory_space<vmem>>, vector<1x1x1x8xf32>
    %845 = vector.shape_cast %844 : vector<1x1x1x8xf32> to vector<1x8xf32>
    %846 = vector.broadcast %845 : vector<1x8xf32> to vector<8x8xf32>
    %847 = arith.addf %843, %846 : vector<8x8xf32>
    %c1_571 = arith.constant 1 : index
    %c1_572 = arith.constant 1 : index
    %c0_573 = arith.constant 0 : index
    %c0_574 = arith.constant 0 : index
    %848 = vector.load %arg18[%c1_571, %c1_572, %c0_573, %c0_574] : memref<2x4x32x8xbf16, #tpu.memory_space<vmem>>, vector<1x1x32x8xbf16>
    %849 = vector.shape_cast %848 : vector<1x1x32x8xbf16> to vector<32x8xbf16>
    %850 = arith.truncf %11 : vector<16x32xf32> to vector<16x32xbf16>
    %cst_575 = arith.constant dense<0.000000e+00> : vector<16x8xf32>
    %851 = tpu.matmul %850, %849, %cst_575 {dimension_numbers = #tpu.dot_dimension_numbers<[1], [0], [0], [1], [0, 0, 1, 1], [], []>} : vector<16x32xbf16>, vector<32x8xbf16>, vector<16x8xf32> -> vector<16x8xf32>
    %c1_576 = arith.constant 1 : index
    %c1_577 = arith.constant 1 : index
    %c0_578 = arith.constant 0 : index
    %c0_579 = arith.constant 0 : index
    %852 = vector.load %arg19[%c1_576, %c1_577, %c0_578, %c0_579] : memref<2x4x1x8xf32, #tpu.memory_space<vmem>>, vector<1x1x1x8xf32>
    %853 = vector.shape_cast %852 : vector<1x1x1x8xf32> to vector<1x8xf32>
    %854 = vector.broadcast %853 : vector<1x8xf32> to vector<16x8xf32>
    %855 = arith.addf %851, %854 : vector<16x8xf32>
    %c1_580 = arith.constant 1 : index
    %c1_581 = arith.constant 1 : index
    %c0_582 = arith.constant 0 : index
    %c0_583 = arith.constant 0 : index
    %856 = vector.load %arg20[%c1_580, %c1_581, %c0_582, %c0_583] : memref<2x4x32x8xbf16, #tpu.memory_space<vmem>>, vector<1x1x32x8xbf16>
    %857 = vector.shape_cast %856 : vector<1x1x32x8xbf16> to vector<32x8xbf16>
    %858 = arith.truncf %11 : vector<16x32xf32> to vector<16x32xbf16>
    %cst_584 = arith.constant dense<0.000000e+00> : vector<16x8xf32>
    %859 = tpu.matmul %858, %857, %cst_584 {dimension_numbers = #tpu.dot_dimension_numbers<[1], [0], [0], [1], [0, 0, 1, 1], [], []>} : vector<16x32xbf16>, vector<32x8xbf16>, vector<16x8xf32> -> vector<16x8xf32>
    %c1_585 = arith.constant 1 : index
    %c1_586 = arith.constant 1 : index
    %c0_587 = arith.constant 0 : index
    %c0_588 = arith.constant 0 : index
    %860 = vector.load %arg21[%c1_585, %c1_586, %c0_587, %c0_588] : memref<2x4x1x8xf32, #tpu.memory_space<vmem>>, vector<1x1x1x8xf32>
    %861 = vector.shape_cast %860 : vector<1x1x1x8xf32> to vector<1x8xf32>
    %862 = vector.broadcast %861 : vector<1x8xf32> to vector<16x8xf32>
    %863 = arith.addf %859, %862 : vector<16x8xf32>
    %cst_589 = arith.constant 0.353553385 : f32
    %864 = vector.broadcast %cst_589 : f32 to vector<8x8xf32>
    %865 = arith.mulf %847, %864 : vector<8x8xf32>
    %866 = arith.truncf %865 : vector<8x8xf32> to vector<8x8xbf16>
    %867 = arith.truncf %855 : vector<16x8xf32> to vector<16x8xbf16>
    %cst_590 = arith.constant dense<0.000000e+00> : vector<8x16xf32>
    %868 = tpu.matmul %866, %867, %cst_590 {dimension_numbers = #tpu.dot_dimension_numbers<[1], [1], [0], [0], [0, 0, 1, 0], [], []>} : vector<8x8xbf16>, vector<16x8xbf16>, vector<8x16xf32> -> vector<8x16xf32>
    %cst_591 = arith.constant dense<0xFF800000> : vector<8xf32>
    %869 = vector.multi_reduction <maximumf>, %868, %cst_591 [1] : vector<8x16xf32> to vector<8xf32>
    %870 = vector.shape_cast %869 : vector<8xf32> to vector<8x1xf32>
    %871 = vector.broadcast %870 : vector<8x1xf32> to vector<8x16xf32>
    %872 = arith.subf %868, %871 : vector<8x16xf32>
    %873 = math.exp %872 : vector<8x16xf32>
    %cst_592 = arith.constant dense<0.000000e+00> : vector<8xf32>
    %874 = vector.multi_reduction <add>, %873, %cst_592 [1] : vector<8x16xf32> to vector<8xf32>
    %875 = vector.shape_cast %874 : vector<8xf32> to vector<8x1xf32>
    %876 = tpu.reciprocal %875 {approx = true} : vector<8x1xf32> -> vector<8x1xf32>
    %877 = vector.broadcast %876 : vector<8x1xf32> to vector<8x16xf32>
    %878 = arith.mulf %873, %877 : vector<8x16xf32>
    %879 = arith.truncf %878 : vector<8x16xf32> to vector<8x16xbf16>
    %880 = arith.truncf %863 : vector<16x8xf32> to vector<16x8xbf16>
    %cst_593 = arith.constant dense<0.000000e+00> : vector<8x8xf32>
    %881 = tpu.matmul %879, %880, %cst_593 {dimension_numbers = #tpu.dot_dimension_numbers<[1], [0], [0], [1], [0, 0, 1, 1], [], []>} : vector<8x16xbf16>, vector<16x8xbf16>, vector<8x8xf32> -> vector<8x8xf32>
    %c1_594 = arith.constant 1 : index
    %c1_595 = arith.constant 1 : index
    %c0_596 = arith.constant 0 : index
    %c0_597 = arith.constant 0 : index
    %882 = vector.load %arg22[%c1_594, %c1_595, %c0_596, %c0_597] : memref<2x4x8x32xbf16, #tpu.memory_space<vmem>>, vector<1x1x8x32xbf16>
    %883 = vector.shape_cast %882 : vector<1x1x8x32xbf16> to vector<8x32xbf16>
    %884 = arith.truncf %881 : vector<8x8xf32> to vector<8x8xbf16>
    %cst_598 = arith.constant dense<0.000000e+00> : vector<8x32xf32>
    %885 = tpu.matmul %884, %883, %cst_598 {dimension_numbers = #tpu.dot_dimension_numbers<[1], [0], [0], [1], [0, 0, 1, 1], [], []>} : vector<8x8xbf16>, vector<8x32xbf16>, vector<8x32xf32> -> vector<8x32xf32>
    %886 = arith.addf %839, %885 : vector<8x32xf32>
    %c1_599 = arith.constant 1 : index
    %c2_600 = arith.constant 2 : index
    %c0_601 = arith.constant 0 : index
    %c0_602 = arith.constant 0 : index
    %887 = vector.load %arg16[%c1_599, %c2_600, %c0_601, %c0_602] : memref<2x4x32x8xbf16, #tpu.memory_space<vmem>>, vector<1x1x32x8xbf16>
    %888 = vector.shape_cast %887 : vector<1x1x32x8xbf16> to vector<32x8xbf16>
    %889 = arith.truncf %793 : vector<8x32xf32> to vector<8x32xbf16>
    %cst_603 = arith.constant dense<0.000000e+00> : vector<8x8xf32>
    %890 = tpu.matmul %889, %888, %cst_603 {dimension_numbers = #tpu.dot_dimension_numbers<[1], [0], [0], [1], [0, 0, 1, 1], [], []>} : vector<8x32xbf16>, vector<32x8xbf16>, vector<8x8xf32> -> vector<8x8xf32>
    %c1_604 = arith.constant 1 : index
    %c2_605 = arith.constant 2 : index
    %c0_606 = arith.constant 0 : index
    %c0_607 = arith.constant 0 : index
    %891 = vector.load %arg17[%c1_604, %c2_605, %c0_606, %c0_607] : memref<2x4x1x8xf32, #tpu.memory_space<vmem>>, vector<1x1x1x8xf32>
    %892 = vector.shape_cast %891 : vector<1x1x1x8xf32> to vector<1x8xf32>
    %893 = vector.broadcast %892 : vector<1x8xf32> to vector<8x8xf32>
    %894 = arith.addf %890, %893 : vector<8x8xf32>
    %c1_608 = arith.constant 1 : index
    %c2_609 = arith.constant 2 : index
    %c0_610 = arith.constant 0 : index
    %c0_611 = arith.constant 0 : index
    %895 = vector.load %arg18[%c1_608, %c2_609, %c0_610, %c0_611] : memref<2x4x32x8xbf16, #tpu.memory_space<vmem>>, vector<1x1x32x8xbf16>
    %896 = vector.shape_cast %895 : vector<1x1x32x8xbf16> to vector<32x8xbf16>
    %897 = arith.truncf %11 : vector<16x32xf32> to vector<16x32xbf16>
    %cst_612 = arith.constant dense<0.000000e+00> : vector<16x8xf32>
    %898 = tpu.matmul %897, %896, %cst_612 {dimension_numbers = #tpu.dot_dimension_numbers<[1], [0], [0], [1], [0, 0, 1, 1], [], []>} : vector<16x32xbf16>, vector<32x8xbf16>, vector<16x8xf32> -> vector<16x8xf32>
    %c1_613 = arith.constant 1 : index
    %c2_614 = arith.constant 2 : index
    %c0_615 = arith.constant 0 : index
    %c0_616 = arith.constant 0 : index
    %899 = vector.load %arg19[%c1_613, %c2_614, %c0_615, %c0_616] : memref<2x4x1x8xf32, #tpu.memory_space<vmem>>, vector<1x1x1x8xf32>
    %900 = vector.shape_cast %899 : vector<1x1x1x8xf32> to vector<1x8xf32>
    %901 = vector.broadcast %900 : vector<1x8xf32> to vector<16x8xf32>
    %902 = arith.addf %898, %901 : vector<16x8xf32>
    %c1_617 = arith.constant 1 : index
    %c2_618 = arith.constant 2 : index
    %c0_619 = arith.constant 0 : index
    %c0_620 = arith.constant 0 : index
    %903 = vector.load %arg20[%c1_617, %c2_618, %c0_619, %c0_620] : memref<2x4x32x8xbf16, #tpu.memory_space<vmem>>, vector<1x1x32x8xbf16>
    %904 = vector.shape_cast %903 : vector<1x1x32x8xbf16> to vector<32x8xbf16>
    %905 = arith.truncf %11 : vector<16x32xf32> to vector<16x32xbf16>
    %cst_621 = arith.constant dense<0.000000e+00> : vector<16x8xf32>
    %906 = tpu.matmul %905, %904, %cst_621 {dimension_numbers = #tpu.dot_dimension_numbers<[1], [0], [0], [1], [0, 0, 1, 1], [], []>} : vector<16x32xbf16>, vector<32x8xbf16>, vector<16x8xf32> -> vector<16x8xf32>
    %c1_622 = arith.constant 1 : index
    %c2_623 = arith.constant 2 : index
    %c0_624 = arith.constant 0 : index
    %c0_625 = arith.constant 0 : index
    %907 = vector.load %arg21[%c1_622, %c2_623, %c0_624, %c0_625] : memref<2x4x1x8xf32, #tpu.memory_space<vmem>>, vector<1x1x1x8xf32>
    %908 = vector.shape_cast %907 : vector<1x1x1x8xf32> to vector<1x8xf32>
    %909 = vector.broadcast %908 : vector<1x8xf32> to vector<16x8xf32>
    %910 = arith.addf %906, %909 : vector<16x8xf32>
    %cst_626 = arith.constant 0.353553385 : f32
    %911 = vector.broadcast %cst_626 : f32 to vector<8x8xf32>
    %912 = arith.mulf %894, %911 : vector<8x8xf32>
    %913 = arith.truncf %912 : vector<8x8xf32> to vector<8x8xbf16>
    %914 = arith.truncf %902 : vector<16x8xf32> to vector<16x8xbf16>
    %cst_627 = arith.constant dense<0.000000e+00> : vector<8x16xf32>
    %915 = tpu.matmul %913, %914, %cst_627 {dimension_numbers = #tpu.dot_dimension_numbers<[1], [1], [0], [0], [0, 0, 1, 0], [], []>} : vector<8x8xbf16>, vector<16x8xbf16>, vector<8x16xf32> -> vector<8x16xf32>
    %cst_628 = arith.constant dense<0xFF800000> : vector<8xf32>
    %916 = vector.multi_reduction <maximumf>, %915, %cst_628 [1] : vector<8x16xf32> to vector<8xf32>
    %917 = vector.shape_cast %916 : vector<8xf32> to vector<8x1xf32>
    %918 = vector.broadcast %917 : vector<8x1xf32> to vector<8x16xf32>
    %919 = arith.subf %915, %918 : vector<8x16xf32>
    %920 = math.exp %919 : vector<8x16xf32>
    %cst_629 = arith.constant dense<0.000000e+00> : vector<8xf32>
    %921 = vector.multi_reduction <add>, %920, %cst_629 [1] : vector<8x16xf32> to vector<8xf32>
    %922 = vector.shape_cast %921 : vector<8xf32> to vector<8x1xf32>
    %923 = tpu.reciprocal %922 {approx = true} : vector<8x1xf32> -> vector<8x1xf32>
    %924 = vector.broadcast %923 : vector<8x1xf32> to vector<8x16xf32>
    %925 = arith.mulf %920, %924 : vector<8x16xf32>
    %926 = arith.truncf %925 : vector<8x16xf32> to vector<8x16xbf16>
    %927 = arith.truncf %910 : vector<16x8xf32> to vector<16x8xbf16>
    %cst_630 = arith.constant dense<0.000000e+00> : vector<8x8xf32>
    %928 = tpu.matmul %926, %927, %cst_630 {dimension_numbers = #tpu.dot_dimension_numbers<[1], [0], [0], [1], [0, 0, 1, 1], [], []>} : vector<8x16xbf16>, vector<16x8xbf16>, vector<8x8xf32> -> vector<8x8xf32>
    %c1_631 = arith.constant 1 : index
    %c2_632 = arith.constant 2 : index
    %c0_633 = arith.constant 0 : index
    %c0_634 = arith.constant 0 : index
    %929 = vector.load %arg22[%c1_631, %c2_632, %c0_633, %c0_634] : memref<2x4x8x32xbf16, #tpu.memory_space<vmem>>, vector<1x1x8x32xbf16>
    %930 = vector.shape_cast %929 : vector<1x1x8x32xbf16> to vector<8x32xbf16>
    %931 = arith.truncf %928 : vector<8x8xf32> to vector<8x8xbf16>
    %cst_635 = arith.constant dense<0.000000e+00> : vector<8x32xf32>
    %932 = tpu.matmul %931, %930, %cst_635 {dimension_numbers = #tpu.dot_dimension_numbers<[1], [0], [0], [1], [0, 0, 1, 1], [], []>} : vector<8x8xbf16>, vector<8x32xbf16>, vector<8x32xf32> -> vector<8x32xf32>
    %933 = arith.addf %886, %932 : vector<8x32xf32>
    %c1_636 = arith.constant 1 : index
    %c3_637 = arith.constant 3 : index
    %c0_638 = arith.constant 0 : index
    %c0_639 = arith.constant 0 : index
    %934 = vector.load %arg16[%c1_636, %c3_637, %c0_638, %c0_639] : memref<2x4x32x8xbf16, #tpu.memory_space<vmem>>, vector<1x1x32x8xbf16>
    %935 = vector.shape_cast %934 : vector<1x1x32x8xbf16> to vector<32x8xbf16>
    %936 = arith.truncf %793 : vector<8x32xf32> to vector<8x32xbf16>
    %cst_640 = arith.constant dense<0.000000e+00> : vector<8x8xf32>
    %937 = tpu.matmul %936, %935, %cst_640 {dimension_numbers = #tpu.dot_dimension_numbers<[1], [0], [0], [1], [0, 0, 1, 1], [], []>} : vector<8x32xbf16>, vector<32x8xbf16>, vector<8x8xf32> -> vector<8x8xf32>
    %c1_641 = arith.constant 1 : index
    %c3_642 = arith.constant 3 : index
    %c0_643 = arith.constant 0 : index
    %c0_644 = arith.constant 0 : index
    %938 = vector.load %arg17[%c1_641, %c3_642, %c0_643, %c0_644] : memref<2x4x1x8xf32, #tpu.memory_space<vmem>>, vector<1x1x1x8xf32>
    %939 = vector.shape_cast %938 : vector<1x1x1x8xf32> to vector<1x8xf32>
    %940 = vector.broadcast %939 : vector<1x8xf32> to vector<8x8xf32>
    %941 = arith.addf %937, %940 : vector<8x8xf32>
    %c1_645 = arith.constant 1 : index
    %c3_646 = arith.constant 3 : index
    %c0_647 = arith.constant 0 : index
    %c0_648 = arith.constant 0 : index
    %942 = vector.load %arg18[%c1_645, %c3_646, %c0_647, %c0_648] : memref<2x4x32x8xbf16, #tpu.memory_space<vmem>>, vector<1x1x32x8xbf16>
    %943 = vector.shape_cast %942 : vector<1x1x32x8xbf16> to vector<32x8xbf16>
    %944 = arith.truncf %11 : vector<16x32xf32> to vector<16x32xbf16>
    %cst_649 = arith.constant dense<0.000000e+00> : vector<16x8xf32>
    %945 = tpu.matmul %944, %943, %cst_649 {dimension_numbers = #tpu.dot_dimension_numbers<[1], [0], [0], [1], [0, 0, 1, 1], [], []>} : vector<16x32xbf16>, vector<32x8xbf16>, vector<16x8xf32> -> vector<16x8xf32>
    %c1_650 = arith.constant 1 : index
    %c3_651 = arith.constant 3 : index
    %c0_652 = arith.constant 0 : index
    %c0_653 = arith.constant 0 : index
    %946 = vector.load %arg19[%c1_650, %c3_651, %c0_652, %c0_653] : memref<2x4x1x8xf32, #tpu.memory_space<vmem>>, vector<1x1x1x8xf32>
    %947 = vector.shape_cast %946 : vector<1x1x1x8xf32> to vector<1x8xf32>
    %948 = vector.broadcast %947 : vector<1x8xf32> to vector<16x8xf32>
    %949 = arith.addf %945, %948 : vector<16x8xf32>
    %c1_654 = arith.constant 1 : index
    %c3_655 = arith.constant 3 : index
    %c0_656 = arith.constant 0 : index
    %c0_657 = arith.constant 0 : index
    %950 = vector.load %arg20[%c1_654, %c3_655, %c0_656, %c0_657] : memref<2x4x32x8xbf16, #tpu.memory_space<vmem>>, vector<1x1x32x8xbf16>
    %951 = vector.shape_cast %950 : vector<1x1x32x8xbf16> to vector<32x8xbf16>
    %952 = arith.truncf %11 : vector<16x32xf32> to vector<16x32xbf16>
    %cst_658 = arith.constant dense<0.000000e+00> : vector<16x8xf32>
    %953 = tpu.matmul %952, %951, %cst_658 {dimension_numbers = #tpu.dot_dimension_numbers<[1], [0], [0], [1], [0, 0, 1, 1], [], []>} : vector<16x32xbf16>, vector<32x8xbf16>, vector<16x8xf32> -> vector<16x8xf32>
    %c1_659 = arith.constant 1 : index
    %c3_660 = arith.constant 3 : index
    %c0_661 = arith.constant 0 : index
    %c0_662 = arith.constant 0 : index
    %954 = vector.load %arg21[%c1_659, %c3_660, %c0_661, %c0_662] : memref<2x4x1x8xf32, #tpu.memory_space<vmem>>, vector<1x1x1x8xf32>
    %955 = vector.shape_cast %954 : vector<1x1x1x8xf32> to vector<1x8xf32>
    %956 = vector.broadcast %955 : vector<1x8xf32> to vector<16x8xf32>
    %957 = arith.addf %953, %956 : vector<16x8xf32>
    %cst_663 = arith.constant 0.353553385 : f32
    %958 = vector.broadcast %cst_663 : f32 to vector<8x8xf32>
    %959 = arith.mulf %941, %958 : vector<8x8xf32>
    %960 = arith.truncf %959 : vector<8x8xf32> to vector<8x8xbf16>
    %961 = arith.truncf %949 : vector<16x8xf32> to vector<16x8xbf16>
    %cst_664 = arith.constant dense<0.000000e+00> : vector<8x16xf32>
    %962 = tpu.matmul %960, %961, %cst_664 {dimension_numbers = #tpu.dot_dimension_numbers<[1], [1], [0], [0], [0, 0, 1, 0], [], []>} : vector<8x8xbf16>, vector<16x8xbf16>, vector<8x16xf32> -> vector<8x16xf32>
    %cst_665 = arith.constant dense<0xFF800000> : vector<8xf32>
    %963 = vector.multi_reduction <maximumf>, %962, %cst_665 [1] : vector<8x16xf32> to vector<8xf32>
    %964 = vector.shape_cast %963 : vector<8xf32> to vector<8x1xf32>
    %965 = vector.broadcast %964 : vector<8x1xf32> to vector<8x16xf32>
    %966 = arith.subf %962, %965 : vector<8x16xf32>
    %967 = math.exp %966 : vector<8x16xf32>
    %cst_666 = arith.constant dense<0.000000e+00> : vector<8xf32>
    %968 = vector.multi_reduction <add>, %967, %cst_666 [1] : vector<8x16xf32> to vector<8xf32>
    %969 = vector.shape_cast %968 : vector<8xf32> to vector<8x1xf32>
    %970 = tpu.reciprocal %969 {approx = true} : vector<8x1xf32> -> vector<8x1xf32>
    %971 = vector.broadcast %970 : vector<8x1xf32> to vector<8x16xf32>
    %972 = arith.mulf %967, %971 : vector<8x16xf32>
    %973 = arith.truncf %972 : vector<8x16xf32> to vector<8x16xbf16>
    %974 = arith.truncf %957 : vector<16x8xf32> to vector<16x8xbf16>
    %cst_667 = arith.constant dense<0.000000e+00> : vector<8x8xf32>
    %975 = tpu.matmul %973, %974, %cst_667 {dimension_numbers = #tpu.dot_dimension_numbers<[1], [0], [0], [1], [0, 0, 1, 1], [], []>} : vector<8x16xbf16>, vector<16x8xbf16>, vector<8x8xf32> -> vector<8x8xf32>
    %c1_668 = arith.constant 1 : index
    %c3_669 = arith.constant 3 : index
    %c0_670 = arith.constant 0 : index
    %c0_671 = arith.constant 0 : index
    %976 = vector.load %arg22[%c1_668, %c3_669, %c0_670, %c0_671] : memref<2x4x8x32xbf16, #tpu.memory_space<vmem>>, vector<1x1x8x32xbf16>
    %977 = vector.shape_cast %976 : vector<1x1x8x32xbf16> to vector<8x32xbf16>
    %978 = arith.truncf %975 : vector<8x8xf32> to vector<8x8xbf16>
    %cst_672 = arith.constant dense<0.000000e+00> : vector<8x32xf32>
    %979 = tpu.matmul %978, %977, %cst_672 {dimension_numbers = #tpu.dot_dimension_numbers<[1], [0], [0], [1], [0, 0, 1, 1], [], []>} : vector<8x8xbf16>, vector<8x32xbf16>, vector<8x32xf32> -> vector<8x32xf32>
    %980 = arith.addf %933, %979 : vector<8x32xf32>
    %c1_673 = arith.constant 1 : index
    %c0_674 = arith.constant 0 : index
    %c0_675 = arith.constant 0 : index
    %981 = vector.load %arg23[%c1_673, %c0_674, %c0_675] : memref<2x1x32xf32, #tpu.memory_space<vmem>>, vector<1x1x32xf32>
    %982 = vector.shape_cast %981 : vector<1x1x32xf32> to vector<1x32xf32>
    %983 = vector.broadcast %982 : vector<1x32xf32> to vector<8x32xf32>
    %984 = arith.addf %980, %983 : vector<8x32xf32>
    %985 = arith.addf %771, %984 : vector<8x32xf32>
    %986 = vector.extract_strided_slice %529 {offsets = [6, 0], sizes = [1, 32], strides = [1, 1]} : vector<8x32xf32> to vector<1x32xf32>
    %987 = vector.extract_strided_slice %529 {offsets = [7, 0], sizes = [1, 32], strides = [1, 1]} : vector<8x32xf32> to vector<1x32xf32>
    %cst_676 = arith.constant dense<0.000000e+00> : vector<8xf32>
    %988 = vector.multi_reduction <add>, %985, %cst_676 [1] : vector<8x32xf32> to vector<8xf32>
    %989 = vector.shape_cast %988 : vector<8xf32> to vector<8x1xf32>
    %cst_677 = arith.constant 3.200000e+01 : f32
    %990 = vector.broadcast %cst_677 : f32 to vector<8x1xf32>
    %991 = arith.divf %989, %990 : vector<8x1xf32>
    %992 = vector.broadcast %991 : vector<8x1xf32> to vector<8x32xf32>
    %993 = arith.subf %985, %992 : vector<8x32xf32>
    %994 = arith.mulf %993, %993 : vector<8x32xf32>
    %cst_678 = arith.constant dense<0.000000e+00> : vector<8xf32>
    %995 = vector.multi_reduction <add>, %994, %cst_678 [1] : vector<8x32xf32> to vector<8xf32>
    %996 = vector.shape_cast %995 : vector<8xf32> to vector<8x1xf32>
    %cst_679 = arith.constant 3.200000e+01 : f32
    %997 = vector.broadcast %cst_679 : f32 to vector<8x1xf32>
    %998 = arith.divf %996, %997 : vector<8x1xf32>
    %cst_680 = arith.constant 9.99999974E-6 : f32
    %999 = vector.broadcast %cst_680 : f32 to vector<8x1xf32>
    %1000 = arith.addf %998, %999 : vector<8x1xf32>
    %1001 = math.rsqrt %1000 : vector<8x1xf32>
    %1002 = vector.broadcast %1001 : vector<8x1xf32> to vector<8x32xf32>
    %1003 = arith.mulf %993, %1002 : vector<8x32xf32>
    %1004 = vector.broadcast %986 : vector<1x32xf32> to vector<8x32xf32>
    %1005 = arith.mulf %1003, %1004 : vector<8x32xf32>
    %1006 = vector.broadcast %987 : vector<1x32xf32> to vector<8x32xf32>
    %1007 = arith.addf %1005, %1006 : vector<8x32xf32>
    %c1_681 = arith.constant 1 : index
    %c0_682 = arith.constant 0 : index
    %c0_683 = arith.constant 0 : index
    %1008 = vector.load %arg24[%c1_681, %c0_682, %c0_683] : memref<2x32x64xbf16, #tpu.memory_space<vmem>>, vector<1x32x64xbf16>
    %1009 = vector.shape_cast %1008 : vector<1x32x64xbf16> to vector<32x64xbf16>
    %1010 = arith.truncf %1007 : vector<8x32xf32> to vector<8x32xbf16>
    %cst_684 = arith.constant dense<0.000000e+00> : vector<8x64xf32>
    %1011 = tpu.matmul %1010, %1009, %cst_684 {dimension_numbers = #tpu.dot_dimension_numbers<[1], [0], [0], [1], [0, 0, 1, 1], [], []>} : vector<8x32xbf16>, vector<32x64xbf16>, vector<8x64xf32> -> vector<8x64xf32>
    %c1_685 = arith.constant 1 : index
    %c0_686 = arith.constant 0 : index
    %c0_687 = arith.constant 0 : index
    %1012 = vector.load %arg25[%c1_685, %c0_686, %c0_687] : memref<2x1x64xf32, #tpu.memory_space<vmem>>, vector<1x1x64xf32>
    %1013 = vector.shape_cast %1012 : vector<1x1x64xf32> to vector<1x64xf32>
    %1014 = vector.broadcast %1013 : vector<1x64xf32> to vector<8x64xf32>
    %1015 = arith.addf %1011, %1014 : vector<8x64xf32>
    %cst_688 = arith.constant 5.000000e-01 : f32
    %1016 = vector.broadcast %cst_688 : f32 to vector<8x64xf32>
    %1017 = arith.mulf %1016, %1015 : vector<8x64xf32>
    %cst_689 = arith.constant 4.471500e-02 : f32
    %1018 = vector.broadcast %cst_689 : f32 to vector<8x64xf32>
    %1019 = arith.mulf %1018, %1015 : vector<8x64xf32>
    %1020 = arith.mulf %1019, %1015 : vector<8x64xf32>
    %1021 = arith.mulf %1020, %1015 : vector<8x64xf32>
    %1022 = arith.addf %1015, %1021 : vector<8x64xf32>
    %cst_690 = arith.constant 0.797884583 : f32
    %1023 = vector.broadcast %cst_690 : f32 to vector<8x64xf32>
    %1024 = arith.mulf %1023, %1022 : vector<8x64xf32>
    %1025 = math.tanh %1024 : vector<8x64xf32>
    %cst_691 = arith.constant 1.000000e+00 : f32
    %1026 = vector.broadcast %cst_691 : f32 to vector<8x64xf32>
    %1027 = arith.addf %1026, %1025 : vector<8x64xf32>
    %1028 = arith.mulf %1017, %1027 : vector<8x64xf32>
    %c1_692 = arith.constant 1 : index
    %c0_693 = arith.constant 0 : index
    %c0_694 = arith.constant 0 : index
    %1029 = vector.load %arg26[%c1_692, %c0_693, %c0_694] : memref<2x64x32xbf16, #tpu.memory_space<vmem>>, vector<1x64x32xbf16>
    %1030 = vector.shape_cast %1029 : vector<1x64x32xbf16> to vector<64x32xbf16>
    %1031 = arith.truncf %1028 : vector<8x64xf32> to vector<8x64xbf16>
    %cst_695 = arith.constant dense<0.000000e+00> : vector<8x32xf32>
    %1032 = tpu.matmul %1031, %1030, %cst_695 {dimension_numbers = #tpu.dot_dimension_numbers<[1], [0], [0], [1], [0, 0, 1, 1], [], []>} : vector<8x64xbf16>, vector<64x32xbf16>, vector<8x32xf32> -> vector<8x32xf32>
    %c1_696 = arith.constant 1 : index
    %c0_697 = arith.constant 0 : index
    %c0_698 = arith.constant 0 : index
    %1033 = vector.load %arg27[%c1_696, %c0_697, %c0_698] : memref<2x1x32xf32, #tpu.memory_space<vmem>>, vector<1x1x32xf32>
    %1034 = vector.shape_cast %1033 : vector<1x1x32xf32> to vector<1x32xf32>
    %1035 = vector.broadcast %1034 : vector<1x32xf32> to vector<8x32xf32>
    %1036 = arith.addf %1032, %1035 : vector<8x32xf32>
    %1037 = arith.addf %985, %1036 : vector<8x32xf32>
    %c0_699 = arith.constant 0 : index
    %c0_700 = arith.constant 0 : index
    %1038 = vector.load %arg28[%c0_699, %c0_700] : memref<2x32xf32, #tpu.memory_space<vmem>>, vector<1x32xf32>
    %c1_701 = arith.constant 1 : index
    %c0_702 = arith.constant 0 : index
    %1039 = vector.load %arg28[%c1_701, %c0_702] : memref<2x32xf32, #tpu.memory_space<vmem>>, vector<1x32xf32>
    %cst_703 = arith.constant dense<0.000000e+00> : vector<8xf32>
    %1040 = vector.multi_reduction <add>, %1037, %cst_703 [1] : vector<8x32xf32> to vector<8xf32>
    %1041 = vector.shape_cast %1040 : vector<8xf32> to vector<8x1xf32>
    %cst_704 = arith.constant 3.200000e+01 : f32
    %1042 = vector.broadcast %cst_704 : f32 to vector<8x1xf32>
    %1043 = arith.divf %1041, %1042 : vector<8x1xf32>
    %1044 = vector.broadcast %1043 : vector<8x1xf32> to vector<8x32xf32>
    %1045 = arith.subf %1037, %1044 : vector<8x32xf32>
    %1046 = arith.mulf %1045, %1045 : vector<8x32xf32>
    %cst_705 = arith.constant dense<0.000000e+00> : vector<8xf32>
    %1047 = vector.multi_reduction <add>, %1046, %cst_705 [1] : vector<8x32xf32> to vector<8xf32>
    %1048 = vector.shape_cast %1047 : vector<8xf32> to vector<8x1xf32>
    %cst_706 = arith.constant 3.200000e+01 : f32
    %1049 = vector.broadcast %cst_706 : f32 to vector<8x1xf32>
    %1050 = arith.divf %1048, %1049 : vector<8x1xf32>
    %cst_707 = arith.constant 9.99999974E-6 : f32
    %1051 = vector.broadcast %cst_707 : f32 to vector<8x1xf32>
    %1052 = arith.addf %1050, %1051 : vector<8x1xf32>
    %1053 = math.rsqrt %1052 : vector<8x1xf32>
    %1054 = vector.broadcast %1053 : vector<8x1xf32> to vector<8x32xf32>
    %1055 = arith.mulf %1045, %1054 : vector<8x32xf32>
    %1056 = vector.broadcast %1038 : vector<1x32xf32> to vector<8x32xf32>
    %1057 = arith.mulf %1055, %1056 : vector<8x32xf32>
    %1058 = vector.broadcast %1039 : vector<1x32xf32> to vector<8x32xf32>
    %1059 = arith.addf %1057, %1058 : vector<8x32xf32>
    %c0_708 = arith.constant 0 : index
    %c0_709 = arith.constant 0 : index
    %c0_710 = arith.constant 0 : index
    %1060 = vector.load %arg29[%c0_708, %c0_709, %c0_710] : memref<1x8x32xf32, #tpu.memory_space<vmem>>, vector<1x8x32xf32>
    %1061 = vector.shape_cast %1060 : vector<1x8x32xf32> to vector<8x32xf32>
    %1062 = vector.shape_cast %1059 : vector<8x32xf32> to vector<1x8x32xf32>
    tpu.vector_store %arg29[%c0_708, %c0_709, %c0_710], %1062 {strides = array<i32>} : memref<1x8x32xf32, #tpu.memory_space<vmem>>, vector<1x8x32xf32>,
    return
  }
  func.func @transform_0(%arg0: i32) -> (i32, i32, i32) {
    %c0_i32 = arith.constant 0 : i32
    %c0_i32_0 = arith.constant 0 : i32
    %c0_i32_1 = arith.constant 0 : i32
    return %arg0, %c0_i32, %c0_i32_0 : i32, i32, i32
  }
  func.func @transform_1(%arg0: i32) -> (i32, i32, i32) {
    %c0_i32 = arith.constant 0 : i32
    %c0_i32_0 = arith.constant 0 : i32
    %c0_i32_1 = arith.constant 0 : i32
    return %arg0, %c0_i32, %c0_i32_0 : i32, i32, i32
  }
  func.func @transform_2(%arg0: i32) -> (i32, i32, i32) {
    %c0_i32 = arith.constant 0 : i32
    %c0_i32_0 = arith.constant 0 : i32
    %c0_i32_1 = arith.constant 0 : i32
    return %arg0, %c0_i32, %c0_i32_0 : i32, i32, i32
  }
  func.func @transform_3(%arg0: i32) -> (i32, i32) {
    %c0_i32 = arith.constant 0 : i32
    %c0_i32_0 = arith.constant 0 : i32
    %c0_i32_1 = arith.constant 0 : i32
    return %c0_i32, %c0_i32_0 : i32, i32
  }
  func.func @transform_4(%arg0: i32) -> (i32, i32) {
    %c0_i32 = arith.constant 0 : i32
    %c0_i32_0 = arith.constant 0 : i32
    %c0_i32_1 = arith.constant 0 : i32
    return %c0_i32, %c0_i32_0 : i32, i32
  }
  func.func @transform_5(%arg0: i32) -> (i32, i32, i32) {
    %c0_i32 = arith.constant 0 : i32
    %c0_i32_0 = arith.constant 0 : i32
    %c0_i32_1 = arith.constant 0 : i32
    return %arg0, %c0_i32, %c0_i32_0 : i32, i32, i32
  }
  func.func @transform_6(%arg0: i32) -> (i32, i32, i32) {
    %c0_i32 = arith.constant 0 : i32
    %c0_i32_0 = arith.constant 0 : i32
    %c0_i32_1 = arith.constant 0 : i32
    %c0_i32_2 = arith.constant 0 : i32
    return %c0_i32, %c0_i32_0, %c0_i32_1 : i32, i32, i32
  }
  func.func @transform_7(%arg0: i32) -> (i32, i32, i32, i32) {
    %c0_i32 = arith.constant 0 : i32
    %c0_i32_0 = arith.constant 0 : i32
    %c0_i32_1 = arith.constant 0 : i32
    %c0_i32_2 = arith.constant 0 : i32
    %c0_i32_3 = arith.constant 0 : i32
    return %c0_i32, %c0_i32_0, %c0_i32_1, %c0_i32_2 : i32, i32, i32, i32
  }
  func.func @transform_8(%arg0: i32) -> (i32, i32, i32, i32) {
    %c0_i32 = arith.constant 0 : i32
    %c0_i32_0 = arith.constant 0 : i32
    %c0_i32_1 = arith.constant 0 : i32
    %c0_i32_2 = arith.constant 0 : i32
    %c0_i32_3 = arith.constant 0 : i32
    return %c0_i32, %c0_i32_0, %c0_i32_1, %c0_i32_2 : i32, i32, i32, i32
  }
  func.func @transform_9(%arg0: i32) -> (i32, i32, i32, i32) {
    %c0_i32 = arith.constant 0 : i32
    %c0_i32_0 = arith.constant 0 : i32
    %c0_i32_1 = arith.constant 0 : i32
    %c0_i32_2 = arith.constant 0 : i32
    %c0_i32_3 = arith.constant 0 : i32
    return %c0_i32, %c0_i32_0, %c0_i32_1, %c0_i32_2 : i32, i32, i32, i32
  }
  func.func @transform_10(%arg0: i32) -> (i32, i32, i32, i32) {
    %c0_i32 = arith.constant 0 : i32
    %c0_i32_0 = arith.constant 0 : i32
    %c0_i32_1 = arith.constant 0 : i32
    %c0_i32_2 = arith.constant 0 : i32
    %c0_i32_3 = arith.constant 0 : i32
    return %c0_i32, %c0_i32_0, %c0_i32_1, %c0_i32_2 : i32, i32, i32, i32
  }
  func.func @transform_11(%arg0: i32) -> (i32, i32, i32, i32) {
    %c0_i32 = arith.constant 0 : i32
    %c0_i32_0 = arith.constant 0 : i32
    %c0_i32_1 = arith.constant 0 : i32
    %c0_i32_2 = arith.constant 0 : i32
    %c0_i32_3 = arith.constant 0 : i32
    return %c0_i32, %c0_i32_0, %c0_i32_1, %c0_i32_2 : i32, i32, i32, i32
  }
  func.func @transform_12(%arg0: i32) -> (i32, i32, i32, i32) {
    %c0_i32 = arith.constant 0 : i32
    %c0_i32_0 = arith.constant 0 : i32
    %c0_i32_1 = arith.constant 0 : i32
    %c0_i32_2 = arith.constant 0 : i32
    %c0_i32_3 = arith.constant 0 : i32
    return %c0_i32, %c0_i32_0, %c0_i32_1, %c0_i32_2 : i32, i32, i32, i32
  }
  func.func @transform_13(%arg0: i32) -> (i32, i32, i32, i32) {
    %c0_i32 = arith.constant 0 : i32
    %c0_i32_0 = arith.constant 0 : i32
    %c0_i32_1 = arith.constant 0 : i32
    %c0_i32_2 = arith.constant 0 : i32
    %c0_i32_3 = arith.constant 0 : i32
    return %c0_i32, %c0_i32_0, %c0_i32_1, %c0_i32_2 : i32, i32, i32, i32
  }
  func.func @transform_14(%arg0: i32) -> (i32, i32, i32) {
    %c0_i32 = arith.constant 0 : i32
    %c0_i32_0 = arith.constant 0 : i32
    %c0_i32_1 = arith.constant 0 : i32
    %c0_i32_2 = arith.constant 0 : i32
    return %c0_i32, %c0_i32_0, %c0_i32_1 : i32, i32, i32
  }
  func.func @transform_15(%arg0: i32) -> (i32, i32, i32, i32) {
    %c0_i32 = arith.constant 0 : i32
    %c0_i32_0 = arith.constant 0 : i32
    %c0_i32_1 = arith.constant 0 : i32
    %c0_i32_2 = arith.constant 0 : i32
    %c0_i32_3 = arith.constant 0 : i32
    return %c0_i32, %c0_i32_0, %c0_i32_1, %c0_i32_2 : i32, i32, i32, i32
  }
  func.func @transform_16(%arg0: i32) -> (i32, i32, i32, i32) {
    %c0_i32 = arith.constant 0 : i32
    %c0_i32_0 = arith.constant 0 : i32
    %c0_i32_1 = arith.constant 0 : i32
    %c0_i32_2 = arith.constant 0 : i32
    %c0_i32_3 = arith.constant 0 : i32
    return %c0_i32, %c0_i32_0, %c0_i32_1, %c0_i32_2 : i32, i32, i32, i32
  }
  func.func @transform_17(%arg0: i32) -> (i32, i32, i32, i32) {
    %c0_i32 = arith.constant 0 : i32
    %c0_i32_0 = arith.constant 0 : i32
    %c0_i32_1 = arith.constant 0 : i32
    %c0_i32_2 = arith.constant 0 : i32
    %c0_i32_3 = arith.constant 0 : i32
    return %c0_i32, %c0_i32_0, %c0_i32_1, %c0_i32_2 : i32, i32, i32, i32
  }
  func.func @transform_18(%arg0: i32) -> (i32, i32, i32, i32) {
    %c0_i32 = arith.constant 0 : i32
    %c0_i32_0 = arith.constant 0 : i32
    %c0_i32_1 = arith.constant 0 : i32
    %c0_i32_2 = arith.constant 0 : i32
    %c0_i32_3 = arith.constant 0 : i32
    return %c0_i32, %c0_i32_0, %c0_i32_1, %c0_i32_2 : i32, i32, i32, i32
  }
  func.func @transform_19(%arg0: i32) -> (i32, i32, i32, i32) {
    %c0_i32 = arith.constant 0 : i32
    %c0_i32_0 = arith.constant 0 : i32
    %c0_i32_1 = arith.constant 0 : i32
    %c0_i32_2 = arith.constant 0 : i32
    %c0_i32_3 = arith.constant 0 : i32
    return %c0_i32, %c0_i32_0, %c0_i32_1, %c0_i32_2 : i32, i32, i32, i32
  }
  func.func @transform_20(%arg0: i32) -> (i32, i32, i32, i32) {
    %c0_i32 = arith.constant 0 : i32
    %c0_i32_0 = arith.constant 0 : i32
    %c0_i32_1 = arith.constant 0 : i32
    %c0_i32_2 = arith.constant 0 : i32
    %c0_i32_3 = arith.constant 0 : i32
    return %c0_i32, %c0_i32_0, %c0_i32_1, %c0_i32_2 : i32, i32, i32, i32
  }
  func.func @transform_21(%arg0: i32) -> (i32, i32, i32, i32) {
    %c0_i32 = arith.constant 0 : i32
    %c0_i32_0 = arith.constant 0 : i32
    %c0_i32_1 = arith.constant 0 : i32
    %c0_i32_2 = arith.constant 0 : i32
    %c0_i32_3 = arith.constant 0 : i32
    return %c0_i32, %c0_i32_0, %c0_i32_1, %c0_i32_2 : i32, i32, i32, i32
  }
  func.func @transform_22(%arg0: i32) -> (i32, i32, i32) {
    %c0_i32 = arith.constant 0 : i32
    %c0_i32_0 = arith.constant 0 : i32
    %c0_i32_1 = arith.constant 0 : i32
    %c0_i32_2 = arith.constant 0 : i32
    return %c0_i32, %c0_i32_0, %c0_i32_1 : i32, i32, i32
  }
  func.func @transform_23(%arg0: i32) -> (i32, i32, i32) {
    %c0_i32 = arith.constant 0 : i32
    %c0_i32_0 = arith.constant 0 : i32
    %c0_i32_1 = arith.constant 0 : i32
    %c0_i32_2 = arith.constant 0 : i32
    return %c0_i32, %c0_i32_0, %c0_i32_1 : i32, i32, i32
  }
  func.func @transform_24(%arg0: i32) -> (i32, i32, i32) {
    %c0_i32 = arith.constant 0 : i32
    %c0_i32_0 = arith.constant 0 : i32
    %c0_i32_1 = arith.constant 0 : i32
    %c0_i32_2 = arith.constant 0 : i32
    return %c0_i32, %c0_i32_0, %c0_i32_1 : i32, i32, i32
  }
  func.func @transform_25(%arg0: i32) -> (i32, i32, i32) {
    %c0_i32 = arith.constant 0 : i32
    %c0_i32_0 = arith.constant 0 : i32
    %c0_i32_1 = arith.constant 0 : i32
    %c0_i32_2 = arith.constant 0 : i32
    return %c0_i32, %c0_i32_0, %c0_i32_1 : i32, i32, i32
  }
  func.func @transform_26(%arg0: i32) -> (i32, i32, i32) {
    %c0_i32 = arith.constant 0 : i32
    %c0_i32_0 = arith.constant 0 : i32
    %c0_i32_1 = arith.constant 0 : i32
    %c0_i32_2 = arith.constant 0 : i32
    return %c0_i32, %c0_i32_0, %c0_i32_1 : i32, i32, i32
  }
  func.func @transform_27(%arg0: i32) -> (i32, i32) {
    %c0_i32 = arith.constant 0 : i32
    %c0_i32_0 = arith.constant 0 : i32
    %c0_i32_1 = arith.constant 0 : i32
    return %c0_i32, %c0_i32_0 : i32, i32
  }
  func.func @transform_28(%arg0: i32) -> (i32, i32, i32) {
    %c0_i32 = arith.constant 0 : i32
    %c0_i32_0 = arith.constant 0 : i32
    %c0_i32_1 = arith.constant 0 : i32
    return %arg0, %c0_i32, %c0_i32_0 : i32, i32, i32
  }
}

</mosaic_0001>

<llo_original>
// kernel: run.1
$region0: #{run.1}
  #allocation0 [shape = 'u32[]', space=smem, size = 0x4, offset = 0x4, fixed_abs, tag = 'smem constant byte address 0x4 - core index']
  #allocation1 [shape = 'u32[144,128]{1,0:T(1,128)}', space=vmem, size = 0x12000, scoped, tag = 'internal scratch']
  %s0 = inlined_call_operand.vmem [shape: f32[2,8,32], index: 0, kind: input, shape index: {}]
  %s1 = inlined_call_operand.vmem [shape: f32[2,8,32], index: 1, kind: input, shape index: {}]
  %s2 = inlined_call_operand.vmem [shape: f32[2,16,32], index: 2, kind: input, shape index: {}]
  %s3 = inlined_call_operand.vmem [shape: f32[8,8], index: 3, kind: input, shape index: {}]
  %s4 = inlined_call_operand.vmem [shape: f32[8,8], index: 4, kind: input, shape index: {}]
  %s5 = inlined_call_operand.vmem [shape: f32[2,1,8], index: 5, kind: input, shape index: {}]
  %s6 = inlined_call_operand.vmem [shape: f32[2,8,32], index: 6, kind: input, shape index: {}]
  %s7 = inlined_call_operand.vmem [shape: bf16[2,4,32,8], index: 7, kind: input, shape index: {}]
  %s8 = inlined_call_operand.vmem [shape: f32[2,4,1,8], index: 8, kind: input, shape index: {}]
  %s9 = inlined_call_operand.vmem [shape: bf16[2,4,32,8], index: 9, kind: input, shape index: {}]
  %s10 = inlined_call_operand.vmem [shape: f32[2,4,1,8], index: 10, kind: input, shape index: {}]
  %s11 = inlined_call_operand.vmem [shape: bf16[2,4,32,8], index: 11, kind: input, shape index: {}]
  %s12 = inlined_call_operand.vmem [shape: f32[2,4,1,8], index: 12, kind: input, shape index: {}]
  %s13 = inlined_call_operand.vmem [shape: bf16[2,4,8,32], index: 13, kind: input, shape index: {}]
  %s14 = inlined_call_operand.vmem [shape: f32[2,1,32], index: 14, kind: input, shape index: {}]
  %s15 = inlined_call_operand.vmem [shape: bf16[2,4,32,8], index: 15, kind: input, shape index: {}]
  %s16 = inlined_call_operand.vmem [shape: f32[2,4,1,8], index: 16, kind: input, shape index: {}]
  %s17 = inlined_call_operand.vmem [shape: bf16[2,4,32,8], index: 17, kind: input, shape index: {}]
  %s18 = inlined_call_operand.vmem [shape: f32[2,4,1,8], index: 18, kind: input, shape index: {}]
  %s19 = inlined_call_operand.vmem [shape: bf16[2,4,32,8], index: 19, kind: input, shape index: {}]
  %s20 = inlined_call_operand.vmem [shape: f32[2,4,1,8], index: 20, kind: input, shape index: {}]
  %s21 = inlined_call_operand.vmem [shape: bf16[2,4,8,32], index: 21, kind: input, shape index: {}]
  %s22 = inlined_call_operand.vmem [shape: f32[2,1,32], index: 22, kind: input, shape index: {}]
  %s23 = inlined_call_operand.vmem [shape: bf16[2,32,64], index: 23, kind: input, shape index: {}]
  %s24 = inlined_call_operand.vmem [shape: f32[2,1,64], index: 24, kind: input, shape index: {}]
  %s25 = inlined_call_operand.vmem [shape: bf16[2,64,32], index: 25, kind: input, shape index: {}]
  %s26 = inlined_call_operand.vmem [shape: f32[2,1,32], index: 26, kind: input, shape index: {}]
  %s27 = inlined_call_operand.vmem [shape: f32[2,32], index: 27, kind: input, shape index: {}]
  %s28 = inlined_call_operand.hbm [shape: f32[2,8,32], index: 28, kind: output, shape index: {}]
  %s29 = sld [smem:[#allocation0]]
  $region145: #{run.1} parent=0
    _
  %s31 = ssub.s32 1, %s29
  %s32 = scalar_select 0, %s31, %s29
  $region1: #{run.1} parent=0
    #allocation2 [shape = 'u8[8192]{0}', space=vmem, size = 0x2000, scoped, tag = 'output window, operand 0']
    #allocation3 [shape = 's32[2]{0}', space=sflag, size = 0x8, scoped, tag = 'scoped memory for run.1']
    %33 = vsyncpa [#allocation3], 0
    %s34 = scalar_lea.sflag [#allocation3], 1
    %35 = vsyncpa %s34, 0
    loop: start=0, step=1, limit=4
    $region2: #{run.1} parent=1 // loop_pre_header
      _
    $region3: #{run.1} parent=1 // loop_header
      %s37 = sphi 0, %s41
      %p38 = scmp.ge.s32.totalorder %s37, 4
      %s47 = sphi 0, %s49
      %s50 = sphi 0, %s47
      %s51 = sphi 0, %s50
      %s67 = sphi 0, %s51
      %s73 = sphi 0, %s75
      %s76 = sphi 0, %s73
      %s77 = sphi 0, %s76
      %s93 = sphi 0, %s77
      %s99 = sphi 0, %s101
      %s102 = sphi 0, %s99
      %s103 = sphi 0, %s102
      %s119 = sphi 0, %s103
      %s123 = sphi 0, %s123
      %s125 = sphi 0, %s123
      %s126 = sphi 0, %s125
      %s140 = sphi 0, %s126
      %s144 = sphi 0, %s144
      %s146 = sphi 0, %s144
      %s147 = sphi 0, %s146
      %s161 = sphi 0, %s147
      %s167 = sphi 0, %s169
      %s170 = sphi 0, %s167
      %s171 = sphi 0, %s170
      %s187 = sphi 0, %s171
      %s191 = sphi 0, %s191
      %s193 = sphi 0, %s191
      %s194 = sphi 0, %s193
      %s208 = sphi 0, %s194
      %s212 = sphi 0, %s212
      %s214 = sphi 0, %s212
      %s215 = sphi 0, %s214
      %s229 = sphi 0, %s215
      %s233 = sphi 0, %s233
      %s235 = sphi 0, %s233
      %s236 = sphi 0, %s235
      %s250 = sphi 0, %s236
      %s254 = sphi 0, %s254
      %s256 = sphi 0, %s254
      %s257 = sphi 0, %s256
      %s271 = sphi 0, %s257
      %s275 = sphi 0, %s275
      %s277 = sphi 0, %s275
      %s278 = sphi 0, %s277
      %s292 = sphi 0, %s278
      %s296 = sphi 0, %s296
      %s298 = sphi 0, %s296
      %s299 = sphi 0, %s298
      %s313 = sphi 0, %s299
      %s317 = sphi 0, %s317
      %s319 = sphi 0, %s317
      %s320 = sphi 0, %s319
      %s334 = sphi 0, %s320
      %s338 = sphi 0, %s338
      %s340 = sphi 0, %s338
      %s341 = sphi 0, %s340
      %s355 = sphi 0, %s341
      %s359 = sphi 0, %s359
      %s361 = sphi 0, %s359
      %s362 = sphi 0, %s361
      %s376 = sphi 0, %s362
      %s380 = sphi 0, %s380
      %s382 = sphi 0, %s380
      %s383 = sphi 0, %s382
      %s397 = sphi 0, %s383
      %s401 = sphi 0, %s401
      %s403 = sphi 0, %s401
      %s404 = sphi 0, %s403
      %s418 = sphi 0, %s404
      %s422 = sphi 0, %s422
      %s424 = sphi 0, %s422
      %s425 = sphi 0, %s424
      %s439 = sphi 0, %s425
      %s443 = sphi 0, %s443
      %s445 = sphi 0, %s443
      %s446 = sphi 0, %s445
      %s460 = sphi 0, %s446
      %s464 = sphi 0, %s464
      %s466 = sphi 0, %s464
      %s467 = sphi 0, %s466
      %s481 = sphi 0, %s467
      %s485 = sphi 0, %s485
      %s487 = sphi 0, %s485
      %s488 = sphi 0, %s487
      %s502 = sphi 0, %s488
      %s506 = sphi 0, %s506
      %s508 = sphi 0, %s506
      %s509 = sphi 0, %s508
      %s523 = sphi 0, %s509
      %s527 = sphi 0, %s527
      %s529 = sphi 0, %s527
      %s530 = sphi 0, %s529
      %s544 = sphi 0, %s530
      %s548 = sphi 0, %s548
      %s550 = sphi 0, %s548
      %s551 = sphi 0, %s550
      %s565 = sphi 0, %s551
      %s569 = sphi 0, %s569
      %s571 = sphi 0, %s569
      %s572 = sphi 0, %s571
      %s586 = sphi 0, %s572
      %s590 = sphi 0, %s590
      %s592 = sphi 0, %s590
      %s593 = sphi 0, %s592
      %s607 = sphi 0, %s593
      %s611 = sphi 0, %s611
      %s613 = sphi 0, %s611
      %s614 = sphi 0, %s613
      %s628 = sphi 0, %s614
      %s632 = sphi 0, %s632
      %s634 = sphi 0, %s632
      %s635 = sphi 0, %s634
      %s649 = sphi 0, %s635
      %s655 = sphi 0, %s657
      %s658 = sphi 0, %s655
      %s659 = sphi 0, %s658
      %s675 = sphi 0, %s659
    $region4: #{run.1} parent=1 // loop_header_branch
      %40 = sbr.rel (%p38) target = $region8
    $region5: #{run.1} parent=1 // loop_body
      %s42 = ssub.s32 %s37, 1
      %s43 = ssub.s32 %s37, 2
      %s44 = sadd.s32 %s37, 1
      %s45 = ssub.s32 %s37, %s44
      %p46 = scmp.eq.s32.totalorder %s45, 0
      %s48 = sadd.s32 %s47, 1
      %s49 = scalar_select %p46, %s47, %s48
      %p52 = pneg %p46
      %p53 = scmp.eq.s32.totalorder %s37, 1
      %p54 = por %p52, %p53
      %p55 = scmp.ne.s32.totalorder %s47, %s50
      %p56 = scmp.eq.s32.totalorder %s37, 0
      %p57 = por %p55, %p56
      %p58 = scmp.ne.s32.totalorder %s47, %s50
      %p59 = scmp.eq.s32.totalorder %s42, 1
      %p60 = por %p58, %p59
      %p61 = scmp.ne.s32.totalorder %s50, %s51
      %p62 = scmp.eq.s32.totalorder %s42, 0
      %p63 = por %p61, %p62
      %p64 = scmp.ne.s32.totalorder %s50, %s51
      %p65 = scmp.eq.s32.totalorder %s43, 1
      %p66 = por %p64, %p65
      %p68 = scmp.ne.s32.totalorder %s51, %s67
      %p69 = scmp.eq.s32.totalorder %s43, 0
      %p70 = por %p68, %p69
      %s71 = ssub.s32 %s37, %s44
      %p72 = scmp.eq.s32.totalorder %s71, 0
      %s74 = sadd.s32 %s73, 1
      %s75 = scalar_select %p72, %s73, %s74
      %p78 = pneg %p72
      %p79 = scmp.eq.s32.totalorder %s37, 1
      %p80 = por %p78, %p79
      %p81 = scmp.ne.s32.totalorder %s73, %s76
      %p82 = scmp.eq.s32.totalorder %s37, 0
      %p83 = por %p81, %p82
      %p84 = scmp.ne.s32.totalorder %s73, %s76
      %p85 = scmp.eq.s32.totalorder %s42, 1
      %p86 = por %p84, %p85
      %p87 = scmp.ne.s32.totalorder %s76, %s77
      %p88 = scmp.eq.s32.totalorder %s42, 0
      %p89 = por %p87, %p88
      %p90 = scmp.ne.s32.totalorder %s76, %s77
      %p91 = scmp.eq.s32.totalorder %s43, 1
      %p92 = por %p90, %p91
      %p94 = scmp.ne.s32.totalorder %s77, %s93
      %p95 = scmp.eq.s32.totalorder %s43, 0
      %p96 = por %p94, %p95
      %s97 = ssub.s32 %s37, %s44
      %p98 = scmp.eq.s32.totalorder %s97, 0
      %s100 = sadd.s32 %s99, 1
      %s101 = scalar_select %p98, %s99, %s100
      %p104 = pneg %p98
      %p105 = scmp.eq.s32.totalorder %s37, 1
      %p106 = por %p104, %p105
      %p107 = scmp.ne.s32.totalorder %s99, %s102
      %p108 = scmp.eq.s32.totalorder %s37, 0
      %p109 = por %p107, %p108
      %p110 = scmp.ne.s32.totalorder %s99, %s102
      %p111 = scmp.eq.s32.totalorder %s42, 1
      %p112 = por %p110, %p111
      %p113 = scmp.ne.s32.totalorder %s102, %s103
      %p114 = scmp.eq.s32.totalorder %s42, 0
      %p115 = por %p113, %p114
      %p116 = scmp.ne.s32.totalorder %s102, %s103
      %p117 = scmp.eq.s32.totalorder %s43, 1
      %p118 = por %p116, %p117
      %p120 = scmp.ne.s32.totalorder %s103, %s119
      %p121 = scmp.eq.s32.totalorder %s43, 0
      %p122 = por %p120, %p121
      %s124 = sadd.s32 %s123, 1
      %p127 = scmp.eq.s32.totalorder %s37, 1
      %p128 = scmp.ne.s32.totalorder %s123, %s125
      %p129 = scmp.eq.s32.totalorder %s37, 0
      %p130 = por %p128, %p129
      %p131 = scmp.ne.s32.totalorder %s123, %s125
      %p132 = scmp.eq.s32.totalorder %s42, 1
      %p133 = por %p131, %p132
      %p134 = scmp.ne.s32.totalorder %s125, %s126
      %p135 = scmp.eq.s32.totalorder %s42, 0
      %p136 = por %p134, %p135
      %p137 = scmp.ne.s32.totalorder %s125, %s126
      %p138 = scmp.eq.s32.totalorder %s43, 1
      %p139 = por %p137, %p138
      %p141 = scmp.ne.s32.totalorder %s126, %s140
      %p142 = scmp.eq.s32.totalorder %s43, 0
      %p143 = por %p141, %p142
      %s145 = sadd.s32 %s144, 1
      %p148 = scmp.eq.s32.totalorder %s37, 1
      %p149 = scmp.ne.s32.totalorder %s144, %s146
      %p150 = scmp.eq.s32.totalorder %s37, 0
      %p151 = por %p149, %p150
      %p152 = scmp.ne.s32.totalorder %s144, %s146
      %p153 = scmp.eq.s32.totalorder %s42, 1
      %p154 = por %p152, %p153
      %p155 = scmp.ne.s32.totalorder %s146, %s147
      %p156 = scmp.eq.s32.totalorder %s42, 0
      %p157 = por %p155, %p156
      %p158 = scmp.ne.s32.totalorder %s146, %s147
      %p159 = scmp.eq.s32.totalorder %s43, 1
      %p160 = por %p158, %p159
      %p162 = scmp.ne.s32.totalorder %s147, %s161
      %p163 = scmp.eq.s32.totalorder %s43, 0
      %p164 = por %p162, %p163
      %s165 = ssub.s32 %s37, %s44
      %p166 = scmp.eq.s32.totalorder %s165, 0
      %s168 = sadd.s32 %s167, 1
      %s169 = scalar_select %p166, %s167, %s168
      %p172 = pneg %p166
      %p173 = scmp.eq.s32.totalorder %s37, 1
      %p174 = por %p172, %p173
      %p175 = scmp.ne.s32.totalorder %s167, %s170
      %p176 = scmp.eq.s32.totalorder %s37, 0
      %p177 = por %p175, %p176
      %p178 = scmp.ne.s32.totalorder %s167, %s170
      %p179 = scmp.eq.s32.totalorder %s42, 1
      %p180 = por %p178, %p179
      %p181 = scmp.ne.s32.totalorder %s170, %s171
      %p182 = scmp.eq.s32.totalorder %s42, 0
      %p183 = por %p181, %p182
      %p184 = scmp.ne.s32.totalorder %s170, %s171
      %p185 = scmp.eq.s32.totalorder %s43, 1
      %p186 = por %p184, %p185
      %p188 = scmp.ne.s32.totalorder %s171, %s187
      %p189 = scmp.eq.s32.totalorder %s43, 0
      %p190 = por %p188, %p189
      %s192 = sadd.s32 %s191, 1
      %p195 = scmp.eq.s32.totalorder %s37, 1
      %p196 = scmp.ne.s32.totalorder %s191, %s193
      %p197 = scmp.eq.s32.totalorder %s37, 0
      %p198 = por %p196, %p197
      %p199 = scmp.ne.s32.totalorder %s191, %s193
      %p200 = scmp.eq.s32.totalorder %s42, 1
      %p201 = por %p199, %p200
      %p202 = scmp.ne.s32.totalorder %s193, %s194
      %p203 = scmp.eq.s32.totalorder %s42, 0
      %p204 = por %p202, %p203
      %p205 = scmp.ne.s32.totalorder %s193, %s194
      %p206 = scmp.eq.s32.totalorder %s43, 1
      %p207 = por %p205, %p206
      %p209 = scmp.ne.s32.totalorder %s194, %s208
      %p210 = scmp.eq.s32.totalorder %s43, 0
      %p211 = por %p209, %p210
      %s213 = sadd.s32 %s212, 1
      %p216 = scmp.eq.s32.totalorder %s37, 1
      %p217 = scmp.ne.s32.totalorder %s212, %s214
      %p218 = scmp.eq.s32.totalorder %s37, 0
      %p219 = por %p217, %p218
      %p220 = scmp.ne.s32.totalorder %s212, %s214
      %p221 = scmp.eq.s32.totalorder %s42, 1
      %p222 = por %p220, %p221
      %p223 = scmp.ne.s32.totalorder %s214, %s215
      %p224 = scmp.eq.s32.totalorder %s42, 0
      %p225 = por %p223, %p224
      %p226 = scmp.ne.s32.totalorder %s214, %s215
      %p227 = scmp.eq.s32.totalorder %s43, 1
      %p228 = por %p226, %p227
      %p230 = scmp.ne.s32.totalorder %s215, %s229
      %p231 = scmp.eq.s32.totalorder %s43, 0
      %p232 = por %p230, %p231
      %s234 = sadd.s32 %s233, 1
      %p237 = scmp.eq.s32.totalorder %s37, 1
      %p238 = scmp.ne.s32.totalorder %s233, %s235
      %p239 = scmp.eq.s32.totalorder %s37, 0
      %p240 = por %p238, %p239
      %p241 = scmp.ne.s32.totalorder %s233, %s235
      %p242 = scmp.eq.s32.totalorder %s42, 1
      %p243 = por %p241, %p242
      %p244 = scmp.ne.s32.totalorder %s235, %s236
      %p245 = scmp.eq.s32.totalorder %s42, 0
      %p246 = por %p244, %p245
      %p247 = scmp.ne.s32.totalorder %s235, %s236
      %p248 = scmp.eq.s32.totalorder %s43, 1
      %p249 = por %p247, %p248
      %p251 = scmp.ne.s32.totalorder %s236, %s250
      %p252 = scmp.eq.s32.totalorder %s43, 0
      %p253 = por %p251, %p252
      %s255 = sadd.s32 %s254, 1
      %p258 = scmp.eq.s32.totalorder %s37, 1
      %p259 = scmp.ne.s32.totalorder %s254, %s256
      %p260 = scmp.eq.s32.totalorder %s37, 0
      %p261 = por %p259, %p260
      %p262 = scmp.ne.s32.totalorder %s254, %s256
      %p263 = scmp.eq.s32.totalorder %s42, 1
      %p264 = por %p262, %p263
      %p265 = scmp.ne.s32.totalorder %s256, %s257
      %p266 = scmp.eq.s32.totalorder %s42, 0
      %p267 = por %p265, %p266
      %p268 = scmp.ne.s32.totalorder %s256, %s257
      %p269 = scmp.eq.s32.totalorder %s43, 1
      %p270 = por %p268, %p269
      %p272 = scmp.ne.s32.totalorder %s257, %s271
      %p273 = scmp.eq.s32.totalorder %s43, 0
      %p274 = por %p272, %p273
      %s276 = sadd.s32 %s275, 1
      %p279 = scmp.eq.s32.totalorder %s37, 1
      %p280 = scmp.ne.s32.totalorder %s275, %s277
      %p281 = scmp.eq.s32.totalorder %s37, 0
      %p282 = por %p280, %p281
      %p283 = scmp.ne.s32.totalorder %s275, %s277
      %p284 = scmp.eq.s32.totalorder %s42, 1
      %p285 = por %p283, %p284
      %p286 = scmp.ne.s32.totalorder %s277, %s278
      %p287 = scmp.eq.s32.totalorder %s42, 0
      %p288 = por %p286, %p287
      %p289 = scmp.ne.s32.totalorder %s277, %s278
      %p290 = scmp.eq.s32.totalorder %s43, 1
      %p291 = por %p289, %p290
      %p293 = scmp.ne.s32.totalorder %s278, %s292
      %p294 = scmp.eq.s32.totalorder %s43, 0
      %p295 = por %p293, %p294
      %s297 = sadd.s32 %s296, 1
      %p300 = scmp.eq.s32.totalorder %s37, 1
      %p301 = scmp.ne.s32.totalorder %s296, %s298
      %p302 = scmp.eq.s32.totalorder %s37, 0
      %p303 = por %p301, %p302
      %p304 = scmp.ne.s32.totalorder %s296, %s298
      %p305 = scmp.eq.s32.totalorder %s42, 1
      %p306 = por %p304, %p305
      %p307 = scmp.ne.s32.totalorder %s298, %s299
      %p308 = scmp.eq.s32.totalorder %s42, 0
      %p309 = por %p307, %p308
      %p310 = scmp.ne.s32.totalorder %s298, %s299
      %p311 = scmp.eq.s32.totalorder %s43, 1
      %p312 = por %p310, %p311
      %p314 = scmp.ne.s32.totalorder %s299, %s313
      %p315 = scmp.eq.s32.totalorder %s43, 0
      %p316 = por %p314, %p315
      %s318 = sadd.s32 %s317, 1
      %p321 = scmp.eq.s32.totalorder %s37, 1
      %p322 = scmp.ne.s32.totalorder %s317, %s319
      %p323 = scmp.eq.s32.totalorder %s37, 0
      %p324 = por %p322, %p323
      %p325 = scmp.ne.s32.totalorder %s317, %s319
      %p326 = scmp.eq.s32.totalorder %s42, 1
      %p327 = por %p325, %p326
      %p328 = scmp.ne.s32.totalorder %s319, %s320
      %p329 = scmp.eq.s32.totalorder %s42, 0
      %p330 = por %p328, %p329
      %p331 = scmp.ne.s32.totalorder %s319, %s320
      %p332 = scmp.eq.s32.totalorder %s43, 1
      %p333 = por %p331, %p332
      %p335 = scmp.ne.s32.totalorder %s320, %s334
      %p336 = scmp.eq.s32.totalorder %s43, 0
      %p337 = por %p335, %p336
      %s339 = sadd.s32 %s338, 1
      %p342 = scmp.eq.s32.totalorder %s37, 1
      %p343 = scmp.ne.s32.totalorder %s338, %s340
      %p344 = scmp.eq.s32.totalorder %s37, 0
      %p345 = por %p343, %p344
      %p346 = scmp.ne.s32.totalorder %s338, %s340
      %p347 = scmp.eq.s32.totalorder %s42, 1
      %p348 = por %p346, %p347
      %p349 = scmp.ne.s32.totalorder %s340, %s341
      %p350 = scmp.eq.s32.totalorder %s42, 0
      %p351 = por %p349, %p350
      %p352 = scmp.ne.s32.totalorder %s340, %s341
      %p353 = scmp.eq.s32.totalorder %s43, 1
      %p354 = por %p352, %p353
      %p356 = scmp.ne.s32.totalorder %s341, %s355
      %p357 = scmp.eq.s32.totalorder %s43, 0
      %p358 = por %p356, %p357
      %s360 = sadd.s32 %s359, 1
      %p363 = scmp.eq.s32.totalorder %s37, 1
      %p364 = scmp.ne.s32.totalorder %s359, %s361
      %p365 = scmp.eq.s32.totalorder %s37, 0
      %p366 = por %p364, %p365
      %p367 = scmp.ne.s32.totalorder %s359, %s361
      %p368 = scmp.eq.s32.totalorder %s42, 1
      %p369 = por %p367, %p368
      %p370 = scmp.ne.s32.totalorder %s361, %s362
      %p371 = scmp.eq.s32.totalorder %s42, 0
      %p372 = por %p370, %p371
      %p373 = scmp.ne.s32.totalorder %s361, %s362
      %p374 = scmp.eq.s32.totalorder %s43, 1
      %p375 = por %p373, %p374
      %p377 = scmp.ne.s32.totalorder %s362, %s376
      %p378 = scmp.eq.s32.totalorder %s43, 0
      %p379 = por %p377, %p378
      %s381 = sadd.s32 %s380, 1
      %p384 = scmp.eq.s32.totalorder %s37, 1
      %p385 = scmp.ne.s32.totalorder %s380, %s382
      %p386 = scmp.eq.s32.totalorder %s37, 0
      %p387 = por %p385, %p386
      %p388 = scmp.ne.s32.totalorder %s380, %s382
      %p389 = scmp.eq.s32.totalorder %s42, 1
      %p390 = por %p388, %p389
      %p391 = scmp.ne.s32.totalorder %s382, %s383
      %p392 = scmp.eq.s32.totalorder %s42, 0
      %p393 = por %p391, %p392
      %p394 = scmp.ne.s32.totalorder %s382, %s383
      %p395 = scmp.eq.s32.totalorder %s43, 1
      %p396 = por %p394, %p395
      %p398 = scmp.ne.s32.totalorder %s383, %s397
      %p399 = scmp.eq.s32.totalorder %s43, 0
      %p400 = por %p398, %p399
      %s402 = sadd.s32 %s401, 1
      %p405 = scmp.eq.s32.totalorder %s37, 1
      %p406 = scmp.ne.s32.totalorder %s401, %s403
      %p407 = scmp.eq.s32.totalorder %s37, 0
      %p408 = por %p406, %p407
      %p409 = scmp.ne.s32.totalorder %s401, %s403
      %p410 = scmp.eq.s32.totalorder %s42, 1
      %p411 = por %p409, %p410
      %p412 = scmp.ne.s32.totalorder %s403, %s404
      %p413 = scmp.eq.s32.totalorder %s42, 0
      %p414 = por %p412, %p413
      %p415 = scmp.ne.s32.totalorder %s403, %s404
      %p416 = scmp.eq.s32.totalorder %s43, 1
      %p417 = por %p415, %p416
      %p419 = scmp.ne.s32.totalorder %s404, %s418
      %p420 = scmp.eq.s32.totalorder %s43, 0
      %p421 = por %p419, %p420
      %s423 = sadd.s32 %s422, 1
      %p426 = scmp.eq.s32.totalorder %s37, 1
      %p427 = scmp.ne.s32.totalorder %s422, %s424
      %p428 = scmp.eq.s32.totalorder %s37, 0
      %p429 = por %p427, %p428
      %p430 = scmp.ne.s32.totalorder %s422, %s424
      %p431 = scmp.eq.s32.totalorder %s42, 1
      %p432 = por %p430, %p431
      %p433 = scmp.ne.s32.totalorder %s424, %s425
      %p434 = scmp.eq.s32.totalorder %s42, 0
      %p435 = por %p433, %p434
      %p436 = scmp.ne.s32.totalorder %s424, %s425
      %p437 = scmp.eq.s32.totalorder %s43, 1
      %p438 = por %p436, %p437
      %p440 = scmp.ne.s32.totalorder %s425, %s439
      %p441 = scmp.eq.s32.totalorder %s43, 0
      %p442 = por %p440, %p441
      %s444 = sadd.s32 %s443, 1
      %p447 = scmp.eq.s32.totalorder %s37, 1
      %p448 = scmp.ne.s32.totalorder %s443, %s445
      %p449 = scmp.eq.s32.totalorder %s37, 0
      %p450 = por %p448, %p449
      %p451 = scmp.ne.s32.totalorder %s443, %s445
      %p452 = scmp.eq.s32.totalorder %s42, 1
      %p453 = por %p451, %p452
      %p454 = scmp.ne.s32.totalorder %s445, %s446
      %p455 = scmp.eq.s32.totalorder %s42, 0
      %p456 = por %p454, %p455
      %p457 = scmp.ne.s32.totalorder %s445, %s446
      %p458 = scmp.eq.s32.totalorder %s43, 1
      %p459 = por %p457, %p458
      %p461 = scmp.ne.s32.totalorder %s446, %s460
      %p462 = scmp.eq.s32.totalorder %s43, 0
      %p463 = por %p461, %p462
      %s465 = sadd.s32 %s464, 1
      %p468 = scmp.eq.s32.totalorder %s37, 1
      %p469 = scmp.ne.s32.totalorder %s464, %s466
      %p470 = scmp.eq.s32.totalorder %s37, 0
      %p471 = por %p469, %p470
      %p472 = scmp.ne.s32.totalorder %s464, %s466
      %p473 = scmp.eq.s32.totalorder %s42, 1
      %p474 = por %p472, %p473
      %p475 = scmp.ne.s32.totalorder %s466, %s467
      %p476 = scmp.eq.s32.totalorder %s42, 0
      %p477 = por %p475, %p476
      %p478 = scmp.ne.s32.totalorder %s466, %s467
      %p479 = scmp.eq.s32.totalorder %s43, 1
      %p480 = por %p478, %p479
      %p482 = scmp.ne.s32.totalorder %s467, %s481
      %p483 = scmp.eq.s32.totalorder %s43, 0
      %p484 = por %p482, %p483
      %s486 = sadd.s32 %s485, 1
      %p489 = scmp.eq.s32.totalorder %s37, 1
      %p490 = scmp.ne.s32.totalorder %s485, %s487
      %p491 = scmp.eq.s32.totalorder %s37, 0
      %p492 = por %p490, %p491
      %p493 = scmp.ne.s32.totalorder %s485, %s487
      %p494 = scmp.eq.s32.totalorder %s42, 1
      %p495 = por %p493, %p494
      %p496 = scmp.ne.s32.totalorder %s487, %s488
      %p497 = scmp.eq.s32.totalorder %s42, 0
      %p498 = por %p496, %p497
      %p499 = scmp.ne.s32.totalorder %s487, %s488
      %p500 = scmp.eq.s32.totalorder %s43, 1
      %p501 = por %p499, %p500
      %p503 = scmp.ne.s32.totalorder %s488, %s502
      %p504 = scmp.eq.s32.totalorder %s43, 0
      %p505 = por %p503, %p504
      %s507 = sadd.s32 %s506, 1
      %p510 = scmp.eq.s32.totalorder %s37, 1
      %p511 = scmp.ne.s32.totalorder %s506, %s508
      %p512 = scmp.eq.s32.totalorder %s37, 0
      %p513 = por %p511, %p512
      %p514 = scmp.ne.s32.totalorder %s506, %s508
      %p515 = scmp.eq.s32.totalorder %s42, 1
      %p516 = por %p514, %p515
      %p517 = scmp.ne.s32.totalorder %s508, %s509
      %p518 = scmp.eq.s32.totalorder %s42, 0
      %p519 = por %p517, %p518
      %p520 = scmp.ne.s32.totalorder %s508, %s509
      %p521 = scmp.eq.s32.totalorder %s43, 1
      %p522 = por %p520, %p521
      %p524 = scmp.ne.s32.totalorder %s509, %s523
      %p525 = scmp.eq.s32.totalorder %s43, 0
      %p526 = por %p524, %p525
      %s528 = sadd.s32 %s527, 1
      %p531 = scmp.eq.s32.totalorder %s37, 1
      %p532 = scmp.ne.s32.totalorder %s527, %s529
      %p533 = scmp.eq.s32.totalorder %s37, 0
      %p534 = por %p532, %p533
      %p535 = scmp.ne.s32.totalorder %s527, %s529
      %p536 = scmp.eq.s32.totalorder %s42, 1
      %p537 = por %p535, %p536
      %p538 = scmp.ne.s32.totalorder %s529, %s530
      %p539 = scmp.eq.s32.totalorder %s42, 0
      %p540 = por %p538, %p539
      %p541 = scmp.ne.s32.totalorder %s529, %s530
      %p542 = scmp.eq.s32.totalorder %s43, 1
      %p543 = por %p541, %p542
      %p545 = scmp.ne.s32.totalorder %s530, %s544
      %p546 = scmp.eq.s32.totalorder %s43, 0
      %p547 = por %p545, %p546
      %s549 = sadd.s32 %s548, 1
      %p552 = scmp.eq.s32.totalorder %s37, 1
      %p553 = scmp.ne.s32.totalorder %s548, %s550
      %p554 = scmp.eq.s32.totalorder %s37, 0
      %p555 = por %p553, %p554
      %p556 = scmp.ne.s32.totalorder %s548, %s550
      %p557 = scmp.eq.s32.totalorder %s42, 1
      %p558 = por %p556, %p557
      %p559 = scmp.ne.s32.totalorder %s550, %s551
      %p560 = scmp.eq.s32.totalorder %s42, 0
      %p561 = por %p559, %p560
      %p562 = scmp.ne.s32.totalorder %s550, %s551
      %p563 = scmp.eq.s32.totalorder %s43, 1
      %p564 = por %p562, %p563
      %p566 = scmp.ne.s32.totalorder %s551, %s565
      %p567 = scmp.eq.s32.totalorder %s43, 0
      %p568 = por %p566, %p567
      %s570 = sadd.s32 %s569, 1
      %p573 = scmp.eq.s32.totalorder %s37, 1
      %p574 = scmp.ne.s32.totalorder %s569, %s571
      %p575 = scmp.eq.s32.totalorder %s37, 0
      %p576 = por %p574, %p575
      %p577 = scmp.ne.s32.totalorder %s569, %s571
      %p578 = scmp.eq.s32.totalorder %s42, 1
      %p579 = por %p577, %p578
      %p580 = scmp.ne.s32.totalorder %s571, %s572
      %p581 = scmp.eq.s32.totalorder %s42, 0
      %p582 = por %p580, %p581
      %p583 = scmp.ne.s32.totalorder %s571, %s572
      %p584 = scmp.eq.s32.totalorder %s43, 1
      %p585 = por %p583, %p584
      %p587 = scmp.ne.s32.totalorder %s572, %s586
      %p588 = scmp.eq.s32.totalorder %s43, 0
      %p589 = por %p587, %p588
      %s591 = sadd.s32 %s590, 1
      %p594 = scmp.eq.s32.totalorder %s37, 1
      %p595 = scmp.ne.s32.totalorder %s590, %s592
      %p596 = scmp.eq.s32.totalorder %s37, 0
      %p597 = por %p595, %p596
      %p598 = scmp.ne.s32.totalorder %s590, %s592
      %p599 = scmp.eq.s32.totalorder %s42, 1
      %p600 = por %p598, %p599
      %p601 = scmp.ne.s32.totalorder %s592, %s593
      %p602 = scmp.eq.s32.totalorder %s42, 0
      %p603 = por %p601, %p602
      %p604 = scmp.ne.s32.totalorder %s592, %s593
      %p605 = scmp.eq.s32.totalorder %s43, 1
      %p606 = por %p604, %p605
      %p608 = scmp.ne.s32.totalorder %s593, %s607
      %p609 = scmp.eq.s32.totalorder %s43, 0
      %p610 = por %p608, %p609
      %s612 = sadd.s32 %s611, 1
      %p615 = scmp.eq.s32.totalorder %s37, 1
      %p616 = scmp.ne.s32.totalorder %s611, %s613
      %p617 = scmp.eq.s32.totalorder %s37, 0
      %p618 = por %p616, %p617
      %p619 = scmp.ne.s32.totalorder %s611, %s613
      %p620 = scmp.eq.s32.totalorder %s42, 1
      %p621 = por %p619, %p620
      %p622 = scmp.ne.s32.totalorder %s613, %s614
      %p623 = scmp.eq.s32.totalorder %s42, 0
      %p624 = por %p622, %p623
      %p625 = scmp.ne.s32.totalorder %s613, %s614
      %p626 = scmp.eq.s32.totalorder %s43, 1
      %p627 = por %p625, %p626
      %p629 = scmp.ne.s32.totalorder %s614, %s628
      %p630 = scmp.eq.s32.totalorder %s43, 0
      %p631 = por %p629, %p630
      %s633 = sadd.s32 %s632, 1
      %p636 = scmp.eq.s32.totalorder %s37, 1
      %p637 = scmp.ne.s32.totalorder %s632, %s634
      %p638 = scmp.eq.s32.totalorder %s37, 0
      %p639 = por %p637, %p638
      %p640 = scmp.ne.s32.totalorder %s632, %s634
      %p641 = scmp.eq.s32.totalorder %s42, 1
      %p642 = por %p640, %p641
      %p643 = scmp.ne.s32.totalorder %s634, %s635
      %p644 = scmp.eq.s32.totalorder %s42, 0
      %p645 = por %p643, %p644
      %p646 = scmp.ne.s32.totalorder %s634, %s635
      %p647 = scmp.eq.s32.totalorder %s43, 1
      %p648 = por %p646, %p647
      %p650 = scmp.ne.s32.totalorder %s635, %s649
      %p651 = scmp.eq.s32.totalorder %s43, 0
      %p652 = por %p650, %p651
      %s653 = ssub.s32 %s37, %s44
      %p654 = scmp.eq.s32.totalorder %s653, 0
      %s656 = sadd.s32 %s655, 1
      %s657 = scalar_select %p654, %s655, %s656
      %p660 = pneg %p654
      %p661 = scmp.eq.s32.totalorder %s37, 1
      %p662 = por %p660, %p661
      %p663 = scmp.ne.s32.totalorder %s655, %s658
      %p664 = scmp.eq.s32.totalorder %s37, 0
      %p665 = por %p663, %p664
      %p666 = scmp.ne.s32.totalorder %s655, %s658
      %p667 = scmp.eq.s32.totalorder %s42, 1
      %p668 = por %p666, %p667
      %p669 = scmp.ne.s32.totalorder %s658, %s659
      %p670 = scmp.eq.s32.totalorder %s42, 0
      %p671 = por %p669, %p670
      %p672 = scmp.ne.s32.totalorder %s658, %s659
      %p673 = scmp.eq.s32.totalorder %s43, 1
      %p674 = por %p672, %p673
      %p676 = scmp.ne.s32.totalorder %s659, %s675
      %p677 = scmp.eq.s32.totalorder %s43, 0
      %p678 = por %p676, %p677
      %p679 = scmp.le.s32.totalorder 1, %s37
      %p680 = scmp.lt.s32.totalorder %s37, 3
      %p681 = pnand %p679, %p680
      %p682 = pneg %p681
      // Predicated region
      $region9: #{run.1} parent=5 // pred_check
        _
      $region10: #{run.1} parent=5 // pred_check_branch
        %684 = sbr.rel (%p681) target = $region12
      $region11: #{run.1} parent=5 // pred_region
        %s685 = ssub.s32 %s37, 1
        // Predicated region
        $region13: #{run.1} parent=11 // pred_check
          %p686 = pneg %p136
        $region14: #{run.1} parent=11 // pred_check_branch
          %688 = sbr.rel (%p686) target = $region16
        $region15: #{run.1} parent=11 // pred_region
          _
        $region16: #{run.1} parent=11 // pred_fallthru
          _
        // Predicated region
        $region17: #{run.1} parent=11 // pred_check
          %p689 = pneg %p157
        $region18: #{run.1} parent=11 // pred_check_branch
          %691 = sbr.rel (%p689) target = $region20
        $region19: #{run.1} parent=11 // pred_region
          _
        $region20: #{run.1} parent=11 // pred_fallthru
          _
        // Predicated region
        $region21: #{run.1} parent=11 // pred_check
          %p692 = pneg %p204
        $region22: #{run.1} parent=11 // pred_check_branch
          %694 = sbr.rel (%p692) target = $region24
        $region23: #{run.1} parent=11 // pred_region
          _
        $region24: #{run.1} parent=11 // pred_fallthru
          _
        // Predicated region
        $region25: #{run.1} parent=11 // pred_check
          %p695 = pneg %p225
        $region26: #{run.1} parent=11 // pred_check_branch
          %697 = sbr.rel (%p695) target = $region28
        $region27: #{run.1} parent=11 // pred_region
          _
        $region28: #{run.1} parent=11 // pred_fallthru
          _
        // Predicated region
        $region29: #{run.1} parent=11 // pred_check
          %p698 = pneg %p246
        $region30: #{run.1} parent=11 // pred_check_branch
          %700 = sbr.rel (%p698) target = $region32
        $region31: #{run.1} parent=11 // pred_region
          _
        $region32: #{run.1} parent=11 // pred_fallthru
          _
        // Predicated region
        $region33: #{run.1} parent=11 // pred_check
          %p701 = pneg %p267
        $region34: #{run.1} parent=11 // pred_check_branch
          %703 = sbr.rel (%p701) target = $region36
        $region35: #{run.1} parent=11 // pred_region
          _
        $region36: #{run.1} parent=11 // pred_fallthru
          _
        // Predicated region
        $region37: #{run.1} parent=11 // pred_check
          %p704 = pneg %p288
        $region38: #{run.1} parent=11 // pred_check_branch
          %706 = sbr.rel (%p704) target = $region40
        $region39: #{run.1} parent=11 // pred_region
          _
        $region40: #{run.1} parent=11 // pred_fallthru
          _
        // Predicated region
        $region41: #{run.1} parent=11 // pred_check
          %p707 = pneg %p309
        $region42: #{run.1} parent=11 // pred_check_branch
          %709 = sbr.rel (%p707) target = $region44
        $region43: #{run.1} parent=11 // pred_region
          _
        $region44: #{run.1} parent=11 // pred_fallthru
          _
        // Predicated region
        $region45: #{run.1} parent=11 // pred_check
          %p710 = pneg %p330
        $region46: #{run.1} parent=11 // pred_check_branch
          %712 = sbr.rel (%p710) target = $region48
        $region47: #{run.1} parent=11 // pred_region
          _
        $region48: #{run.1} parent=11 // pred_fallthru
          _
        // Predicated region
        $region49: #{run.1} parent=11 // pred_check
          %p713 = pneg %p351
        $region50: #{run.1} parent=11 // pred_check_branch
          %715 = sbr.rel (%p713) target = $region52
        $region51: #{run.1} parent=11 // pred_region
          _
        $region52: #{run.1} parent=11 // pred_fallthru
          _
        // Predicated region
        $region53: #{run.1} parent=11 // pred_check
          %p716 = pneg %p372
        $region54: #{run.1} parent=11 // pred_check_branch
          %718 = sbr.rel (%p716) target = $region56
        $region55: #{run.1} parent=11 // pred_region
          _
        $region56: #{run.1} parent=11 // pred_fallthru
          _
        // Predicated region
        $region57: #{run.1} parent=11 // pred_check
          %p719 = pneg %p393
        $region58: #{run.1} parent=11 // pred_check_branch
          %721 = sbr.rel (%p719) target = $region60
        $region59: #{run.1} parent=11 // pred_region
          _
        $region60: #{run.1} parent=11 // pred_fallthru
          _
        // Predicated region
        $region61: #{run.1} parent=11 // pred_check
          %p722 = pneg %p414
        $region62: #{run.1} parent=11 // pred_check_branch
          %724 = sbr.rel (%p722) target = $region64
        $region63: #{run.1} parent=11 // pred_region
          _
        $region64: #{run.1} parent=11 // pred_fallthru
          _
        // Predicated region
        $region65: #{run.1} parent=11 // pred_check
          %p725 = pneg %p435
        $region66: #{run.1} parent=11 // pred_check_branch
          %727 = sbr.rel (%p725) target = $region68
        $region67: #{run.1} parent=11 // pred_region
          _
        $region68: #{run.1} parent=11 // pred_fallthru
          _
        // Predicated region
        $region69: #{run.1} parent=11 // pred_check
          %p728 = pneg %p456
        $region70: #{run.1} parent=11 // pred_check_branch
          %730 = sbr.rel (%p728) target = $region72
        $region71: #{run.1} parent=11 // pred_region
          _
        $region72: #{run.1} parent=11 // pred_fallthru
          _
        // Predicated region
        $region73: #{run.1} parent=11 // pred_check
          %p731 = pneg %p477
        $region74: #{run.1} parent=11 // pred_check_branch
          %733 = sbr.rel (%p731) target = $region76
        $region75: #{run.1} parent=11 // pred_region
          _
        $region76: #{run.1} parent=11 // pred_fallthru
          _
        // Predicated region
        $region77: #{run.1} parent=11 // pred_check
          %p734 = pneg %p498
        $region78: #{run.1} parent=11 // pred_check_branch
          %736 = sbr.rel (%p734) target = $region80
        $region79: #{run.1} parent=11 // pred_region
          _
        $region80: #{run.1} parent=11 // pred_fallthru
          _
        // Predicated region
        $region81: #{run.1} parent=11 // pred_check
          %p737 = pneg %p519
        $region82: #{run.1} parent=11 // pred_check_branch
          %739 = sbr.rel (%p737) target = $region84
        $region83: #{run.1} parent=11 // pred_region
          _
        $region84: #{run.1} parent=11 // pred_fallthru
          _
        // Predicated region
        $region85: #{run.1} parent=11 // pred_check
          %p740 = pneg %p540
        $region86: #{run.1} parent=11 // pred_check_branch
          %742 = sbr.rel (%p740) target = $region88
        $region87: #{run.1} parent=11 // pred_region
          _
        $region88: #{run.1} parent=11 // pred_fallthru
          _
        // Predicated region
        $region89: #{run.1} parent=11 // pred_check
          %p743 = pneg %p561
        $region90: #{run.1} parent=11 // pred_check_branch
          %745 = sbr.rel (%p743) target = $region92
        $region91: #{run.1} parent=11 // pred_region
          _
        $region92: #{run.1} parent=11 // pred_fallthru
          _
        // Predicated region
        $region93: #{run.1} parent=11 // pred_check
          %p746 = pneg %p582
        $region94: #{run.1} parent=11 // pred_check_branch
          %748 = sbr.rel (%p746) target = $region96
        $region95: #{run.1} parent=11 // pred_region
          _
        $region96: #{run.1} parent=11 // pred_fallthru
          _
        // Predicated region
        $region97: #{run.1} parent=11 // pred_check
          %p749 = pneg %p603
        $region98: #{run.1} parent=11 // pred_check_branch
          %751 = sbr.rel (%p749) target = $region100
        $region99: #{run.1} parent=11 // pred_region
          _
        $region100: #{run.1} parent=11 // pred_fallthru
          _
        // Predicated region
        $region101: #{run.1} parent=11 // pred_check
          %p752 = pneg %p624
        $region102: #{run.1} parent=11 // pred_check_branch
          %754 = sbr.rel (%p752) target = $region104
        $region103: #{run.1} parent=11 // pred_region
          _
        $region104: #{run.1} parent=11 // pred_fallthru
          _
        // Predicated region
        $region105: #{run.1} parent=11 // pred_check
          %p755 = pneg %p645
        $region106: #{run.1} parent=11 // pred_check_branch
          %757 = sbr.rel (%p755) target = $region108
        $region107: #{run.1} parent=11 // pred_region
          _
        $region108: #{run.1} parent=11 // pred_fallthru
          _
      $region12: #{run.1} parent=5 // pred_fallthru
        _
      %p758 = scmp.lt.s32.totalorder %s37, 2
      // Predicated region
      $region109: #{run.1} parent=5 // pred_check
        %p759 = pneg %p758
      $region110: #{run.1} parent=5 // pred_check_branch
        %761 = sbr.rel (%p759) target = $region112
      $region111: #{run.1} parent=5 // pred_region
        // Predicated region
        $region113: #{run.1} parent=111 // pred_check
          %p762 = pneg %p57
        $region114: #{run.1} parent=111 // pred_check_branch
          %764 = sbr.rel (%p762) target = $region116
        $region115: #{run.1} parent=111 // pred_region
          %p765 = scmp.lt.s32.totalorder %s37, 1
          %s766 = scalar_select %p765, %s37, 1
          %s767 = smul.addr %s766, 8
          %s768 = scalar_lea.vmem %s0, %s767
        $region116: #{run.1} parent=111 // pred_fallthru
          _
        // Predicated region
        $region117: #{run.1} parent=111 // pred_check
          %p769 = pneg %p83
        $region118: #{run.1} parent=111 // pred_check_branch
          %771 = sbr.rel (%p769) target = $region120
        $region119: #{run.1} parent=111 // pred_region
          %p772 = scmp.lt.s32.totalorder %s37, 1
          %s773 = scalar_select %p772, %s37, 1
          %s774 = smul.addr %s773, 8
          %s775 = scalar_lea.vmem %s1, %s774
        $region120: #{run.1} parent=111 // pred_fallthru
          _
        // Predicated region
        $region121: #{run.1} parent=111 // pred_check
          %p776 = pneg %p109
        $region122: #{run.1} parent=111 // pred_check_branch
          %778 = sbr.rel (%p776) target = $region124
        $region123: #{run.1} parent=111 // pred_region
          %p779 = scmp.lt.s32.totalorder %s37, 1
          %s780 = scalar_select %p779, %s37, 1
          %s781 = smul.addr %s780, 2
          %s782 = smul.addr %s781, 8
          %s783 = scalar_lea.vmem %s2, %s782
        $region124: #{run.1} parent=111 // pred_fallthru
          _
        // Predicated region
        $region125: #{run.1} parent=111 // pred_check
          %p784 = pneg %p177
        $region126: #{run.1} parent=111 // pred_check_branch
          %786 = sbr.rel (%p784) target = $region128
        $region127: #{run.1} parent=111 // pred_region
          %p787 = scmp.lt.s32.totalorder %s37, 1
          %s788 = scalar_select %p787, %s37, 1
          %s789 = scalar_lea.vmem %s5, %s788
        $region128: #{run.1} parent=111 // pred_fallthru
          _
      $region112: #{run.1} parent=5 // pred_fallthru
        _
      %p790 = scmp.le.s32.totalorder 1, %s37
      %p791 = scmp.lt.s32.totalorder %s37, 3
      %p792 = pnand %p790, %p791
      %p793 = pneg %p792
      // Predicated region
      $region129: #{run.1} parent=5 // pred_check
        _
      $region130: #{run.1} parent=5 // pred_check_branch
        %795 = sbr.rel (%p792) target = $region132
      $region131: #{run.1} parent=5 // pred_region
        %s796 = ssub.s32 %s37, 1
        %p797 = scmp.lt.s32.totalorder %s42, 1
        %s798 = scalar_select %p797, %s42, 1
        %s799 = smul.addr %s798, 8
        %s800 = scalar_lea.vmem %s0, %s799
        %p801 = pneg %p63
        %p802 = pneg %p60
        %p803 = scmp.lt.s32.totalorder %s42, 1
        %s804 = scalar_select %p803, %s42, 1
        %s805 = smul.addr %s804, 8
        %s806 = scalar_lea.vmem %s1, %s805
        %p807 = pneg %p89
        %p808 = pneg %p86
        %p809 = scmp.lt.s32.totalorder %s42, 1
        %s810 = scalar_select %p809, %s42, 1
        %s811 = smul.addr %s810, 2
        %s812 = smul.addr %s811, 8
        %s813 = scalar_lea.vmem %s2, %s812
        %p814 = pneg %p115
        %p815 = pneg %p112
        %p816 = pneg %p136
        %p817 = pneg %p133
        %p818 = pneg %p157
        %p819 = pneg %p154
        %p820 = scmp.lt.s32.totalorder %s42, 1
        %s821 = scalar_select %p820, %s42, 1
        %s822 = scalar_lea.vmem %s5, %s821
        %p823 = pneg %p183
        %p824 = pneg %p180
        %p825 = pneg %p204
        %p826 = pneg %p201
        %p827 = pneg %p225
        %p828 = pneg %p222
        %p829 = pneg %p246
        %p830 = pneg %p243
        %p831 = pneg %p267
        %p832 = pneg %p264
        %p833 = pneg %p288
        %p834 = pneg %p285
        %p835 = pneg %p309
        %p836 = pneg %p306
        %p837 = pneg %p330
        %p838 = pneg %p327
        %p839 = pneg %p351
        %p840 = pneg %p348
        %p841 = pneg %p372
        %p842 = pneg %p369
        %p843 = pneg %p393
        %p844 = pneg %p390
        %p845 = pneg %p414
        %p846 = pneg %p411
        %p847 = pneg %p435
        %p848 = pneg %p432
        %p849 = pneg %p456
        %p850 = pneg %p453
        %p851 = pneg %p477
        %p852 = pneg %p474
        %p853 = pneg %p498
        %p854 = pneg %p495
        %p855 = pneg %p519
        %p856 = pneg %p516
        %p857 = pneg %p540
        %p858 = pneg %p537
        %p859 = pneg %p561
        %p860 = pneg %p558
        %p861 = pneg %p582
        %p862 = pneg %p579
        %p863 = pneg %p603
        %p864 = pneg %p600
        %p865 = pneg %p624
        %p866 = pneg %p621
        %p867 = pneg %p645
        %p868 = pneg %p642
        %p869 = pneg %p671
        %p870 = pneg %p668
        %s871 = sand.u32 %s658, 1
        %s872 = scalar_lea.sflag [#allocation3], %s871
        %s873 = sand.u32 %s658, 1
        %s874 = smul.addr %s873, 8
        %s875 = scalar_lea.vmem [#allocation2], %s874
        %p876 = scmp.lt.s32.totalorder %s42, 1
        %s877 = scalar_select %p876, %s42, 1
        %s878 = smul.addr %s877, 8
        %s879 = scalar_lea.vmem %s0, %s878
        %p880 = scmp.lt.s32.totalorder %s42, 1
        %s881 = scalar_select %p880, %s42, 1
        %s882 = smul.addr %s881, 8
        %s883 = scalar_lea.vmem %s1, %s882
        %p884 = scmp.lt.s32.totalorder %s42, 1
        %s885 = scalar_select %p884, %s42, 1
        %s886 = smul.addr %s885, 2
        %s887 = smul.addr %s886, 8
        %s888 = scalar_lea.vmem %s2, %s887
        %p889 = scmp.lt.s32.totalorder %s42, 1
        %s890 = scalar_select %p889, %s42, 1
        %s891 = scalar_lea.vmem %s5, %s890
        %v893 = vld [vmem:[%s891] sm:$0x1]
        %v894 = vld [vmem:[%s3] sm:$0xff]
        %v896 = vlaneseq
        %v897 = vshrl.u32 %v896, 7
        %v898 = vsub.s32 0, %v897
        %v899 = vrot.slane %v893, %v898
        %v901 = vadd.f32 %v894, %v899
        %v902 = vld [vmem:[%s4] sm:$0xff]
        %v903 = vadd.f32 %v902, %v899
        %v904 = vld [vmem:[%s888] sm:$0xff]
        %v905 = vld [vmem:[%s888 + $0x8] sm:$0xff]
        %v906 = vld [vmem:[%s879] sm:$0xff]
        %v907 = vld [vmem:[%s883] sm:$0xff]
        %v908 = vld [vmem:[%s6] sm:$0xff]
        %vm909 = vcmask 261120
        %v910 = vsel %vm909, %v906, 0.0
        %911 = vadd.xlane.f32.xlu0 %v910
        %v912 = vpop.xlane.xlu0 %911
        %v913 = vrcp.pop 32.0
        %v914 = vmul.f32 %v912, %v913
        %v915 = vsub.f32 %v906, %v914
        %v916 = vmul.f32 %v915, %v915
        %v917 = vsel %vm909, %v916, 0.0
        %918 = vadd.xlane.f32.xlu0 %v917
        %v919 = vpop.xlane.xlu0 %918
        %v920 = vmul.f32 %v919, %v913
        %v921 = vadd.f32 %v920, 1e-05
        %v922 = vrsqrt.pop %v921
        %v923 = vmul.f32 %v915, %v922
        %v924 = vlaneseq
        %v925 = vshrl.u32 %v924, 7
        %v926 = vsub.s32 0, %v925
        %v927 = vrot.slane %v908, %v926
        %v928 = vmul.f32 %v923, %v927
        %v929 = vlaneseq
        %v930 = vshrl.u32 %v929, 7
        %v931 = vsub.s32 1, %v930
        %v932 = vrot.slane %v908, %v931
        %v933 = vadd.f32 %v928, %v932
        %v934 = vsel %vm909, %v907, 0.0
        %935 = vadd.xlane.f32.xlu0 %v934
        %v936 = vpop.xlane.xlu0 %935
        %v937 = vmul.f32 %v936, %v913
        %v938 = vsub.f32 %v907, %v937
        %v939 = vmul.f32 %v938, %v938
        %v940 = vsel %vm909, %v939, 0.0
        %941 = vadd.xlane.f32.xlu0 %v940
        %v942 = vpop.xlane.xlu0 %941
        %v943 = vmul.f32 %v942, %v913
        %v944 = vadd.f32 %v943, 1e-05
        %v945 = vrsqrt.pop %v944
        %v946 = vmul.f32 %v938, %v945
        %v947 = vlaneseq
        %v948 = vshrl.u32 %v947, 7
        %v949 = vsub.s32 2, %v948
        %v950 = vrot.slane %v908, %v949
        %v951 = vmul.f32 %v946, %v950
        %v952 = vlaneseq
        %v953 = vshrl.u32 %v952, 7
        %v954 = vsub.s32 3, %v953
        %v955 = vrot.slane %v908, %v954
        %v956 = vadd.f32 %v951, %v955
        %v957 = vld [vmem:[%s7] sm:$0xf]
        %v958 = vld [vmem:[%s7 + $0x4] sm:$0xf]
        %v959 = vld [vmem:[%s7 + $0x8] sm:$0xf]
        %v960 = vld [vmem:[%s7 + $0xc] sm:$0xf]
        %v961 = vpack.c.bf16 %v956, %v933
        %v962 = vld [vmem:[%s8] sm:$0x1]
        %v964 = vlaneseq
        %v965 = vshrl.u32 %v964, 7
        %v966 = vsub.s32 0, %v965
        %v967 = vrot.slane %v962, %v966
        %v973 = vunpack.c.l.b16 %v957
        %v974 = vunpack.c.l.b16 %v958
        %v975 = vunpack.c.l.b16 %v959
        %v976 = vunpack.c.l.b16 %v960
        %v977 = vpack.c.b16 %v974, %v973
        %v978 = vpack.c.b16 %v976, %v975
        %v982 = vsel %vm909, %v961, 0
        %984 = vmatprep.subr.bf16.mxu0 0
        %985 = vmatpush1.bf16.msra.mxu0 %v977
        %986 = vmatprep.subr.bf16.mxu0 0
        %987 = vmatpush1.bf16.msra.mxu0 %v978
        %988 = vmatprep.subr.bf16.mxu0 0
        %989 = vmatpush1.bf16.msra.mxu0 0
        %990 = vmatprep.subr.bf16.mxu0 0
        %991 = vmatpush1.bf16.msra.mxu0 0
        %992 = vmatprep.subr.bf16.mxu0 0
        %993 = vmatpush1.bf16.msra.mxu0 0
        %994 = vmatprep.subr.bf16.mxu0 0
        %995 = vmatpush1.bf16.msra.mxu0 0
        %996 = vmatprep.subr.bf16.mxu0 0
        %997 = vmatpush1.bf16.msra.mxu0 0
        %998 = vmatprep.subr.bf16.mxu0 0
        %999 = vmatpush1.bf16.msra.mxu0 0
        %1000 = vmatprep.subr.bf16.mxu0 0
        %1001 = vmatpush1.bf16.msra.mxu0 0
        %1002 = vmatprep.subr.bf16.mxu0 0
        %1003 = vmatpush1.bf16.msra.mxu0 0
        %1004 = vmatprep.subr.bf16.mxu0 0
        %1005 = vmatpush1.bf16.msra.mxu0 0
        %1006 = vmatprep.subr.bf16.mxu0 0
        %1007 = vmatpush1.bf16.msra.mxu0 0
        %1008 = vmatprep.subr.bf16.mxu0 0
        %1009 = vmatpush1.bf16.msra.mxu0 0
        %1010 = vmatprep.subr.bf16.mxu0 0
        %1011 = vmatpush1.bf16.msra.mxu0 0
        %1012 = vmatprep.subr.bf16.mxu0 0
        %1013 = vmatpush1.bf16.msra.mxu0 0
        %1014 = vmatprep.subr.bf16.mxu0 0
        %1015 = vmatpush1.bf16.msra.mxu0 0
        %1016 = vmatprep.mubr.bf16.mxu0 0
        %1017 = vmatmul.mubr.bf16.gmra.mrb[0].mxu0 %v982
        %v1018 = vpop.f32.mrb[0].mxu0
        %v1019 = vadd.f32 %v967, %v1018
        %v1020 = vpop.f32.mrb[0].mxu0
        %v1021 = vpop.f32.mrb[0].mxu0
        %v1022 = vadd.f32 %v967, %v1021
        %v1023 = vpop.f32.mrb[0].mxu0
        %1024 = vdwg.mxu0
        %v1025 = vld [vmem:[%s9] sm:$0xf]
        %v1026 = vld [vmem:[%s9 + $0x4] sm:$0xf]
        %v1027 = vld [vmem:[%s9 + $0x8] sm:$0xf]
        %v1028 = vld [vmem:[%s9 + $0xc] sm:$0xf]
        %v1029 = vpack.c.bf16 %v956, %v956
        %v1030 = vld [vmem:[%s10] sm:$0x1]
        %v1032 = vlaneseq
        %v1033 = vshrl.u32 %v1032, 7
        %v1034 = vsub.s32 0, %v1033
        %v1035 = vrot.slane %v1030, %v1034
        %v1041 = vunpack.c.l.b16 %v1025
        %v1042 = vunpack.c.l.b16 %v1026
        %v1043 = vunpack.c.l.b16 %v1027
        %v1044 = vunpack.c.l.b16 %v1028
        %v1045 = vpack.c.b16 %v1042, %v1041
        %v1046 = vpack.c.b16 %v1044, %v1043
        %v1050 = vsel %vm909, %v1029, 0
        %1052 = vmatprep.subr.bf16.mxu0 0
        %1053 = vmatpush1.bf16.msra.mxu0 %v1045
        %1054 = vmatprep.subr.bf16.mxu0 0
        %1055 = vmatpush1.bf16.msra.mxu0 %v1046
        %1056 = vmatprep.subr.bf16.mxu0 0
        %1057 = vmatpush1.bf16.msra.mxu0 0
        %1058 = vmatprep.subr.bf16.mxu0 0
        %1059 = vmatpush1.bf16.msra.mxu0 0
        %1060 = vmatprep.subr.bf16.mxu0 0
        %1061 = vmatpush1.bf16.msra.mxu0 0
        %1062 = vmatprep.subr.bf16.mxu0 0
        %1063 = vmatpush1.bf16.msra.mxu0 0
        %1064 = vmatprep.subr.bf16.mxu0 0
        %1065 = vmatpush1.bf16.msra.mxu0 0
        %1066 = vmatprep.subr.bf16.mxu0 0
        %1067 = vmatpush1.bf16.msra.mxu0 0
        %1068 = vmatprep.subr.bf16.mxu0 0
        %1069 = vmatpush1.bf16.msra.mxu0 0
        %1070 = vmatprep.subr.bf16.mxu0 0
        %1071 = vmatpush1.bf16.msra.mxu0 0
        %1072 = vmatprep.subr.bf16.mxu0 0
        %1073 = vmatpush1.bf16.msra.mxu0 0
        %1074 = vmatprep.subr.bf16.mxu0 0
        %1075 = vmatpush1.bf16.msra.mxu0 0
        %1076 = vmatprep.subr.bf16.mxu0 0
        %1077 = vmatpush1.bf16.msra.mxu0 0
        %1078 = vmatprep.subr.bf16.mxu0 0
        %1079 = vmatpush1.bf16.msra.mxu0 0
        %1080 = vmatprep.subr.bf16.mxu0 0
        %1081 = vmatpush1.bf16.msra.mxu0 0
        %1082 = vmatprep.subr.bf16.mxu0 0
        %1083 = vmatpush1.bf16.msra.mxu0 0
        %1084 = vmatprep.mubr.bf16.mxu0 0
        %1085 = vmatmul.mubr.bf16.gmra.mrb[0].mxu0 %v1050
        %v1086 = vpop.f32.mrb[0].mxu0
        %v1087 = vadd.f32 %v1035, %v1086
        %v1088 = vpop.f32.mrb[0].mxu0
        %v1089 = vpop.f32.mrb[0].mxu0
        %v1090 = vpop.f32.mrb[0].mxu0
        %1091 = vdwg.mxu0
        %v1092 = vld [vmem:[%s11] sm:$0xf]
        %v1093 = vld [vmem:[%s11 + $0x4] sm:$0xf]
        %v1094 = vld [vmem:[%s11 + $0x8] sm:$0xf]
        %v1095 = vld [vmem:[%s11 + $0xc] sm:$0xf]
        %v1096 = vld [vmem:[%s12] sm:$0x1]
        %v1098 = vlaneseq
        %v1099 = vshrl.u32 %v1098, 7
        %v1100 = vsub.s32 0, %v1099
        %v1101 = vrot.slane %v1096, %v1100
        %v1107 = vunpack.c.l.b16 %v1092
        %v1108 = vunpack.c.l.b16 %v1093
        %v1109 = vunpack.c.l.b16 %v1094
        %v1110 = vunpack.c.l.b16 %v1095
        %v1111 = vpack.c.b16 %v1108, %v1107
        %v1112 = vpack.c.b16 %v1110, %v1109
        %1115 = vmatprep.subr.bf16.mxu0 0
        %1116 = vmatpush1.bf16.msra.mxu0 %v1111
        %1117 = vmatprep.subr.bf16.mxu0 0
        %1118 = vmatpush1.bf16.msra.mxu0 %v1112
        %1119 = vmatprep.subr.bf16.mxu0 0
        %1120 = vmatpush1.bf16.msra.mxu0 0
        %1121 = vmatprep.subr.bf16.mxu0 0
        %1122 = vmatpush1.bf16.msra.mxu0 0
        %1123 = vmatprep.subr.bf16.mxu0 0
        %1124 = vmatpush1.bf16.msra.mxu0 0
        %1125 = vmatprep.subr.bf16.mxu0 0
        %1126 = vmatpush1.bf16.msra.mxu0 0
        %1127 = vmatprep.subr.bf16.mxu0 0
        %1128 = vmatpush1.bf16.msra.mxu0 0
        %1129 = vmatprep.subr.bf16.mxu0 0
        %1130 = vmatpush1.bf16.msra.mxu0 0
        %1131 = vmatprep.subr.bf16.mxu0 0
        %1132 = vmatpush1.bf16.msra.mxu0 0
        %1133 = vmatprep.subr.bf16.mxu0 0
        %1134 = vmatpush1.bf16.msra.mxu0 0
        %1135 = vmatprep.subr.bf16.mxu0 0
        %1136 = vmatpush1.bf16.msra.mxu0 0
        %1137 = vmatprep.subr.bf16.mxu0 0
        %1138 = vmatpush1.bf16.msra.mxu0 0
        %1139 = vmatprep.subr.bf16.mxu0 0
        %1140 = vmatpush1.bf16.msra.mxu0 0
        %1141 = vmatprep.subr.bf16.mxu0 0
        %1142 = vmatpush1.bf16.msra.mxu0 0
        %1143 = vmatprep.subr.bf16.mxu0 0
        %1144 = vmatpush1.bf16.msra.mxu0 0
        %1145 = vmatprep.subr.bf16.mxu0 0
        %1146 = vmatpush1.bf16.msra.mxu0 0
        %1147 = vmatprep.mubr.bf16.mxu0 0
        %1148 = vmatmul.mubr.bf16.gmra.mrb[0].mxu0 %v1050
        %v1149 = vpop.f32.mrb[0].mxu0
        %v1150 = vadd.f32 %v1101, %v1149
        %v1151 = vpop.f32.mrb[0].mxu0
        %v1152 = vpop.f32.mrb[0].mxu0
        %v1153 = vpop.f32.mrb[0].mxu0
        %1154 = vdwg.mxu0
        %v1155 = vmul.f32 %v1019, 0.35355338
        %v1156 = vmul.f32 %v1022, 0.35355338
        %v1157 = vpack.c.bf16 %v1156, %v1155
        %v1158 = vpack.c.bf16 %v1087, %v1087
        %vm1159 = vcmask 64512
        %v1161 = vsel %vm1159, %v1157, 0
        %v1164 = vsel %vm1159, %v1158, 0
        %1166 = vmatprep.subr.bf16.mxu0 0
        %1167 = vmatpush1.bf16.xpose.msra.mxu0 %v1164
        %1168 = vmatprep.subr.bf16.mxu0 0
        %1169 = vmatpush1.bf16.xpose.msra.mxu0 0
        %1170 = vmatprep.subr.bf16.mxu0 0
        %1171 = vmatpush1.bf16.xpose.msra.mxu0 0
        %1172 = vmatprep.subr.bf16.mxu0 0
        %1173 = vmatpush1.bf16.xpose.msra.mxu0 0
        %1174 = vmatprep.subr.bf16.mxu0 0
        %1175 = vmatpush1.bf16.xpose.msra.mxu0 0
        %1176 = vmatprep.subr.bf16.mxu0 0
        %1177 = vmatpush1.bf16.xpose.msra.mxu0 0
        %1178 = vmatprep.subr.bf16.mxu0 0
        %1179 = vmatpush1.bf16.xpose.msra.mxu0 0
        %1180 = vmatprep.subr.bf16.mxu0 0
        %1181 = vmatpush1.bf16.xpose.msra.mxu0 0
        %1182 = vmatprep.subr.bf16.mxu0 0
        %1183 = vmatpush1.bf16.xpose.msra.mxu0 0
        %1184 = vmatprep.subr.bf16.mxu0 0
        %1185 = vmatpush1.bf16.xpose.msra.mxu0 0
        %1186 = vmatprep.subr.bf16.mxu0 0
        %1187 = vmatpush1.bf16.xpose.msra.mxu0 0
        %1188 = vmatprep.subr.bf16.mxu0 0
        %1189 = vmatpush1.bf16.xpose.msra.mxu0 0
        %1190 = vmatprep.subr.bf16.mxu0 0
        %1191 = vmatpush1.bf16.xpose.msra.mxu0 0
        %1192 = vmatprep.subr.bf16.mxu0 0
        %1193 = vmatpush1.bf16.xpose.msra.mxu0 0
        %1194 = vmatprep.subr.bf16.mxu0 0
        %1195 = vmatpush1.bf16.xpose.msra.mxu0 0
        %1196 = vmatprep.subr.bf16.mxu0 0
        %1197 = vmatpush1.bf16.xpose.msra.mxu0 0
        %1198 = vmatprep.mubr.bf16.mxu0 0
        %1199 = vmatmul.mubr.bf16.gmra.mrb[0].mxu0 %v1161
        %v1200 = vpop.f32.mrb[0].mxu0
        %v1201 = vadd.f32 %v901, %v1200
        %v1202 = vpop.f32.mrb[0].mxu0
        %v1203 = vpop.f32.mrb[0].mxu0
        %v1204 = vadd.f32 %v903, %v1203
        %v1205 = vpop.f32.mrb[0].mxu0
        %1206 = vdwg.mxu0
        %v1207 = vsel %vm1159, %v1201, -inf
        %1208 = vmax.xlane.f32.xlu0 %v1207
        %v1209 = vpop.xlane.xlu0 %1208
        %v1210 = vsel %vm1159, %v1204, -inf
        %1211 = vmax.xlane.f32.xlu0 %v1210
        %v1212 = vpop.xlane.xlu0 %1211
        %v1213 = vsub.f32 %v1201, %v1209
        %v1214 = vsub.f32 %v1204, %v1212
        %v1215 = vmul.f32 %v1213, 1.442695
        %v1216 = vpow.pop %v1215
        %v1217 = vmul.f32 %v1214, 1.442695
        %v1218 = vpow.pop %v1217
        %v1219 = vsel %vm1159, %v1216, 0.0
        %1220 = vadd.xlane.f32.xlu0 %v1219
        %v1221 = vpop.xlane.xlu0 %1220
        %v1222 = vsel %vm1159, %v1218, 0.0
        %1223 = vadd.xlane.f32.xlu0 %v1222
        %v1224 = vpop.xlane.xlu0 %1223
        %v1225 = vrcp.pop %v1221
        %v1226 = vrcp.pop %v1224
        %v1227 = vmul.f32 %v1216, %v1225
        %v1228 = vmul.f32 %v1218, %v1226
        %v1229 = vpack.c.bf16 %v1228, %v1227
        %v1230 = vpack.c.bf16 %v1150, %v1150
        %v1232 = vsel %vm1159, %v1229, 0
        %vm1234 = vcmask 1043456
        %v1236 = vsel %vm1234, %v1230, 0
        %1238 = vmatprep.subr.bf16.mxu0 0
        %1239 = vmatpush1.bf16.msra.mxu0 %v1236
        %1240 = vmatprep.subr.bf16.mxu0 0
        %1241 = vmatpush1.bf16.msra.mxu0 0
        %1242 = vmatprep.subr.bf16.mxu0 0
        %1243 = vmatpush1.bf16.msra.mxu0 0
        %1244 = vmatprep.subr.bf16.mxu0 0
        %1245 = vmatpush1.bf16.msra.mxu0 0
        %1246 = vmatprep.subr.bf16.mxu0 0
        %1247 = vmatpush1.bf16.msra.mxu0 0
        %1248 = vmatprep.subr.bf16.mxu0 0
        %1249 = vmatpush1.bf16.msra.mxu0 0
        %1250 = vmatprep.subr.bf16.mxu0 0
        %1251 = vmatpush1.bf16.msra.mxu0 0
        %1252 = vmatprep.subr.bf16.mxu0 0
        %1253 = vmatpush1.bf16.msra.mxu0 0
        %1254 = vmatprep.subr.bf16.mxu0 0
        %1255 = vmatpush1.bf16.msra.mxu0 0
        %1256 = vmatprep.subr.bf16.mxu0 0
        %1257 = vmatpush1.bf16.msra.mxu0 0
        %1258 = vmatprep.subr.bf16.mxu0 0
        %1259 = vmatpush1.bf16.msra.mxu0 0
        %1260 = vmatprep.subr.bf16.mxu0 0
        %1261 = vmatpush1.bf16.msra.mxu0 0
        %1262 = vmatprep.subr.bf16.mxu0 0
        %1263 = vmatpush1.bf16.msra.mxu0 0
        %1264 = vmatprep.subr.bf16.mxu0 0
        %1265 = vmatpush1.bf16.msra.mxu0 0
        %1266 = vmatprep.subr.bf16.mxu0 0
        %1267 = vmatpush1.bf16.msra.mxu0 0
        %1268 = vmatprep.subr.bf16.mxu0 0
        %1269 = vmatpush1.bf16.msra.mxu0 0
        %1270 = vmatprep.mubr.bf16.mxu0 0
        %1271 = vmatmul.mubr.bf16.gmra.mrb[0].mxu0 %v1232
        %v1272 = vpop.f32.mrb[0].mxu0
        %v1273 = vadd.f32 0.0, %v1272
        %v1274 = vpop.f32.mrb[0].mxu0
        %v1275 = vpop.f32.mrb[0].mxu0
        %v1276 = vadd.f32 0.0, %v1275
        %v1277 = vpop.f32.mrb[0].mxu0
        %1278 = vdwg.mxu0
        %v1279 = vld [vmem:[%s13] sm:$0xf]
        %v1280 = vpack.c.bf16 %v1276, %v1273
        %s1281 = scalar_lea.vmem %s7, 16
        %v1282 = vld [vmem:[%s1281] sm:$0xf]
        %v1283 = vld [vmem:[%s1281 + $0x4] sm:$0xf]
        %v1284 = vld [vmem:[%s1281 + $0x8] sm:$0xf]
        %v1285 = vld [vmem:[%s1281 + $0xc] sm:$0xf]
        %s1286 = scalar_lea.vmem %s8, 1
        %v1287 = vld [vmem:[%s1286] sm:$0x1]
        %v1289 = vlaneseq
        %v1290 = vshrl.u32 %v1289, 7
        %v1291 = vsub.s32 0, %v1290
        %v1292 = vrot.slane %v1287, %v1291
        %v1298 = vunpack.c.l.b16 %v1282
        %v1299 = vunpack.c.l.b16 %v1283
        %v1300 = vunpack.c.l.b16 %v1284
        %v1301 = vunpack.c.l.b16 %v1285
        %v1302 = vpack.c.b16 %v1299, %v1298
        %v1303 = vpack.c.b16 %v1301, %v1300
        %1306 = vmatprep.subr.bf16.mxu0 0
        %1307 = vmatpush1.bf16.msra.mxu0 %v1302
        %1308 = vmatprep.subr.bf16.mxu0 0
        %1309 = vmatpush1.bf16.msra.mxu0 %v1303
        %1310 = vmatprep.subr.bf16.mxu0 0
        %1311 = vmatpush1.bf16.msra.mxu0 0
        %1312 = vmatprep.subr.bf16.mxu0 0
        %1313 = vmatpush1.bf16.msra.mxu0 0
        %1314 = vmatprep.subr.bf16.mxu0 0
        %1315 = vmatpush1.bf16.msra.mxu0 0
        %1316 = vmatprep.subr.bf16.mxu0 0
        %1317 = vmatpush1.bf16.msra.mxu0 0
        %1318 = vmatprep.subr.bf16.mxu0 0
        %1319 = vmatpush1.bf16.msra.mxu0 0
        %1320 = vmatprep.subr.bf16.mxu0 0
        %1321 = vmatpush1.bf16.msra.mxu0 0
        %1322 = vmatprep.subr.bf16.mxu0 0
        %1323 = vmatpush1.bf16.msra.mxu0 0
        %1324 = vmatprep.subr.bf16.mxu0 0
        %1325 = vmatpush1.bf16.msra.mxu0 0
        %1326 = vmatprep.subr.bf16.mxu0 0
        %1327 = vmatpush1.bf16.msra.mxu0 0
        %1328 = vmatprep.subr.bf16.mxu0 0
        %1329 = vmatpush1.bf16.msra.mxu0 0
        %1330 = vmatprep.subr.bf16.mxu0 0
        %1331 = vmatpush1.bf16.msra.mxu0 0
        %1332 = vmatprep.subr.bf16.mxu0 0
        %1333 = vmatpush1.bf16.msra.mxu0 0
        %1334 = vmatprep.subr.bf16.mxu0 0
        %1335 = vmatpush1.bf16.msra.mxu0 0
        %1336 = vmatprep.subr.bf16.mxu0 0
        %1337 = vmatpush1.bf16.msra.mxu0 0
        %1338 = vmatprep.mubr.bf16.mxu0 0
        %1339 = vmatmul.mubr.bf16.gmra.mrb[0].mxu0 %v982
        %v1340 = vpop.f32.mrb[0].mxu0
        %v1341 = vadd.f32 %v1292, %v1340
        %v1342 = vpop.f32.mrb[0].mxu0
        %v1343 = vpop.f32.mrb[0].mxu0
        %v1344 = vadd.f32 %v1292, %v1343
        %v1345 = vpop.f32.mrb[0].mxu0
        %1346 = vdwg.mxu0
        %s1347 = scalar_lea.vmem %s9, 16
        %v1348 = vld [vmem:[%s1347] sm:$0xf]
        %v1349 = vld [vmem:[%s1347 + $0x4] sm:$0xf]
        %v1350 = vld [vmem:[%s1347 + $0x8] sm:$0xf]
        %v1351 = vld [vmem:[%s1347 + $0xc] sm:$0xf]
        %s1352 = scalar_lea.vmem %s10, 1
        %v1353 = vld [vmem:[%s1352] sm:$0x1]
        %v1355 = vlaneseq
        %v1356 = vshrl.u32 %v1355, 7
        %v1357 = vsub.s32 0, %v1356
        %v1358 = vrot.slane %v1353, %v1357
        %v1364 = vunpack.c.l.b16 %v1348
        %v1365 = vunpack.c.l.b16 %v1349
        %v1366 = vunpack.c.l.b16 %v1350
        %v1367 = vunpack.c.l.b16 %v1351
        %v1368 = vpack.c.b16 %v1365, %v1364
        %v1369 = vpack.c.b16 %v1367, %v1366
        %1372 = vmatprep.subr.bf16.mxu0 0
        %1373 = vmatpush1.bf16.msra.mxu0 %v1368
        %1374 = vmatprep.subr.bf16.mxu0 0
        %1375 = vmatpush1.bf16.msra.mxu0 %v1369
        %1376 = vmatprep.subr.bf16.mxu0 0
        %1377 = vmatpush1.bf16.msra.mxu0 0
        %1378 = vmatprep.subr.bf16.mxu0 0
        %1379 = vmatpush1.bf16.msra.mxu0 0
        %1380 = vmatprep.subr.bf16.mxu0 0
        %1381 = vmatpush1.bf16.msra.mxu0 0
        %1382 = vmatprep.subr.bf16.mxu0 0
        %1383 = vmatpush1.bf16.msra.mxu0 0
        %1384 = vmatprep.subr.bf16.mxu0 0
        %1385 = vmatpush1.bf16.msra.mxu0 0
        %1386 = vmatprep.subr.bf16.mxu0 0
        %1387 = vmatpush1.bf16.msra.mxu0 0
        %1388 = vmatprep.subr.bf16.mxu0 0
        %1389 = vmatpush1.bf16.msra.mxu0 0
        %1390 = vmatprep.subr.bf16.mxu0 0
        %1391 = vmatpush1.bf16.msra.mxu0 0
        %1392 = vmatprep.subr.bf16.mxu0 0
        %1393 = vmatpush1.bf16.msra.mxu0 0
        %1394 = vmatprep.subr.bf16.mxu0 0
        %1395 = vmatpush1.bf16.msra.mxu0 0
        %1396 = vmatprep.subr.bf16.mxu0 0
        %1397 = vmatpush1.bf16.msra.mxu0 0
        %1398 = vmatprep.subr.bf16.mxu0 0
        %1399 = vmatpush1.bf16.msra.mxu0 0
        %1400 = vmatprep.subr.bf16.mxu0 0
        %1401 = vmatpush1.bf16.msra.mxu0 0
        %1402 = vmatprep.subr.bf16.mxu0 0
        %1403 = vmatpush1.bf16.msra.mxu0 0
        %1404 = vmatprep.mubr.bf16.mxu0 0
        %1405 = vmatmul.mubr.bf16.gmra.mrb[0].mxu0 %v1050
        %v1406 = vpop.f32.mrb[0].mxu0
        %v1407 = vadd.f32 %v1358, %v1406
        %v1408 = vpop.f32.mrb[0].mxu0
        %v1409 = vpop.f32.mrb[0].mxu0
        %v1410 = vpop.f32.mrb[0].mxu0
        %1411 = vdwg.mxu0
        %s1412 = scalar_lea.vmem %s11, 16
        %v1413 = vld [vmem:[%s1412] sm:$0xf]
        %v1414 = vld [vmem:[%s1412 + $0x4] sm:$0xf]
        %v1415 = vld [vmem:[%s1412 + $0x8] sm:$0xf]
        %v1416 = vld [vmem:[%s1412 + $0xc] sm:$0xf]
        %s1417 = scalar_lea.vmem %s12, 1
        %v1418 = vld [vmem:[%s1417] sm:$0x1]
        %v1420 = vlaneseq
        %v1421 = vshrl.u32 %v1420, 7
        %v1422 = vsub.s32 0, %v1421
        %v1423 = vrot.slane %v1418, %v1422
        %v1429 = vunpack.c.l.b16 %v1413
        %v1430 = vunpack.c.l.b16 %v1414
        %v1431 = vunpack.c.l.b16 %v1415
        %v1432 = vunpack.c.l.b16 %v1416
        %v1433 = vpack.c.b16 %v1430, %v1429
        %v1434 = vpack.c.b16 %v1432, %v1431
        %1437 = vmatprep.subr.bf16.mxu0 0
        %1438 = vmatpush1.bf16.msra.mxu0 %v1433
        %1439 = vmatprep.subr.bf16.mxu0 0
        %1440 = vmatpush1.bf16.msra.mxu0 %v1434
        %1441 = vmatprep.subr.bf16.mxu0 0
        %1442 = vmatpush1.bf16.msra.mxu0 0
        %1443 = vmatprep.subr.bf16.mxu0 0
        %1444 = vmatpush1.bf16.msra.mxu0 0
        %1445 = vmatprep.subr.bf16.mxu0 0
        %1446 = vmatpush1.bf16.msra.mxu0 0
        %1447 = vmatprep.subr.bf16.mxu0 0
        %1448 = vmatpush1.bf16.msra.mxu0 0
        %1449 = vmatprep.subr.bf16.mxu0 0
        %1450 = vmatpush1.bf16.msra.mxu0 0
        %1451 = vmatprep.subr.bf16.mxu0 0
        %1452 = vmatpush1.bf16.msra.mxu0 0
        %1453 = vmatprep.subr.bf16.mxu0 0
        %1454 = vmatpush1.bf16.msra.mxu0 0
        %1455 = vmatprep.subr.bf16.mxu0 0
        %1456 = vmatpush1.bf16.msra.mxu0 0
        %1457 = vmatprep.subr.bf16.mxu0 0
        %1458 = vmatpush1.bf16.msra.mxu0 0
        %1459 = vmatprep.subr.bf16.mxu0 0
        %1460 = vmatpush1.bf16.msra.mxu0 0
        %1461 = vmatprep.subr.bf16.mxu0 0
        %1462 = vmatpush1.bf16.msra.mxu0 0
        %1463 = vmatprep.subr.bf16.mxu0 0
        %1464 = vmatpush1.bf16.msra.mxu0 0
        %1465 = vmatprep.subr.bf16.mxu0 0
        %1466 = vmatpush1.bf16.msra.mxu0 0
        %1467 = vmatprep.subr.bf16.mxu0 0
        %1468 = vmatpush1.bf16.msra.mxu0 0
        %1469 = vmatprep.mubr.bf16.mxu0 0
        %1470 = vmatmul.mubr.bf16.gmra.mrb[0].mxu0 %v1050
        %v1471 = vpop.f32.mrb[0].mxu0
        %v1472 = vadd.f32 %v1423, %v1471
        %v1473 = vpop.f32.mrb[0].mxu0
        %v1474 = vpop.f32.mrb[0].mxu0
        %v1475 = vpop.f32.mrb[0].mxu0
        %1476 = vdwg.mxu0
        %v1477 = vmul.f32 %v1341, 0.35355338
        %v1478 = vmul.f32 %v1344, 0.35355338
        %v1479 = vpack.c.bf16 %v1478, %v1477
        %v1480 = vpack.c.bf16 %v1407, %v1407
        %v1482 = vsel %vm1159, %v1479, 0
        %v1485 = vsel %vm1159, %v1480, 0
        %1487 = vmatprep.subr.bf16.mxu0 0
        %1488 = vmatpush1.bf16.xpose.msra.mxu0 %v1485
        %1489 = vmatprep.subr.bf16.mxu0 0
        %1490 = vmatpush1.bf16.xpose.msra.mxu0 0
        %1491 = vmatprep.subr.bf16.mxu0 0
        %1492 = vmatpush1.bf16.xpose.msra.mxu0 0
        %1493 = vmatprep.subr.bf16.mxu0 0
        %1494 = vmatpush1.bf16.xpose.msra.mxu0 0
        %1495 = vmatprep.subr.bf16.mxu0 0
        %1496 = vmatpush1.bf16.xpose.msra.mxu0 0
        %1497 = vmatprep.subr.bf16.mxu0 0
        %1498 = vmatpush1.bf16.xpose.msra.mxu0 0
        %1499 = vmatprep.subr.bf16.mxu0 0
        %1500 = vmatpush1.bf16.xpose.msra.mxu0 0
        %1501 = vmatprep.subr.bf16.mxu0 0
        %1502 = vmatpush1.bf16.xpose.msra.mxu0 0
        %1503 = vmatprep.subr.bf16.mxu0 0
        %1504 = vmatpush1.bf16.xpose.msra.mxu0 0
        %1505 = vmatprep.subr.bf16.mxu0 0
        %1506 = vmatpush1.bf16.xpose.msra.mxu0 0
        %1507 = vmatprep.subr.bf16.mxu0 0
        %1508 = vmatpush1.bf16.xpose.msra.mxu0 0
        %1509 = vmatprep.subr.bf16.mxu0 0
        %1510 = vmatpush1.bf16.xpose.msra.mxu0 0
        %1511 = vmatprep.subr.bf16.mxu0 0
        %1512 = vmatpush1.bf16.xpose.msra.mxu0 0
        %1513 = vmatprep.subr.bf16.mxu0 0
        %1514 = vmatpush1.bf16.xpose.msra.mxu0 0
        %1515 = vmatprep.subr.bf16.mxu0 0
        %1516 = vmatpush1.bf16.xpose.msra.mxu0 0
        %1517 = vmatprep.subr.bf16.mxu0 0
        %1518 = vmatpush1.bf16.xpose.msra.mxu0 0
        %1519 = vmatprep.mubr.bf16.mxu0 0
        %1520 = vmatmul.mubr.bf16.gmra.mrb[0].mxu0 %v1482
        %v1521 = vpop.f32.mrb[0].mxu0
        %v1522 = vadd.f32 %v901, %v1521
        %v1523 = vpop.f32.mrb[0].mxu0
        %v1524 = vpop.f32.mrb[0].mxu0
        %v1525 = vadd.f32 %v903, %v1524
        %v1526 = vpop.f32.mrb[0].mxu0
        %1527 = vdwg.mxu0
        %v1528 = vsel %vm1159, %v1522, -inf
        %1529 = vmax.xlane.f32.xlu0 %v1528
        %v1530 = vpop.xlane.xlu0 %1529
        %v1531 = vsel %vm1159, %v1525, -inf
        %1532 = vmax.xlane.f32.xlu0 %v1531
        %v1533 = vpop.xlane.xlu0 %1532
        %v1534 = vsub.f32 %v1522, %v1530
        %v1535 = vsub.f32 %v1525, %v1533
        %v1536 = vmul.f32 %v1534, 1.442695
        %v1537 = vpow.pop %v1536
        %v1538 = vmul.f32 %v1535, 1.442695
        %v1539 = vpow.pop %v1538
        %v1540 = vsel %vm1159, %v1537, 0.0
        %1541 = vadd.xlane.f32.xlu0 %v1540
        %v1542 = vpop.xlane.xlu0 %1541
        %v1543 = vsel %vm1159, %v1539, 0.0
        %1544 = vadd.xlane.f32.xlu0 %v1543
        %v1545 = vpop.xlane.xlu0 %1544
        %v1546 = vrcp.pop %v1542
        %v1547 = vrcp.pop %v1545
        %v1548 = vmul.f32 %v1537, %v1546
        %v1549 = vmul.f32 %v1539, %v1547
        %v1550 = vpack.c.bf16 %v1549, %v1548
        %v1551 = vpack.c.bf16 %v1472, %v1472
        %v1553 = vsel %vm1159, %v1550, 0
        %v1556 = vsel %vm1234, %v1551, 0
        %1558 = vmatprep.subr.bf16.mxu0 0
        %1559 = vmatpush1.bf16.msra.mxu0 %v1556
        %1560 = vmatprep.subr.bf16.mxu0 0
        %1561 = vmatpush1.bf16.msra.mxu0 0
        %1562 = vmatprep.subr.bf16.mxu0 0
        %1563 = vmatpush1.bf16.msra.mxu0 0
        %1564 = vmatprep.subr.bf16.mxu0 0
        %1565 = vmatpush1.bf16.msra.mxu0 0
        %1566 = vmatprep.subr.bf16.mxu0 0
        %1567 = vmatpush1.bf16.msra.mxu0 0
        %1568 = vmatprep.subr.bf16.mxu0 0
        %1569 = vmatpush1.bf16.msra.mxu0 0
        %1570 = vmatprep.subr.bf16.mxu0 0
        %1571 = vmatpush1.bf16.msra.mxu0 0
        %1572 = vmatprep.subr.bf16.mxu0 0
        %1573 = vmatpush1.bf16.msra.mxu0 0
        %1574 = vmatprep.subr.bf16.mxu0 0
        %1575 = vmatpush1.bf16.msra.mxu0 0
        %1576 = vmatprep.subr.bf16.mxu0 0
        %1577 = vmatpush1.bf16.msra.mxu0 0
        %1578 = vmatprep.subr.bf16.mxu0 0
        %1579 = vmatpush1.bf16.msra.mxu0 0
        %1580 = vmatprep.subr.bf16.mxu0 0
        %1581 = vmatpush1.bf16.msra.mxu0 0
        %1582 = vmatprep.subr.bf16.mxu0 0
        %1583 = vmatpush1.bf16.msra.mxu0 0
        %1584 = vmatprep.subr.bf16.mxu0 0
        %1585 = vmatpush1.bf16.msra.mxu0 0
        %1586 = vmatprep.subr.bf16.mxu0 0
        %1587 = vmatpush1.bf16.msra.mxu0 0
        %1588 = vmatprep.subr.bf16.mxu0 0
        %1589 = vmatpush1.bf16.msra.mxu0 0
        %1590 = vmatprep.mubr.bf16.mxu0 0
        %1591 = vmatmul.mubr.bf16.gmra.mrb[0].mxu0 %v1553
        %v1592 = vpop.f32.mrb[0].mxu0
        %v1593 = vadd.f32 0.0, %v1592
        %v1594 = vpop.f32.mrb[0].mxu0
        %v1595 = vpop.f32.mrb[0].mxu0
        %v1596 = vadd.f32 0.0, %v1595
        %v1597 = vpop.f32.mrb[0].mxu0
        %1598 = vdwg.mxu0
        %s1599 = scalar_lea.vmem %s13, 4
        %v1600 = vld [vmem:[%s1599] sm:$0xf]
        %v1601 = vpack.c.bf16 %v1596, %v1593
        %v1603 = vsel %vm1159, %v1601, 0
        %v1606 = vsel %vm1234, %v1600, 0
        %1608 = vmatprep.subr.bf16.mxu0 0
        %1609 = vmatpush1.bf16.msra.mxu0 %v1606
        %1610 = vmatprep.subr.bf16.mxu0 0
        %1611 = vmatpush1.bf16.msra.mxu0 0
        %1612 = vmatprep.subr.bf16.mxu0 0
        %1613 = vmatpush1.bf16.msra.mxu0 0
        %1614 = vmatprep.subr.bf16.mxu0 0
        %1615 = vmatpush1.bf16.msra.mxu0 0
        %1616 = vmatprep.subr.bf16.mxu0 0
        %1617 = vmatpush1.bf16.msra.mxu0 0
        %1618 = vmatprep.subr.bf16.mxu0 0
        %1619 = vmatpush1.bf16.msra.mxu0 0
        %1620 = vmatprep.subr.bf16.mxu0 0
        %1621 = vmatpush1.bf16.msra.mxu0 0
        %1622 = vmatprep.subr.bf16.mxu0 0
        %1623 = vmatpush1.bf16.msra.mxu0 0
        %1624 = vmatprep.subr.bf16.mxu0 0
        %1625 = vmatpush1.bf16.msra.mxu0 0
        %1626 = vmatprep.subr.bf16.mxu0 0
        %1627 = vmatpush1.bf16.msra.mxu0 0
        %1628 = vmatprep.subr.bf16.mxu0 0
        %1629 = vmatpush1.bf16.msra.mxu0 0
        %1630 = vmatprep.subr.bf16.mxu0 0
        %1631 = vmatpush1.bf16.msra.mxu0 0
        %1632 = vmatprep.subr.bf16.mxu0 0
        %1633 = vmatpush1.bf16.msra.mxu0 0
        %1634 = vmatprep.subr.bf16.mxu0 0
        %1635 = vmatpush1.bf16.msra.mxu0 0
        %1636 = vmatprep.subr.bf16.mxu0 0
        %1637 = vmatpush1.bf16.msra.mxu0 0
        %1638 = vmatprep.subr.bf16.mxu0 0
        %1639 = vmatpush1.bf16.msra.mxu0 0
        %1640 = vmatprep.mubr.bf16.mxu0 0
        %1641 = vmatmul.mubr.bf16.gmra.mrb[0].mxu0 %v1603
        %v1642 = vpop.f32.mrb[0].mxu0
        %v1643 = vadd.f32 0.0, %v1642
        %v1644 = vpop.f32.mrb[0].mxu0
        %v1645 = vpop.f32.mrb[0].mxu0
        %v1646 = vadd.f32 0.0, %v1645
        %v1647 = vpop.f32.mrb[0].mxu0
        %1648 = vdwg.mxu0
        %v1650 = vsel %vm1159, %v1280, 0
        %v1653 = vsel %vm1234, %v1279, 0
        %1655 = vmatprep.subr.bf16.mxu0 0
        %1656 = vmatpush1.bf16.msra.mxu0 %v1653
        %1657 = vmatprep.subr.bf16.mxu0 0
        %1658 = vmatpush1.bf16.msra.mxu0 0
        %1659 = vmatprep.subr.bf16.mxu0 0
        %1660 = vmatpush1.bf16.msra.mxu0 0
        %1661 = vmatprep.subr.bf16.mxu0 0
        %1662 = vmatpush1.bf16.msra.mxu0 0
        %1663 = vmatprep.subr.bf16.mxu0 0
        %1664 = vmatpush1.bf16.msra.mxu0 0
        %1665 = vmatprep.subr.bf16.mxu0 0
        %1666 = vmatpush1.bf16.msra.mxu0 0
        %1667 = vmatprep.subr.bf16.mxu0 0
        %1668 = vmatpush1.bf16.msra.mxu0 0
        %1669 = vmatprep.subr.bf16.mxu0 0
        %1670 = vmatpush1.bf16.msra.mxu0 0
        %1671 = vmatprep.subr.bf16.mxu0 0
        %1672 = vmatpush1.bf16.msra.mxu0 0
        %1673 = vmatprep.subr.bf16.mxu0 0
        %1674 = vmatpush1.bf16.msra.mxu0 0
        %1675 = vmatprep.subr.bf16.mxu0 0
        %1676 = vmatpush1.bf16.msra.mxu0 0
        %1677 = vmatprep.subr.bf16.mxu0 0
        %1678 = vmatpush1.bf16.msra.mxu0 0
        %1679 = vmatprep.subr.bf16.mxu0 0
        %1680 = vmatpush1.bf16.msra.mxu0 0
        %1681 = vmatprep.subr.bf16.mxu0 0
        %1682 = vmatpush1.bf16.msra.mxu0 0
        %1683 = vmatprep.subr.bf16.mxu0 0
        %1684 = vmatpush1.bf16.msra.mxu0 0
        %1685 = vmatprep.subr.bf16.mxu0 0
        %1686 = vmatpush1.bf16.msra.mxu0 0
        %1687 = vmatprep.mubr.bf16.mxu0 0
        %1688 = vmatmul.mubr.bf16.gmra.mrb[0].mxu0 %v1650
        %v1689 = vpop.f32.mrb[0].mxu0
        %v1690 = vadd.f32 %v1643, %v1689
        %v1691 = vpop.f32.mrb[0].mxu0
        %v1692 = vpop.f32.mrb[0].mxu0
        %v1693 = vadd.f32 %v1646, %v1692
        %v1694 = vpop.f32.mrb[0].mxu0
        %1695 = vdwg.mxu0
        %s1696 = scalar_lea.vmem %s7, 32
        %v1697 = vld [vmem:[%s1696] sm:$0xf]
        %v1698 = vld [vmem:[%s1696 + $0x4] sm:$0xf]
        %v1699 = vld [vmem:[%s1696 + $0x8] sm:$0xf]
        %v1700 = vld [vmem:[%s1696 + $0xc] sm:$0xf]
        %s1701 = scalar_lea.vmem %s8, 2
        %v1702 = vld [vmem:[%s1701] sm:$0x1]
        %v1704 = vlaneseq
        %v1705 = vshrl.u32 %v1704, 7
        %v1706 = vsub.s32 0, %v1705
        %v1707 = vrot.slane %v1702, %v1706
        %v1713 = vunpack.c.l.b16 %v1697
        %v1714 = vunpack.c.l.b16 %v1698
        %v1715 = vunpack.c.l.b16 %v1699
        %v1716 = vunpack.c.l.b16 %v1700
        %v1717 = vpack.c.b16 %v1714, %v1713
        %v1718 = vpack.c.b16 %v1716, %v1715
        %1721 = vmatprep.subr.bf16.mxu0 0
        %1722 = vmatpush1.bf16.msra.mxu0 %v1717
        %1723 = vmatprep.subr.bf16.mxu0 0
        %1724 = vmatpush1.bf16.msra.mxu0 %v1718
        %1725 = vmatprep.subr.bf16.mxu0 0
        %1726 = vmatpush1.bf16.msra.mxu0 0
        %1727 = vmatprep.subr.bf16.mxu0 0
        %1728 = vmatpush1.bf16.msra.mxu0 0
        %1729 = vmatprep.subr.bf16.mxu0 0
        %1730 = vmatpush1.bf16.msra.mxu0 0
        %1731 = vmatprep.subr.bf16.mxu0 0
        %1732 = vmatpush1.bf16.msra.mxu0 0
        %1733 = vmatprep.subr.bf16.mxu0 0
        %1734 = vmatpush1.bf16.msra.mxu0 0
        %1735 = vmatprep.subr.bf16.mxu0 0
        %1736 = vmatpush1.bf16.msra.mxu0 0
        %1737 = vmatprep.subr.bf16.mxu0 0
        %1738 = vmatpush1.bf16.msra.mxu0 0
        %1739 = vmatprep.subr.bf16.mxu0 0
        %1740 = vmatpush1.bf16.msra.mxu0 0
        %1741 = vmatprep.subr.bf16.mxu0 0
        %1742 = vmatpush1.bf16.msra.mxu0 0
        %1743 = vmatprep.subr.bf16.mxu0 0
        %1744 = vmatpush1.bf16.msra.mxu0 0
        %1745 = vmatprep.subr.bf16.mxu0 0
        %1746 = vmatpush1.bf16.msra.mxu0 0
        %1747 = vmatprep.subr.bf16.mxu0 0
        %1748 = vmatpush1.bf16.msra.mxu0 0
        %1749 = vmatprep.subr.bf16.mxu0 0
        %1750 = vmatpush1.bf16.msra.mxu0 0
        %1751 = vmatprep.subr.bf16.mxu0 0
        %1752 = vmatpush1.bf16.msra.mxu0 0
        %1753 = vmatprep.mubr.bf16.mxu0 0
        %1754 = vmatmul.mubr.bf16.gmra.mrb[0].mxu0 %v982
        %v1755 = vpop.f32.mrb[0].mxu0
        %v1756 = vadd.f32 %v1707, %v1755
        %v1757 = vpop.f32.mrb[0].mxu0
        %v1758 = vpop.f32.mrb[0].mxu0
        %v1759 = vadd.f32 %v1707, %v1758
        %v1760 = vpop.f32.mrb[0].mxu0
        %1761 = vdwg.mxu0
        %s1762 = scalar_lea.vmem %s9, 32
        %v1763 = vld [vmem:[%s1762] sm:$0xf]
        %v1764 = vld [vmem:[%s1762 + $0x4] sm:$0xf]
        %v1765 = vld [vmem:[%s1762 + $0x8] sm:$0xf]
        %v1766 = vld [vmem:[%s1762 + $0xc] sm:$0xf]
        %s1767 = scalar_lea.vmem %s10, 2
        %v1768 = vld [vmem:[%s1767] sm:$0x1]
        %v1770 = vlaneseq
        %v1771 = vshrl.u32 %v1770, 7
        %v1772 = vsub.s32 0, %v1771
        %v1773 = vrot.slane %v1768, %v1772
        %v1779 = vunpack.c.l.b16 %v1763
        %v1780 = vunpack.c.l.b16 %v1764
        %v1781 = vunpack.c.l.b16 %v1765
        %v1782 = vunpack.c.l.b16 %v1766
        %v1783 = vpack.c.b16 %v1780, %v1779
        %v1784 = vpack.c.b16 %v1782, %v1781
        %1787 = vmatprep.subr.bf16.mxu0 0
        %1788 = vmatpush1.bf16.msra.mxu0 %v1783
        %1789 = vmatprep.subr.bf16.mxu0 0
        %1790 = vmatpush1.bf16.msra.mxu0 %v1784
        %1791 = vmatprep.subr.bf16.mxu0 0
        %1792 = vmatpush1.bf16.msra.mxu0 0
        %1793 = vmatprep.subr.bf16.mxu0 0
        %1794 = vmatpush1.bf16.msra.mxu0 0
        %1795 = vmatprep.subr.bf16.mxu0 0
        %1796 = vmatpush1.bf16.msra.mxu0 0
        %1797 = vmatprep.subr.bf16.mxu0 0
        %1798 = vmatpush1.bf16.msra.mxu0 0
        %1799 = vmatprep.subr.bf16.mxu0 0
        %1800 = vmatpush1.bf16.msra.mxu0 0
        %1801 = vmatprep.subr.bf16.mxu0 0
        %1802 = vmatpush1.bf16.msra.mxu0 0
        %1803 = vmatprep.subr.bf16.mxu0 0
        %1804 = vmatpush1.bf16.msra.mxu0 0
        %1805 = vmatprep.subr.bf16.mxu0 0
        %1806 = vmatpush1.bf16.msra.mxu0 0
        %1807 = vmatprep.subr.bf16.mxu0 0
        %1808 = vmatpush1.bf16.msra.mxu0 0
        %1809 = vmatprep.subr.bf16.mxu0 0
        %1810 = vmatpush1.bf16.msra.mxu0 0
        %1811 = vmatprep.subr.bf16.mxu0 0
        %1812 = vmatpush1.bf16.msra.mxu0 0
        %1813 = vmatprep.subr.bf16.mxu0 0
        %1814 = vmatpush1.bf16.msra.mxu0 0
        %1815 = vmatprep.subr.bf16.mxu0 0
        %1816 = vmatpush1.bf16.msra.mxu0 0
        %1817 = vmatprep.subr.bf16.mxu0 0
        %1818 = vmatpush1.bf16.msra.mxu0 0
        %1819 = vmatprep.mubr.bf16.mxu0 0
        %1820 = vmatmul.mubr.bf16.gmra.mrb[0].mxu0 %v1050
        %v1821 = vpop.f32.mrb[0].mxu0
        %v1822 = vadd.f32 %v1773, %v1821
        %v1823 = vpop.f32.mrb[0].mxu0
        %v1824 = vpop.f32.mrb[0].mxu0
        %v1825 = vpop.f32.mrb[0].mxu0
        %1826 = vdwg.mxu0
        %s1827 = scalar_lea.vmem %s11, 32
        %v1828 = vld [vmem:[%s1827] sm:$0xf]
        %v1829 = vld [vmem:[%s1827 + $0x4] sm:$0xf]
        %v1830 = vld [vmem:[%s1827 + $0x8] sm:$0xf]
        %v1831 = vld [vmem:[%s1827 + $0xc] sm:$0xf]
        %s1832 = scalar_lea.vmem %s12, 2
        %v1833 = vld [vmem:[%s1832] sm:$0x1]
        %v1835 = vlaneseq
        %v1836 = vshrl.u32 %v1835, 7
        %v1837 = vsub.s32 0, %v1836
        %v1838 = vrot.slane %v1833, %v1837
        %v1844 = vunpack.c.l.b16 %v1828
        %v1845 = vunpack.c.l.b16 %v1829
        %v1846 = vunpack.c.l.b16 %v1830
        %v1847 = vunpack.c.l.b16 %v1831
        %v1848 = vpack.c.b16 %v1845, %v1844
        %v1849 = vpack.c.b16 %v1847, %v1846
        %1852 = vmatprep.subr.bf16.mxu0 0
        %1853 = vmatpush1.bf16.msra.mxu0 %v1848
        %1854 = vmatprep.subr.bf16.mxu0 0
        %1855 = vmatpush1.bf16.msra.mxu0 %v1849
        %1856 = vmatprep.subr.bf16.mxu0 0
        %1857 = vmatpush1.bf16.msra.mxu0 0
        %1858 = vmatprep.subr.bf16.mxu0 0
        %1859 = vmatpush1.bf16.msra.mxu0 0
        %1860 = vmatprep.subr.bf16.mxu0 0
        %1861 = vmatpush1.bf16.msra.mxu0 0
        %1862 = vmatprep.subr.bf16.mxu0 0
        %1863 = vmatpush1.bf16.msra.mxu0 0
        %1864 = vmatprep.subr.bf16.mxu0 0
        %1865 = vmatpush1.bf16.msra.mxu0 0
        %1866 = vmatprep.subr.bf16.mxu0 0
        %1867 = vmatpush1.bf16.msra.mxu0 0
        %1868 = vmatprep.subr.bf16.mxu0 0
        %1869 = vmatpush1.bf16.msra.mxu0 0
        %1870 = vmatprep.subr.bf16.mxu0 0
        %1871 = vmatpush1.bf16.msra.mxu0 0
        %1872 = vmatprep.subr.bf16.mxu0 0
        %1873 = vmatpush1.bf16.msra.mxu0 0
        %1874 = vmatprep.subr.bf16.mxu0 0
        %1875 = vmatpush1.bf16.msra.mxu0 0
        %1876 = vmatprep.subr.bf16.mxu0 0
        %1877 = vmatpush1.bf16.msra.mxu0 0
        %1878 = vmatprep.subr.bf16.mxu0 0
        %1879 = vmatpush1.bf16.msra.mxu0 0
        %1880 = vmatprep.subr.bf16.mxu0 0
        %1881 = vmatpush1.bf16.msra.mxu0 0
        %1882 = vmatprep.subr.bf16.mxu0 0
        %1883 = vmatpush1.bf16.msra.mxu0 0
        %1884 = vmatprep.mubr.bf16.mxu0 0
        %1885 = vmatmul.mubr.bf16.gmra.mrb[0].mxu0 %v1050
        %v1886 = vpop.f32.mrb[0].mxu0
        %v1887 = vadd.f32 %v1838, %v1886
        %v1888 = vpop.f32.mrb[0].mxu0
        %v1889 = vpop.f32.mrb[0].mxu0
        %v1890 = vpop.f32.mrb[0].mxu0
        %1891 = vdwg.mxu0
        %v1892 = vmul.f32 %v1756, 0.35355338
        %v1893 = vmul.f32 %v1759, 0.35355338
        %v1894 = vpack.c.bf16 %v1893, %v1892
        %v1895 = vpack.c.bf16 %v1822, %v1822
        %v1897 = vsel %vm1159, %v1894, 0
        %v1900 = vsel %vm1159, %v1895, 0
        %1902 = vmatprep.subr.bf16.mxu0 0
        %1903 = vmatpush1.bf16.xpose.msra.mxu0 %v1900
        %1904 = vmatprep.subr.bf16.mxu0 0
        %1905 = vmatpush1.bf16.xpose.msra.mxu0 0
        %1906 = vmatprep.subr.bf16.mxu0 0
        %1907 = vmatpush1.bf16.xpose.msra.mxu0 0
        %1908 = vmatprep.subr.bf16.mxu0 0
        %1909 = vmatpush1.bf16.xpose.msra.mxu0 0
        %1910 = vmatprep.subr.bf16.mxu0 0
        %1911 = vmatpush1.bf16.xpose.msra.mxu0 0
        %1912 = vmatprep.subr.bf16.mxu0 0
        %1913 = vmatpush1.bf16.xpose.msra.mxu0 0
        %1914 = vmatprep.subr.bf16.mxu0 0
        %1915 = vmatpush1.bf16.xpose.msra.mxu0 0
        %1916 = vmatprep.subr.bf16.mxu0 0
        %1917 = vmatpush1.bf16.xpose.msra.mxu0 0
        %1918 = vmatprep.subr.bf16.mxu0 0
        %1919 = vmatpush1.bf16.xpose.msra.mxu0 0
        %1920 = vmatprep.subr.bf16.mxu0 0
        %1921 = vmatpush1.bf16.xpose.msra.mxu0 0
        %1922 = vmatprep.subr.bf16.mxu0 0
        %1923 = vmatpush1.bf16.xpose.msra.mxu0 0
        %1924 = vmatprep.subr.bf16.mxu0 0
        %1925 = vmatpush1.bf16.xpose.msra.mxu0 0
        %1926 = vmatprep.subr.bf16.mxu0 0
        %1927 = vmatpush1.bf16.xpose.msra.mxu0 0
        %1928 = vmatprep.subr.bf16.mxu0 0
        %1929 = vmatpush1.bf16.xpose.msra.mxu0 0
        %1930 = vmatprep.subr.bf16.mxu0 0
        %1931 = vmatpush1.bf16.xpose.msra.mxu0 0
        %1932 = vmatprep.subr.bf16.mxu0 0
        %1933 = vmatpush1.bf16.xpose.msra.mxu0 0
        %1934 = vmatprep.mubr.bf16.mxu0 0
        %1935 = vmatmul.mubr.bf16.gmra.mrb[0].mxu0 %v1897
        %v1936 = vpop.f32.mrb[0].mxu0
        %v1937 = vadd.f32 %v901, %v1936
        %v1938 = vpop.f32.mrb[0].mxu0
        %v1939 = vpop.f32.mrb[0].mxu0
        %v1940 = vadd.f32 %v903, %v1939
        %v1941 = vpop.f32.mrb[0].mxu0
        %1942 = vdwg.mxu0
        %v1943 = vsel %vm1159, %v1937, -inf
        %1944 = vmax.xlane.f32.xlu0 %v1943
        %v1945 = vpop.xlane.xlu0 %1944
        %v1946 = vsel %vm1159, %v1940, -inf
        %1947 = vmax.xlane.f32.xlu0 %v1946
        %v1948 = vpop.xlane.xlu0 %1947
        %v1949 = vsub.f32 %v1937, %v1945
        %v1950 = vsub.f32 %v1940, %v1948
        %v1951 = vmul.f32 %v1949, 1.442695
        %v1952 = vpow.pop %v1951
        %v1953 = vmul.f32 %v1950, 1.442695
        %v1954 = vpow.pop %v1953
        %v1955 = vsel %vm1159, %v1952, 0.0
        %1956 = vadd.xlane.f32.xlu0 %v1955
        %v1957 = vpop.xlane.xlu0 %1956
        %v1958 = vsel %vm1159, %v1954, 0.0
        %1959 = vadd.xlane.f32.xlu0 %v1958
        %v1960 = vpop.xlane.xlu0 %1959
        %v1961 = vrcp.pop %v1957
        %v1962 = vrcp.pop %v1960
        %v1963 = vmul.f32 %v1952, %v1961
        %v1964 = vmul.f32 %v1954, %v1962
        %v1965 = vpack.c.bf16 %v1964, %v1963
        %v1966 = vpack.c.bf16 %v1887, %v1887
        %v1968 = vsel %vm1159, %v1965, 0
        %v1971 = vsel %vm1234, %v1966, 0
        %1973 = vmatprep.subr.bf16.mxu0 0
        %1974 = vmatpush1.bf16.msra.mxu0 %v1971
        %1975 = vmatprep.subr.bf16.mxu0 0
        %1976 = vmatpush1.bf16.msra.mxu0 0
        %1977 = vmatprep.subr.bf16.mxu0 0
        %1978 = vmatpush1.bf16.msra.mxu0 0
        %1979 = vmatprep.subr.bf16.mxu0 0
        %1980 = vmatpush1.bf16.msra.mxu0 0
        %1981 = vmatprep.subr.bf16.mxu0 0
        %1982 = vmatpush1.bf16.msra.mxu0 0
        %1983 = vmatprep.subr.bf16.mxu0 0
        %1984 = vmatpush1.bf16.msra.mxu0 0
        %1985 = vmatprep.subr.bf16.mxu0 0
        %1986 = vmatpush1.bf16.msra.mxu0 0
        %1987 = vmatprep.subr.bf16.mxu0 0
        %1988 = vmatpush1.bf16.msra.mxu0 0
        %1989 = vmatprep.subr.bf16.mxu0 0
        %1990 = vmatpush1.bf16.msra.mxu0 0
        %1991 = vmatprep.subr.bf16.mxu0 0
        %1992 = vmatpush1.bf16.msra.mxu0 0
        %1993 = vmatprep.subr.bf16.mxu0 0
        %1994 = vmatpush1.bf16.msra.mxu0 0
        %1995 = vmatprep.subr.bf16.mxu0 0
        %1996 = vmatpush1.bf16.msra.mxu0 0
        %1997 = vmatprep.subr.bf16.mxu0 0
        %1998 = vmatpush1.bf16.msra.mxu0 0
        %1999 = vmatprep.subr.bf16.mxu0 0
        %2000 = vmatpush1.bf16.msra.mxu0 0
        %2001 = vmatprep.subr.bf16.mxu0 0
        %2002 = vmatpush1.bf16.msra.mxu0 0
        %2003 = vmatprep.subr.bf16.mxu0 0
        %2004 = vmatpush1.bf16.msra.mxu0 0
        %2005 = vmatprep.mubr.bf16.mxu0 0
        %2006 = vmatmul.mubr.bf16.gmra.mrb[0].mxu0 %v1968
        %v2007 = vpop.f32.mrb[0].mxu0
        %v2008 = vadd.f32 0.0, %v2007
        %v2009 = vpop.f32.mrb[0].mxu0
        %v2010 = vpop.f32.mrb[0].mxu0
        %v2011 = vadd.f32 0.0, %v2010
        %v2012 = vpop.f32.mrb[0].mxu0
        %2013 = vdwg.mxu0
        %s2014 = scalar_lea.vmem %s13, 8
        %v2015 = vld [vmem:[%s2014] sm:$0xf]
        %v2016 = vpack.c.bf16 %v2011, %v2008
        %v2018 = vsel %vm1159, %v2016, 0
        %v2021 = vsel %vm1234, %v2015, 0
        %2023 = vmatprep.subr.bf16.mxu0 0
        %2024 = vmatpush1.bf16.msra.mxu0 %v2021
        %2025 = vmatprep.subr.bf16.mxu0 0
        %2026 = vmatpush1.bf16.msra.mxu0 0
        %2027 = vmatprep.subr.bf16.mxu0 0
        %2028 = vmatpush1.bf16.msra.mxu0 0
        %2029 = vmatprep.subr.bf16.mxu0 0
        %2030 = vmatpush1.bf16.msra.mxu0 0
        %2031 = vmatprep.subr.bf16.mxu0 0
        %2032 = vmatpush1.bf16.msra.mxu0 0
        %2033 = vmatprep.subr.bf16.mxu0 0
        %2034 = vmatpush1.bf16.msra.mxu0 0
        %2035 = vmatprep.subr.bf16.mxu0 0
        %2036 = vmatpush1.bf16.msra.mxu0 0
        %2037 = vmatprep.subr.bf16.mxu0 0
        %2038 = vmatpush1.bf16.msra.mxu0 0
        %2039 = vmatprep.subr.bf16.mxu0 0
        %2040 = vmatpush1.bf16.msra.mxu0 0
        %2041 = vmatprep.subr.bf16.mxu0 0
        %2042 = vmatpush1.bf16.msra.mxu0 0
        %2043 = vmatprep.subr.bf16.mxu0 0
        %2044 = vmatpush1.bf16.msra.mxu0 0
        %2045 = vmatprep.subr.bf16.mxu0 0
        %2046 = vmatpush1.bf16.msra.mxu0 0
        %2047 = vmatprep.subr.bf16.mxu0 0
        %2048 = vmatpush1.bf16.msra.mxu0 0
        %2049 = vmatprep.subr.bf16.mxu0 0
        %2050 = vmatpush1.bf16.msra.mxu0 0
        %2051 = vmatprep.subr.bf16.mxu0 0
        %2052 = vmatpush1.bf16.msra.mxu0 0
        %2053 = vmatprep.subr.bf16.mxu0 0
        %2054 = vmatpush1.bf16.msra.mxu0 0
        %2055 = vmatprep.mubr.bf16.mxu0 0
        %2056 = vmatmul.mubr.bf16.gmra.mrb[0].mxu0 %v2018
        %v2057 = vpop.f32.mrb[0].mxu0
        %v2058 = vadd.f32 0.0, %v2057
        %v2059 = vpop.f32.mrb[0].mxu0
        %v2060 = vpop.f32.mrb[0].mxu0
        %v2061 = vadd.f32 0.0, %v2060
        %v2062 = vpop.f32.mrb[0].mxu0
        %2063 = vdwg.mxu0
        %v2064 = vadd.f32 %v1690, %v2058
        %v2065 = vadd.f32 %v1693, %v2061
        %s2066 = scalar_lea.vmem %s7, 48
        %v2067 = vld [vmem:[%s2066] sm:$0xf]
        %v2068 = vld [vmem:[%s2066 + $0x4] sm:$0xf]
        %v2069 = vld [vmem:[%s2066 + $0x8] sm:$0xf]
        %v2070 = vld [vmem:[%s2066 + $0xc] sm:$0xf]
        %s2071 = scalar_lea.vmem %s8, 3
        %v2072 = vld [vmem:[%s2071] sm:$0x1]
        %v2074 = vlaneseq
        %v2075 = vshrl.u32 %v2074, 7
        %v2076 = vsub.s32 0, %v2075
        %v2077 = vrot.slane %v2072, %v2076
        %v2083 = vunpack.c.l.b16 %v2067
        %v2084 = vunpack.c.l.b16 %v2068
        %v2085 = vunpack.c.l.b16 %v2069
        %v2086 = vunpack.c.l.b16 %v2070
        %v2087 = vpack.c.b16 %v2084, %v2083
        %v2088 = vpack.c.b16 %v2086, %v2085
        %2091 = vmatprep.subr.bf16.mxu0 0
        %2092 = vmatpush1.bf16.msra.mxu0 %v2087
        %2093 = vmatprep.subr.bf16.mxu0 0
        %2094 = vmatpush1.bf16.msra.mxu0 %v2088
        %2095 = vmatprep.subr.bf16.mxu0 0
        %2096 = vmatpush1.bf16.msra.mxu0 0
        %2097 = vmatprep.subr.bf16.mxu0 0
        %2098 = vmatpush1.bf16.msra.mxu0 0
        %2099 = vmatprep.subr.bf16.mxu0 0
        %2100 = vmatpush1.bf16.msra.mxu0 0
        %2101 = vmatprep.subr.bf16.mxu0 0
        %2102 = vmatpush1.bf16.msra.mxu0 0
        %2103 = vmatprep.subr.bf16.mxu0 0
        %2104 = vmatpush1.bf16.msra.mxu0 0
        %2105 = vmatprep.subr.bf16.mxu0 0
        %2106 = vmatpush1.bf16.msra.mxu0 0
        %2107 = vmatprep.subr.bf16.mxu0 0
        %2108 = vmatpush1.bf16.msra.mxu0 0
        %2109 = vmatprep.subr.bf16.mxu0 0
        %2110 = vmatpush1.bf16.msra.mxu0 0
        %2111 = vmatprep.subr.bf16.mxu0 0
        %2112 = vmatpush1.bf16.msra.mxu0 0
        %2113 = vmatprep.subr.bf16.mxu0 0
        %2114 = vmatpush1.bf16.msra.mxu0 0
        %2115 = vmatprep.subr.bf16.mxu0 0
        %2116 = vmatpush1.bf16.msra.mxu0 0
        %2117 = vmatprep.subr.bf16.mxu0 0
        %2118 = vmatpush1.bf16.msra.mxu0 0
        %2119 = vmatprep.subr.bf16.mxu0 0
        %2120 = vmatpush1.bf16.msra.mxu0 0
        %2121 = vmatprep.subr.bf16.mxu0 0
        %2122 = vmatpush1.bf16.msra.mxu0 0
        %2123 = vmatprep.mubr.bf16.mxu0 0
        %2124 = vmatmul.mubr.bf16.gmra.mrb[0].mxu0 %v982
        %v2125 = vpop.f32.mrb[0].mxu0
        %v2126 = vadd.f32 %v2077, %v2125
        %v2127 = vpop.f32.mrb[0].mxu0
        %v2128 = vpop.f32.mrb[0].mxu0
        %v2129 = vadd.f32 %v2077, %v2128
        %v2130 = vpop.f32.mrb[0].mxu0
        %2131 = vdwg.mxu0
        %s2132 = scalar_lea.vmem %s9, 48
        %v2133 = vld [vmem:[%s2132] sm:$0xf]
        %v2134 = vld [vmem:[%s2132 + $0x4] sm:$0xf]
        %v2135 = vld [vmem:[%s2132 + $0x8] sm:$0xf]
        %v2136 = vld [vmem:[%s2132 + $0xc] sm:$0xf]
        %s2137 = scalar_lea.vmem %s10, 3
        %v2138 = vld [vmem:[%s2137] sm:$0x1]
        %v2140 = vlaneseq
        %v2141 = vshrl.u32 %v2140, 7
        %v2142 = vsub.s32 0, %v2141
        %v2143 = vrot.slane %v2138, %v2142
        %v2149 = vunpack.c.l.b16 %v2133
        %v2150 = vunpack.c.l.b16 %v2134
        %v2151 = vunpack.c.l.b16 %v2135
        %v2152 = vunpack.c.l.b16 %v2136
        %v2153 = vpack.c.b16 %v2150, %v2149
        %v2154 = vpack.c.b16 %v2152, %v2151
        %2157 = vmatprep.subr.bf16.mxu0 0
        %2158 = vmatpush1.bf16.msra.mxu0 %v2153
        %2159 = vmatprep.subr.bf16.mxu0 0
        %2160 = vmatpush1.bf16.msra.mxu0 %v2154
        %2161 = vmatprep.subr.bf16.mxu0 0
        %2162 = vmatpush1.bf16.msra.mxu0 0
        %2163 = vmatprep.subr.bf16.mxu0 0
        %2164 = vmatpush1.bf16.msra.mxu0 0
        %2165 = vmatprep.subr.bf16.mxu0 0
        %2166 = vmatpush1.bf16.msra.mxu0 0
        %2167 = vmatprep.subr.bf16.mxu0 0
        %2168 = vmatpush1.bf16.msra.mxu0 0
        %2169 = vmatprep.subr.bf16.mxu0 0
        %2170 = vmatpush1.bf16.msra.mxu0 0
        %2171 = vmatprep.subr.bf16.mxu0 0
        %2172 = vmatpush1.bf16.msra.mxu0 0
        %2173 = vmatprep.subr.bf16.mxu0 0
        %2174 = vmatpush1.bf16.msra.mxu0 0
        %2175 = vmatprep.subr.bf16.mxu0 0
        %2176 = vmatpush1.bf16.msra.mxu0 0
        %2177 = vmatprep.subr.bf16.mxu0 0
        %2178 = vmatpush1.bf16.msra.mxu0 0
        %2179 = vmatprep.subr.bf16.mxu0 0
        %2180 = vmatpush1.bf16.msra.mxu0 0
        %2181 = vmatprep.subr.bf16.mxu0 0
        %2182 = vmatpush1.bf16.msra.mxu0 0
        %2183 = vmatprep.subr.bf16.mxu0 0
        %2184 = vmatpush1.bf16.msra.mxu0 0
        %2185 = vmatprep.subr.bf16.mxu0 0
        %2186 = vmatpush1.bf16.msra.mxu0 0
        %2187 = vmatprep.subr.bf16.mxu0 0
        %2188 = vmatpush1.bf16.msra.mxu0 0
        %2189 = vmatprep.mubr.bf16.mxu0 0
        %2190 = vmatmul.mubr.bf16.gmra.mrb[0].mxu0 %v1050
        %v2191 = vpop.f32.mrb[0].mxu0
        %v2192 = vadd.f32 %v2143, %v2191
        %v2193 = vpop.f32.mrb[0].mxu0
        %v2194 = vpop.f32.mrb[0].mxu0
        %v2195 = vpop.f32.mrb[0].mxu0
        %2196 = vdwg.mxu0
        %s2197 = scalar_lea.vmem %s11, 48
        %v2198 = vld [vmem:[%s2197] sm:$0xf]
        %v2199 = vld [vmem:[%s2197 + $0x4] sm:$0xf]
        %v2200 = vld [vmem:[%s2197 + $0x8] sm:$0xf]
        %v2201 = vld [vmem:[%s2197 + $0xc] sm:$0xf]
        %s2202 = scalar_lea.vmem %s12, 3
        %v2203 = vld [vmem:[%s2202] sm:$0x1]
        %v2205 = vlaneseq
        %v2206 = vshrl.u32 %v2205, 7
        %v2207 = vsub.s32 0, %v2206
        %v2208 = vrot.slane %v2203, %v2207
        %v2214 = vunpack.c.l.b16 %v2198
        %v2215 = vunpack.c.l.b16 %v2199
        %v2216 = vunpack.c.l.b16 %v2200
        %v2217 = vunpack.c.l.b16 %v2201
        %v2218 = vpack.c.b16 %v2215, %v2214
        %v2219 = vpack.c.b16 %v2217, %v2216
        %2222 = vmatprep.subr.bf16.mxu0 0
        %2223 = vmatpush1.bf16.msra.mxu0 %v2218
        %2224 = vmatprep.subr.bf16.mxu0 0
        %2225 = vmatpush1.bf16.msra.mxu0 %v2219
        %2226 = vmatprep.subr.bf16.mxu0 0
        %2227 = vmatpush1.bf16.msra.mxu0 0
        %2228 = vmatprep.subr.bf16.mxu0 0
        %2229 = vmatpush1.bf16.msra.mxu0 0
        %2230 = vmatprep.subr.bf16.mxu0 0
        %2231 = vmatpush1.bf16.msra.mxu0 0
        %2232 = vmatprep.subr.bf16.mxu0 0
        %2233 = vmatpush1.bf16.msra.mxu0 0
        %2234 = vmatprep.subr.bf16.mxu0 0
        %2235 = vmatpush1.bf16.msra.mxu0 0
        %2236 = vmatprep.subr.bf16.mxu0 0
        %2237 = vmatpush1.bf16.msra.mxu0 0
        %2238 = vmatprep.subr.bf16.mxu0 0
        %2239 = vmatpush1.bf16.msra.mxu0 0
        %2240 = vmatprep.subr.bf16.mxu0 0
        %2241 = vmatpush1.bf16.msra.mxu0 0
        %2242 = vmatprep.subr.bf16.mxu0 0
        %2243 = vmatpush1.bf16.msra.mxu0 0
        %2244 = vmatprep.subr.bf16.mxu0 0
        %2245 = vmatpush1.bf16.msra.mxu0 0
        %2246 = vmatprep.subr.bf16.mxu0 0
        %2247 = vmatpush1.bf16.msra.mxu0 0
        %2248 = vmatprep.subr.bf16.mxu0 0
        %2249 = vmatpush1.bf16.msra.mxu0 0
        %2250 = vmatprep.subr.bf16.mxu0 0
        %2251 = vmatpush1.bf16.msra.mxu0 0
        %2252 = vmatprep.subr.bf16.mxu0 0
        %2253 = vmatpush1.bf16.msra.mxu0 0
        %2254 = vmatprep.mubr.bf16.mxu0 0
        %2255 = vmatmul.mubr.bf16.gmra.mrb[0].mxu0 %v1050
        %v2256 = vpop.f32.mrb[0].mxu0
        %v2257 = vadd.f32 %v2208, %v2256
        %v2258 = vpop.f32.mrb[0].mxu0
        %v2259 = vpop.f32.mrb[0].mxu0
        %v2260 = vpop.f32.mrb[0].mxu0
        %2261 = vdwg.mxu0
        %v2262 = vmul.f32 %v2126, 0.35355338
        %v2263 = vmul.f32 %v2129, 0.35355338
        %v2264 = vpack.c.bf16 %v2263, %v2262
        %v2265 = vpack.c.bf16 %v2192, %v2192
        %v2267 = vsel %vm1159, %v2264, 0
        %v2270 = vsel %vm1159, %v2265, 0
        %2272 = vmatprep.subr.bf16.mxu0 0
        %2273 = vmatpush1.bf16.xpose.msra.mxu0 %v2270
        %2274 = vmatprep.subr.bf16.mxu0 0
        %2275 = vmatpush1.bf16.xpose.msra.mxu0 0
        %2276 = vmatprep.subr.bf16.mxu0 0
        %2277 = vmatpush1.bf16.xpose.msra.mxu0 0
        %2278 = vmatprep.subr.bf16.mxu0 0
        %2279 = vmatpush1.bf16.xpose.msra.mxu0 0
        %2280 = vmatprep.subr.bf16.mxu0 0
        %2281 = vmatpush1.bf16.xpose.msra.mxu0 0
        %2282 = vmatprep.subr.bf16.mxu0 0
        %2283 = vmatpush1.bf16.xpose.msra.mxu0 0
        %2284 = vmatprep.subr.bf16.mxu0 0
        %2285 = vmatpush1.bf16.xpose.msra.mxu0 0
        %2286 = vmatprep.subr.bf16.mxu0 0
        %2287 = vmatpush1.bf16.xpose.msra.mxu0 0
        %2288 = vmatprep.subr.bf16.mxu0 0
        %2289 = vmatpush1.bf16.xpose.msra.mxu0 0
        %2290 = vmatprep.subr.bf16.mxu0 0
        %2291 = vmatpush1.bf16.xpose.msra.mxu0 0
        %2292 = vmatprep.subr.bf16.mxu0 0
        %2293 = vmatpush1.bf16.xpose.msra.mxu0 0
        %2294 = vmatprep.subr.bf16.mxu0 0
        %2295 = vmatpush1.bf16.xpose.msra.mxu0 0
        %2296 = vmatprep.subr.bf16.mxu0 0
        %2297 = vmatpush1.bf16.xpose.msra.mxu0 0
        %2298 = vmatprep.subr.bf16.mxu0 0
        %2299 = vmatpush1.bf16.xpose.msra.mxu0 0
        %2300 = vmatprep.subr.bf16.mxu0 0
        %2301 = vmatpush1.bf16.xpose.msra.mxu0 0
        %2302 = vmatprep.subr.bf16.mxu0 0
        %2303 = vmatpush1.bf16.xpose.msra.mxu0 0
        %2304 = vmatprep.mubr.bf16.mxu0 0
        %2305 = vmatmul.mubr.bf16.gmra.mrb[0].mxu0 %v2267
        %v2306 = vpop.f32.mrb[0].mxu0
        %v2307 = vadd.f32 %v901, %v2306
        %v2308 = vpop.f32.mrb[0].mxu0
        %v2309 = vpop.f32.mrb[0].mxu0
        %v2310 = vadd.f32 %v903, %v2309
        %v2311 = vpop.f32.mrb[0].mxu0
        %2312 = vdwg.mxu0
        %v2313 = vsel %vm1159, %v2307, -inf
        %2314 = vmax.xlane.f32.xlu0 %v2313
        %v2315 = vpop.xlane.xlu0 %2314
        %v2316 = vsel %vm1159, %v2310, -inf
        %2317 = vmax.xlane.f32.xlu0 %v2316
        %v2318 = vpop.xlane.xlu0 %2317
        %v2319 = vsub.f32 %v2307, %v2315
        %v2320 = vsub.f32 %v2310, %v2318
        %v2321 = vmul.f32 %v2319, 1.442695
        %v2322 = vpow.pop %v2321
        %v2323 = vmul.f32 %v2320, 1.442695
        %v2324 = vpow.pop %v2323
        %v2325 = vsel %vm1159, %v2322, 0.0
        %2326 = vadd.xlane.f32.xlu0 %v2325
        %v2327 = vpop.xlane.xlu0 %2326
        %v2328 = vsel %vm1159, %v2324, 0.0
        %2329 = vadd.xlane.f32.xlu0 %v2328
        %v2330 = vpop.xlane.xlu0 %2329
        %v2331 = vrcp.pop %v2327
        %v2332 = vrcp.pop %v2330
        %v2333 = vmul.f32 %v2322, %v2331
        %v2334 = vmul.f32 %v2324, %v2332
        %v2335 = vpack.c.bf16 %v2334, %v2333
        %v2336 = vpack.c.bf16 %v2257, %v2257
        %v2338 = vsel %vm1159, %v2335, 0
        %v2341 = vsel %vm1234, %v2336, 0
        %2343 = vmatprep.subr.bf16.mxu0 0
        %2344 = vmatpush1.bf16.msra.mxu0 %v2341
        %2345 = vmatprep.subr.bf16.mxu0 0
        %2346 = vmatpush1.bf16.msra.mxu0 0
        %2347 = vmatprep.subr.bf16.mxu0 0
        %2348 = vmatpush1.bf16.msra.mxu0 0
        %2349 = vmatprep.subr.bf16.mxu0 0
        %2350 = vmatpush1.bf16.msra.mxu0 0
        %2351 = vmatprep.subr.bf16.mxu0 0
        %2352 = vmatpush1.bf16.msra.mxu0 0
        %2353 = vmatprep.subr.bf16.mxu0 0
        %2354 = vmatpush1.bf16.msra.mxu0 0
        %2355 = vmatprep.subr.bf16.mxu0 0
        %2356 = vmatpush1.bf16.msra.mxu0 0
        %2357 = vmatprep.subr.bf16.mxu0 0
        %2358 = vmatpush1.bf16.msra.mxu0 0
        %2359 = vmatprep.subr.bf16.mxu0 0
        %2360 = vmatpush1.bf16.msra.mxu0 0
        %2361 = vmatprep.subr.bf16.mxu0 0
        %2362 = vmatpush1.bf16.msra.mxu0 0
        %2363 = vmatprep.subr.bf16.mxu0 0
        %2364 = vmatpush1.bf16.msra.mxu0 0
        %2365 = vmatprep.subr.bf16.mxu0 0
        %2366 = vmatpush1.bf16.msra.mxu0 0
        %2367 = vmatprep.subr.bf16.mxu0 0
        %2368 = vmatpush1.bf16.msra.mxu0 0
        %2369 = vmatprep.subr.bf16.mxu0 0
        %2370 = vmatpush1.bf16.msra.mxu0 0
        %2371 = vmatprep.subr.bf16.mxu0 0
        %2372 = vmatpush1.bf16.msra.mxu0 0
        %2373 = vmatprep.subr.bf16.mxu0 0
        %2374 = vmatpush1.bf16.msra.mxu0 0
        %2375 = vmatprep.mubr.bf16.mxu0 0
        %2376 = vmatmul.mubr.bf16.gmra.mrb[0].mxu0 %v2338
        %v2377 = vpop.f32.mrb[0].mxu0
        %v2378 = vadd.f32 0.0, %v2377
        %v2379 = vpop.f32.mrb[0].mxu0
        %v2380 = vpop.f32.mrb[0].mxu0
        %v2381 = vadd.f32 0.0, %v2380
        %v2382 = vpop.f32.mrb[0].mxu0
        %2383 = vdwg.mxu0
        %s2384 = scalar_lea.vmem %s13, 12
        %v2385 = vld [vmem:[%s2384] sm:$0xf]
        %v2386 = vpack.c.bf16 %v2381, %v2378
        %v2388 = vsel %vm1159, %v2386, 0
        %v2391 = vsel %vm1234, %v2385, 0
        %2393 = vmatprep.subr.bf16.mxu0 0
        %2394 = vmatpush1.bf16.msra.mxu0 %v2391
        %2395 = vmatprep.subr.bf16.mxu0 0
        %2396 = vmatpush1.bf16.msra.mxu0 0
        %2397 = vmatprep.subr.bf16.mxu0 0
        %2398 = vmatpush1.bf16.msra.mxu0 0
        %2399 = vmatprep.subr.bf16.mxu0 0
        %2400 = vmatpush1.bf16.msra.mxu0 0
        %2401 = vmatprep.subr.bf16.mxu0 0
        %2402 = vmatpush1.bf16.msra.mxu0 0
        %2403 = vmatprep.subr.bf16.mxu0 0
        %2404 = vmatpush1.bf16.msra.mxu0 0
        %2405 = vmatprep.subr.bf16.mxu0 0
        %2406 = vmatpush1.bf16.msra.mxu0 0
        %2407 = vmatprep.subr.bf16.mxu0 0
        %2408 = vmatpush1.bf16.msra.mxu0 0
        %2409 = vmatprep.subr.bf16.mxu0 0
        %2410 = vmatpush1.bf16.msra.mxu0 0
        %2411 = vmatprep.subr.bf16.mxu0 0
        %2412 = vmatpush1.bf16.msra.mxu0 0
        %2413 = vmatprep.subr.bf16.mxu0 0
        %2414 = vmatpush1.bf16.msra.mxu0 0
        %2415 = vmatprep.subr.bf16.mxu0 0
        %2416 = vmatpush1.bf16.msra.mxu0 0
        %2417 = vmatprep.subr.bf16.mxu0 0
        %2418 = vmatpush1.bf16.msra.mxu0 0
        %2419 = vmatprep.subr.bf16.mxu0 0
        %2420 = vmatpush1.bf16.msra.mxu0 0
        %2421 = vmatprep.subr.bf16.mxu0 0
        %2422 = vmatpush1.bf16.msra.mxu0 0
        %2423 = vmatprep.subr.bf16.mxu0 0
        %2424 = vmatpush1.bf16.msra.mxu0 0
        %2425 = vmatprep.mubr.bf16.mxu0 0
        %2426 = vmatmul.mubr.bf16.gmra.mrb[0].mxu0 %v2388
        %v2427 = vpop.f32.mrb[0].mxu0
        %v2428 = vadd.f32 0.0, %v2427
        %v2429 = vpop.f32.mrb[0].mxu0
        %v2430 = vpop.f32.mrb[0].mxu0
        %v2431 = vadd.f32 0.0, %v2430
        %v2432 = vpop.f32.mrb[0].mxu0
        %2433 = vdwg.mxu0
        %v2434 = vadd.f32 %v2064, %v2428
        %v2435 = vadd.f32 %v2065, %v2431
        %v2436 = vld [vmem:[%s14] sm:$0x1]
        %v2438 = vlaneseq
        %v2439 = vshrl.u32 %v2438, 7
        %v2440 = vsub.s32 0, %v2439
        %v2441 = vrot.slane %v2436, %v2440
        %v2443 = vadd.f32 %v2434, %v2441
        %v2444 = vadd.f32 %v2435, %v2441
        %v2445 = vadd.f32 %v906, %v2443
        %v2446 = vadd.f32 %v907, %v2444
        %v2447 = vsel %vm909, %v2445, 0.0
        %2448 = vadd.xlane.f32.xlu0 %v2447
        %v2449 = vpop.xlane.xlu0 %2448
        %v2450 = vsel %vm909, %v2446, 0.0
        %2451 = vadd.xlane.f32.xlu0 %v2450
        %v2452 = vpop.xlane.xlu0 %2451
        %v2453 = vmul.f32 %v2449, %v913
        %v2454 = vmul.f32 %v2452, %v913
        %v2455 = vsub.f32 %v2445, %v2453
        %v2456 = vsub.f32 %v2446, %v2454
        %v2457 = vmul.f32 %v2455, %v2455
        %v2458 = vmul.f32 %v2456, %v2456
        %v2459 = vsel %vm909, %v2457, 0.0
        %2460 = vadd.xlane.f32.xlu0 %v2459
        %v2461 = vpop.xlane.xlu0 %2460
        %v2462 = vsel %vm909, %v2458, 0.0
        %2463 = vadd.xlane.f32.xlu0 %v2462
        %v2464 = vpop.xlane.xlu0 %2463
        %v2465 = vmul.f32 %v2461, %v913
        %v2466 = vmul.f32 %v2464, %v913
        %v2467 = vadd.f32 %v2465, 1e-05
        %v2468 = vadd.f32 %v2466, 1e-05
        %v2469 = vrsqrt.pop %v2467
        %v2470 = vrsqrt.pop %v2468
        %v2471 = vmul.f32 %v2455, %v2469
        %v2472 = vmul.f32 %v2456, %v2470
        %v2473 = vlaneseq
        %v2474 = vshrl.u32 %v2473, 7
        %v2475 = vsub.s32 4, %v2474
        %v2476 = vrot.slane %v908, %v2475
        %v2477 = vmul.f32 %v2471, %v2476
        %v2478 = vmul.f32 %v2472, %v2476
        %v2479 = vlaneseq
        %v2480 = vshrl.u32 %v2479, 7
        %v2481 = vsub.s32 5, %v2480
        %v2482 = vrot.slane %v908, %v2481
        %v2483 = vadd.f32 %v2477, %v2482
        %v2484 = vadd.f32 %v2478, %v2482
        %v2485 = vld [vmem:[%s15] sm:$0xf]
        %v2486 = vld [vmem:[%s15 + $0x4] sm:$0xf]
        %v2487 = vld [vmem:[%s15 + $0x8] sm:$0xf]
        %v2488 = vld [vmem:[%s15 + $0xc] sm:$0xf]
        %v2489 = vpack.c.bf16 %v2484, %v2483
        %v2490 = vld [vmem:[%s16] sm:$0x1]
        %v2492 = vlaneseq
        %v2493 = vshrl.u32 %v2492, 7
        %v2494 = vsub.s32 0, %v2493
        %v2495 = vrot.slane %v2490, %v2494
        %v2501 = vunpack.c.l.b16 %v2485
        %v2502 = vunpack.c.l.b16 %v2486
        %v2503 = vunpack.c.l.b16 %v2487
        %v2504 = vunpack.c.l.b16 %v2488
        %v2505 = vpack.c.b16 %v2502, %v2501
        %v2506 = vpack.c.b16 %v2504, %v2503
        %v2510 = vsel %vm909, %v2489, 0
        %2512 = vmatprep.subr.bf16.mxu0 0
        %2513 = vmatpush1.bf16.msra.mxu0 %v2505
        %2514 = vmatprep.subr.bf16.mxu0 0
        %2515 = vmatpush1.bf16.msra.mxu0 %v2506
        %2516 = vmatprep.subr.bf16.mxu0 0
        %2517 = vmatpush1.bf16.msra.mxu0 0
        %2518 = vmatprep.subr.bf16.mxu0 0
        %2519 = vmatpush1.bf16.msra.mxu0 0
        %2520 = vmatprep.subr.bf16.mxu0 0
        %2521 = vmatpush1.bf16.msra.mxu0 0
        %2522 = vmatprep.subr.bf16.mxu0 0
        %2523 = vmatpush1.bf16.msra.mxu0 0
        %2524 = vmatprep.subr.bf16.mxu0 0
        %2525 = vmatpush1.bf16.msra.mxu0 0
        %2526 = vmatprep.subr.bf16.mxu0 0
        %2527 = vmatpush1.bf16.msra.mxu0 0
        %2528 = vmatprep.subr.bf16.mxu0 0
        %2529 = vmatpush1.bf16.msra.mxu0 0
        %2530 = vmatprep.subr.bf16.mxu0 0
        %2531 = vmatpush1.bf16.msra.mxu0 0
        %2532 = vmatprep.subr.bf16.mxu0 0
        %2533 = vmatpush1.bf16.msra.mxu0 0
        %2534 = vmatprep.subr.bf16.mxu0 0
        %2535 = vmatpush1.bf16.msra.mxu0 0
        %2536 = vmatprep.subr.bf16.mxu0 0
        %2537 = vmatpush1.bf16.msra.mxu0 0
        %2538 = vmatprep.subr.bf16.mxu0 0
        %2539 = vmatpush1.bf16.msra.mxu0 0
        %2540 = vmatprep.subr.bf16.mxu0 0
        %2541 = vmatpush1.bf16.msra.mxu0 0
        %2542 = vmatprep.subr.bf16.mxu0 0
        %2543 = vmatpush1.bf16.msra.mxu0 0
        %2544 = vmatprep.mubr.bf16.mxu0 0
        %2545 = vmatmul.mubr.bf16.gmra.mrb[0].mxu0 %v2510
        %v2546 = vpop.f32.mrb[0].mxu0
        %v2547 = vadd.f32 %v2495, %v2546
        %v2548 = vpop.f32.mrb[0].mxu0
        %v2549 = vpop.f32.mrb[0].mxu0
        %v2550 = vadd.f32 %v2495, %v2549
        %v2551 = vpop.f32.mrb[0].mxu0
        %2552 = vdwg.mxu0
        %v2553 = vld [vmem:[%s17] sm:$0xf]
        %v2554 = vld [vmem:[%s17 + $0x4] sm:$0xf]
        %v2555 = vld [vmem:[%s17 + $0x8] sm:$0xf]
        %v2556 = vld [vmem:[%s17 + $0xc] sm:$0xf]
        %v2557 = vpack.c.bf16 %v905, %v904
        %v2558 = vld [vmem:[%s18] sm:$0x1]
        %v2560 = vlaneseq
        %v2561 = vshrl.u32 %v2560, 7
        %v2562 = vsub.s32 0, %v2561
        %v2563 = vrot.slane %v2558, %v2562
        %v2569 = vunpack.c.l.b16 %v2553
        %v2570 = vunpack.c.l.b16 %v2554
        %v2571 = vunpack.c.l.b16 %v2555
        %v2572 = vunpack.c.l.b16 %v2556
        %v2573 = vpack.c.b16 %v2570, %v2569
        %v2574 = vpack.c.b16 %v2572, %v2571
        %v2578 = vsel %vm909, %v2557, 0
        %2580 = vmatprep.subr.bf16.mxu0 0
        %2581 = vmatpush1.bf16.msra.mxu0 %v2573
        %2582 = vmatprep.subr.bf16.mxu0 0
        %2583 = vmatpush1.bf16.msra.mxu0 %v2574
        %2584 = vmatprep.subr.bf16.mxu0 0
        %2585 = vmatpush1.bf16.msra.mxu0 0
        %2586 = vmatprep.subr.bf16.mxu0 0
        %2587 = vmatpush1.bf16.msra.mxu0 0
        %2588 = vmatprep.subr.bf16.mxu0 0
        %2589 = vmatpush1.bf16.msra.mxu0 0
        %2590 = vmatprep.subr.bf16.mxu0 0
        %2591 = vmatpush1.bf16.msra.mxu0 0
        %2592 = vmatprep.subr.bf16.mxu0 0
        %2593 = vmatpush1.bf16.msra.mxu0 0
        %2594 = vmatprep.subr.bf16.mxu0 0
        %2595 = vmatpush1.bf16.msra.mxu0 0
        %2596 = vmatprep.subr.bf16.mxu0 0
        %2597 = vmatpush1.bf16.msra.mxu0 0
        %2598 = vmatprep.subr.bf16.mxu0 0
        %2599 = vmatpush1.bf16.msra.mxu0 0
        %2600 = vmatprep.subr.bf16.mxu0 0
        %2601 = vmatpush1.bf16.msra.mxu0 0
        %2602 = vmatprep.subr.bf16.mxu0 0
        %2603 = vmatpush1.bf16.msra.mxu0 0
        %2604 = vmatprep.subr.bf16.mxu0 0
        %2605 = vmatpush1.bf16.msra.mxu0 0
        %2606 = vmatprep.subr.bf16.mxu0 0
        %2607 = vmatpush1.bf16.msra.mxu0 0
        %2608 = vmatprep.subr.bf16.mxu0 0
        %2609 = vmatpush1.bf16.msra.mxu0 0
        %2610 = vmatprep.subr.bf16.mxu0 0
        %2611 = vmatpush1.bf16.msra.mxu0 0
        %2612 = vmatprep.mubr.bf16.mxu0 0
        %2613 = vmatmul.mubr.bf16.gmra.mrb[0].mxu0 %v2578
        %v2614 = vpop.f32.mrb[0].mxu0
        %v2615 = vadd.f32 %v2563, %v2614
        %v2616 = vpop.f32.mrb[0].mxu0
        %v2617 = vpop.f32.mrb[0].mxu0
        %v2618 = vadd.f32 %v2563, %v2617
        %v2619 = vpop.f32.mrb[0].mxu0
        %2620 = vdwg.mxu0
        %v2621 = vld [vmem:[%s19] sm:$0xf]
        %v2622 = vld [vmem:[%s19 + $0x4] sm:$0xf]
        %v2623 = vld [vmem:[%s19 + $0x8] sm:$0xf]
        %v2624 = vld [vmem:[%s19 + $0xc] sm:$0xf]
        %v2625 = vld [vmem:[%s20] sm:$0x1]
        %v2627 = vlaneseq
        %v2628 = vshrl.u32 %v2627, 7
        %v2629 = vsub.s32 0, %v2628
        %v2630 = vrot.slane %v2625, %v2629
        %v2636 = vunpack.c.l.b16 %v2621
        %v2637 = vunpack.c.l.b16 %v2622
        %v2638 = vunpack.c.l.b16 %v2623
        %v2639 = vunpack.c.l.b16 %v2624
        %v2640 = vpack.c.b16 %v2637, %v2636
        %v2641 = vpack.c.b16 %v2639, %v2638
        %2644 = vmatprep.subr.bf16.mxu0 0
        %2645 = vmatpush1.bf16.msra.mxu0 %v2640
        %2646 = vmatprep.subr.bf16.mxu0 0
        %2647 = vmatpush1.bf16.msra.mxu0 %v2641
        %2648 = vmatprep.subr.bf16.mxu0 0
        %2649 = vmatpush1.bf16.msra.mxu0 0
        %2650 = vmatprep.subr.bf16.mxu0 0
        %2651 = vmatpush1.bf16.msra.mxu0 0
        %2652 = vmatprep.subr.bf16.mxu0 0
        %2653 = vmatpush1.bf16.msra.mxu0 0
        %2654 = vmatprep.subr.bf16.mxu0 0
        %2655 = vmatpush1.bf16.msra.mxu0 0
        %2656 = vmatprep.subr.bf16.mxu0 0
        %2657 = vmatpush1.bf16.msra.mxu0 0
        %2658 = vmatprep.subr.bf16.mxu0 0
        %2659 = vmatpush1.bf16.msra.mxu0 0
        %2660 = vmatprep.subr.bf16.mxu0 0
        %2661 = vmatpush1.bf16.msra.mxu0 0
        %2662 = vmatprep.subr.bf16.mxu0 0
        %2663 = vmatpush1.bf16.msra.mxu0 0
        %2664 = vmatprep.subr.bf16.mxu0 0
        %2665 = vmatpush1.bf16.msra.mxu0 0
        %2666 = vmatprep.subr.bf16.mxu0 0
        %2667 = vmatpush1.bf16.msra.mxu0 0
        %2668 = vmatprep.subr.bf16.mxu0 0
        %2669 = vmatpush1.bf16.msra.mxu0 0
        %2670 = vmatprep.subr.bf16.mxu0 0
        %2671 = vmatpush1.bf16.msra.mxu0 0
        %2672 = vmatprep.subr.bf16.mxu0 0
        %2673 = vmatpush1.bf16.msra.mxu0 0
        %2674 = vmatprep.subr.bf16.mxu0 0
        %2675 = vmatpush1.bf16.msra.mxu0 0
        %2676 = vmatprep.mubr.bf16.mxu0 0
        %2677 = vmatmul.mubr.bf16.gmra.mrb[0].mxu0 %v2578
        %v2678 = vpop.f32.mrb[0].mxu0
        %v2679 = vadd.f32 %v2630, %v2678
        %v2680 = vpop.f32.mrb[0].mxu0
        %v2681 = vpop.f32.mrb[0].mxu0
        %v2682 = vadd.f32 %v2630, %v2681
        %v2683 = vpop.f32.mrb[0].mxu0
        %2684 = vdwg.mxu0
        %v2685 = vmul.f32 %v2547, 0.35355338
        %v2686 = vmul.f32 %v2550, 0.35355338
        %v2687 = vpack.c.bf16 %v2686, %v2685
        %v2688 = vpack.c.bf16 %v2618, %v2615
        %v2690 = vsel %vm1159, %v2687, 0
        %v2693 = vsel %vm1159, %v2688, 0
        %2695 = vmatprep.subr.bf16.mxu0 0
        %2696 = vmatpush1.bf16.xpose.msra.mxu0 %v2693
        %2697 = vmatprep.subr.bf16.mxu0 0
        %2698 = vmatpush1.bf16.xpose.msra.mxu0 0
        %2699 = vmatprep.subr.bf16.mxu0 0
        %2700 = vmatpush1.bf16.xpose.msra.mxu0 0
        %2701 = vmatprep.subr.bf16.mxu0 0
        %2702 = vmatpush1.bf16.xpose.msra.mxu0 0
        %2703 = vmatprep.subr.bf16.mxu0 0
        %2704 = vmatpush1.bf16.xpose.msra.mxu0 0
        %2705 = vmatprep.subr.bf16.mxu0 0
        %2706 = vmatpush1.bf16.xpose.msra.mxu0 0
        %2707 = vmatprep.subr.bf16.mxu0 0
        %2708 = vmatpush1.bf16.xpose.msra.mxu0 0
        %2709 = vmatprep.subr.bf16.mxu0 0
        %2710 = vmatpush1.bf16.xpose.msra.mxu0 0
        %2711 = vmatprep.subr.bf16.mxu0 0
        %2712 = vmatpush1.bf16.xpose.msra.mxu0 0
        %2713 = vmatprep.subr.bf16.mxu0 0
        %2714 = vmatpush1.bf16.xpose.msra.mxu0 0
        %2715 = vmatprep.subr.bf16.mxu0 0
        %2716 = vmatpush1.bf16.xpose.msra.mxu0 0
        %2717 = vmatprep.subr.bf16.mxu0 0
        %2718 = vmatpush1.bf16.xpose.msra.mxu0 0
        %2719 = vmatprep.subr.bf16.mxu0 0
        %2720 = vmatpush1.bf16.xpose.msra.mxu0 0
        %2721 = vmatprep.subr.bf16.mxu0 0
        %2722 = vmatpush1.bf16.xpose.msra.mxu0 0
        %2723 = vmatprep.subr.bf16.mxu0 0
        %2724 = vmatpush1.bf16.xpose.msra.mxu0 0
        %2725 = vmatprep.subr.bf16.mxu0 0
        %2726 = vmatpush1.bf16.xpose.msra.mxu0 0
        %2727 = vmatprep.mubr.bf16.mxu0 0
        %2728 = vmatmul.mubr.bf16.gmra.mrb[0].mxu0 %v2690
        %v2729 = vpop.f32.mrb[0].mxu0
        %v2730 = vadd.f32 0.0, %v2729
        %v2731 = vpop.f32.mrb[0].mxu0
        %v2732 = vpop.f32.mrb[0].mxu0
        %v2733 = vadd.f32 0.0, %v2732
        %v2734 = vpop.f32.mrb[0].mxu0
        %2735 = vdwg.mxu0
        %vm2736 = vcmask 130048
        %v2737 = vsel %vm2736, %v2730, -inf
        %2738 = vmax.xlane.f32.xlu0 %v2737
        %v2739 = vpop.xlane.xlu0 %2738
        %v2740 = vsel %vm2736, %v2733, -inf
        %2741 = vmax.xlane.f32.xlu0 %v2740
        %v2742 = vpop.xlane.xlu0 %2741
        %v2743 = vsub.f32 %v2730, %v2739
        %v2744 = vsub.f32 %v2733, %v2742
        %v2745 = vmul.f32 %v2743, 1.442695
        %v2746 = vpow.pop %v2745
        %v2747 = vmul.f32 %v2744, 1.442695
        %v2748 = vpow.pop %v2747
        %v2749 = vsel %vm2736, %v2746, 0.0
        %2750 = vadd.xlane.f32.xlu0 %v2749
        %v2751 = vpop.xlane.xlu0 %2750
        %v2752 = vsel %vm2736, %v2748, 0.0
        %2753 = vadd.xlane.f32.xlu0 %v2752
        %v2754 = vpop.xlane.xlu0 %2753
        %v2755 = vrcp.pop %v2751
        %v2756 = vrcp.pop %v2754
        %v2757 = vmul.f32 %v2746, %v2755
        %v2758 = vmul.f32 %v2748, %v2756
        %v2759 = vpack.c.bf16 %v2758, %v2757
        %v2760 = vpack.c.bf16 %v2682, %v2679
        %v2762 = vsel %vm2736, %v2759, 0
        %2764 = vmatprep.subr.bf16.mxu0 0
        %2765 = vmatpush1.bf16.msra.mxu0 %v2760
        %2766 = vmatprep.subr.bf16.mxu0 0
        %2767 = vmatpush1.bf16.msra.mxu0 0
        %2768 = vmatprep.subr.bf16.mxu0 0
        %2769 = vmatpush1.bf16.msra.mxu0 0
        %2770 = vmatprep.subr.bf16.mxu0 0
        %2771 = vmatpush1.bf16.msra.mxu0 0
        %2772 = vmatprep.subr.bf16.mxu0 0
        %2773 = vmatpush1.bf16.msra.mxu0 0
        %2774 = vmatprep.subr.bf16.mxu0 0
        %2775 = vmatpush1.bf16.msra.mxu0 0
        %2776 = vmatprep.subr.bf16.mxu0 0
        %2777 = vmatpush1.bf16.msra.mxu0 0
        %2778 = vmatprep.subr.bf16.mxu0 0
        %2779 = vmatpush1.bf16.msra.mxu0 0
        %2780 = vmatprep.subr.bf16.mxu0 0
        %2781 = vmatpush1.bf16.msra.mxu0 0
        %2782 = vmatprep.subr.bf16.mxu0 0
        %2783 = vmatpush1.bf16.msra.mxu0 0
        %2784 = vmatprep.subr.bf16.mxu0 0
        %2785 = vmatpush1.bf16.msra.mxu0 0
        %2786 = vmatprep.subr.bf16.mxu0 0
        %2787 = vmatpush1.bf16.msra.mxu0 0
        %2788 = vmatprep.subr.bf16.mxu0 0
        %2789 = vmatpush1.bf16.msra.mxu0 0
        %2790 = vmatprep.subr.bf16.mxu0 0
        %2791 = vmatpush1.bf16.msra.mxu0 0
        %2792 = vmatprep.subr.bf16.mxu0 0
        %2793 = vmatpush1.bf16.msra.mxu0 0
        %2794 = vmatprep.subr.bf16.mxu0 0
        %2795 = vmatpush1.bf16.msra.mxu0 0
        %2796 = vmatprep.mubr.bf16.mxu0 0
        %2797 = vmatmul.mubr.bf16.gmra.mrb[0].mxu0 %v2762
        %v2798 = vpop.f32.mrb[0].mxu0
        %v2799 = vadd.f32 0.0, %v2798
        %v2800 = vpop.f32.mrb[0].mxu0
        %v2801 = vpop.f32.mrb[0].mxu0
        %v2802 = vadd.f32 0.0, %v2801
        %v2803 = vpop.f32.mrb[0].mxu0
        %2804 = vdwg.mxu0
        %v2805 = vld [vmem:[%s21] sm:$0xf]
        %v2806 = vpack.c.bf16 %v2802, %v2799
        %s2807 = scalar_lea.vmem %s15, 16
        %v2808 = vld [vmem:[%s2807] sm:$0xf]
        %v2809 = vld [vmem:[%s2807 + $0x4] sm:$0xf]
        %v2810 = vld [vmem:[%s2807 + $0x8] sm:$0xf]
        %v2811 = vld [vmem:[%s2807 + $0xc] sm:$0xf]
        %s2812 = scalar_lea.vmem %s16, 1
        %v2813 = vld [vmem:[%s2812] sm:$0x1]
        %v2815 = vlaneseq
        %v2816 = vshrl.u32 %v2815, 7
        %v2817 = vsub.s32 0, %v2816
        %v2818 = vrot.slane %v2813, %v2817
        %v2824 = vunpack.c.l.b16 %v2808
        %v2825 = vunpack.c.l.b16 %v2809
        %v2826 = vunpack.c.l.b16 %v2810
        %v2827 = vunpack.c.l.b16 %v2811
        %v2828 = vpack.c.b16 %v2825, %v2824
        %v2829 = vpack.c.b16 %v2827, %v2826
        %2832 = vmatprep.subr.bf16.mxu0 0
        %2833 = vmatpush1.bf16.msra.mxu0 %v2828
        %2834 = vmatprep.subr.bf16.mxu0 0
        %2835 = vmatpush1.bf16.msra.mxu0 %v2829
        %2836 = vmatprep.subr.bf16.mxu0 0
        %2837 = vmatpush1.bf16.msra.mxu0 0
        %2838 = vmatprep.subr.bf16.mxu0 0
        %2839 = vmatpush1.bf16.msra.mxu0 0
        %2840 = vmatprep.subr.bf16.mxu0 0
        %2841 = vmatpush1.bf16.msra.mxu0 0
        %2842 = vmatprep.subr.bf16.mxu0 0
        %2843 = vmatpush1.bf16.msra.mxu0 0
        %2844 = vmatprep.subr.bf16.mxu0 0
        %2845 = vmatpush1.bf16.msra.mxu0 0
        %2846 = vmatprep.subr.bf16.mxu0 0
        %2847 = vmatpush1.bf16.msra.mxu0 0
        %2848 = vmatprep.subr.bf16.mxu0 0
        %2849 = vmatpush1.bf16.msra.mxu0 0
        %2850 = vmatprep.subr.bf16.mxu0 0
        %2851 = vmatpush1.bf16.msra.mxu0 0
        %2852 = vmatprep.subr.bf16.mxu0 0
        %2853 = vmatpush1.bf16.msra.mxu0 0
        %2854 = vmatprep.subr.bf16.mxu0 0
        %2855 = vmatpush1.bf16.msra.mxu0 0
        %2856 = vmatprep.subr.bf16.mxu0 0
        %2857 = vmatpush1.bf16.msra.mxu0 0
        %2858 = vmatprep.subr.bf16.mxu0 0
        %2859 = vmatpush1.bf16.msra.mxu0 0
        %2860 = vmatprep.subr.bf16.mxu0 0
        %2861 = vmatpush1.bf16.msra.mxu0 0
        %2862 = vmatprep.subr.bf16.mxu0 0
        %2863 = vmatpush1.bf16.msra.mxu0 0
        %2864 = vmatprep.mubr.bf16.mxu0 0
        %2865 = vmatmul.mubr.bf16.gmra.mrb[0].mxu0 %v2510
        %v2866 = vpop.f32.mrb[0].mxu0
        %v2867 = vadd.f32 %v2818, %v2866
        %v2868 = vpop.f32.mrb[0].mxu0
        %v2869 = vpop.f32.mrb[0].mxu0
        %v2870 = vadd.f32 %v2818, %v2869
        %v2871 = vpop.f32.mrb[0].mxu0
        %2872 = vdwg.mxu0
        %s2873 = scalar_lea.vmem %s17, 16
        %v2874 = vld [vmem:[%s2873] sm:$0xf]
        %v2875 = vld [vmem:[%s2873 + $0x4] sm:$0xf]
        %v2876 = vld [vmem:[%s2873 + $0x8] sm:$0xf]
        %v2877 = vld [vmem:[%s2873 + $0xc] sm:$0xf]
        %s2878 = scalar_lea.vmem %s18, 1
        %v2879 = vld [vmem:[%s2878] sm:$0x1]
        %v2881 = vlaneseq
        %v2882 = vshrl.u32 %v2881, 7
        %v2883 = vsub.s32 0, %v2882
        %v2884 = vrot.slane %v2879, %v2883
        %v2890 = vunpack.c.l.b16 %v2874
        %v2891 = vunpack.c.l.b16 %v2875
        %v2892 = vunpack.c.l.b16 %v2876
        %v2893 = vunpack.c.l.b16 %v2877
        %v2894 = vpack.c.b16 %v2891, %v2890
        %v2895 = vpack.c.b16 %v2893, %v2892
        %2898 = vmatprep.subr.bf16.mxu0 0
        %2899 = vmatpush1.bf16.msra.mxu0 %v2894
        %2900 = vmatprep.subr.bf16.mxu0 0
        %2901 = vmatpush1.bf16.msra.mxu0 %v2895
        %2902 = vmatprep.subr.bf16.mxu0 0
        %2903 = vmatpush1.bf16.msra.mxu0 0
        %2904 = vmatprep.subr.bf16.mxu0 0
        %2905 = vmatpush1.bf16.msra.mxu0 0
        %2906 = vmatprep.subr.bf16.mxu0 0
        %2907 = vmatpush1.bf16.msra.mxu0 0
        %2908 = vmatprep.subr.bf16.mxu0 0
        %2909 = vmatpush1.bf16.msra.mxu0 0
        %2910 = vmatprep.subr.bf16.mxu0 0
        %2911 = vmatpush1.bf16.msra.mxu0 0
        %2912 = vmatprep.subr.bf16.mxu0 0
        %2913 = vmatpush1.bf16.msra.mxu0 0
        %2914 = vmatprep.subr.bf16.mxu0 0
        %2915 = vmatpush1.bf16.msra.mxu0 0
        %2916 = vmatprep.subr.bf16.mxu0 0
        %2917 = vmatpush1.bf16.msra.mxu0 0
        %2918 = vmatprep.subr.bf16.mxu0 0
        %2919 = vmatpush1.bf16.msra.mxu0 0
        %2920 = vmatprep.subr.bf16.mxu0 0
        %2921 = vmatpush1.bf16.msra.mxu0 0
        %2922 = vmatprep.subr.bf16.mxu0 0
        %2923 = vmatpush1.bf16.msra.mxu0 0
        %2924 = vmatprep.subr.bf16.mxu0 0
        %2925 = vmatpush1.bf16.msra.mxu0 0
        %2926 = vmatprep.subr.bf16.mxu0 0
        %2927 = vmatpush1.bf16.msra.mxu0 0
        %2928 = vmatprep.subr.bf16.mxu0 0
        %2929 = vmatpush1.bf16.msra.mxu0 0
        %2930 = vmatprep.mubr.bf16.mxu0 0
        %2931 = vmatmul.mubr.bf16.gmra.mrb[0].mxu0 %v2578
        %v2932 = vpop.f32.mrb[0].mxu0
        %v2933 = vadd.f32 %v2884, %v2932
        %v2934 = vpop.f32.mrb[0].mxu0
        %v2935 = vpop.f32.mrb[0].mxu0
        %v2936 = vadd.f32 %v2884, %v2935
        %v2937 = vpop.f32.mrb[0].mxu0
        %2938 = vdwg.mxu0
        %s2939 = scalar_lea.vmem %s19, 16
        %v2940 = vld [vmem:[%s2939] sm:$0xf]
        %v2941 = vld [vmem:[%s2939 + $0x4] sm:$0xf]
        %v2942 = vld [vmem:[%s2939 + $0x8] sm:$0xf]
        %v2943 = vld [vmem:[%s2939 + $0xc] sm:$0xf]
        %s2944 = scalar_lea.vmem %s20, 1
        %v2945 = vld [vmem:[%s2944] sm:$0x1]
        %v2947 = vlaneseq
        %v2948 = vshrl.u32 %v2947, 7
        %v2949 = vsub.s32 0, %v2948
        %v2950 = vrot.slane %v2945, %v2949
        %v2956 = vunpack.c.l.b16 %v2940
        %v2957 = vunpack.c.l.b16 %v2941
        %v2958 = vunpack.c.l.b16 %v2942
        %v2959 = vunpack.c.l.b16 %v2943
        %v2960 = vpack.c.b16 %v2957, %v2956
        %v2961 = vpack.c.b16 %v2959, %v2958
        %2964 = vmatprep.subr.bf16.mxu0 0
        %2965 = vmatpush1.bf16.msra.mxu0 %v2960
        %2966 = vmatprep.subr.bf16.mxu0 0
        %2967 = vmatpush1.bf16.msra.mxu0 %v2961
        %2968 = vmatprep.subr.bf16.mxu0 0
        %2969 = vmatpush1.bf16.msra.mxu0 0
        %2970 = vmatprep.subr.bf16.mxu0 0
        %2971 = vmatpush1.bf16.msra.mxu0 0
        %2972 = vmatprep.subr.bf16.mxu0 0
        %2973 = vmatpush1.bf16.msra.mxu0 0
        %2974 = vmatprep.subr.bf16.mxu0 0
        %2975 = vmatpush1.bf16.msra.mxu0 0
        %2976 = vmatprep.subr.bf16.mxu0 0
        %2977 = vmatpush1.bf16.msra.mxu0 0
        %2978 = vmatprep.subr.bf16.mxu0 0
        %2979 = vmatpush1.bf16.msra.mxu0 0
        %2980 = vmatprep.subr.bf16.mxu0 0
        %2981 = vmatpush1.bf16.msra.mxu0 0
        %2982 = vmatprep.subr.bf16.mxu0 0
        %2983 = vmatpush1.bf16.msra.mxu0 0
        %2984 = vmatprep.subr.bf16.mxu0 0
        %2985 = vmatpush1.bf16.msra.mxu0 0
        %2986 = vmatprep.subr.bf16.mxu0 0
        %2987 = vmatpush1.bf16.msra.mxu0 0
        %2988 = vmatprep.subr.bf16.mxu0 0
        %2989 = vmatpush1.bf16.msra.mxu0 0
        %2990 = vmatprep.subr.bf16.mxu0 0
        %2991 = vmatpush1.bf16.msra.mxu0 0
        %2992 = vmatprep.subr.bf16.mxu0 0
        %2993 = vmatpush1.bf16.msra.mxu0 0
        %2994 = vmatprep.subr.bf16.mxu0 0
        %2995 = vmatpush1.bf16.msra.mxu0 0
        %2996 = vmatprep.mubr.bf16.mxu0 0
        %2997 = vmatmul.mubr.bf16.gmra.mrb[0].mxu0 %v2578
        %v2998 = vpop.f32.mrb[0].mxu0
        %v2999 = vadd.f32 %v2950, %v2998
        %v3000 = vpop.f32.mrb[0].mxu0
        %v3001 = vpop.f32.mrb[0].mxu0
        %v3002 = vadd.f32 %v2950, %v3001
        %v3003 = vpop.f32.mrb[0].mxu0
        %3004 = vdwg.mxu0
        %v3005 = vmul.f32 %v2867, 0.35355338
        %v3006 = vmul.f32 %v2870, 0.35355338
        %v3007 = vpack.c.bf16 %v3006, %v3005
        %v3008 = vpack.c.bf16 %v2936, %v2933
        %v3010 = vsel %vm1159, %v3007, 0
        %v3013 = vsel %vm1159, %v3008, 0
        %3015 = vmatprep.subr.bf16.mxu0 0
        %3016 = vmatpush1.bf16.xpose.msra.mxu0 %v3013
        %3017 = vmatprep.subr.bf16.mxu0 0
        %3018 = vmatpush1.bf16.xpose.msra.mxu0 0
        %3019 = vmatprep.subr.bf16.mxu0 0
        %3020 = vmatpush1.bf16.xpose.msra.mxu0 0
        %3021 = vmatprep.subr.bf16.mxu0 0
        %3022 = vmatpush1.bf16.xpose.msra.mxu0 0
        %3023 = vmatprep.subr.bf16.mxu0 0
        %3024 = vmatpush1.bf16.xpose.msra.mxu0 0
        %3025 = vmatprep.subr.bf16.mxu0 0
        %3026 = vmatpush1.bf16.xpose.msra.mxu0 0
        %3027 = vmatprep.subr.bf16.mxu0 0
        %3028 = vmatpush1.bf16.xpose.msra.mxu0 0
        %3029 = vmatprep.subr.bf16.mxu0 0
        %3030 = vmatpush1.bf16.xpose.msra.mxu0 0
        %3031 = vmatprep.subr.bf16.mxu0 0
        %3032 = vmatpush1.bf16.xpose.msra.mxu0 0
        %3033 = vmatprep.subr.bf16.mxu0 0
        %3034 = vmatpush1.bf16.xpose.msra.mxu0 0
        %3035 = vmatprep.subr.bf16.mxu0 0
        %3036 = vmatpush1.bf16.xpose.msra.mxu0 0
        %3037 = vmatprep.subr.bf16.mxu0 0
        %3038 = vmatpush1.bf16.xpose.msra.mxu0 0
        %3039 = vmatprep.subr.bf16.mxu0 0
        %3040 = vmatpush1.bf16.xpose.msra.mxu0 0
        %3041 = vmatprep.subr.bf16.mxu0 0
        %3042 = vmatpush1.bf16.xpose.msra.mxu0 0
        %3043 = vmatprep.subr.bf16.mxu0 0
        %3044 = vmatpush1.bf16.xpose.msra.mxu0 0
        %3045 = vmatprep.subr.bf16.mxu0 0
        %3046 = vmatpush1.bf16.xpose.msra.mxu0 0
        %3047 = vmatprep.mubr.bf16.mxu0 0
        %3048 = vmatmul.mubr.bf16.gmra.mrb[0].mxu0 %v3010
        %v3049 = vpop.f32.mrb[0].mxu0
        %v3050 = vadd.f32 0.0, %v3049
        %v3051 = vpop.f32.mrb[0].mxu0
        %v3052 = vpop.f32.mrb[0].mxu0
        %v3053 = vadd.f32 0.0, %v3052
        %v3054 = vpop.f32.mrb[0].mxu0
        %3055 = vdwg.mxu0
        %v3056 = vsel %vm2736, %v3050, -inf
        %3057 = vmax.xlane.f32.xlu0 %v3056
        %v3058 = vpop.xlane.xlu0 %3057
        %v3059 = vsel %vm2736, %v3053, -inf
        %3060 = vmax.xlane.f32.xlu0 %v3059
        %v3061 = vpop.xlane.xlu0 %3060
        %v3062 = vsub.f32 %v3050, %v3058
        %v3063 = vsub.f32 %v3053, %v3061
        %v3064 = vmul.f32 %v3062, 1.442695
        %v3065 = vpow.pop %v3064
        %v3066 = vmul.f32 %v3063, 1.442695
        %v3067 = vpow.pop %v3066
        %v3068 = vsel %vm2736, %v3065, 0.0
        %3069 = vadd.xlane.f32.xlu0 %v3068
        %v3070 = vpop.xlane.xlu0 %3069
        %v3071 = vsel %vm2736, %v3067, 0.0
        %3072 = vadd.xlane.f32.xlu0 %v3071
        %v3073 = vpop.xlane.xlu0 %3072
        %v3074 = vrcp.pop %v3070
        %v3075 = vrcp.pop %v3073
        %v3076 = vmul.f32 %v3065, %v3074
        %v3077 = vmul.f32 %v3067, %v3075
        %v3078 = vpack.c.bf16 %v3077, %v3076
        %v3079 = vpack.c.bf16 %v3002, %v2999
        %v3081 = vsel %vm2736, %v3078, 0
        %3083 = vmatprep.subr.bf16.mxu0 0
        %3084 = vmatpush1.bf16.msra.mxu0 %v3079
        %3085 = vmatprep.subr.bf16.mxu0 0
        %3086 = vmatpush1.bf16.msra.mxu0 0
        %3087 = vmatprep.subr.bf16.mxu0 0
        %3088 = vmatpush1.bf16.msra.mxu0 0
        %3089 = vmatprep.subr.bf16.mxu0 0
        %3090 = vmatpush1.bf16.msra.mxu0 0
        %3091 = vmatprep.subr.bf16.mxu0 0
        %3092 = vmatpush1.bf16.msra.mxu0 0
        %3093 = vmatprep.subr.bf16.mxu0 0
        %3094 = vmatpush1.bf16.msra.mxu0 0
        %3095 = vmatprep.subr.bf16.mxu0 0
        %3096 = vmatpush1.bf16.msra.mxu0 0
        %3097 = vmatprep.subr.bf16.mxu0 0
        %3098 = vmatpush1.bf16.msra.mxu0 0
        %3099 = vmatprep.subr.bf16.mxu0 0
        %3100 = vmatpush1.bf16.msra.mxu0 0
        %3101 = vmatprep.subr.bf16.mxu0 0
        %3102 = vmatpush1.bf16.msra.mxu0 0
        %3103 = vmatprep.subr.bf16.mxu0 0
        %3104 = vmatpush1.bf16.msra.mxu0 0
        %3105 = vmatprep.subr.bf16.mxu0 0
        %3106 = vmatpush1.bf16.msra.mxu0 0
        %3107 = vmatprep.subr.bf16.mxu0 0
        %3108 = vmatpush1.bf16.msra.mxu0 0
        %3109 = vmatprep.subr.bf16.mxu0 0
        %3110 = vmatpush1.bf16.msra.mxu0 0
        %3111 = vmatprep.subr.bf16.mxu0 0
        %3112 = vmatpush1.bf16.msra.mxu0 0
        %3113 = vmatprep.subr.bf16.mxu0 0
        %3114 = vmatpush1.bf16.msra.mxu0 0
        %3115 = vmatprep.mubr.bf16.mxu0 0
        %3116 = vmatmul.mubr.bf16.gmra.mrb[0].mxu0 %v3081
        %v3117 = vpop.f32.mrb[0].mxu0
        %v3118 = vadd.f32 0.0, %v3117
        %v3119 = vpop.f32.mrb[0].mxu0
        %v3120 = vpop.f32.mrb[0].mxu0
        %v3121 = vadd.f32 0.0, %v3120
        %v3122 = vpop.f32.mrb[0].mxu0
        %3123 = vdwg.mxu0
        %s3124 = scalar_lea.vmem %s21, 4
        %v3125 = vld [vmem:[%s3124] sm:$0xf]
        %v3126 = vpack.c.bf16 %v3121, %v3118
        %v3128 = vsel %vm1159, %v3126, 0
        %v3131 = vsel %vm1234, %v3125, 0
        %3133 = vmatprep.subr.bf16.mxu0 0
        %3134 = vmatpush1.bf16.msra.mxu0 %v3131
        %3135 = vmatprep.subr.bf16.mxu0 0
        %3136 = vmatpush1.bf16.msra.mxu0 0
        %3137 = vmatprep.subr.bf16.mxu0 0
        %3138 = vmatpush1.bf16.msra.mxu0 0
        %3139 = vmatprep.subr.bf16.mxu0 0
        %3140 = vmatpush1.bf16.msra.mxu0 0
        %3141 = vmatprep.subr.bf16.mxu0 0
        %3142 = vmatpush1.bf16.msra.mxu0 0
        %3143 = vmatprep.subr.bf16.mxu0 0
        %3144 = vmatpush1.bf16.msra.mxu0 0
        %3145 = vmatprep.subr.bf16.mxu0 0
        %3146 = vmatpush1.bf16.msra.mxu0 0
        %3147 = vmatprep.subr.bf16.mxu0 0
        %3148 = vmatpush1.bf16.msra.mxu0 0
        %3149 = vmatprep.subr.bf16.mxu0 0
        %3150 = vmatpush1.bf16.msra.mxu0 0
        %3151 = vmatprep.subr.bf16.mxu0 0
        %3152 = vmatpush1.bf16.msra.mxu0 0
        %3153 = vmatprep.subr.bf16.mxu0 0
        %3154 = vmatpush1.bf16.msra.mxu0 0
        %3155 = vmatprep.subr.bf16.mxu0 0
        %3156 = vmatpush1.bf16.msra.mxu0 0
        %3157 = vmatprep.subr.bf16.mxu0 0
        %3158 = vmatpush1.bf16.msra.mxu0 0
        %3159 = vmatprep.subr.bf16.mxu0 0
        %3160 = vmatpush1.bf16.msra.mxu0 0
        %3161 = vmatprep.subr.bf16.mxu0 0
        %3162 = vmatpush1.bf16.msra.mxu0 0
        %3163 = vmatprep.subr.bf16.mxu0 0
        %3164 = vmatpush1.bf16.msra.mxu0 0
        %3165 = vmatprep.mubr.bf16.mxu0 0
        %3166 = vmatmul.mubr.bf16.gmra.mrb[0].mxu0 %v3128
        %v3167 = vpop.f32.mrb[0].mxu0
        %v3168 = vadd.f32 0.0, %v3167
        %v3169 = vpop.f32.mrb[0].mxu0
        %v3170 = vpop.f32.mrb[0].mxu0
        %v3171 = vadd.f32 0.0, %v3170
        %v3172 = vpop.f32.mrb[0].mxu0
        %3173 = vdwg.mxu0
        %v3175 = vsel %vm1159, %v2806, 0
        %v3178 = vsel %vm1234, %v2805, 0
        %3180 = vmatprep.subr.bf16.mxu0 0
        %3181 = vmatpush1.bf16.msra.mxu0 %v3178
        %3182 = vmatprep.subr.bf16.mxu0 0
        %3183 = vmatpush1.bf16.msra.mxu0 0
        %3184 = vmatprep.subr.bf16.mxu0 0
        %3185 = vmatpush1.bf16.msra.mxu0 0
        %3186 = vmatprep.subr.bf16.mxu0 0
        %3187 = vmatpush1.bf16.msra.mxu0 0
        %3188 = vmatprep.subr.bf16.mxu0 0
        %3189 = vmatpush1.bf16.msra.mxu0 0
        %3190 = vmatprep.subr.bf16.mxu0 0
        %3191 = vmatpush1.bf16.msra.mxu0 0
        %3192 = vmatprep.subr.bf16.mxu0 0
        %3193 = vmatpush1.bf16.msra.mxu0 0
        %3194 = vmatprep.subr.bf16.mxu0 0
        %3195 = vmatpush1.bf16.msra.mxu0 0
        %3196 = vmatprep.subr.bf16.mxu0 0
        %3197 = vmatpush1.bf16.msra.mxu0 0
        %3198 = vmatprep.subr.bf16.mxu0 0
        %3199 = vmatpush1.bf16.msra.mxu0 0
        %3200 = vmatprep.subr.bf16.mxu0 0
        %3201 = vmatpush1.bf16.msra.mxu0 0
        %3202 = vmatprep.subr.bf16.mxu0 0
        %3203 = vmatpush1.bf16.msra.mxu0 0
        %3204 = vmatprep.subr.bf16.mxu0 0
        %3205 = vmatpush1.bf16.msra.mxu0 0
        %3206 = vmatprep.subr.bf16.mxu0 0
        %3207 = vmatpush1.bf16.msra.mxu0 0
        %3208 = vmatprep.subr.bf16.mxu0 0
        %3209 = vmatpush1.bf16.msra.mxu0 0
        %3210 = vmatprep.subr.bf16.mxu0 0
        %3211 = vmatpush1.bf16.msra.mxu0 0
        %3212 = vmatprep.mubr.bf16.mxu0 0
        %3213 = vmatmul.mubr.bf16.gmra.mrb[0].mxu0 %v3175
        %v3214 = vpop.f32.mrb[0].mxu0
        %v3215 = vadd.f32 %v3168, %v3214
        %v3216 = vpop.f32.mrb[0].mxu0
        %v3217 = vpop.f32.mrb[0].mxu0
        %v3218 = vadd.f32 %v3171, %v3217
        %v3219 = vpop.f32.mrb[0].mxu0
        %3220 = vdwg.mxu0
        %s3221 = scalar_lea.vmem %s15, 32
        %v3222 = vld [vmem:[%s3221] sm:$0xf]
        %v3223 = vld [vmem:[%s3221 + $0x4] sm:$0xf]
        %v3224 = vld [vmem:[%s3221 + $0x8] sm:$0xf]
        %v3225 = vld [vmem:[%s3221 + $0xc] sm:$0xf]
        %s3226 = scalar_lea.vmem %s16, 2
        %v3227 = vld [vmem:[%s3226] sm:$0x1]
        %v3229 = vlaneseq
        %v3230 = vshrl.u32 %v3229, 7
        %v3231 = vsub.s32 0, %v3230
        %v3232 = vrot.slane %v3227, %v3231
        %v3238 = vunpack.c.l.b16 %v3222
        %v3239 = vunpack.c.l.b16 %v3223
        %v3240 = vunpack.c.l.b16 %v3224
        %v3241 = vunpack.c.l.b16 %v3225
        %v3242 = vpack.c.b16 %v3239, %v3238
        %v3243 = vpack.c.b16 %v3241, %v3240
        %3246 = vmatprep.subr.bf16.mxu0 0
        %3247 = vmatpush1.bf16.msra.mxu0 %v3242
        %3248 = vmatprep.subr.bf16.mxu0 0
        %3249 = vmatpush1.bf16.msra.mxu0 %v3243
        %3250 = vmatprep.subr.bf16.mxu0 0
        %3251 = vmatpush1.bf16.msra.mxu0 0
        %3252 = vmatprep.subr.bf16.mxu0 0
        %3253 = vmatpush1.bf16.msra.mxu0 0
        %3254 = vmatprep.subr.bf16.mxu0 0
        %3255 = vmatpush1.bf16.msra.mxu0 0
        %3256 = vmatprep.subr.bf16.mxu0 0
        %3257 = vmatpush1.bf16.msra.mxu0 0
        %3258 = vmatprep.subr.bf16.mxu0 0
        %3259 = vmatpush1.bf16.msra.mxu0 0
        %3260 = vmatprep.subr.bf16.mxu0 0
        %3261 = vmatpush1.bf16.msra.mxu0 0
        %3262 = vmatprep.subr.bf16.mxu0 0
        %3263 = vmatpush1.bf16.msra.mxu0 0
        %3264 = vmatprep.subr.bf16.mxu0 0
        %3265 = vmatpush1.bf16.msra.mxu0 0
        %3266 = vmatprep.subr.bf16.mxu0 0
        %3267 = vmatpush1.bf16.msra.mxu0 0
        %3268 = vmatprep.subr.bf16.mxu0 0
        %3269 = vmatpush1.bf16.msra.mxu0 0
        %3270 = vmatprep.subr.bf16.mxu0 0
        %3271 = vmatpush1.bf16.msra.mxu0 0
        %3272 = vmatprep.subr.bf16.mxu0 0
        %3273 = vmatpush1.bf16.msra.mxu0 0
        %3274 = vmatprep.subr.bf16.mxu0 0
        %3275 = vmatpush1.bf16.msra.mxu0 0
        %3276 = vmatprep.subr.bf16.mxu0 0
        %3277 = vmatpush1.bf16.msra.mxu0 0
        %3278 = vmatprep.mubr.bf16.mxu0 0
        %3279 = vmatmul.mubr.bf16.gmra.mrb[0].mxu0 %v2510
        %v3280 = vpop.f32.mrb[0].mxu0
        %v3281 = vadd.f32 %v3232, %v3280
        %v3282 = vpop.f32.mrb[0].mxu0
        %v3283 = vpop.f32.mrb[0].mxu0
        %v3284 = vadd.f32 %v3232, %v3283
        %v3285 = vpop.f32.mrb[0].mxu0
        %3286 = vdwg.mxu0
        %s3287 = scalar_lea.vmem %s17, 32
        %v3288 = vld [vmem:[%s3287] sm:$0xf]
        %v3289 = vld [vmem:[%s3287 + $0x4] sm:$0xf]
        %v3290 = vld [vmem:[%s3287 + $0x8] sm:$0xf]
        %v3291 = vld [vmem:[%s3287 + $0xc] sm:$0xf]
        %s3292 = scalar_lea.vmem %s18, 2
        %v3293 = vld [vmem:[%s3292] sm:$0x1]
        %v3295 = vlaneseq
        %v3296 = vshrl.u32 %v3295, 7
        %v3297 = vsub.s32 0, %v3296
        %v3298 = vrot.slane %v3293, %v3297
        %v3304 = vunpack.c.l.b16 %v3288
        %v3305 = vunpack.c.l.b16 %v3289
        %v3306 = vunpack.c.l.b16 %v3290
        %v3307 = vunpack.c.l.b16 %v3291
        %v3308 = vpack.c.b16 %v3305, %v3304
        %v3309 = vpack.c.b16 %v3307, %v3306
        %3312 = vmatprep.subr.bf16.mxu0 0
        %3313 = vmatpush1.bf16.msra.mxu0 %v3308
        %3314 = vmatprep.subr.bf16.mxu0 0
        %3315 = vmatpush1.bf16.msra.mxu0 %v3309
        %3316 = vmatprep.subr.bf16.mxu0 0
        %3317 = vmatpush1.bf16.msra.mxu0 0
        %3318 = vmatprep.subr.bf16.mxu0 0
        %3319 = vmatpush1.bf16.msra.mxu0 0
        %3320 = vmatprep.subr.bf16.mxu0 0
        %3321 = vmatpush1.bf16.msra.mxu0 0
        %3322 = vmatprep.subr.bf16.mxu0 0
        %3323 = vmatpush1.bf16.msra.mxu0 0
        %3324 = vmatprep.subr.bf16.mxu0 0
        %3325 = vmatpush1.bf16.msra.mxu0 0
        %3326 = vmatprep.subr.bf16.mxu0 0
        %3327 = vmatpush1.bf16.msra.mxu0 0
        %3328 = vmatprep.subr.bf16.mxu0 0
        %3329 = vmatpush1.bf16.msra.mxu0 0
        %3330 = vmatprep.subr.bf16.mxu0 0
        %3331 = vmatpush1.bf16.msra.mxu0 0
        %3332 = vmatprep.subr.bf16.mxu0 0
        %3333 = vmatpush1.bf16.msra.mxu0 0
        %3334 = vmatprep.subr.bf16.mxu0 0
        %3335 = vmatpush1.bf16.msra.mxu0 0
        %3336 = vmatprep.subr.bf16.mxu0 0
        %3337 = vmatpush1.bf16.msra.mxu0 0
        %3338 = vmatprep.subr.bf16.mxu0 0
        %3339 = vmatpush1.bf16.msra.mxu0 0
        %3340 = vmatprep.subr.bf16.mxu0 0
        %3341 = vmatpush1.bf16.msra.mxu0 0
        %3342 = vmatprep.subr.bf16.mxu0 0
        %3343 = vmatpush1.bf16.msra.mxu0 0
        %3344 = vmatprep.mubr.bf16.mxu0 0
        %3345 = vmatmul.mubr.bf16.gmra.mrb[0].mxu0 %v2578
        %v3346 = vpop.f32.mrb[0].mxu0
        %v3347 = vadd.f32 %v3298, %v3346
        %v3348 = vpop.f32.mrb[0].mxu0
        %v3349 = vpop.f32.mrb[0].mxu0
        %v3350 = vadd.f32 %v3298, %v3349
        %v3351 = vpop.f32.mrb[0].mxu0
        %3352 = vdwg.mxu0
        %s3353 = scalar_lea.vmem %s19, 32
        %v3354 = vld [vmem:[%s3353] sm:$0xf]
        %v3355 = vld [vmem:[%s3353 + $0x4] sm:$0xf]
        %v3356 = vld [vmem:[%s3353 + $0x8] sm:$0xf]
        %v3357 = vld [vmem:[%s3353 + $0xc] sm:$0xf]
        %s3358 = scalar_lea.vmem %s20, 2
        %v3359 = vld [vmem:[%s3358] sm:$0x1]
        %v3361 = vlaneseq
        %v3362 = vshrl.u32 %v3361, 7
        %v3363 = vsub.s32 0, %v3362
        %v3364 = vrot.slane %v3359, %v3363
        %v3370 = vunpack.c.l.b16 %v3354
        %v3371 = vunpack.c.l.b16 %v3355
        %v3372 = vunpack.c.l.b16 %v3356
        %v3373 = vunpack.c.l.b16 %v3357
        %v3374 = vpack.c.b16 %v3371, %v3370
        %v3375 = vpack.c.b16 %v3373, %v3372
        %3378 = vmatprep.subr.bf16.mxu0 0
        %3379 = vmatpush1.bf16.msra.mxu0 %v3374
        %3380 = vmatprep.subr.bf16.mxu0 0
        %3381 = vmatpush1.bf16.msra.mxu0 %v3375
        %3382 = vmatprep.subr.bf16.mxu0 0
        %3383 = vmatpush1.bf16.msra.mxu0 0
        %3384 = vmatprep.subr.bf16.mxu0 0
        %3385 = vmatpush1.bf16.msra.mxu0 0
        %3386 = vmatprep.subr.bf16.mxu0 0
        %3387 = vmatpush1.bf16.msra.mxu0 0
        %3388 = vmatprep.subr.bf16.mxu0 0
        %3389 = vmatpush1.bf16.msra.mxu0 0
        %3390 = vmatprep.subr.bf16.mxu0 0
        %3391 = vmatpush1.bf16.msra.mxu0 0
        %3392 = vmatprep.subr.bf16.mxu0 0
        %3393 = vmatpush1.bf16.msra.mxu0 0
        %3394 = vmatprep.subr.bf16.mxu0 0
        %3395 = vmatpush1.bf16.msra.mxu0 0
        %3396 = vmatprep.subr.bf16.mxu0 0
        %3397 = vmatpush1.bf16.msra.mxu0 0
        %3398 = vmatprep.subr.bf16.mxu0 0
        %3399 = vmatpush1.bf16.msra.mxu0 0
        %3400 = vmatprep.subr.bf16.mxu0 0
        %3401 = vmatpush1.bf16.msra.mxu0 0
        %3402 = vmatprep.subr.bf16.mxu0 0
        %3403 = vmatpush1.bf16.msra.mxu0 0
        %3404 = vmatprep.subr.bf16.mxu0 0
        %3405 = vmatpush1.bf16.msra.mxu0 0
        %3406 = vmatprep.subr.bf16.mxu0 0
        %3407 = vmatpush1.bf16.msra.mxu0 0
        %3408 = vmatprep.subr.bf16.mxu0 0
        %3409 = vmatpush1.bf16.msra.mxu0 0
        %3410 = vmatprep.mubr.bf16.mxu0 0
        %3411 = vmatmul.mubr.bf16.gmra.mrb[0].mxu0 %v2578
        %v3412 = vpop.f32.mrb[0].mxu0
        %v3413 = vadd.f32 %v3364, %v3412
        %v3414 = vpop.f32.mrb[0].mxu0
        %v3415 = vpop.f32.mrb[0].mxu0
        %v3416 = vadd.f32 %v3364, %v3415
        %v3417 = vpop.f32.mrb[0].mxu0
        %3418 = vdwg.mxu0
        %v3419 = vmul.f32 %v3281, 0.35355338
        %v3420 = vmul.f32 %v3284, 0.35355338
        %v3421 = vpack.c.bf16 %v3420, %v3419
        %v3422 = vpack.c.bf16 %v3350, %v3347
        %v3424 = vsel %vm1159, %v3421, 0
        %v3427 = vsel %vm1159, %v3422, 0
        %3429 = vmatprep.subr.bf16.mxu0 0
        %3430 = vmatpush1.bf16.xpose.msra.mxu0 %v3427
        %3431 = vmatprep.subr.bf16.mxu0 0
        %3432 = vmatpush1.bf16.xpose.msra.mxu0 0
        %3433 = vmatprep.subr.bf16.mxu0 0
        %3434 = vmatpush1.bf16.xpose.msra.mxu0 0
        %3435 = vmatprep.subr.bf16.mxu0 0
        %3436 = vmatpush1.bf16.xpose.msra.mxu0 0
        %3437 = vmatprep.subr.bf16.mxu0 0
        %3438 = vmatpush1.bf16.xpose.msra.mxu0 0
        %3439 = vmatprep.subr.bf16.mxu0 0
        %3440 = vmatpush1.bf16.xpose.msra.mxu0 0
        %3441 = vmatprep.subr.bf16.mxu0 0
        %3442 = vmatpush1.bf16.xpose.msra.mxu0 0
        %3443 = vmatprep.subr.bf16.mxu0 0
        %3444 = vmatpush1.bf16.xpose.msra.mxu0 0
        %3445 = vmatprep.subr.bf16.mxu0 0
        %3446 = vmatpush1.bf16.xpose.msra.mxu0 0
        %3447 = vmatprep.subr.bf16.mxu0 0
        %3448 = vmatpush1.bf16.xpose.msra.mxu0 0
        %3449 = vmatprep.subr.bf16.mxu0 0
        %3450 = vmatpush1.bf16.xpose.msra.mxu0 0
        %3451 = vmatprep.subr.bf16.mxu0 0
        %3452 = vmatpush1.bf16.xpose.msra.mxu0 0
        %3453 = vmatprep.subr.bf16.mxu0 0
        %3454 = vmatpush1.bf16.xpose.msra.mxu0 0
        %3455 = vmatprep.subr.bf16.mxu0 0
        %3456 = vmatpush1.bf16.xpose.msra.mxu0 0
        %3457 = vmatprep.subr.bf16.mxu0 0
        %3458 = vmatpush1.bf16.xpose.msra.mxu0 0
        %3459 = vmatprep.subr.bf16.mxu0 0
        %3460 = vmatpush1.bf16.xpose.msra.mxu0 0
        %3461 = vmatprep.mubr.bf16.mxu0 0
        %3462 = vmatmul.mubr.bf16.gmra.mrb[0].mxu0 %v3424
        %v3463 = vpop.f32.mrb[0].mxu0
        %v3464 = vadd.f32 0.0, %v3463
        %v3465 = vpop.f32.mrb[0].mxu0
        %v3466 = vpop.f32.mrb[0].mxu0
        %v3467 = vadd.f32 0.0, %v3466
        %v3468 = vpop.f32.mrb[0].mxu0
        %3469 = vdwg.mxu0
        %v3470 = vsel %vm2736, %v3464, -inf
        %3471 = vmax.xlane.f32.xlu0 %v3470
        %v3472 = vpop.xlane.xlu0 %3471
        %v3473 = vsel %vm2736, %v3467, -inf
        %3474 = vmax.xlane.f32.xlu0 %v3473
        %v3475 = vpop.xlane.xlu0 %3474
        %v3476 = vsub.f32 %v3464, %v3472
        %v3477 = vsub.f32 %v3467, %v3475
        %v3478 = vmul.f32 %v3476, 1.442695
        %v3479 = vpow.pop %v3478
        %v3480 = vmul.f32 %v3477, 1.442695
        %v3481 = vpow.pop %v3480
        %v3482 = vsel %vm2736, %v3479, 0.0
        %3483 = vadd.xlane.f32.xlu0 %v3482
        %v3484 = vpop.xlane.xlu0 %3483
        %v3485 = vsel %vm2736, %v3481, 0.0
        %3486 = vadd.xlane.f32.xlu0 %v3485
        %v3487 = vpop.xlane.xlu0 %3486
        %v3488 = vrcp.pop %v3484
        %v3489 = vrcp.pop %v3487
        %v3490 = vmul.f32 %v3479, %v3488
        %v3491 = vmul.f32 %v3481, %v3489
        %v3492 = vpack.c.bf16 %v3491, %v3490
        %v3493 = vpack.c.bf16 %v3416, %v3413
        %v3495 = vsel %vm2736, %v3492, 0
        %3497 = vmatprep.subr.bf16.mxu0 0
        %3498 = vmatpush1.bf16.msra.mxu0 %v3493
        %3499 = vmatprep.subr.bf16.mxu0 0
        %3500 = vmatpush1.bf16.msra.mxu0 0
        %3501 = vmatprep.subr.bf16.mxu0 0
        %3502 = vmatpush1.bf16.msra.mxu0 0
        %3503 = vmatprep.subr.bf16.mxu0 0
        %3504 = vmatpush1.bf16.msra.mxu0 0
        %3505 = vmatprep.subr.bf16.mxu0 0
        %3506 = vmatpush1.bf16.msra.mxu0 0
        %3507 = vmatprep.subr.bf16.mxu0 0
        %3508 = vmatpush1.bf16.msra.mxu0 0
        %3509 = vmatprep.subr.bf16.mxu0 0
        %3510 = vmatpush1.bf16.msra.mxu0 0
        %3511 = vmatprep.subr.bf16.mxu0 0
        %3512 = vmatpush1.bf16.msra.mxu0 0
        %3513 = vmatprep.subr.bf16.mxu0 0
        %3514 = vmatpush1.bf16.msra.mxu0 0
        %3515 = vmatprep.subr.bf16.mxu0 0
        %3516 = vmatpush1.bf16.msra.mxu0 0
        %3517 = vmatprep.subr.bf16.mxu0 0
        %3518 = vmatpush1.bf16.msra.mxu0 0
        %3519 = vmatprep.subr.bf16.mxu0 0
        %3520 = vmatpush1.bf16.msra.mxu0 0
        %3521 = vmatprep.subr.bf16.mxu0 0
        %3522 = vmatpush1.bf16.msra.mxu0 0
        %3523 = vmatprep.subr.bf16.mxu0 0
        %3524 = vmatpush1.bf16.msra.mxu0 0
        %3525 = vmatprep.subr.bf16.mxu0 0
        %3526 = vmatpush1.bf16.msra.mxu0 0
        %3527 = vmatprep.subr.bf16.mxu0 0
        %3528 = vmatpush1.bf16.msra.mxu0 0
        %3529 = vmatprep.mubr.bf16.mxu0 0
        %3530 = vmatmul.mubr.bf16.gmra.mrb[0].mxu0 %v3495
        %v3531 = vpop.f32.mrb[0].mxu0
        %v3532 = vadd.f32 0.0, %v3531
        %v3533 = vpop.f32.mrb[0].mxu0
        %v3534 = vpop.f32.mrb[0].mxu0
        %v3535 = vadd.f32 0.0, %v3534
        %v3536 = vpop.f32.mrb[0].mxu0
        %3537 = vdwg.mxu0
        %s3538 = scalar_lea.vmem %s21, 8
        %v3539 = vld [vmem:[%s3538] sm:$0xf]
        %v3540 = vpack.c.bf16 %v3535, %v3532
        %v3542 = vsel %vm1159, %v3540, 0
        %v3545 = vsel %vm1234, %v3539, 0
        %3547 = vmatprep.subr.bf16.mxu0 0
        %3548 = vmatpush1.bf16.msra.mxu0 %v3545
        %3549 = vmatprep.subr.bf16.mxu0 0
        %3550 = vmatpush1.bf16.msra.mxu0 0
        %3551 = vmatprep.subr.bf16.mxu0 0
        %3552 = vmatpush1.bf16.msra.mxu0 0
        %3553 = vmatprep.subr.bf16.mxu0 0
        %3554 = vmatpush1.bf16.msra.mxu0 0
        %3555 = vmatprep.subr.bf16.mxu0 0
        %3556 = vmatpush1.bf16.msra.mxu0 0
        %3557 = vmatprep.subr.bf16.mxu0 0
        %3558 = vmatpush1.bf16.msra.mxu0 0
        %3559 = vmatprep.subr.bf16.mxu0 0
        %3560 = vmatpush1.bf16.msra.mxu0 0
        %3561 = vmatprep.subr.bf16.mxu0 0
        %3562 = vmatpush1.bf16.msra.mxu0 0
        %3563 = vmatprep.subr.bf16.mxu0 0
        %3564 = vmatpush1.bf16.msra.mxu0 0
        %3565 = vmatprep.subr.bf16.mxu0 0
        %3566 = vmatpush1.bf16.msra.mxu0 0
        %3567 = vmatprep.subr.bf16.mxu0 0
        %3568 = vmatpush1.bf16.msra.mxu0 0
        %3569 = vmatprep.subr.bf16.mxu0 0
        %3570 = vmatpush1.bf16.msra.mxu0 0
        %3571 = vmatprep.subr.bf16.mxu0 0
        %3572 = vmatpush1.bf16.msra.mxu0 0
        %3573 = vmatprep.subr.bf16.mxu0 0
        %3574 = vmatpush1.bf16.msra.mxu0 0
        %3575 = vmatprep.subr.bf16.mxu0 0
        %3576 = vmatpush1.bf16.msra.mxu0 0
        %3577 = vmatprep.subr.bf16.mxu0 0
        %3578 = vmatpush1.bf16.msra.mxu0 0
        %3579 = vmatprep.mubr.bf16.mxu0 0
        %3580 = vmatmul.mubr.bf16.gmra.mrb[0].mxu0 %v3542
        %v3581 = vpop.f32.mrb[0].mxu0
        %v3582 = vadd.f32 0.0, %v3581
        %v3583 = vpop.f32.mrb[0].mxu0
        %v3584 = vpop.f32.mrb[0].mxu0
        %v3585 = vadd.f32 0.0, %v3584
        %v3586 = vpop.f32.mrb[0].mxu0
        %3587 = vdwg.mxu0
        %v3588 = vadd.f32 %v3215, %v3582
        %v3589 = vadd.f32 %v3218, %v3585
        %s3590 = scalar_lea.vmem %s15, 48
        %v3591 = vld [vmem:[%s3590] sm:$0xf]
        %v3592 = vld [vmem:[%s3590 + $0x4] sm:$0xf]
        %v3593 = vld [vmem:[%s3590 + $0x8] sm:$0xf]
        %v3594 = vld [vmem:[%s3590 + $0xc] sm:$0xf]
        %s3595 = scalar_lea.vmem %s16, 3
        %v3596 = vld [vmem:[%s3595] sm:$0x1]
        %v3598 = vlaneseq
        %v3599 = vshrl.u32 %v3598, 7
        %v3600 = vsub.s32 0, %v3599
        %v3601 = vrot.slane %v3596, %v3600
        %v3607 = vunpack.c.l.b16 %v3591
        %v3608 = vunpack.c.l.b16 %v3592
        %v3609 = vunpack.c.l.b16 %v3593
        %v3610 = vunpack.c.l.b16 %v3594
        %v3611 = vpack.c.b16 %v3608, %v3607
        %v3612 = vpack.c.b16 %v3610, %v3609
        %3615 = vmatprep.subr.bf16.mxu0 0
        %3616 = vmatpush1.bf16.msra.mxu0 %v3611
        %3617 = vmatprep.subr.bf16.mxu0 0
        %3618 = vmatpush1.bf16.msra.mxu0 %v3612
        %3619 = vmatprep.subr.bf16.mxu0 0
        %3620 = vmatpush1.bf16.msra.mxu0 0
        %3621 = vmatprep.subr.bf16.mxu0 0
        %3622 = vmatpush1.bf16.msra.mxu0 0
        %3623 = vmatprep.subr.bf16.mxu0 0
        %3624 = vmatpush1.bf16.msra.mxu0 0
        %3625 = vmatprep.subr.bf16.mxu0 0
        %3626 = vmatpush1.bf16.msra.mxu0 0
        %3627 = vmatprep.subr.bf16.mxu0 0
        %3628 = vmatpush1.bf16.msra.mxu0 0
        %3629 = vmatprep.subr.bf16.mxu0 0
        %3630 = vmatpush1.bf16.msra.mxu0 0
        %3631 = vmatprep.subr.bf16.mxu0 0
        %3632 = vmatpush1.bf16.msra.mxu0 0
        %3633 = vmatprep.subr.bf16.mxu0 0
        %3634 = vmatpush1.bf16.msra.mxu0 0
        %3635 = vmatprep.subr.bf16.mxu0 0
        %3636 = vmatpush1.bf16.msra.mxu0 0
        %3637 = vmatprep.subr.bf16.mxu0 0
        %3638 = vmatpush1.bf16.msra.mxu0 0
        %3639 = vmatprep.subr.bf16.mxu0 0
        %3640 = vmatpush1.bf16.msra.mxu0 0
        %3641 = vmatprep.subr.bf16.mxu0 0
        %3642 = vmatpush1.bf16.msra.mxu0 0
        %3643 = vmatprep.subr.bf16.mxu0 0
        %3644 = vmatpush1.bf16.msra.mxu0 0
        %3645 = vmatprep.subr.bf16.mxu0 0
        %3646 = vmatpush1.bf16.msra.mxu0 0
        %3647 = vmatprep.mubr.bf16.mxu0 0
        %3648 = vmatmul.mubr.bf16.gmra.mrb[0].mxu0 %v2510
        %v3649 = vpop.f32.mrb[0].mxu0
        %v3650 = vadd.f32 %v3601, %v3649
        %v3651 = vpop.f32.mrb[0].mxu0
        %v3652 = vpop.f32.mrb[0].mxu0
        %v3653 = vadd.f32 %v3601, %v3652
        %v3654 = vpop.f32.mrb[0].mxu0
        %3655 = vdwg.mxu0
        %s3656 = scalar_lea.vmem %s17, 48
        %v3657 = vld [vmem:[%s3656] sm:$0xf]
        %v3658 = vld [vmem:[%s3656 + $0x4] sm:$0xf]
        %v3659 = vld [vmem:[%s3656 + $0x8] sm:$0xf]
        %v3660 = vld [vmem:[%s3656 + $0xc] sm:$0xf]
        %s3661 = scalar_lea.vmem %s18, 3
        %v3662 = vld [vmem:[%s3661] sm:$0x1]
        %v3664 = vlaneseq
        %v3665 = vshrl.u32 %v3664, 7
        %v3666 = vsub.s32 0, %v3665
        %v3667 = vrot.slane %v3662, %v3666
        %v3673 = vunpack.c.l.b16 %v3657
        %v3674 = vunpack.c.l.b16 %v3658
        %v3675 = vunpack.c.l.b16 %v3659
        %v3676 = vunpack.c.l.b16 %v3660
        %v3677 = vpack.c.b16 %v3674, %v3673
        %v3678 = vpack.c.b16 %v3676, %v3675
        %3681 = vmatprep.subr.bf16.mxu0 0
        %3682 = vmatpush1.bf16.msra.mxu0 %v3677
        %3683 = vmatprep.subr.bf16.mxu0 0
        %3684 = vmatpush1.bf16.msra.mxu0 %v3678
        %3685 = vmatprep.subr.bf16.mxu0 0
        %3686 = vmatpush1.bf16.msra.mxu0 0
        %3687 = vmatprep.subr.bf16.mxu0 0
        %3688 = vmatpush1.bf16.msra.mxu0 0
        %3689 = vmatprep.subr.bf16.mxu0 0
        %3690 = vmatpush1.bf16.msra.mxu0 0
        %3691 = vmatprep.subr.bf16.mxu0 0
        %3692 = vmatpush1.bf16.msra.mxu0 0
        %3693 = vmatprep.subr.bf16.mxu0 0
        %3694 = vmatpush1.bf16.msra.mxu0 0
        %3695 = vmatprep.subr.bf16.mxu0 0
        %3696 = vmatpush1.bf16.msra.mxu0 0
        %3697 = vmatprep.subr.bf16.mxu0 0
        %3698 = vmatpush1.bf16.msra.mxu0 0
        %3699 = vmatprep.subr.bf16.mxu0 0
        %3700 = vmatpush1.bf16.msra.mxu0 0
        %3701 = vmatprep.subr.bf16.mxu0 0
        %3702 = vmatpush1.bf16.msra.mxu0 0
        %3703 = vmatprep.subr.bf16.mxu0 0
        %3704 = vmatpush1.bf16.msra.mxu0 0
        %3705 = vmatprep.subr.bf16.mxu0 0
        %3706 = vmatpush1.bf16.msra.mxu0 0
        %3707 = vmatprep.subr.bf16.mxu0 0
        %3708 = vmatpush1.bf16.msra.mxu0 0
        %3709 = vmatprep.subr.bf16.mxu0 0
        %3710 = vmatpush1.bf16.msra.mxu0 0
        %3711 = vmatprep.subr.bf16.mxu0 0
        %3712 = vmatpush1.bf16.msra.mxu0 0
        %3713 = vmatprep.mubr.bf16.mxu0 0
        %3714 = vmatmul.mubr.bf16.gmra.mrb[0].mxu0 %v2578
        %v3715 = vpop.f32.mrb[0].mxu0
        %v3716 = vadd.f32 %v3667, %v3715
        %v3717 = vpop.f32.mrb[0].mxu0
        %v3718 = vpop.f32.mrb[0].mxu0
        %v3719 = vadd.f32 %v3667, %v3718
        %v3720 = vpop.f32.mrb[0].mxu0
        %3721 = vdwg.mxu0
        %s3722 = scalar_lea.vmem %s19, 48
        %v3723 = vld [vmem:[%s3722] sm:$0xf]
        %v3724 = vld [vmem:[%s3722 + $0x4] sm:$0xf]
        %v3725 = vld [vmem:[%s3722 + $0x8] sm:$0xf]
        %v3726 = vld [vmem:[%s3722 + $0xc] sm:$0xf]
        %s3727 = scalar_lea.vmem %s20, 3
        %v3728 = vld [vmem:[%s3727] sm:$0x1]
        %v3730 = vlaneseq
        %v3731 = vshrl.u32 %v3730, 7
        %v3732 = vsub.s32 0, %v3731
        %v3733 = vrot.slane %v3728, %v3732
        %v3739 = vunpack.c.l.b16 %v3723
        %v3740 = vunpack.c.l.b16 %v3724
        %v3741 = vunpack.c.l.b16 %v3725
        %v3742 = vunpack.c.l.b16 %v3726
        %v3743 = vpack.c.b16 %v3740, %v3739
        %v3744 = vpack.c.b16 %v3742, %v3741
        %3747 = vmatprep.subr.bf16.mxu0 0
        %3748 = vmatpush1.bf16.msra.mxu0 %v3743
        %3749 = vmatprep.subr.bf16.mxu0 0
        %3750 = vmatpush1.bf16.msra.mxu0 %v3744
        %3751 = vmatprep.subr.bf16.mxu0 0
        %3752 = vmatpush1.bf16.msra.mxu0 0
        %3753 = vmatprep.subr.bf16.mxu0 0
        %3754 = vmatpush1.bf16.msra.mxu0 0
        %3755 = vmatprep.subr.bf16.mxu0 0
        %3756 = vmatpush1.bf16.msra.mxu0 0
        %3757 = vmatprep.subr.bf16.mxu0 0
        %3758 = vmatpush1.bf16.msra.mxu0 0
        %3759 = vmatprep.subr.bf16.mxu0 0
        %3760 = vmatpush1.bf16.msra.mxu0 0
        %3761 = vmatprep.subr.bf16.mxu0 0
        %3762 = vmatpush1.bf16.msra.mxu0 0
        %3763 = vmatprep.subr.bf16.mxu0 0
        %3764 = vmatpush1.bf16.msra.mxu0 0
        %3765 = vmatprep.subr.bf16.mxu0 0
        %3766 = vmatpush1.bf16.msra.mxu0 0
        %3767 = vmatprep.subr.bf16.mxu0 0
        %3768 = vmatpush1.bf16.msra.mxu0 0
        %3769 = vmatprep.subr.bf16.mxu0 0
        %3770 = vmatpush1.bf16.msra.mxu0 0
        %3771 = vmatprep.subr.bf16.mxu0 0
        %3772 = vmatpush1.bf16.msra.mxu0 0
        %3773 = vmatprep.subr.bf16.mxu0 0
        %3774 = vmatpush1.bf16.msra.mxu0 0
        %3775 = vmatprep.subr.bf16.mxu0 0
        %3776 = vmatpush1.bf16.msra.mxu0 0
        %3777 = vmatprep.subr.bf16.mxu0 0
        %3778 = vmatpush1.bf16.msra.mxu0 0
        %3779 = vmatprep.mubr.bf16.mxu0 0
        %3780 = vmatmul.mubr.bf16.gmra.mrb[0].mxu0 %v2578
        %v3781 = vpop.f32.mrb[0].mxu0
        %v3782 = vadd.f32 %v3733, %v3781
        %v3783 = vpop.f32.mrb[0].mxu0
        %v3784 = vpop.f32.mrb[0].mxu0
        %v3785 = vadd.f32 %v3733, %v3784
        %v3786 = vpop.f32.mrb[0].mxu0
        %3787 = vdwg.mxu0
        %v3788 = vmul.f32 %v3650, 0.35355338
        %v3789 = vmul.f32 %v3653, 0.35355338
        %v3790 = vpack.c.bf16 %v3789, %v3788
        %v3791 = vpack.c.bf16 %v3719, %v3716
        %v3793 = vsel %vm1159, %v3790, 0
        %v3796 = vsel %vm1159, %v3791, 0
        %3798 = vmatprep.subr.bf16.mxu0 0
        %3799 = vmatpush1.bf16.xpose.msra.mxu0 %v3796
        %3800 = vmatprep.subr.bf16.mxu0 0
        %3801 = vmatpush1.bf16.xpose.msra.mxu0 0
        %3802 = vmatprep.subr.bf16.mxu0 0
        %3803 = vmatpush1.bf16.xpose.msra.mxu0 0
        %3804 = vmatprep.subr.bf16.mxu0 0
        %3805 = vmatpush1.bf16.xpose.msra.mxu0 0
        %3806 = vmatprep.subr.bf16.mxu0 0
        %3807 = vmatpush1.bf16.xpose.msra.mxu0 0
        %3808 = vmatprep.subr.bf16.mxu0 0
        %3809 = vmatpush1.bf16.xpose.msra.mxu0 0
        %3810 = vmatprep.subr.bf16.mxu0 0
        %3811 = vmatpush1.bf16.xpose.msra.mxu0 0
        %3812 = vmatprep.subr.bf16.mxu0 0
        %3813 = vmatpush1.bf16.xpose.msra.mxu0 0
        %3814 = vmatprep.subr.bf16.mxu0 0
        %3815 = vmatpush1.bf16.xpose.msra.mxu0 0
        %3816 = vmatprep.subr.bf16.mxu0 0
        %3817 = vmatpush1.bf16.xpose.msra.mxu0 0
        %3818 = vmatprep.subr.bf16.mxu0 0
        %3819 = vmatpush1.bf16.xpose.msra.mxu0 0
        %3820 = vmatprep.subr.bf16.mxu0 0
        %3821 = vmatpush1.bf16.xpose.msra.mxu0 0
        %3822 = vmatprep.subr.bf16.mxu0 0
        %3823 = vmatpush1.bf16.xpose.msra.mxu0 0
        %3824 = vmatprep.subr.bf16.mxu0 0
        %3825 = vmatpush1.bf16.xpose.msra.mxu0 0
        %3826 = vmatprep.subr.bf16.mxu0 0
        %3827 = vmatpush1.bf16.xpose.msra.mxu0 0
        %3828 = vmatprep.subr.bf16.mxu0 0
        %3829 = vmatpush1.bf16.xpose.msra.mxu0 0
        %3830 = vmatprep.mubr.bf16.mxu0 0
        %3831 = vmatmul.mubr.bf16.gmra.mrb[0].mxu0 %v3793
        %v3832 = vpop.f32.mrb[0].mxu0
        %v3833 = vadd.f32 0.0, %v3832
        %v3834 = vpop.f32.mrb[0].mxu0
        %v3835 = vpop.f32.mrb[0].mxu0
        %v3836 = vadd.f32 0.0, %v3835
        %v3837 = vpop.f32.mrb[0].mxu0
        %3838 = vdwg.mxu0
        %v3839 = vsel %vm2736, %v3833, -inf
        %3840 = vmax.xlane.f32.xlu0 %v3839
        %v3841 = vpop.xlane.xlu0 %3840
        %v3842 = vsel %vm2736, %v3836, -inf
        %3843 = vmax.xlane.f32.xlu0 %v3842
        %v3844 = vpop.xlane.xlu0 %3843
        %v3845 = vsub.f32 %v3833, %v3841
        %v3846 = vsub.f32 %v3836, %v3844
        %v3847 = vmul.f32 %v3845, 1.442695
        %v3848 = vpow.pop %v3847
        %v3849 = vmul.f32 %v3846, 1.442695
        %v3850 = vpow.pop %v3849
        %v3851 = vsel %vm2736, %v3848, 0.0
        %3852 = vadd.xlane.f32.xlu0 %v3851
        %v3853 = vpop.xlane.xlu0 %3852
        %v3854 = vsel %vm2736, %v3850, 0.0
        %3855 = vadd.xlane.f32.xlu0 %v3854
        %v3856 = vpop.xlane.xlu0 %3855
        %v3857 = vrcp.pop %v3853
        %v3858 = vrcp.pop %v3856
        %v3859 = vmul.f32 %v3848, %v3857
        %v3860 = vmul.f32 %v3850, %v3858
        %v3861 = vpack.c.bf16 %v3860, %v3859
        %v3862 = vpack.c.bf16 %v3785, %v3782
        %v3864 = vsel %vm2736, %v3861, 0
        %3866 = vmatprep.subr.bf16.mxu0 0
        %3867 = vmatpush1.bf16.msra.mxu0 %v3862
        %3868 = vmatprep.subr.bf16.mxu0 0
        %3869 = vmatpush1.bf16.msra.mxu0 0
        %3870 = vmatprep.subr.bf16.mxu0 0
        %3871 = vmatpush1.bf16.msra.mxu0 0
        %3872 = vmatprep.subr.bf16.mxu0 0
        %3873 = vmatpush1.bf16.msra.mxu0 0
        %3874 = vmatprep.subr.bf16.mxu0 0
        %3875 = vmatpush1.bf16.msra.mxu0 0
        %3876 = vmatprep.subr.bf16.mxu0 0
        %3877 = vmatpush1.bf16.msra.mxu0 0
        %3878 = vmatprep.subr.bf16.mxu0 0
        %3879 = vmatpush1.bf16.msra.mxu0 0
        %3880 = vmatprep.subr.bf16.mxu0 0
        %3881 = vmatpush1.bf16.msra.mxu0 0
        %3882 = vmatprep.subr.bf16.mxu0 0
        %3883 = vmatpush1.bf16.msra.mxu0 0
        %3884 = vmatprep.subr.bf16.mxu0 0
        %3885 = vmatpush1.bf16.msra.mxu0 0
        %3886 = vmatprep.subr.bf16.mxu0 0
        %3887 = vmatpush1.bf16.msra.mxu0 0
        %3888 = vmatprep.subr.bf16.mxu0 0
        %3889 = vmatpush1.bf16.msra.mxu0 0
        %3890 = vmatprep.subr.bf16.mxu0 0
        %3891 = vmatpush1.bf16.msra.mxu0 0
        %3892 = vmatprep.subr.bf16.mxu0 0
        %3893 = vmatpush1.bf16.msra.mxu0 0
        %3894 = vmatprep.subr.bf16.mxu0 0
        %3895 = vmatpush1.bf16.msra.mxu0 0
        %3896 = vmatprep.subr.bf16.mxu0 0
        %3897 = vmatpush1.bf16.msra.mxu0 0
        %3898 = vmatprep.mubr.bf16.mxu0 0
        %3899 = vmatmul.mubr.bf16.gmra.mrb[0].mxu0 %v3864
        %v3900 = vpop.f32.mrb[0].mxu0
        %v3901 = vadd.f32 0.0, %v3900
        %v3902 = vpop.f32.mrb[0].mxu0
        %v3903 = vpop.f32.mrb[0].mxu0
        %v3904 = vadd.f32 0.0, %v3903
        %v3905 = vpop.f32.mrb[0].mxu0
        %3906 = vdwg.mxu0
        %s3907 = scalar_lea.vmem %s21, 12
        %v3908 = vld [vmem:[%s3907] sm:$0xf]
        %v3909 = vpack.c.bf16 %v3904, %v3901
        %v3911 = vsel %vm1159, %v3909, 0
        %v3914 = vsel %vm1234, %v3908, 0
        %3916 = vmatprep.subr.bf16.mxu0 0
        %3917 = vmatpush1.bf16.msra.mxu0 %v3914
        %3918 = vmatprep.subr.bf16.mxu0 0
        %3919 = vmatpush1.bf16.msra.mxu0 0
        %3920 = vmatprep.subr.bf16.mxu0 0
        %3921 = vmatpush1.bf16.msra.mxu0 0
        %3922 = vmatprep.subr.bf16.mxu0 0
        %3923 = vmatpush1.bf16.msra.mxu0 0
        %3924 = vmatprep.subr.bf16.mxu0 0
        %3925 = vmatpush1.bf16.msra.mxu0 0
        %3926 = vmatprep.subr.bf16.mxu0 0
        %3927 = vmatpush1.bf16.msra.mxu0 0
        %3928 = vmatprep.subr.bf16.mxu0 0
        %3929 = vmatpush1.bf16.msra.mxu0 0
        %3930 = vmatprep.subr.bf16.mxu0 0
        %3931 = vmatpush1.bf16.msra.mxu0 0
        %3932 = vmatprep.subr.bf16.mxu0 0
        %3933 = vmatpush1.bf16.msra.mxu0 0
        %3934 = vmatprep.subr.bf16.mxu0 0
        %3935 = vmatpush1.bf16.msra.mxu0 0
        %3936 = vmatprep.subr.bf16.mxu0 0
        %3937 = vmatpush1.bf16.msra.mxu0 0
        %3938 = vmatprep.subr.bf16.mxu0 0
        %3939 = vmatpush1.bf16.msra.mxu0 0
        %3940 = vmatprep.subr.bf16.mxu0 0
        %3941 = vmatpush1.bf16.msra.mxu0 0
        %3942 = vmatprep.subr.bf16.mxu0 0
        %3943 = vmatpush1.bf16.msra.mxu0 0
        %3944 = vmatprep.subr.bf16.mxu0 0
        %3945 = vmatpush1.bf16.msra.mxu0 0
        %3946 = vmatprep.subr.bf16.mxu0 0
        %3947 = vmatpush1.bf16.msra.mxu0 0
        %3948 = vmatprep.mubr.bf16.mxu0 0
        %3949 = vmatmul.mubr.bf16.gmra.mrb[0].mxu0 %v3911
        %v3950 = vpop.f32.mrb[0].mxu0
        %v3951 = vadd.f32 0.0, %v3950
        %v3952 = vpop.f32.mrb[0].mxu0
        %v3953 = vpop.f32.mrb[0].mxu0
        %v3954 = vadd.f32 0.0, %v3953
        %v3955 = vpop.f32.mrb[0].mxu0
        %3956 = vdwg.mxu0
        %v3957 = vadd.f32 %v3588, %v3951
        %v3958 = vadd.f32 %v3589, %v3954
        %v3959 = vld [vmem:[%s22] sm:$0x1]
        %v3961 = vlaneseq
        %v3962 = vshrl.u32 %v3961, 7
        %v3963 = vsub.s32 0, %v3962
        %v3964 = vrot.slane %v3959, %v3963
        %v3966 = vadd.f32 %v3957, %v3964
        %v3967 = vadd.f32 %v3958, %v3964
        %v3968 = vadd.f32 %v2445, %v3966
        %v3969 = vadd.f32 %v2446, %v3967
        %v3970 = vsel %vm909, %v3968, 0.0
        %3971 = vadd.xlane.f32.xlu0 %v3970
        %v3972 = vpop.xlane.xlu0 %3971
        %v3973 = vsel %vm909, %v3969, 0.0
        %3974 = vadd.xlane.f32.xlu0 %v3973
        %v3975 = vpop.xlane.xlu0 %3974
        %v3976 = vmul.f32 %v3972, %v913
        %v3977 = vmul.f32 %v3975, %v913
        %v3978 = vsub.f32 %v3968, %v3976
        %v3979 = vsub.f32 %v3969, %v3977
        %v3980 = vmul.f32 %v3978, %v3978
        %v3981 = vmul.f32 %v3979, %v3979
        %v3982 = vsel %vm909, %v3980, 0.0
        %3983 = vadd.xlane.f32.xlu0 %v3982
        %v3984 = vpop.xlane.xlu0 %3983
        %v3985 = vsel %vm909, %v3981, 0.0
        %3986 = vadd.xlane.f32.xlu0 %v3985
        %v3987 = vpop.xlane.xlu0 %3986
        %v3988 = vmul.f32 %v3984, %v913
        %v3989 = vmul.f32 %v3987, %v913
        %v3990 = vadd.f32 %v3988, 1e-05
        %v3991 = vadd.f32 %v3989, 1e-05
        %v3992 = vrsqrt.pop %v3990
        %v3993 = vrsqrt.pop %v3991
        %v3994 = vmul.f32 %v3978, %v3992
        %v3995 = vmul.f32 %v3979, %v3993
        %v3996 = vlaneseq
        %v3997 = vshrl.u32 %v3996, 7
        %v3998 = vsub.s32 6, %v3997
        %v3999 = vrot.slane %v908, %v3998
        %v4000 = vmul.f32 %v3994, %v3999
        %v4001 = vmul.f32 %v3995, %v3999
        %v4002 = vlaneseq
        %v4003 = vshrl.u32 %v4002, 7
        %v4004 = vsub.s32 7, %v4003
        %v4005 = vrot.slane %v908, %v4004
        %v4006 = vadd.f32 %v4000, %v4005
        %v4007 = vadd.f32 %v4001, %v4005
        %v4008 = vld [vmem:[%s23] sm:$0xf]
        %v4009 = vld [vmem:[%s23 + $0x4] sm:$0xf]
        %v4010 = vld [vmem:[%s23 + $0x8] sm:$0xf]
        %v4011 = vld [vmem:[%s23 + $0xc] sm:$0xf]
        %v4012 = vpack.c.bf16 %v4007, %v4006
        %v4013 = vld [vmem:[%s24] sm:$0x1]
        %v4015 = vlaneseq
        %v4016 = vshrl.u32 %v4015, 7
        %v4017 = vsub.s32 0, %v4016
        %v4018 = vrot.slane %v4013, %v4017
        %v4024 = vunpack.c.l.b16 %v4008
        %v4025 = vunpack.c.l.b16 %v4009
        %v4026 = vunpack.c.l.b16 %v4010
        %v4027 = vunpack.c.l.b16 %v4011
        %v4028 = vpack.c.b16 %v4025, %v4024
        %v4029 = vpack.c.b16 %v4027, %v4026
        %v4033 = vsel %vm909, %v4012, 0
        %4035 = vmatprep.subr.bf16.mxu0 0
        %4036 = vmatpush1.bf16.msra.mxu0 %v4028
        %4037 = vmatprep.subr.bf16.mxu0 0
        %4038 = vmatpush1.bf16.msra.mxu0 %v4029
        %4039 = vmatprep.subr.bf16.mxu0 0
        %4040 = vmatpush1.bf16.msra.mxu0 0
        %4041 = vmatprep.subr.bf16.mxu0 0
        %4042 = vmatpush1.bf16.msra.mxu0 0
        %4043 = vmatprep.subr.bf16.mxu0 0
        %4044 = vmatpush1.bf16.msra.mxu0 0
        %4045 = vmatprep.subr.bf16.mxu0 0
        %4046 = vmatpush1.bf16.msra.mxu0 0
        %4047 = vmatprep.subr.bf16.mxu0 0
        %4048 = vmatpush1.bf16.msra.mxu0 0
        %4049 = vmatprep.subr.bf16.mxu0 0
        %4050 = vmatpush1.bf16.msra.mxu0 0
        %4051 = vmatprep.subr.bf16.mxu0 0
        %4052 = vmatpush1.bf16.msra.mxu0 0
        %4053 = vmatprep.subr.bf16.mxu0 0
        %4054 = vmatpush1.bf16.msra.mxu0 0
        %4055 = vmatprep.subr.bf16.mxu0 0
        %4056 = vmatpush1.bf16.msra.mxu0 0
        %4057 = vmatprep.subr.bf16.mxu0 0
        %4058 = vmatpush1.bf16.msra.mxu0 0
        %4059 = vmatprep.subr.bf16.mxu0 0
        %4060 = vmatpush1.bf16.msra.mxu0 0
        %4061 = vmatprep.subr.bf16.mxu0 0
        %4062 = vmatpush1.bf16.msra.mxu0 0
        %4063 = vmatprep.subr.bf16.mxu0 0
        %4064 = vmatpush1.bf16.msra.mxu0 0
        %4065 = vmatprep.subr.bf16.mxu0 0
        %4066 = vmatpush1.bf16.msra.mxu0 0
        %4067 = vmatprep.mubr.bf16.mxu0 0
        %4068 = vmatmul.mubr.bf16.gmra.mrb[0].mxu0 %v4033
        %v4069 = vpop.f32.mrb[0].mxu0
        %v4070 = vadd.f32 %v4018, %v4069
        %v4071 = vpop.f32.mrb[0].mxu0
        %v4072 = vpop.f32.mrb[0].mxu0
        %v4073 = vadd.f32 %v4018, %v4072
        %v4074 = vpop.f32.mrb[0].mxu0
        %4075 = vdwg.mxu0
        %v4076 = vmul.f32 %v4070, 0.5
        %v4077 = vmul.f32 %v4073, 0.5
        %v4078 = vmul.f32 %v4070, 0.044715
        %v4079 = vmul.f32 %v4073, 0.044715
        %v4080 = vmul.f32 %v4078, %v4070
        %v4081 = vmul.f32 %v4079, %v4073
        %v4082 = vmul.f32 %v4080, %v4070
        %v4083 = vmul.f32 %v4081, %v4073
        %v4084 = vadd.f32 %v4070, %v4082
        %v4085 = vadd.f32 %v4073, %v4083
        %v4086 = vmul.f32 %v4084, 0.7978846
        %v4087 = vmul.f32 %v4085, 0.7978846
        %v4088 = vtanh.pop %v4086
        %v4089 = vtanh.pop %v4087
        %v4090 = vadd.f32 %v4088, 1.0
        %v4091 = vadd.f32 %v4089, 1.0
        %v4092 = vmul.f32 %v4076, %v4090
        %v4093 = vmul.f32 %v4077, %v4091
        %v4094 = vld [vmem:[%s25] sm:$0xf]
        %v4095 = vld [vmem:[%s25 + $0x4] sm:$0xf]
        %v4096 = vld [vmem:[%s25 + $0x8] sm:$0xf]
        %v4097 = vld [vmem:[%s25 + $0xc] sm:$0xf]
        %v4098 = vld [vmem:[%s25 + $0x10] sm:$0xf]
        %v4099 = vld [vmem:[%s25 + $0x14] sm:$0xf]
        %v4100 = vld [vmem:[%s25 + $0x18] sm:$0xf]
        %v4101 = vld [vmem:[%s25 + $0x1c] sm:$0xf]
        %v4102 = vpack.c.bf16 %v4093, %v4092
        %v4103 = vld [vmem:[%s26] sm:$0x1]
        %v4105 = vlaneseq
        %v4106 = vshrl.u32 %v4105, 7
        %v4107 = vsub.s32 0, %v4106
        %v4108 = vrot.slane %v4103, %v4107
        %v4118 = vunpack.c.l.b16 %v4094
        %v4119 = vunpack.c.l.b16 %v4095
        %v4120 = vunpack.c.l.b16 %v4096
        %v4121 = vunpack.c.l.b16 %v4097
        %v4122 = vunpack.c.l.b16 %v4098
        %v4123 = vunpack.c.l.b16 %v4099
        %v4124 = vunpack.c.l.b16 %v4100
        %v4125 = vunpack.c.l.b16 %v4101
        %v4126 = vpack.c.b16 %v4119, %v4118
        %v4127 = vpack.c.b16 %v4121, %v4120
        %v4128 = vpack.c.b16 %v4123, %v4122
        %v4129 = vpack.c.b16 %v4125, %v4124
        %vm4134 = vcmask 523264
        %v4136 = vsel %vm4134, %v4102, 0
        %4138 = vmatprep.subr.bf16.mxu0 0
        %4139 = vmatpush1.bf16.msra.mxu0 %v4126
        %4140 = vmatprep.subr.bf16.mxu0 0
        %4141 = vmatpush1.bf16.msra.mxu0 %v4127
        %4142 = vmatprep.subr.bf16.mxu0 0
        %4143 = vmatpush1.bf16.msra.mxu0 %v4128
        %4144 = vmatprep.subr.bf16.mxu0 0
        %4145 = vmatpush1.bf16.msra.mxu0 %v4129
        %4146 = vmatprep.subr.bf16.mxu0 0
        %4147 = vmatpush1.bf16.msra.mxu0 0
        %4148 = vmatprep.subr.bf16.mxu0 0
        %4149 = vmatpush1.bf16.msra.mxu0 0
        %4150 = vmatprep.subr.bf16.mxu0 0
        %4151 = vmatpush1.bf16.msra.mxu0 0
        %4152 = vmatprep.subr.bf16.mxu0 0
        %4153 = vmatpush1.bf16.msra.mxu0 0
        %4154 = vmatprep.subr.bf16.mxu0 0
        %4155 = vmatpush1.bf16.msra.mxu0 0
        %4156 = vmatprep.subr.bf16.mxu0 0
        %4157 = vmatpush1.bf16.msra.mxu0 0
        %4158 = vmatprep.subr.bf16.mxu0 0
        %4159 = vmatpush1.bf16.msra.mxu0 0
        %4160 = vmatprep.subr.bf16.mxu0 0
        %4161 = vmatpush1.bf16.msra.mxu0 0
        %4162 = vmatprep.subr.bf16.mxu0 0
        %4163 = vmatpush1.bf16.msra.mxu0 0
        %4164 = vmatprep.subr.bf16.mxu0 0
        %4165 = vmatpush1.bf16.msra.mxu0 0
        %4166 = vmatprep.subr.bf16.mxu0 0
        %4167 = vmatpush1.bf16.msra.mxu0 0
        %4168 = vmatprep.subr.bf16.mxu0 0
        %4169 = vmatpush1.bf16.msra.mxu0 0
        %4170 = vmatprep.mubr.bf16.mxu0 0
        %4171 = vmatmul.mubr.bf16.gmra.mrb[0].mxu0 %v4136
        %v4172 = vpop.f32.mrb[0].mxu0
        %v4173 = vadd.f32 %v4108, %v4172
        %v4174 = vpop.f32.mrb[0].mxu0
        %v4175 = vpop.f32.mrb[0].mxu0
        %v4176 = vadd.f32 %v4108, %v4175
        %v4177 = vpop.f32.mrb[0].mxu0
        %4178 = vdwg.mxu0
        %v4179 = vadd.f32 %v3968, %v4173
        %v4180 = vadd.f32 %v3969, %v4176
        %s4181 = scalar_lea.vmem %s6, 8
        %v4182 = vld [vmem:[%s4181] sm:$0xff]
        %v4183 = vsel %vm909, %v4179, 0.0
        %4184 = vadd.xlane.f32.xlu0 %v4183
        %v4185 = vpop.xlane.xlu0 %4184
        %v4186 = vmul.f32 %v4185, %v913
        %v4187 = vsub.f32 %v4179, %v4186
        %v4188 = vmul.f32 %v4187, %v4187
        %v4189 = vsel %vm909, %v4188, 0.0
        %4190 = vadd.xlane.f32.xlu0 %v4189
        %v4191 = vpop.xlane.xlu0 %4190
        %v4192 = vmul.f32 %v4191, %v913
        %v4193 = vadd.f32 %v4192, 1e-05
        %v4194 = vrsqrt.pop %v4193
        %v4195 = vmul.f32 %v4187, %v4194
        %v4196 = vlaneseq
        %v4197 = vshrl.u32 %v4196, 7
        %v4198 = vsub.s32 0, %v4197
        %v4199 = vrot.slane %v4182, %v4198
        %v4200 = vmul.f32 %v4195, %v4199
        %v4201 = vlaneseq
        %v4202 = vshrl.u32 %v4201, 7
        %v4203 = vsub.s32 1, %v4202
        %v4204 = vrot.slane %v4182, %v4203
        %v4205 = vadd.f32 %v4200, %v4204
        %v4206 = vsel %vm909, %v4180, 0.0
        %4207 = vadd.xlane.f32.xlu0 %v4206
        %v4208 = vpop.xlane.xlu0 %4207
        %v4209 = vmul.f32 %v4208, %v913
        %v4210 = vsub.f32 %v4180, %v4209
        %v4211 = vmul.f32 %v4210, %v4210
        %v4212 = vsel %vm909, %v4211, 0.0
        %4213 = vadd.xlane.f32.xlu0 %v4212
        %v4214 = vpop.xlane.xlu0 %4213
        %v4215 = vmul.f32 %v4214, %v913
        %v4216 = vadd.f32 %v4215, 1e-05
        %v4217 = vrsqrt.pop %v4216
        %v4218 = vmul.f32 %v4210, %v4217
        %v4219 = vlaneseq
        %v4220 = vshrl.u32 %v4219, 7
        %v4221 = vsub.s32 2, %v4220
        %v4222 = vrot.slane %v4182, %v4221
        %v4223 = vmul.f32 %v4218, %v4222
        %v4224 = vlaneseq
        %v4225 = vshrl.u32 %v4224, 7
        %v4226 = vsub.s32 3, %v4225
        %v4227 = vrot.slane %v4182, %v4226
        %v4228 = vadd.f32 %v4223, %v4227
        %s4229 = scalar_lea.vmem %s7, 64
        %v4230 = vld [vmem:[%s4229] sm:$0xf]
        %v4231 = vld [vmem:[%s4229 + $0x4] sm:$0xf]
        %v4232 = vld [vmem:[%s4229 + $0x8] sm:$0xf]
        %v4233 = vld [vmem:[%s4229 + $0xc] sm:$0xf]
        %v4234 = vpack.c.bf16 %v4205, %v4205
        %s4235 = scalar_lea.vmem %s8, 4
        %v4236 = vld [vmem:[%s4235] sm:$0x1]
        %v4238 = vlaneseq
        %v4239 = vshrl.u32 %v4238, 7
        %v4240 = vsub.s32 0, %v4239
        %v4241 = vrot.slane %v4236, %v4240
        %v4247 = vunpack.c.l.b16 %v4230
        %v4248 = vunpack.c.l.b16 %v4231
        %v4249 = vunpack.c.l.b16 %v4232
        %v4250 = vunpack.c.l.b16 %v4233
        %v4251 = vpack.c.b16 %v4248, %v4247
        %v4252 = vpack.c.b16 %v4250, %v4249
        %v4256 = vsel %vm909, %v4234, 0
        %4258 = vmatprep.subr.bf16.mxu0 0
        %4259 = vmatpush1.bf16.msra.mxu0 %v4251
        %4260 = vmatprep.subr.bf16.mxu0 0
        %4261 = vmatpush1.bf16.msra.mxu0 %v4252
        %4262 = vmatprep.subr.bf16.mxu0 0
        %4263 = vmatpush1.bf16.msra.mxu0 0
        %4264 = vmatprep.subr.bf16.mxu0 0
        %4265 = vmatpush1.bf16.msra.mxu0 0
        %4266 = vmatprep.subr.bf16.mxu0 0
        %4267 = vmatpush1.bf16.msra.mxu0 0
        %4268 = vmatprep.subr.bf16.mxu0 0
        %4269 = vmatpush1.bf16.msra.mxu0 0
        %4270 = vmatprep.subr.bf16.mxu0 0
        %4271 = vmatpush1.bf16.msra.mxu0 0
        %4272 = vmatprep.subr.bf16.mxu0 0
        %4273 = vmatpush1.bf16.msra.mxu0 0
        %4274 = vmatprep.subr.bf16.mxu0 0
        %4275 = vmatpush1.bf16.msra.mxu0 0
        %4276 = vmatprep.subr.bf16.mxu0 0
        %4277 = vmatpush1.bf16.msra.mxu0 0
        %4278 = vmatprep.subr.bf16.mxu0 0
        %4279 = vmatpush1.bf16.msra.mxu0 0
        %4280 = vmatprep.subr.bf16.mxu0 0
        %4281 = vmatpush1.bf16.msra.mxu0 0
        %4282 = vmatprep.subr.bf16.mxu0 0
        %4283 = vmatpush1.bf16.msra.mxu0 0
        %4284 = vmatprep.subr.bf16.mxu0 0
        %4285 = vmatpush1.bf16.msra.mxu0 0
        %4286 = vmatprep.subr.bf16.mxu0 0
        %4287 = vmatpush1.bf16.msra.mxu0 0
        %4288 = vmatprep.subr.bf16.mxu0 0
        %4289 = vmatpush1.bf16.msra.mxu0 0
        %4290 = vmatprep.mubr.bf16.mxu0 0
        %4291 = vmatmul.mubr.bf16.gmra.mrb[0].mxu0 %v4256
        %v4292 = vpop.f32.mrb[0].mxu0
        %v4293 = vadd.f32 %v4241, %v4292
        %v4294 = vpop.f32.mrb[0].mxu0
        %v4295 = vpop.f32.mrb[0].mxu0
        %v4296 = vpop.f32.mrb[0].mxu0
        %4297 = vdwg.mxu0
        %s4298 = scalar_lea.vmem %s9, 64
        %v4299 = vld [vmem:[%s4298] sm:$0xf]
        %v4300 = vld [vmem:[%s4298 + $0x4] sm:$0xf]
        %v4301 = vld [vmem:[%s4298 + $0x8] sm:$0xf]
        %v4302 = vld [vmem:[%s4298 + $0xc] sm:$0xf]
        %v4303 = vpack.c.bf16 %v4228, %v4228
        %s4304 = scalar_lea.vmem %s10, 4
        %v4305 = vld [vmem:[%s4304] sm:$0x1]
        %v4307 = vlaneseq
        %v4308 = vshrl.u32 %v4307, 7
        %v4309 = vsub.s32 0, %v4308
        %v4310 = vrot.slane %v4305, %v4309
        %v4316 = vunpack.c.l.b16 %v4299
        %v4317 = vunpack.c.l.b16 %v4300
        %v4318 = vunpack.c.l.b16 %v4301
        %v4319 = vunpack.c.l.b16 %v4302
        %v4320 = vpack.c.b16 %v4317, %v4316
        %v4321 = vpack.c.b16 %v4319, %v4318
        %v4325 = vsel %vm909, %v4303, 0
        %4327 = vmatprep.subr.bf16.mxu0 0
        %4328 = vmatpush1.bf16.msra.mxu0 %v4320
        %4329 = vmatprep.subr.bf16.mxu0 0
        %4330 = vmatpush1.bf16.msra.mxu0 %v4321
        %4331 = vmatprep.subr.bf16.mxu0 0
        %4332 = vmatpush1.bf16.msra.mxu0 0
        %4333 = vmatprep.subr.bf16.mxu0 0
        %4334 = vmatpush1.bf16.msra.mxu0 0
        %4335 = vmatprep.subr.bf16.mxu0 0
        %4336 = vmatpush1.bf16.msra.mxu0 0
        %4337 = vmatprep.subr.bf16.mxu0 0
        %4338 = vmatpush1.bf16.msra.mxu0 0
        %4339 = vmatprep.subr.bf16.mxu0 0
        %4340 = vmatpush1.bf16.msra.mxu0 0
        %4341 = vmatprep.subr.bf16.mxu0 0
        %4342 = vmatpush1.bf16.msra.mxu0 0
        %4343 = vmatprep.subr.bf16.mxu0 0
        %4344 = vmatpush1.bf16.msra.mxu0 0
        %4345 = vmatprep.subr.bf16.mxu0 0
        %4346 = vmatpush1.bf16.msra.mxu0 0
        %4347 = vmatprep.subr.bf16.mxu0 0
        %4348 = vmatpush1.bf16.msra.mxu0 0
        %4349 = vmatprep.subr.bf16.mxu0 0
        %4350 = vmatpush1.bf16.msra.mxu0 0
        %4351 = vmatprep.subr.bf16.mxu0 0
        %4352 = vmatpush1.bf16.msra.mxu0 0
        %4353 = vmatprep.subr.bf16.mxu0 0
        %4354 = vmatpush1.bf16.msra.mxu0 0
        %4355 = vmatprep.subr.bf16.mxu0 0
        %4356 = vmatpush1.bf16.msra.mxu0 0
        %4357 = vmatprep.subr.bf16.mxu0 0
        %4358 = vmatpush1.bf16.msra.mxu0 0
        %4359 = vmatprep.mubr.bf16.mxu0 0
        %4360 = vmatmul.mubr.bf16.gmra.mrb[0].mxu0 %v4325
        %v4361 = vpop.f32.mrb[0].mxu0
        %v4362 = vadd.f32 %v4310, %v4361
        %v4363 = vpop.f32.mrb[0].mxu0
        %v4364 = vpop.f32.mrb[0].mxu0
        %v4365 = vpop.f32.mrb[0].mxu0
        %4366 = vdwg.mxu0
        %s4367 = scalar_lea.vmem %s11, 64
        %v4368 = vld [vmem:[%s4367] sm:$0xf]
        %v4369 = vld [vmem:[%s4367 + $0x4] sm:$0xf]
        %v4370 = vld [vmem:[%s4367 + $0x8] sm:$0xf]
        %v4371 = vld [vmem:[%s4367 + $0xc] sm:$0xf]
        %s4372 = scalar_lea.vmem %s12, 4
        %v4373 = vld [vmem:[%s4372] sm:$0x1]
        %v4375 = vlaneseq
        %v4376 = vshrl.u32 %v4375, 7
        %v4377 = vsub.s32 0, %v4376
        %v4378 = vrot.slane %v4373, %v4377
        %v4384 = vunpack.c.l.b16 %v4368
        %v4385 = vunpack.c.l.b16 %v4369
        %v4386 = vunpack.c.l.b16 %v4370
        %v4387 = vunpack.c.l.b16 %v4371
        %v4388 = vpack.c.b16 %v4385, %v4384
        %v4389 = vpack.c.b16 %v4387, %v4386
        %4392 = vmatprep.subr.bf16.mxu0 0
        %4393 = vmatpush1.bf16.msra.mxu0 %v4388
        %4394 = vmatprep.subr.bf16.mxu0 0
        %4395 = vmatpush1.bf16.msra.mxu0 %v4389
        %4396 = vmatprep.subr.bf16.mxu0 0
        %4397 = vmatpush1.bf16.msra.mxu0 0
        %4398 = vmatprep.subr.bf16.mxu0 0
        %4399 = vmatpush1.bf16.msra.mxu0 0
        %4400 = vmatprep.subr.bf16.mxu0 0
        %4401 = vmatpush1.bf16.msra.mxu0 0
        %4402 = vmatprep.subr.bf16.mxu0 0
        %4403 = vmatpush1.bf16.msra.mxu0 0
        %4404 = vmatprep.subr.bf16.mxu0 0
        %4405 = vmatpush1.bf16.msra.mxu0 0
        %4406 = vmatprep.subr.bf16.mxu0 0
        %4407 = vmatpush1.bf16.msra.mxu0 0
        %4408 = vmatprep.subr.bf16.mxu0 0
        %4409 = vmatpush1.bf16.msra.mxu0 0
        %4410 = vmatprep.subr.bf16.mxu0 0
        %4411 = vmatpush1.bf16.msra.mxu0 0
        %4412 = vmatprep.subr.bf16.mxu0 0
        %4413 = vmatpush1.bf16.msra.mxu0 0
        %4414 = vmatprep.subr.bf16.mxu0 0
        %4415 = vmatpush1.bf16.msra.mxu0 0
        %4416 = vmatprep.subr.bf16.mxu0 0
        %4417 = vmatpush1.bf16.msra.mxu0 0
        %4418 = vmatprep.subr.bf16.mxu0 0
        %4419 = vmatpush1.bf16.msra.mxu0 0
        %4420 = vmatprep.subr.bf16.mxu0 0
        %4421 = vmatpush1.bf16.msra.mxu0 0
        %4422 = vmatprep.subr.bf16.mxu0 0
        %4423 = vmatpush1.bf16.msra.mxu0 0
        %4424 = vmatprep.mubr.bf16.mxu0 0
        %4425 = vmatmul.mubr.bf16.gmra.mrb[0].mxu0 %v4325
        %v4426 = vpop.f32.mrb[0].mxu0
        %v4427 = vadd.f32 %v4378, %v4426
        %v4428 = vpop.f32.mrb[0].mxu0
        %v4429 = vpop.f32.mrb[0].mxu0
        %v4430 = vpop.f32.mrb[0].mxu0
        %4431 = vdwg.mxu0
        %v4432 = vmul.f32 %v4293, 0.35355338
        %v4433 = vpack.c.bf16 %v4432, %v4432
        %v4434 = vpack.c.bf16 %v4362, %v4362
        %v4436 = vsel %vm1159, %v4433, 0
        %v4439 = vsel %vm1159, %v4434, 0
        %4441 = vmatprep.subr.bf16.mxu0 0
        %4442 = vmatpush1.bf16.xpose.msra.mxu0 %v4439
        %4443 = vmatprep.subr.bf16.mxu0 0
        %4444 = vmatpush1.bf16.xpose.msra.mxu0 0
        %4445 = vmatprep.subr.bf16.mxu0 0
        %4446 = vmatpush1.bf16.xpose.msra.mxu0 0
        %4447 = vmatprep.subr.bf16.mxu0 0
        %4448 = vmatpush1.bf16.xpose.msra.mxu0 0
        %4449 = vmatprep.subr.bf16.mxu0 0
        %4450 = vmatpush1.bf16.xpose.msra.mxu0 0
        %4451 = vmatprep.subr.bf16.mxu0 0
        %4452 = vmatpush1.bf16.xpose.msra.mxu0 0
        %4453 = vmatprep.subr.bf16.mxu0 0
        %4454 = vmatpush1.bf16.xpose.msra.mxu0 0
        %4455 = vmatprep.subr.bf16.mxu0 0
        %4456 = vmatpush1.bf16.xpose.msra.mxu0 0
        %4457 = vmatprep.subr.bf16.mxu0 0
        %4458 = vmatpush1.bf16.xpose.msra.mxu0 0
        %4459 = vmatprep.subr.bf16.mxu0 0
        %4460 = vmatpush1.bf16.xpose.msra.mxu0 0
        %4461 = vmatprep.subr.bf16.mxu0 0
        %4462 = vmatpush1.bf16.xpose.msra.mxu0 0
        %4463 = vmatprep.subr.bf16.mxu0 0
        %4464 = vmatpush1.bf16.xpose.msra.mxu0 0
        %4465 = vmatprep.subr.bf16.mxu0 0
        %4466 = vmatpush1.bf16.xpose.msra.mxu0 0
        %4467 = vmatprep.subr.bf16.mxu0 0
        %4468 = vmatpush1.bf16.xpose.msra.mxu0 0
        %4469 = vmatprep.subr.bf16.mxu0 0
        %4470 = vmatpush1.bf16.xpose.msra.mxu0 0
        %4471 = vmatprep.subr.bf16.mxu0 0
        %4472 = vmatpush1.bf16.xpose.msra.mxu0 0
        %4473 = vmatprep.mubr.bf16.mxu0 0
        %4474 = vmatmul.mubr.bf16.gmra.mrb[0].mxu0 %v4436
        %v4475 = vpop.f32.mrb[0].mxu0
        %v4476 = vadd.f32 %v901, %v4475
        %v4477 = vpop.f32.mrb[0].mxu0
        %v4478 = vpop.f32.mrb[0].mxu0
        %v4479 = vpop.f32.mrb[0].mxu0
        %4480 = vdwg.mxu0
        %v4481 = vsel %vm1159, %v4476, -inf
        %4482 = vmax.xlane.f32.xlu0 %v4481
        %v4483 = vpop.xlane.xlu0 %4482
        %v4484 = vsub.f32 %v4476, %v4483
        %v4485 = vmul.f32 %v4484, 1.442695
        %v4486 = vpow.pop %v4485
        %v4487 = vsel %vm1159, %v4486, 0.0
        %4488 = vadd.xlane.f32.xlu0 %v4487
        %v4489 = vpop.xlane.xlu0 %4488
        %v4490 = vrcp.pop %v4489
        %v4491 = vmul.f32 %v4486, %v4490
        %v4492 = vpack.c.bf16 %v4491, %v4491
        %v4493 = vpack.c.bf16 %v4427, %v4427
        %v4495 = vsel %vm1159, %v4492, 0
        %v4498 = vsel %vm1234, %v4493, 0
        %4500 = vmatprep.subr.bf16.mxu0 0
        %4501 = vmatpush1.bf16.msra.mxu0 %v4498
        %4502 = vmatprep.subr.bf16.mxu0 0
        %4503 = vmatpush1.bf16.msra.mxu0 0
        %4504 = vmatprep.subr.bf16.mxu0 0
        %4505 = vmatpush1.bf16.msra.mxu0 0
        %4506 = vmatprep.subr.bf16.mxu0 0
        %4507 = vmatpush1.bf16.msra.mxu0 0
        %4508 = vmatprep.subr.bf16.mxu0 0
        %4509 = vmatpush1.bf16.msra.mxu0 0
        %4510 = vmatprep.subr.bf16.mxu0 0
        %4511 = vmatpush1.bf16.msra.mxu0 0
        %4512 = vmatprep.subr.bf16.mxu0 0
        %4513 = vmatpush1.bf16.msra.mxu0 0
        %4514 = vmatprep.subr.bf16.mxu0 0
        %4515 = vmatpush1.bf16.msra.mxu0 0
        %4516 = vmatprep.subr.bf16.mxu0 0
        %4517 = vmatpush1.bf16.msra.mxu0 0
        %4518 = vmatprep.subr.bf16.mxu0 0
        %4519 = vmatpush1.bf16.msra.mxu0 0
        %4520 = vmatprep.subr.bf16.mxu0 0
        %4521 = vmatpush1.bf16.msra.mxu0 0
        %4522 = vmatprep.subr.bf16.mxu0 0
        %4523 = vmatpush1.bf16.msra.mxu0 0
        %4524 = vmatprep.subr.bf16.mxu0 0
        %4525 = vmatpush1.bf16.msra.mxu0 0
        %4526 = vmatprep.subr.bf16.mxu0 0
        %4527 = vmatpush1.bf16.msra.mxu0 0
        %4528 = vmatprep.subr.bf16.mxu0 0
        %4529 = vmatpush1.bf16.msra.mxu0 0
        %4530 = vmatprep.subr.bf16.mxu0 0
        %4531 = vmatpush1.bf16.msra.mxu0 0
        %4532 = vmatprep.mubr.bf16.mxu0 0
        %4533 = vmatmul.mubr.bf16.gmra.mrb[0].mxu0 %v4495
        %v4534 = vpop.f32.mrb[0].mxu0
        %v4535 = vadd.f32 0.0, %v4534
        %v4536 = vpop.f32.mrb[0].mxu0
        %v4537 = vpop.f32.mrb[0].mxu0
        %v4538 = vpop.f32.mrb[0].mxu0
        %4539 = vdwg.mxu0
        %s4540 = scalar_lea.vmem %s13, 16
        %v4541 = vld [vmem:[%s4540] sm:$0xf]
        %v4542 = vpack.c.bf16 %v4535, %v4535
        %s4543 = scalar_lea.vmem %s7, 80
        %v4544 = vld [vmem:[%s4543] sm:$0xf]
        %v4545 = vld [vmem:[%s4543 + $0x4] sm:$0xf]
        %v4546 = vld [vmem:[%s4543 + $0x8] sm:$0xf]
        %v4547 = vld [vmem:[%s4543 + $0xc] sm:$0xf]
        %s4548 = scalar_lea.vmem %s8, 5
        %v4549 = vld [vmem:[%s4548] sm:$0x1]
        %v4551 = vlaneseq
        %v4552 = vshrl.u32 %v4551, 7
        %v4553 = vsub.s32 0, %v4552
        %v4554 = vrot.slane %v4549, %v4553
        %v4560 = vunpack.c.l.b16 %v4544
        %v4561 = vunpack.c.l.b16 %v4545
        %v4562 = vunpack.c.l.b16 %v4546
        %v4563 = vunpack.c.l.b16 %v4547
        %v4564 = vpack.c.b16 %v4561, %v4560
        %v4565 = vpack.c.b16 %v4563, %v4562
        %4568 = vmatprep.subr.bf16.mxu0 0
        %4569 = vmatpush1.bf16.msra.mxu0 %v4564
        %4570 = vmatprep.subr.bf16.mxu0 0
        %4571 = vmatpush1.bf16.msra.mxu0 %v4565
        %4572 = vmatprep.subr.bf16.mxu0 0
        %4573 = vmatpush1.bf16.msra.mxu0 0
        %4574 = vmatprep.subr.bf16.mxu0 0
        %4575 = vmatpush1.bf16.msra.mxu0 0
        %4576 = vmatprep.subr.bf16.mxu0 0
        %4577 = vmatpush1.bf16.msra.mxu0 0
        %4578 = vmatprep.subr.bf16.mxu0 0
        %4579 = vmatpush1.bf16.msra.mxu0 0
        %4580 = vmatprep.subr.bf16.mxu0 0
        %4581 = vmatpush1.bf16.msra.mxu0 0
        %4582 = vmatprep.subr.bf16.mxu0 0
        %4583 = vmatpush1.bf16.msra.mxu0 0
        %4584 = vmatprep.subr.bf16.mxu0 0
        %4585 = vmatpush1.bf16.msra.mxu0 0
        %4586 = vmatprep.subr.bf16.mxu0 0
        %4587 = vmatpush1.bf16.msra.mxu0 0
        %4588 = vmatprep.subr.bf16.mxu0 0
        %4589 = vmatpush1.bf16.msra.mxu0 0
        %4590 = vmatprep.subr.bf16.mxu0 0
        %4591 = vmatpush1.bf16.msra.mxu0 0
        %4592 = vmatprep.subr.bf16.mxu0 0
        %4593 = vmatpush1.bf16.msra.mxu0 0
        %4594 = vmatprep.subr.bf16.mxu0 0
        %4595 = vmatpush1.bf16.msra.mxu0 0
        %4596 = vmatprep.subr.bf16.mxu0 0
        %4597 = vmatpush1.bf16.msra.mxu0 0
        %4598 = vmatprep.subr.bf16.mxu0 0
        %4599 = vmatpush1.bf16.msra.mxu0 0
        %4600 = vmatprep.mubr.bf16.mxu0 0
        %4601 = vmatmul.mubr.bf16.gmra.mrb[0].mxu0 %v4256
        %v4602 = vpop.f32.mrb[0].mxu0
        %v4603 = vadd.f32 %v4554, %v4602
        %v4604 = vpop.f32.mrb[0].mxu0
        %v4605 = vpop.f32.mrb[0].mxu0
        %v4606 = vpop.f32.mrb[0].mxu0
        %4607 = vdwg.mxu0
        %s4608 = scalar_lea.vmem %s9, 80
        %v4609 = vld [vmem:[%s4608] sm:$0xf]
        %v4610 = vld [vmem:[%s4608 + $0x4] sm:$0xf]
        %v4611 = vld [vmem:[%s4608 + $0x8] sm:$0xf]
        %v4612 = vld [vmem:[%s4608 + $0xc] sm:$0xf]
        %s4613 = scalar_lea.vmem %s10, 5
        %v4614 = vld [vmem:[%s4613] sm:$0x1]
        %v4616 = vlaneseq
        %v4617 = vshrl.u32 %v4616, 7
        %v4618 = vsub.s32 0, %v4617
        %v4619 = vrot.slane %v4614, %v4618
        %v4625 = vunpack.c.l.b16 %v4609
        %v4626 = vunpack.c.l.b16 %v4610
        %v4627 = vunpack.c.l.b16 %v4611
        %v4628 = vunpack.c.l.b16 %v4612
        %v4629 = vpack.c.b16 %v4626, %v4625
        %v4630 = vpack.c.b16 %v4628, %v4627
        %4633 = vmatprep.subr.bf16.mxu0 0
        %4634 = vmatpush1.bf16.msra.mxu0 %v4629
        %4635 = vmatprep.subr.bf16.mxu0 0
        %4636 = vmatpush1.bf16.msra.mxu0 %v4630
        %4637 = vmatprep.subr.bf16.mxu0 0
        %4638 = vmatpush1.bf16.msra.mxu0 0
        %4639 = vmatprep.subr.bf16.mxu0 0
        %4640 = vmatpush1.bf16.msra.mxu0 0
        %4641 = vmatprep.subr.bf16.mxu0 0
        %4642 = vmatpush1.bf16.msra.mxu0 0
        %4643 = vmatprep.subr.bf16.mxu0 0
        %4644 = vmatpush1.bf16.msra.mxu0 0
        %4645 = vmatprep.subr.bf16.mxu0 0
        %4646 = vmatpush1.bf16.msra.mxu0 0
        %4647 = vmatprep.subr.bf16.mxu0 0
        %4648 = vmatpush1.bf16.msra.mxu0 0
        %4649 = vmatprep.subr.bf16.mxu0 0
        %4650 = vmatpush1.bf16.msra.mxu0 0
        %4651 = vmatprep.subr.bf16.mxu0 0
        %4652 = vmatpush1.bf16.msra.mxu0 0
        %4653 = vmatprep.subr.bf16.mxu0 0
        %4654 = vmatpush1.bf16.msra.mxu0 0
        %4655 = vmatprep.subr.bf16.mxu0 0
        %4656 = vmatpush1.bf16.msra.mxu0 0
        %4657 = vmatprep.subr.bf16.mxu0 0
        %4658 = vmatpush1.bf16.msra.mxu0 0
        %4659 = vmatprep.subr.bf16.mxu0 0
        %4660 = vmatpush1.bf16.msra.mxu0 0
        %4661 = vmatprep.subr.bf16.mxu0 0
        %4662 = vmatpush1.bf16.msra.mxu0 0
        %4663 = vmatprep.subr.bf16.mxu0 0
        %4664 = vmatpush1.bf16.msra.mxu0 0
        %4665 = vmatprep.mubr.bf16.mxu0 0
        %4666 = vmatmul.mubr.bf16.gmra.mrb[0].mxu0 %v4325
        %v4667 = vpop.f32.mrb[0].mxu0
        %v4668 = vadd.f32 %v4619, %v4667
        %v4669 = vpop.f32.mrb[0].mxu0
        %v4670 = vpop.f32.mrb[0].mxu0
        %v4671 = vpop.f32.mrb[0].mxu0
        %4672 = vdwg.mxu0
        %s4673 = scalar_lea.vmem %s11, 80
        %v4674 = vld [vmem:[%s4673] sm:$0xf]
        %v4675 = vld [vmem:[%s4673 + $0x4] sm:$0xf]
        %v4676 = vld [vmem:[%s4673 + $0x8] sm:$0xf]
        %v4677 = vld [vmem:[%s4673 + $0xc] sm:$0xf]
        %s4678 = scalar_lea.vmem %s12, 5
        %v4679 = vld [vmem:[%s4678] sm:$0x1]
        %v4681 = vlaneseq
        %v4682 = vshrl.u32 %v4681, 7
        %v4683 = vsub.s32 0, %v4682
        %v4684 = vrot.slane %v4679, %v4683
        %v4690 = vunpack.c.l.b16 %v4674
        %v4691 = vunpack.c.l.b16 %v4675
        %v4692 = vunpack.c.l.b16 %v4676
        %v4693 = vunpack.c.l.b16 %v4677
        %v4694 = vpack.c.b16 %v4691, %v4690
        %v4695 = vpack.c.b16 %v4693, %v4692
        %4698 = vmatprep.subr.bf16.mxu0 0
        %4699 = vmatpush1.bf16.msra.mxu0 %v4694
        %4700 = vmatprep.subr.bf16.mxu0 0
        %4701 = vmatpush1.bf16.msra.mxu0 %v4695
        %4702 = vmatprep.subr.bf16.mxu0 0
        %4703 = vmatpush1.bf16.msra.mxu0 0
        %4704 = vmatprep.subr.bf16.mxu0 0
        %4705 = vmatpush1.bf16.msra.mxu0 0
        %4706 = vmatprep.subr.bf16.mxu0 0
        %4707 = vmatpush1.bf16.msra.mxu0 0
        %4708 = vmatprep.subr.bf16.mxu0 0
        %4709 = vmatpush1.bf16.msra.mxu0 0
        %4710 = vmatprep.subr.bf16.mxu0 0
        %4711 = vmatpush1.bf16.msra.mxu0 0
        %4712 = vmatprep.subr.bf16.mxu0 0
        %4713 = vmatpush1.bf16.msra.mxu0 0
        %4714 = vmatprep.subr.bf16.mxu0 0
        %4715 = vmatpush1.bf16.msra.mxu0 0
        %4716 = vmatprep.subr.bf16.mxu0 0
        %4717 = vmatpush1.bf16.msra.mxu0 0
        %4718 = vmatprep.subr.bf16.mxu0 0
        %4719 = vmatpush1.bf16.msra.mxu0 0
        %4720 = vmatprep.subr.bf16.mxu0 0
        %4721 = vmatpush1.bf16.msra.mxu0 0
        %4722 = vmatprep.subr.bf16.mxu0 0
        %4723 = vmatpush1.bf16.msra.mxu0 0
        %4724 = vmatprep.subr.bf16.mxu0 0
        %4725 = vmatpush1.bf16.msra.mxu0 0
        %4726 = vmatprep.subr.bf16.mxu0 0
        %4727 = vmatpush1.bf16.msra.mxu0 0
        %4728 = vmatprep.subr.bf16.mxu0 0
        %4729 = vmatpush1.bf16.msra.mxu0 0
        %4730 = vmatprep.mubr.bf16.mxu0 0
        %4731 = vmatmul.mubr.bf16.gmra.mrb[0].mxu0 %v4325
        %v4732 = vpop.f32.mrb[0].mxu0
        %v4733 = vadd.f32 %v4684, %v4732
        %v4734 = vpop.f32.mrb[0].mxu0
        %v4735 = vpop.f32.mrb[0].mxu0
        %v4736 = vpop.f32.mrb[0].mxu0
        %4737 = vdwg.mxu0
        %v4738 = vmul.f32 %v4603, 0.35355338
        %v4739 = vpack.c.bf16 %v4738, %v4738
        %v4740 = vpack.c.bf16 %v4668, %v4668
        %v4742 = vsel %vm1159, %v4739, 0
        %v4745 = vsel %vm1159, %v4740, 0
        %4747 = vmatprep.subr.bf16.mxu0 0
        %4748 = vmatpush1.bf16.xpose.msra.mxu0 %v4745
        %4749 = vmatprep.subr.bf16.mxu0 0
        %4750 = vmatpush1.bf16.xpose.msra.mxu0 0
        %4751 = vmatprep.subr.bf16.mxu0 0
        %4752 = vmatpush1.bf16.xpose.msra.mxu0 0
        %4753 = vmatprep.subr.bf16.mxu0 0
        %4754 = vmatpush1.bf16.xpose.msra.mxu0 0
        %4755 = vmatprep.subr.bf16.mxu0 0
        %4756 = vmatpush1.bf16.xpose.msra.mxu0 0
        %4757 = vmatprep.subr.bf16.mxu0 0
        %4758 = vmatpush1.bf16.xpose.msra.mxu0 0
        %4759 = vmatprep.subr.bf16.mxu0 0
        %4760 = vmatpush1.bf16.xpose.msra.mxu0 0
        %4761 = vmatprep.subr.bf16.mxu0 0
        %4762 = vmatpush1.bf16.xpose.msra.mxu0 0
        %4763 = vmatprep.subr.bf16.mxu0 0
        %4764 = vmatpush1.bf16.xpose.msra.mxu0 0
        %4765 = vmatprep.subr.bf16.mxu0 0
        %4766 = vmatpush1.bf16.xpose.msra.mxu0 0
        %4767 = vmatprep.subr.bf16.mxu0 0
        %4768 = vmatpush1.bf16.xpose.msra.mxu0 0
        %4769 = vmatprep.subr.bf16.mxu0 0
        %4770 = vmatpush1.bf16.xpose.msra.mxu0 0
        %4771 = vmatprep.subr.bf16.mxu0 0
        %4772 = vmatpush1.bf16.xpose.msra.mxu0 0
        %4773 = vmatprep.subr.bf16.mxu0 0
        %4774 = vmatpush1.bf16.xpose.msra.mxu0 0
        %4775 = vmatprep.subr.bf16.mxu0 0
        %4776 = vmatpush1.bf16.xpose.msra.mxu0 0
        %4777 = vmatprep.subr.bf16.mxu0 0
        %4778 = vmatpush1.bf16.xpose.msra.mxu0 0
        %4779 = vmatprep.mubr.bf16.mxu0 0
        %4780 = vmatmul.mubr.bf16.gmra.mrb[0].mxu0 %v4742
        %v4781 = vpop.f32.mrb[0].mxu0
        %v4782 = vadd.f32 %v901, %v4781
        %v4783 = vpop.f32.mrb[0].mxu0
        %v4784 = vpop.f32.mrb[0].mxu0
        %v4785 = vpop.f32.mrb[0].mxu0
        %4786 = vdwg.mxu0
        %v4787 = vsel %vm1159, %v4782, -inf
        %4788 = vmax.xlane.f32.xlu0 %v4787
        %v4789 = vpop.xlane.xlu0 %4788
        %v4790 = vsub.f32 %v4782, %v4789
        %v4791 = vmul.f32 %v4790, 1.442695
        %v4792 = vpow.pop %v4791
        %v4793 = vsel %vm1159, %v4792, 0.0
        %4794 = vadd.xlane.f32.xlu0 %v4793
        %v4795 = vpop.xlane.xlu0 %4794
        %v4796 = vrcp.pop %v4795
        %v4797 = vmul.f32 %v4792, %v4796
        %v4798 = vpack.c.bf16 %v4797, %v4797
        %v4799 = vpack.c.bf16 %v4733, %v4733
        %v4801 = vsel %vm1159, %v4798, 0
        %v4804 = vsel %vm1234, %v4799, 0
        %4806 = vmatprep.subr.bf16.mxu0 0
        %4807 = vmatpush1.bf16.msra.mxu0 %v4804
        %4808 = vmatprep.subr.bf16.mxu0 0
        %4809 = vmatpush1.bf16.msra.mxu0 0
        %4810 = vmatprep.subr.bf16.mxu0 0
        %4811 = vmatpush1.bf16.msra.mxu0 0
        %4812 = vmatprep.subr.bf16.mxu0 0
        %4813 = vmatpush1.bf16.msra.mxu0 0
        %4814 = vmatprep.subr.bf16.mxu0 0
        %4815 = vmatpush1.bf16.msra.mxu0 0
        %4816 = vmatprep.subr.bf16.mxu0 0
        %4817 = vmatpush1.bf16.msra.mxu0 0
        %4818 = vmatprep.subr.bf16.mxu0 0
        %4819 = vmatpush1.bf16.msra.mxu0 0
        %4820 = vmatprep.subr.bf16.mxu0 0
        %4821 = vmatpush1.bf16.msra.mxu0 0
        %4822 = vmatprep.subr.bf16.mxu0 0
        %4823 = vmatpush1.bf16.msra.mxu0 0
        %4824 = vmatprep.subr.bf16.mxu0 0
        %4825 = vmatpush1.bf16.msra.mxu0 0
        %4826 = vmatprep.subr.bf16.mxu0 0
        %4827 = vmatpush1.bf16.msra.mxu0 0
        %4828 = vmatprep.subr.bf16.mxu0 0
        %4829 = vmatpush1.bf16.msra.mxu0 0
        %4830 = vmatprep.subr.bf16.mxu0 0
        %4831 = vmatpush1.bf16.msra.mxu0 0
        %4832 = vmatprep.subr.bf16.mxu0 0
        %4833 = vmatpush1.bf16.msra.mxu0 0
        %4834 = vmatprep.subr.bf16.mxu0 0
        %4835 = vmatpush1.bf16.msra.mxu0 0
        %4836 = vmatprep.subr.bf16.mxu0 0
        %4837 = vmatpush1.bf16.msra.mxu0 0
        %4838 = vmatprep.mubr.bf16.mxu0 0
        %4839 = vmatmul.mubr.bf16.gmra.mrb[0].mxu0 %v4801
        %v4840 = vpop.f32.mrb[0].mxu0
        %v4841 = vadd.f32 0.0, %v4840
        %v4842 = vpop.f32.mrb[0].mxu0
        %v4843 = vpop.f32.mrb[0].mxu0
        %v4844 = vpop.f32.mrb[0].mxu0
        %4845 = vdwg.mxu0
        %s4846 = scalar_lea.vmem %s13, 20
        %v4847 = vld [vmem:[%s4846] sm:$0xf]
        %v4848 = vpack.c.bf16 %v4841, %v4841
        %v4850 = vsel %vm1159, %v4848, 0
        %v4853 = vsel %vm1234, %v4847, 0
        %4855 = vmatprep.subr.bf16.mxu0 0
        %4856 = vmatpush1.bf16.msra.mxu0 %v4853
        %4857 = vmatprep.subr.bf16.mxu0 0
        %4858 = vmatpush1.bf16.msra.mxu0 0
        %4859 = vmatprep.subr.bf16.mxu0 0
        %4860 = vmatpush1.bf16.msra.mxu0 0
        %4861 = vmatprep.subr.bf16.mxu0 0
        %4862 = vmatpush1.bf16.msra.mxu0 0
        %4863 = vmatprep.subr.bf16.mxu0 0
        %4864 = vmatpush1.bf16.msra.mxu0 0
        %4865 = vmatprep.subr.bf16.mxu0 0
        %4866 = vmatpush1.bf16.msra.mxu0 0
        %4867 = vmatprep.subr.bf16.mxu0 0
        %4868 = vmatpush1.bf16.msra.mxu0 0
        %4869 = vmatprep.subr.bf16.mxu0 0
        %4870 = vmatpush1.bf16.msra.mxu0 0
        %4871 = vmatprep.subr.bf16.mxu0 0
        %4872 = vmatpush1.bf16.msra.mxu0 0
        %4873 = vmatprep.subr.bf16.mxu0 0
        %4874 = vmatpush1.bf16.msra.mxu0 0
        %4875 = vmatprep.subr.bf16.mxu0 0
        %4876 = vmatpush1.bf16.msra.mxu0 0
        %4877 = vmatprep.subr.bf16.mxu0 0
        %4878 = vmatpush1.bf16.msra.mxu0 0
        %4879 = vmatprep.subr.bf16.mxu0 0
        %4880 = vmatpush1.bf16.msra.mxu0 0
        %4881 = vmatprep.subr.bf16.mxu0 0
        %4882 = vmatpush1.bf16.msra.mxu0 0
        %4883 = vmatprep.subr.bf16.mxu0 0
        %4884 = vmatpush1.bf16.msra.mxu0 0
        %4885 = vmatprep.subr.bf16.mxu0 0
        %4886 = vmatpush1.bf16.msra.mxu0 0
        %4887 = vmatprep.mubr.bf16.mxu0 0
        %4888 = vmatmul.mubr.bf16.gmra.mrb[0].mxu0 %v4850
        %v4889 = vpop.f32.mrb[0].mxu0
        %v4890 = vadd.f32 0.0, %v4889
        %v4891 = vpop.f32.mrb[0].mxu0
        %v4892 = vpop.f32.mrb[0].mxu0
        %v4893 = vpop.f32.mrb[0].mxu0
        %4894 = vdwg.mxu0
        %v4896 = vsel %vm1159, %v4542, 0
        %v4899 = vsel %vm1234, %v4541, 0
        %4901 = vmatprep.subr.bf16.mxu0 0
        %4902 = vmatpush1.bf16.msra.mxu0 %v4899
        %4903 = vmatprep.subr.bf16.mxu0 0
        %4904 = vmatpush1.bf16.msra.mxu0 0
        %4905 = vmatprep.subr.bf16.mxu0 0
        %4906 = vmatpush1.bf16.msra.mxu0 0
        %4907 = vmatprep.subr.bf16.mxu0 0
        %4908 = vmatpush1.bf16.msra.mxu0 0
        %4909 = vmatprep.subr.bf16.mxu0 0
        %4910 = vmatpush1.bf16.msra.mxu0 0
        %4911 = vmatprep.subr.bf16.mxu0 0
        %4912 = vmatpush1.bf16.msra.mxu0 0
        %4913 = vmatprep.subr.bf16.mxu0 0
        %4914 = vmatpush1.bf16.msra.mxu0 0
        %4915 = vmatprep.subr.bf16.mxu0 0
        %4916 = vmatpush1.bf16.msra.mxu0 0
        %4917 = vmatprep.subr.bf16.mxu0 0
        %4918 = vmatpush1.bf16.msra.mxu0 0
        %4919 = vmatprep.subr.bf16.mxu0 0
        %4920 = vmatpush1.bf16.msra.mxu0 0
        %4921 = vmatprep.subr.bf16.mxu0 0
        %4922 = vmatpush1.bf16.msra.mxu0 0
        %4923 = vmatprep.subr.bf16.mxu0 0
        %4924 = vmatpush1.bf16.msra.mxu0 0
        %4925 = vmatprep.subr.bf16.mxu0 0
        %4926 = vmatpush1.bf16.msra.mxu0 0
        %4927 = vmatprep.subr.bf16.mxu0 0
        %4928 = vmatpush1.bf16.msra.mxu0 0
        %4929 = vmatprep.subr.bf16.mxu0 0
        %4930 = vmatpush1.bf16.msra.mxu0 0
        %4931 = vmatprep.subr.bf16.mxu0 0
        %4932 = vmatpush1.bf16.msra.mxu0 0
        %4933 = vmatprep.mubr.bf16.mxu0 0
        %4934 = vmatmul.mubr.bf16.gmra.mrb[0].mxu0 %v4896
        %v4935 = vpop.f32.mrb[0].mxu0
        %v4936 = vadd.f32 %v4890, %v4935
        %v4937 = vpop.f32.mrb[0].mxu0
        %v4938 = vpop.f32.mrb[0].mxu0
        %v4939 = vpop.f32.mrb[0].mxu0
        %4940 = vdwg.mxu0
        %s4941 = scalar_lea.vmem %s7, 96
        %v4942 = vld [vmem:[%s4941] sm:$0xf]
        %v4943 = vld [vmem:[%s4941 + $0x4] sm:$0xf]
        %v4944 = vld [vmem:[%s4941 + $0x8] sm:$0xf]
        %v4945 = vld [vmem:[%s4941 + $0xc] sm:$0xf]
        %s4946 = scalar_lea.vmem %s8, 6
        %v4947 = vld [vmem:[%s4946] sm:$0x1]
        %v4949 = vlaneseq
        %v4950 = vshrl.u32 %v4949, 7
        %v4951 = vsub.s32 0, %v4950
        %v4952 = vrot.slane %v4947, %v4951
        %v4958 = vunpack.c.l.b16 %v4942
        %v4959 = vunpack.c.l.b16 %v4943
        %v4960 = vunpack.c.l.b16 %v4944
        %v4961 = vunpack.c.l.b16 %v4945
        %v4962 = vpack.c.b16 %v4959, %v4958
        %v4963 = vpack.c.b16 %v4961, %v4960
        %4966 = vmatprep.subr.bf16.mxu0 0
        %4967 = vmatpush1.bf16.msra.mxu0 %v4962
        %4968 = vmatprep.subr.bf16.mxu0 0
        %4969 = vmatpush1.bf16.msra.mxu0 %v4963
        %4970 = vmatprep.subr.bf16.mxu0 0
        %4971 = vmatpush1.bf16.msra.mxu0 0
        %4972 = vmatprep.subr.bf16.mxu0 0
        %4973 = vmatpush1.bf16.msra.mxu0 0
        %4974 = vmatprep.subr.bf16.mxu0 0
        %4975 = vmatpush1.bf16.msra.mxu0 0
        %4976 = vmatprep.subr.bf16.mxu0 0
        %4977 = vmatpush1.bf16.msra.mxu0 0
        %4978 = vmatprep.subr.bf16.mxu0 0
        %4979 = vmatpush1.bf16.msra.mxu0 0
        %4980 = vmatprep.subr.bf16.mxu0 0
        %4981 = vmatpush1.bf16.msra.mxu0 0
        %4982 = vmatprep.subr.bf16.mxu0 0
        %4983 = vmatpush1.bf16.msra.mxu0 0
        %4984 = vmatprep.subr.bf16.mxu0 0
        %4985 = vmatpush1.bf16.msra.mxu0 0
        %4986 = vmatprep.subr.bf16.mxu0 0
        %4987 = vmatpush1.bf16.msra.mxu0 0
        %4988 = vmatprep.subr.bf16.mxu0 0
        %4989 = vmatpush1.bf16.msra.mxu0 0
        %4990 = vmatprep.subr.bf16.mxu0 0
        %4991 = vmatpush1.bf16.msra.mxu0 0
        %4992 = vmatprep.subr.bf16.mxu0 0
        %4993 = vmatpush1.bf16.msra.mxu0 0
        %4994 = vmatprep.subr.bf16.mxu0 0
        %4995 = vmatpush1.bf16.msra.mxu0 0
        %4996 = vmatprep.subr.bf16.mxu0 0
        %4997 = vmatpush1.bf16.msra.mxu0 0
        %4998 = vmatprep.mubr.bf16.mxu0 0
        %4999 = vmatmul.mubr.bf16.gmra.mrb[0].mxu0 %v4256
        %v5000 = vpop.f32.mrb[0].mxu0
        %v5001 = vadd.f32 %v4952, %v5000
        %v5002 = vpop.f32.mrb[0].mxu0
        %v5003 = vpop.f32.mrb[0].mxu0
        %v5004 = vpop.f32.mrb[0].mxu0
        %5005 = vdwg.mxu0
        %s5006 = scalar_lea.vmem %s9, 96
        %v5007 = vld [vmem:[%s5006] sm:$0xf]
        %v5008 = vld [vmem:[%s5006 + $0x4] sm:$0xf]
        %v5009 = vld [vmem:[%s5006 + $0x8] sm:$0xf]
        %v5010 = vld [vmem:[%s5006 + $0xc] sm:$0xf]
        %s5011 = scalar_lea.vmem %s10, 6
        %v5012 = vld [vmem:[%s5011] sm:$0x1]
        %v5014 = vlaneseq
        %v5015 = vshrl.u32 %v5014, 7
        %v5016 = vsub.s32 0, %v5015
        %v5017 = vrot.slane %v5012, %v5016
        %v5023 = vunpack.c.l.b16 %v5007
        %v5024 = vunpack.c.l.b16 %v5008
        %v5025 = vunpack.c.l.b16 %v5009
        %v5026 = vunpack.c.l.b16 %v5010
        %v5027 = vpack.c.b16 %v5024, %v5023
        %v5028 = vpack.c.b16 %v5026, %v5025
        %5031 = vmatprep.subr.bf16.mxu0 0
        %5032 = vmatpush1.bf16.msra.mxu0 %v5027
        %5033 = vmatprep.subr.bf16.mxu0 0
        %5034 = vmatpush1.bf16.msra.mxu0 %v5028
        %5035 = vmatprep.subr.bf16.mxu0 0
        %5036 = vmatpush1.bf16.msra.mxu0 0
        %5037 = vmatprep.subr.bf16.mxu0 0
        %5038 = vmatpush1.bf16.msra.mxu0 0
        %5039 = vmatprep.subr.bf16.mxu0 0
        %5040 = vmatpush1.bf16.msra.mxu0 0
        %5041 = vmatprep.subr.bf16.mxu0 0
        %5042 = vmatpush1.bf16.msra.mxu0 0
        %5043 = vmatprep.subr.bf16.mxu0 0
        %5044 = vmatpush1.bf16.msra.mxu0 0
        %5045 = vmatprep.subr.bf16.mxu0 0
        %5046 = vmatpush1.bf16.msra.mxu0 0
        %5047 = vmatprep.subr.bf16.mxu0 0
        %5048 = vmatpush1.bf16.msra.mxu0 0
        %5049 = vmatprep.subr.bf16.mxu0 0
        %5050 = vmatpush1.bf16.msra.mxu0 0
        %5051 = vmatprep.subr.bf16.mxu0 0
        %5052 = vmatpush1.bf16.msra.mxu0 0
        %5053 = vmatprep.subr.bf16.mxu0 0
        %5054 = vmatpush1.bf16.msra.mxu0 0
        %5055 = vmatprep.subr.bf16.mxu0 0
        %5056 = vmatpush1.bf16.msra.mxu0 0
        %5057 = vmatprep.subr.bf16.mxu0 0
        %5058 = vmatpush1.bf16.msra.mxu0 0
        %5059 = vmatprep.subr.bf16.mxu0 0
        %5060 = vmatpush1.bf16.msra.mxu0 0
        %5061 = vmatprep.subr.bf16.mxu0 0
        %5062 = vmatpush1.bf16.msra.mxu0 0
        %5063 = vmatprep.mubr.bf16.mxu0 0
        %5064 = vmatmul.mubr.bf16.gmra.mrb[0].mxu0 %v4325
        %v5065 = vpop.f32.mrb[0].mxu0
        %v5066 = vadd.f32 %v5017, %v5065
        %v5067 = vpop.f32.mrb[0].mxu0
        %v5068 = vpop.f32.mrb[0].mxu0
        %v5069 = vpop.f32.mrb[0].mxu0
        %5070 = vdwg.mxu0
        %s5071 = scalar_lea.vmem %s11, 96
        %v5072 = vld [vmem:[%s5071] sm:$0xf]
        %v5073 = vld [vmem:[%s5071 + $0x4] sm:$0xf]
        %v5074 = vld [vmem:[%s5071 + $0x8] sm:$0xf]
        %v5075 = vld [vmem:[%s5071 + $0xc] sm:$0xf]
        %s5076 = scalar_lea.vmem %s12, 6
        %v5077 = vld [vmem:[%s5076] sm:$0x1]
        %v5079 = vlaneseq
        %v5080 = vshrl.u32 %v5079, 7
        %v5081 = vsub.s32 0, %v5080
        %v5082 = vrot.slane %v5077, %v5081
        %v5088 = vunpack.c.l.b16 %v5072
        %v5089 = vunpack.c.l.b16 %v5073
        %v5090 = vunpack.c.l.b16 %v5074
        %v5091 = vunpack.c.l.b16 %v5075
        %v5092 = vpack.c.b16 %v5089, %v5088
        %v5093 = vpack.c.b16 %v5091, %v5090
        %5096 = vmatprep.subr.bf16.mxu0 0
        %5097 = vmatpush1.bf16.msra.mxu0 %v5092
        %5098 = vmatprep.subr.bf16.mxu0 0
        %5099 = vmatpush1.bf16.msra.mxu0 %v5093
        %5100 = vmatprep.subr.bf16.mxu0 0
        %5101 = vmatpush1.bf16.msra.mxu0 0
        %5102 = vmatprep.subr.bf16.mxu0 0
        %5103 = vmatpush1.bf16.msra.mxu0 0
        %5104 = vmatprep.subr.bf16.mxu0 0
        %5105 = vmatpush1.bf16.msra.mxu0 0
        %5106 = vmatprep.subr.bf16.mxu0 0
        %5107 = vmatpush1.bf16.msra.mxu0 0
        %5108 = vmatprep.subr.bf16.mxu0 0
        %5109 = vmatpush1.bf16.msra.mxu0 0
        %5110 = vmatprep.subr.bf16.mxu0 0
        %5111 = vmatpush1.bf16.msra.mxu0 0
        %5112 = vmatprep.subr.bf16.mxu0 0
        %5113 = vmatpush1.bf16.msra.mxu0 0
        %5114 = vmatprep.subr.bf16.mxu0 0
        %5115 = vmatpush1.bf16.msra.mxu0 0
        %5116 = vmatprep.subr.bf16.mxu0 0
        %5117 = vmatpush1.bf16.msra.mxu0 0
        %5118 = vmatprep.subr.bf16.mxu0 0
        %5119 = vmatpush1.bf16.msra.mxu0 0
        %5120 = vmatprep.subr.bf16.mxu0 0
        %5121 = vmatpush1.bf16.msra.mxu0 0
        %5122 = vmatprep.subr.bf16.mxu0 0
        %5123 = vmatpush1.bf16.msra.mxu0 0
        %5124 = vmatprep.subr.bf16.mxu0 0
        %5125 = vmatpush1.bf16.msra.mxu0 0
        %5126 = vmatprep.subr.bf16.mxu0 0
        %5127 = vmatpush1.bf16.msra.mxu0 0
        %5128 = vmatprep.mubr.bf16.mxu0 0
        %5129 = vmatmul.mubr.bf16.gmra.mrb[0].mxu0 %v4325
        %v5130 = vpop.f32.mrb[0].mxu0
        %v5131 = vadd.f32 %v5082, %v5130
        %v5132 = vpop.f32.mrb[0].mxu0
        %v5133 = vpop.f32.mrb[0].mxu0
        %v5134 = vpop.f32.mrb[0].mxu0
        %5135 = vdwg.mxu0
        %v5136 = vmul.f32 %v5001, 0.35355338
        %v5137 = vpack.c.bf16 %v5136, %v5136
        %v5138 = vpack.c.bf16 %v5066, %v5066
        %v5140 = vsel %vm1159, %v5137, 0
        %v5143 = vsel %vm1159, %v5138, 0
        %5145 = vmatprep.subr.bf16.mxu0 0
        %5146 = vmatpush1.bf16.xpose.msra.mxu0 %v5143
        %5147 = vmatprep.subr.bf16.mxu0 0
        %5148 = vmatpush1.bf16.xpose.msra.mxu0 0
        %5149 = vmatprep.subr.bf16.mxu0 0
        %5150 = vmatpush1.bf16.xpose.msra.mxu0 0
        %5151 = vmatprep.subr.bf16.mxu0 0
        %5152 = vmatpush1.bf16.xpose.msra.mxu0 0
        %5153 = vmatprep.subr.bf16.mxu0 0
        %5154 = vmatpush1.bf16.xpose.msra.mxu0 0
        %5155 = vmatprep.subr.bf16.mxu0 0
        %5156 = vmatpush1.bf16.xpose.msra.mxu0 0
        %5157 = vmatprep.subr.bf16.mxu0 0
        %5158 = vmatpush1.bf16.xpose.msra.mxu0 0
        %5159 = vmatprep.subr.bf16.mxu0 0
        %5160 = vmatpush1.bf16.xpose.msra.mxu0 0
        %5161 = vmatprep.subr.bf16.mxu0 0
        %5162 = vmatpush1.bf16.xpose.msra.mxu0 0
        %5163 = vmatprep.subr.bf16.mxu0 0
        %5164 = vmatpush1.bf16.xpose.msra.mxu0 0
        %5165 = vmatprep.subr.bf16.mxu0 0
        %5166 = vmatpush1.bf16.xpose.msra.mxu0 0
        %5167 = vmatprep.subr.bf16.mxu0 0
        %5168 = vmatpush1.bf16.xpose.msra.mxu0 0
        %5169 = vmatprep.subr.bf16.mxu0 0
        %5170 = vmatpush1.bf16.xpose.msra.mxu0 0
        %5171 = vmatprep.subr.bf16.mxu0 0
        %5172 = vmatpush1.bf16.xpose.msra.mxu0 0
        %5173 = vmatprep.subr.bf16.mxu0 0
        %5174 = vmatpush1.bf16.xpose.msra.mxu0 0
        %5175 = vmatprep.subr.bf16.mxu0 0
        %5176 = vmatpush1.bf16.xpose.msra.mxu0 0
        %5177 = vmatprep.mubr.bf16.mxu0 0
        %5178 = vmatmul.mubr.bf16.gmra.mrb[0].mxu0 %v5140
        %v5179 = vpop.f32.mrb[0].mxu0
        %v5180 = vadd.f32 %v901, %v5179
        %v5181 = vpop.f32.mrb[0].mxu0
        %v5182 = vpop.f32.mrb[0].mxu0
        %v5183 = vpop.f32.mrb[0].mxu0
        %5184 = vdwg.mxu0
        %v5185 = vsel %vm1159, %v5180, -inf
        %5186 = vmax.xlane.f32.xlu0 %v5185
        %v5187 = vpop.xlane.xlu0 %5186
        %v5188 = vsub.f32 %v5180, %v5187
        %v5189 = vmul.f32 %v5188, 1.442695
        %v5190 = vpow.pop %v5189
        %v5191 = vsel %vm1159, %v5190, 0.0
        %5192 = vadd.xlane.f32.xlu0 %v5191
        %v5193 = vpop.xlane.xlu0 %5192
        %v5194 = vrcp.pop %v5193
        %v5195 = vmul.f32 %v5190, %v5194
        %v5196 = vpack.c.bf16 %v5195, %v5195
        %v5197 = vpack.c.bf16 %v5131, %v5131
        %v5199 = vsel %vm1159, %v5196, 0
        %v5202 = vsel %vm1234, %v5197, 0
        %5204 = vmatprep.subr.bf16.mxu0 0
        %5205 = vmatpush1.bf16.msra.mxu0 %v5202
        %5206 = vmatprep.subr.bf16.mxu0 0
        %5207 = vmatpush1.bf16.msra.mxu0 0
        %5208 = vmatprep.subr.bf16.mxu0 0
        %5209 = vmatpush1.bf16.msra.mxu0 0
        %5210 = vmatprep.subr.bf16.mxu0 0
        %5211 = vmatpush1.bf16.msra.mxu0 0
        %5212 = vmatprep.subr.bf16.mxu0 0
        %5213 = vmatpush1.bf16.msra.mxu0 0
        %5214 = vmatprep.subr.bf16.mxu0 0
        %5215 = vmatpush1.bf16.msra.mxu0 0
        %5216 = vmatprep.subr.bf16.mxu0 0
        %5217 = vmatpush1.bf16.msra.mxu0 0
        %5218 = vmatprep.subr.bf16.mxu0 0
        %5219 = vmatpush1.bf16.msra.mxu0 0
        %5220 = vmatprep.subr.bf16.mxu0 0
        %5221 = vmatpush1.bf16.msra.mxu0 0
        %5222 = vmatprep.subr.bf16.mxu0 0
        %5223 = vmatpush1.bf16.msra.mxu0 0
        %5224 = vmatprep.subr.bf16.mxu0 0
        %5225 = vmatpush1.bf16.msra.mxu0 0
        %5226 = vmatprep.subr.bf16.mxu0 0
        %5227 = vmatpush1.bf16.msra.mxu0 0
        %5228 = vmatprep.subr.bf16.mxu0 0
        %5229 = vmatpush1.bf16.msra.mxu0 0
        %5230 = vmatprep.subr.bf16.mxu0 0
        %5231 = vmatpush1.bf16.msra.mxu0 0
        %5232 = vmatprep.subr.bf16.mxu0 0
        %5233 = vmatpush1.bf16.msra.mxu0 0
        %5234 = vmatprep.subr.bf16.mxu0 0
        %5235 = vmatpush1.bf16.msra.mxu0 0
        %5236 = vmatprep.mubr.bf16.mxu0 0
        %5237 = vmatmul.mubr.bf16.gmra.mrb[0].mxu0 %v5199
        %v5238 = vpop.f32.mrb[0].mxu0
        %v5239 = vadd.f32 0.0, %v5238
        %v5240 = vpop.f32.mrb[0].mxu0
        %v5241 = vpop.f32.mrb[0].mxu0
        %v5242 = vpop.f32.mrb[0].mxu0
        %5243 = vdwg.mxu0
        %s5244 = scalar_lea.vmem %s13, 24
        %v5245 = vld [vmem:[%s5244] sm:$0xf]
        %v5246 = vpack.c.bf16 %v5239, %v5239
        %v5248 = vsel %vm1159, %v5246, 0
        %v5251 = vsel %vm1234, %v5245, 0
        %5253 = vmatprep.subr.bf16.mxu0 0
        %5254 = vmatpush1.bf16.msra.mxu0 %v5251
        %5255 = vmatprep.subr.bf16.mxu0 0
        %5256 = vmatpush1.bf16.msra.mxu0 0
        %5257 = vmatprep.subr.bf16.mxu0 0
        %5258 = vmatpush1.bf16.msra.mxu0 0
        %5259 = vmatprep.subr.bf16.mxu0 0
        %5260 = vmatpush1.bf16.msra.mxu0 0
        %5261 = vmatprep.subr.bf16.mxu0 0
        %5262 = vmatpush1.bf16.msra.mxu0 0
        %5263 = vmatprep.subr.bf16.mxu0 0
        %5264 = vmatpush1.bf16.msra.mxu0 0
        %5265 = vmatprep.subr.bf16.mxu0 0
        %5266 = vmatpush1.bf16.msra.mxu0 0
        %5267 = vmatprep.subr.bf16.mxu0 0
        %5268 = vmatpush1.bf16.msra.mxu0 0
        %5269 = vmatprep.subr.bf16.mxu0 0
        %5270 = vmatpush1.bf16.msra.mxu0 0
        %5271 = vmatprep.subr.bf16.mxu0 0
        %5272 = vmatpush1.bf16.msra.mxu0 0
        %5273 = vmatprep.subr.bf16.mxu0 0
        %5274 = vmatpush1.bf16.msra.mxu0 0
        %5275 = vmatprep.subr.bf16.mxu0 0
        %5276 = vmatpush1.bf16.msra.mxu0 0
        %5277 = vmatprep.subr.bf16.mxu0 0
        %5278 = vmatpush1.bf16.msra.mxu0 0
        %5279 = vmatprep.subr.bf16.mxu0 0
        %5280 = vmatpush1.bf16.msra.mxu0 0
        %5281 = vmatprep.subr.bf16.mxu0 0
        %5282 = vmatpush1.bf16.msra.mxu0 0
        %5283 = vmatprep.subr.bf16.mxu0 0
        %5284 = vmatpush1.bf16.msra.mxu0 0
        %5285 = vmatprep.mubr.bf16.mxu0 0
        %5286 = vmatmul.mubr.bf16.gmra.mrb[0].mxu0 %v5248
        %v5287 = vpop.f32.mrb[0].mxu0
        %v5288 = vadd.f32 0.0, %v5287
        %v5289 = vpop.f32.mrb[0].mxu0
        %v5290 = vpop.f32.mrb[0].mxu0
        %v5291 = vpop.f32.mrb[0].mxu0
        %5292 = vdwg.mxu0
        %v5293 = vadd.f32 %v4936, %v5288
        %s5294 = scalar_lea.vmem %s7, 112
        %v5295 = vld [vmem:[%s5294] sm:$0xf]
        %v5296 = vld [vmem:[%s5294 + $0x4] sm:$0xf]
        %v5297 = vld [vmem:[%s5294 + $0x8] sm:$0xf]
        %v5298 = vld [vmem:[%s5294 + $0xc] sm:$0xf]
        %s5299 = scalar_lea.vmem %s8, 7
        %v5300 = vld [vmem:[%s5299] sm:$0x1]
        %v5302 = vlaneseq
        %v5303 = vshrl.u32 %v5302, 7
        %v5304 = vsub.s32 0, %v5303
        %v5305 = vrot.slane %v5300, %v5304
        %v5311 = vunpack.c.l.b16 %v5295
        %v5312 = vunpack.c.l.b16 %v5296
        %v5313 = vunpack.c.l.b16 %v5297
        %v5314 = vunpack.c.l.b16 %v5298
        %v5315 = vpack.c.b16 %v5312, %v5311
        %v5316 = vpack.c.b16 %v5314, %v5313
        %5319 = vmatprep.subr.bf16.mxu0 0
        %5320 = vmatpush1.bf16.msra.mxu0 %v5315
        %5321 = vmatprep.subr.bf16.mxu0 0
        %5322 = vmatpush1.bf16.msra.mxu0 %v5316
        %5323 = vmatprep.subr.bf16.mxu0 0
        %5324 = vmatpush1.bf16.msra.mxu0 0
        %5325 = vmatprep.subr.bf16.mxu0 0
        %5326 = vmatpush1.bf16.msra.mxu0 0
        %5327 = vmatprep.subr.bf16.mxu0 0
        %5328 = vmatpush1.bf16.msra.mxu0 0
        %5329 = vmatprep.subr.bf16.mxu0 0
        %5330 = vmatpush1.bf16.msra.mxu0 0
        %5331 = vmatprep.subr.bf16.mxu0 0
        %5332 = vmatpush1.bf16.msra.mxu0 0
        %5333 = vmatprep.subr.bf16.mxu0 0
        %5334 = vmatpush1.bf16.msra.mxu0 0
        %5335 = vmatprep.subr.bf16.mxu0 0
        %5336 = vmatpush1.bf16.msra.mxu0 0
        %5337 = vmatprep.subr.bf16.mxu0 0
        %5338 = vmatpush1.bf16.msra.mxu0 0
        %5339 = vmatprep.subr.bf16.mxu0 0
        %5340 = vmatpush1.bf16.msra.mxu0 0
        %5341 = vmatprep.subr.bf16.mxu0 0
        %5342 = vmatpush1.bf16.msra.mxu0 0
        %5343 = vmatprep.subr.bf16.mxu0 0
        %5344 = vmatpush1.bf16.msra.mxu0 0
        %5345 = vmatprep.subr.bf16.mxu0 0
        %5346 = vmatpush1.bf16.msra.mxu0 0
        %5347 = vmatprep.subr.bf16.mxu0 0
        %5348 = vmatpush1.bf16.msra.mxu0 0
        %5349 = vmatprep.subr.bf16.mxu0 0
        %5350 = vmatpush1.bf16.msra.mxu0 0
        %5351 = vmatprep.mubr.bf16.mxu0 0
        %5352 = vmatmul.mubr.bf16.gmra.mrb[0].mxu0 %v4256
        %v5353 = vpop.f32.mrb[0].mxu0
        %v5354 = vadd.f32 %v5305, %v5353
        %v5355 = vpop.f32.mrb[0].mxu0
        %v5356 = vpop.f32.mrb[0].mxu0
        %v5357 = vpop.f32.mrb[0].mxu0
        %5358 = vdwg.mxu0
        %s5359 = scalar_lea.vmem %s9, 112
        %v5360 = vld [vmem:[%s5359] sm:$0xf]
        %v5361 = vld [vmem:[%s5359 + $0x4] sm:$0xf]
        %v5362 = vld [vmem:[%s5359 + $0x8] sm:$0xf]
        %v5363 = vld [vmem:[%s5359 + $0xc] sm:$0xf]
        %s5364 = scalar_lea.vmem %s10, 7
        %v5365 = vld [vmem:[%s5364] sm:$0x1]
        %v5367 = vlaneseq
        %v5368 = vshrl.u32 %v5367, 7
        %v5369 = vsub.s32 0, %v5368
        %v5370 = vrot.slane %v5365, %v5369
        %v5376 = vunpack.c.l.b16 %v5360
        %v5377 = vunpack.c.l.b16 %v5361
        %v5378 = vunpack.c.l.b16 %v5362
        %v5379 = vunpack.c.l.b16 %v5363
        %v5380 = vpack.c.b16 %v5377, %v5376
        %v5381 = vpack.c.b16 %v5379, %v5378
        %5384 = vmatprep.subr.bf16.mxu0 0
        %5385 = vmatpush1.bf16.msra.mxu0 %v5380
        %5386 = vmatprep.subr.bf16.mxu0 0
        %5387 = vmatpush1.bf16.msra.mxu0 %v5381
        %5388 = vmatprep.subr.bf16.mxu0 0
        %5389 = vmatpush1.bf16.msra.mxu0 0
        %5390 = vmatprep.subr.bf16.mxu0 0
        %5391 = vmatpush1.bf16.msra.mxu0 0
        %5392 = vmatprep.subr.bf16.mxu0 0
        %5393 = vmatpush1.bf16.msra.mxu0 0
        %5394 = vmatprep.subr.bf16.mxu0 0
        %5395 = vmatpush1.bf16.msra.mxu0 0
        %5396 = vmatprep.subr.bf16.mxu0 0
        %5397 = vmatpush1.bf16.msra.mxu0 0
        %5398 = vmatprep.subr.bf16.mxu0 0
        %5399 = vmatpush1.bf16.msra.mxu0 0
        %5400 = vmatprep.subr.bf16.mxu0 0
        %5401 = vmatpush1.bf16.msra.mxu0 0
        %5402 = vmatprep.subr.bf16.mxu0 0
        %5403 = vmatpush1.bf16.msra.mxu0 0
        %5404 = vmatprep.subr.bf16.mxu0 0
        %5405 = vmatpush1.bf16.msra.mxu0 0
        %5406 = vmatprep.subr.bf16.mxu0 0
        %5407 = vmatpush1.bf16.msra.mxu0 0
        %5408 = vmatprep.subr.bf16.mxu0 0
        %5409 = vmatpush1.bf16.msra.mxu0 0
        %5410 = vmatprep.subr.bf16.mxu0 0
        %5411 = vmatpush1.bf16.msra.mxu0 0
        %5412 = vmatprep.subr.bf16.mxu0 0
        %5413 = vmatpush1.bf16.msra.mxu0 0
        %5414 = vmatprep.subr.bf16.mxu0 0
        %5415 = vmatpush1.bf16.msra.mxu0 0
        %5416 = vmatprep.mubr.bf16.mxu0 0
        %5417 = vmatmul.mubr.bf16.gmra.mrb[0].mxu0 %v4325
        %v5418 = vpop.f32.mrb[0].mxu0
        %v5419 = vadd.f32 %v5370, %v5418
        %v5420 = vpop.f32.mrb[0].mxu0
        %v5421 = vpop.f32.mrb[0].mxu0
        %v5422 = vpop.f32.mrb[0].mxu0
        %5423 = vdwg.mxu0
        %s5424 = scalar_lea.vmem %s11, 112
        %v5425 = vld [vmem:[%s5424] sm:$0xf]
        %v5426 = vld [vmem:[%s5424 + $0x4] sm:$0xf]
        %v5427 = vld [vmem:[%s5424 + $0x8] sm:$0xf]
        %v5428 = vld [vmem:[%s5424 + $0xc] sm:$0xf]
        %s5429 = scalar_lea.vmem %s12, 7
        %v5430 = vld [vmem:[%s5429] sm:$0x1]
        %v5432 = vlaneseq
        %v5433 = vshrl.u32 %v5432, 7
        %v5434 = vsub.s32 0, %v5433
        %v5435 = vrot.slane %v5430, %v5434
        %v5441 = vunpack.c.l.b16 %v5425
        %v5442 = vunpack.c.l.b16 %v5426
        %v5443 = vunpack.c.l.b16 %v5427
        %v5444 = vunpack.c.l.b16 %v5428
        %v5445 = vpack.c.b16 %v5442, %v5441
        %v5446 = vpack.c.b16 %v5444, %v5443
        %5449 = vmatprep.subr.bf16.mxu0 0
        %5450 = vmatpush1.bf16.msra.mxu0 %v5445
        %5451 = vmatprep.subr.bf16.mxu0 0
        %5452 = vmatpush1.bf16.msra.mxu0 %v5446
        %5453 = vmatprep.subr.bf16.mxu0 0
        %5454 = vmatpush1.bf16.msra.mxu0 0
        %5455 = vmatprep.subr.bf16.mxu0 0
        %5456 = vmatpush1.bf16.msra.mxu0 0
        %5457 = vmatprep.subr.bf16.mxu0 0
        %5458 = vmatpush1.bf16.msra.mxu0 0
        %5459 = vmatprep.subr.bf16.mxu0 0
        %5460 = vmatpush1.bf16.msra.mxu0 0
        %5461 = vmatprep.subr.bf16.mxu0 0
        %5462 = vmatpush1.bf16.msra.mxu0 0
        %5463 = vmatprep.subr.bf16.mxu0 0
        %5464 = vmatpush1.bf16.msra.mxu0 0
        %5465 = vmatprep.subr.bf16.mxu0 0
        %5466 = vmatpush1.bf16.msra.mxu0 0
        %5467 = vmatprep.subr.bf16.mxu0 0
        %5468 = vmatpush1.bf16.msra.mxu0 0
        %5469 = vmatprep.subr.bf16.mxu0 0
        %5470 = vmatpush1.bf16.msra.mxu0 0
        %5471 = vmatprep.subr.bf16.mxu0 0
        %5472 = vmatpush1.bf16.msra.mxu0 0
        %5473 = vmatprep.subr.bf16.mxu0 0
        %5474 = vmatpush1.bf16.msra.mxu0 0
        %5475 = vmatprep.subr.bf16.mxu0 0
        %5476 = vmatpush1.bf16.msra.mxu0 0
        %5477 = vmatprep.subr.bf16.mxu0 0
        %5478 = vmatpush1.bf16.msra.mxu0 0
        %5479 = vmatprep.subr.bf16.mxu0 0
        %5480 = vmatpush1.bf16.msra.mxu0 0
        %5481 = vmatprep.mubr.bf16.mxu0 0
        %5482 = vmatmul.mubr.bf16.gmra.mrb[0].mxu0 %v4325
        %v5483 = vpop.f32.mrb[0].mxu0
        %v5484 = vadd.f32 %v5435, %v5483
        %v5485 = vpop.f32.mrb[0].mxu0
        %v5486 = vpop.f32.mrb[0].mxu0
        %v5487 = vpop.f32.mrb[0].mxu0
        %5488 = vdwg.mxu0
        %v5489 = vmul.f32 %v5354, 0.35355338
        %v5490 = vpack.c.bf16 %v5489, %v5489
        %v5491 = vpack.c.bf16 %v5419, %v5419
        %v5493 = vsel %vm1159, %v5490, 0
        %v5496 = vsel %vm1159, %v5491, 0
        %5498 = vmatprep.subr.bf16.mxu0 0
        %5499 = vmatpush1.bf16.xpose.msra.mxu0 %v5496
        %5500 = vmatprep.subr.bf16.mxu0 0
        %5501 = vmatpush1.bf16.xpose.msra.mxu0 0
        %5502 = vmatprep.subr.bf16.mxu0 0
        %5503 = vmatpush1.bf16.xpose.msra.mxu0 0
        %5504 = vmatprep.subr.bf16.mxu0 0
        %5505 = vmatpush1.bf16.xpose.msra.mxu0 0
        %5506 = vmatprep.subr.bf16.mxu0 0
        %5507 = vmatpush1.bf16.xpose.msra.mxu0 0
        %5508 = vmatprep.subr.bf16.mxu0 0
        %5509 = vmatpush1.bf16.xpose.msra.mxu0 0
        %5510 = vmatprep.subr.bf16.mxu0 0
        %5511 = vmatpush1.bf16.xpose.msra.mxu0 0
        %5512 = vmatprep.subr.bf16.mxu0 0
        %5513 = vmatpush1.bf16.xpose.msra.mxu0 0
        %5514 = vmatprep.subr.bf16.mxu0 0
        %5515 = vmatpush1.bf16.xpose.msra.mxu0 0
        %5516 = vmatprep.subr.bf16.mxu0 0
        %5517 = vmatpush1.bf16.xpose.msra.mxu0 0
        %5518 = vmatprep.subr.bf16.mxu0 0
        %5519 = vmatpush1.bf16.xpose.msra.mxu0 0
        %5520 = vmatprep.subr.bf16.mxu0 0
        %5521 = vmatpush1.bf16.xpose.msra.mxu0 0
        %5522 = vmatprep.subr.bf16.mxu0 0
        %5523 = vmatpush1.bf16.xpose.msra.mxu0 0
        %5524 = vmatprep.subr.bf16.mxu0 0
        %5525 = vmatpush1.bf16.xpose.msra.mxu0 0
        %5526 = vmatprep.subr.bf16.mxu0 0
        %5527 = vmatpush1.bf16.xpose.msra.mxu0 0
        %5528 = vmatprep.subr.bf16.mxu0 0
        %5529 = vmatpush1.bf16.xpose.msra.mxu0 0
        %5530 = vmatprep.mubr.bf16.mxu0 0
        %5531 = vmatmul.mubr.bf16.gmra.mrb[0].mxu0 %v5493
        %v5532 = vpop.f32.mrb[0].mxu0
        %v5533 = vadd.f32 %v901, %v5532
        %v5534 = vpop.f32.mrb[0].mxu0
        %v5535 = vpop.f32.mrb[0].mxu0
        %v5536 = vpop.f32.mrb[0].mxu0
        %5537 = vdwg.mxu0
        %v5538 = vsel %vm1159, %v5533, -inf
        %5539 = vmax.xlane.f32.xlu0 %v5538
        %v5540 = vpop.xlane.xlu0 %5539
        %v5541 = vsub.f32 %v5533, %v5540
        %v5542 = vmul.f32 %v5541, 1.442695
        %v5543 = vpow.pop %v5542
        %v5544 = vsel %vm1159, %v5543, 0.0
        %5545 = vadd.xlane.f32.xlu0 %v5544
        %v5546 = vpop.xlane.xlu0 %5545
        %v5547 = vrcp.pop %v5546
        %v5548 = vmul.f32 %v5543, %v5547
        %v5549 = vpack.c.bf16 %v5548, %v5548
        %v5550 = vpack.c.bf16 %v5484, %v5484
        %v5552 = vsel %vm1159, %v5549, 0
        %v5555 = vsel %vm1234, %v5550, 0
        %5557 = vmatprep.subr.bf16.mxu0 0
        %5558 = vmatpush1.bf16.msra.mxu0 %v5555
        %5559 = vmatprep.subr.bf16.mxu0 0
        %5560 = vmatpush1.bf16.msra.mxu0 0
        %5561 = vmatprep.subr.bf16.mxu0 0
        %5562 = vmatpush1.bf16.msra.mxu0 0
        %5563 = vmatprep.subr.bf16.mxu0 0
        %5564 = vmatpush1.bf16.msra.mxu0 0
        %5565 = vmatprep.subr.bf16.mxu0 0
        %5566 = vmatpush1.bf16.msra.mxu0 0
        %5567 = vmatprep.subr.bf16.mxu0 0
        %5568 = vmatpush1.bf16.msra.mxu0 0
        %5569 = vmatprep.subr.bf16.mxu0 0
        %5570 = vmatpush1.bf16.msra.mxu0 0
        %5571 = vmatprep.subr.bf16.mxu0 0
        %5572 = vmatpush1.bf16.msra.mxu0 0
        %5573 = vmatprep.subr.bf16.mxu0 0
        %5574 = vmatpush1.bf16.msra.mxu0 0
        %5575 = vmatprep.subr.bf16.mxu0 0
        %5576 = vmatpush1.bf16.msra.mxu0 0
        %5577 = vmatprep.subr.bf16.mxu0 0
        %5578 = vmatpush1.bf16.msra.mxu0 0
        %5579 = vmatprep.subr.bf16.mxu0 0
        %5580 = vmatpush1.bf16.msra.mxu0 0
        %5581 = vmatprep.subr.bf16.mxu0 0
        %5582 = vmatpush1.bf16.msra.mxu0 0
        %5583 = vmatprep.subr.bf16.mxu0 0
        %5584 = vmatpush1.bf16.msra.mxu0 0
        %5585 = vmatprep.subr.bf16.mxu0 0
        %5586 = vmatpush1.bf16.msra.mxu0 0
        %5587 = vmatprep.subr.bf16.mxu0 0
        %5588 = vmatpush1.bf16.msra.mxu0 0
        %5589 = vmatprep.mubr.bf16.mxu0 0
        %5590 = vmatmul.mubr.bf16.gmra.mrb[0].mxu0 %v5552
        %v5591 = vpop.f32.mrb[0].mxu0
        %v5592 = vadd.f32 0.0, %v5591
        %v5593 = vpop.f32.mrb[0].mxu0
        %v5594 = vpop.f32.mrb[0].mxu0
        %v5595 = vpop.f32.mrb[0].mxu0
        %5596 = vdwg.mxu0
        %s5597 = scalar_lea.vmem %s13, 28
        %v5598 = vld [vmem:[%s5597] sm:$0xf]
        %v5599 = vpack.c.bf16 %v5592, %v5592
        %v5601 = vsel %vm1159, %v5599, 0
        %v5604 = vsel %vm1234, %v5598, 0
        %5606 = vmatprep.subr.bf16.mxu0 0
        %5607 = vmatpush1.bf16.msra.mxu0 %v5604
        %5608 = vmatprep.subr.bf16.mxu0 0
        %5609 = vmatpush1.bf16.msra.mxu0 0
        %5610 = vmatprep.subr.bf16.mxu0 0
        %5611 = vmatpush1.bf16.msra.mxu0 0
        %5612 = vmatprep.subr.bf16.mxu0 0
        %5613 = vmatpush1.bf16.msra.mxu0 0
        %5614 = vmatprep.subr.bf16.mxu0 0
        %5615 = vmatpush1.bf16.msra.mxu0 0
        %5616 = vmatprep.subr.bf16.mxu0 0
        %5617 = vmatpush1.bf16.msra.mxu0 0
        %5618 = vmatprep.subr.bf16.mxu0 0
        %5619 = vmatpush1.bf16.msra.mxu0 0
        %5620 = vmatprep.subr.bf16.mxu0 0
        %5621 = vmatpush1.bf16.msra.mxu0 0
        %5622 = vmatprep.subr.bf16.mxu0 0
        %5623 = vmatpush1.bf16.msra.mxu0 0
        %5624 = vmatprep.subr.bf16.mxu0 0
        %5625 = vmatpush1.bf16.msra.mxu0 0
        %5626 = vmatprep.subr.bf16.mxu0 0
        %5627 = vmatpush1.bf16.msra.mxu0 0
        %5628 = vmatprep.subr.bf16.mxu0 0
        %5629 = vmatpush1.bf16.msra.mxu0 0
        %5630 = vmatprep.subr.bf16.mxu0 0
        %5631 = vmatpush1.bf16.msra.mxu0 0
        %5632 = vmatprep.subr.bf16.mxu0 0
        %5633 = vmatpush1.bf16.msra.mxu0 0
        %5634 = vmatprep.subr.bf16.mxu0 0
        %5635 = vmatpush1.bf16.msra.mxu0 0
        %5636 = vmatprep.subr.bf16.mxu0 0
        %5637 = vmatpush1.bf16.msra.mxu0 0
        %5638 = vmatprep.mubr.bf16.mxu0 0
        %5639 = vmatmul.mubr.bf16.gmra.mrb[0].mxu0 %v5601
        %v5640 = vpop.f32.mrb[0].mxu0
        %v5641 = vadd.f32 0.0, %v5640
        %v5642 = vpop.f32.mrb[0].mxu0
        %v5643 = vpop.f32.mrb[0].mxu0
        %v5644 = vpop.f32.mrb[0].mxu0
        %5645 = vdwg.mxu0
        %v5646 = vadd.f32 %v5293, %v5641
        %s5647 = scalar_lea.vmem %s14, 1
        %v5648 = vld [vmem:[%s5647] sm:$0x1]
        %v5650 = vlaneseq
        %v5651 = vshrl.u32 %v5650, 7
        %v5652 = vsub.s32 0, %v5651
        %v5653 = vrot.slane %v5648, %v5652
        %v5655 = vadd.f32 %v5646, %v5653
        %v5656 = vadd.f32 %v4179, %v5655
        %v5657 = vsel %vm909, %v5656, 0.0
        %5658 = vadd.xlane.f32.xlu0 %v5657
        %v5659 = vpop.xlane.xlu0 %5658
        %v5660 = vmul.f32 %v5659, %v913
        %v5661 = vsub.f32 %v5656, %v5660
        %v5662 = vmul.f32 %v5661, %v5661
        %v5663 = vsel %vm909, %v5662, 0.0
        %5664 = vadd.xlane.f32.xlu0 %v5663
        %v5665 = vpop.xlane.xlu0 %5664
        %v5666 = vmul.f32 %v5665, %v913
        %v5667 = vadd.f32 %v5666, 1e-05
        %v5668 = vrsqrt.pop %v5667
        %v5669 = vmul.f32 %v5661, %v5668
        %v5670 = vlaneseq
        %v5671 = vshrl.u32 %v5670, 7
        %v5672 = vsub.s32 4, %v5671
        %v5673 = vrot.slane %v4182, %v5672
        %v5674 = vmul.f32 %v5669, %v5673
        %v5675 = vlaneseq
        %v5676 = vshrl.u32 %v5675, 7
        %v5677 = vsub.s32 5, %v5676
        %v5678 = vrot.slane %v4182, %v5677
        %v5679 = vadd.f32 %v5674, %v5678
        %s5680 = scalar_lea.vmem %s15, 64
        %v5681 = vld [vmem:[%s5680] sm:$0xf]
        %v5682 = vld [vmem:[%s5680 + $0x4] sm:$0xf]
        %v5683 = vld [vmem:[%s5680 + $0x8] sm:$0xf]
        %v5684 = vld [vmem:[%s5680 + $0xc] sm:$0xf]
        %v5685 = vpack.c.bf16 %v5679, %v5679
        %s5686 = scalar_lea.vmem %s16, 4
        %v5687 = vld [vmem:[%s5686] sm:$0x1]
        %v5689 = vlaneseq
        %v5690 = vshrl.u32 %v5689, 7
        %v5691 = vsub.s32 0, %v5690
        %v5692 = vrot.slane %v5687, %v5691
        %v5698 = vunpack.c.l.b16 %v5681
        %v5699 = vunpack.c.l.b16 %v5682
        %v5700 = vunpack.c.l.b16 %v5683
        %v5701 = vunpack.c.l.b16 %v5684
        %v5702 = vpack.c.b16 %v5699, %v5698
        %v5703 = vpack.c.b16 %v5701, %v5700
        %v5707 = vsel %vm909, %v5685, 0
        %5709 = vmatprep.subr.bf16.mxu0 0
        %5710 = vmatpush1.bf16.msra.mxu0 %v5702
        %5711 = vmatprep.subr.bf16.mxu0 0
        %5712 = vmatpush1.bf16.msra.mxu0 %v5703
        %5713 = vmatprep.subr.bf16.mxu0 0
        %5714 = vmatpush1.bf16.msra.mxu0 0
        %5715 = vmatprep.subr.bf16.mxu0 0
        %5716 = vmatpush1.bf16.msra.mxu0 0
        %5717 = vmatprep.subr.bf16.mxu0 0
        %5718 = vmatpush1.bf16.msra.mxu0 0
        %5719 = vmatprep.subr.bf16.mxu0 0
        %5720 = vmatpush1.bf16.msra.mxu0 0
        %5721 = vmatprep.subr.bf16.mxu0 0
        %5722 = vmatpush1.bf16.msra.mxu0 0
        %5723 = vmatprep.subr.bf16.mxu0 0
        %5724 = vmatpush1.bf16.msra.mxu0 0
        %5725 = vmatprep.subr.bf16.mxu0 0
        %5726 = vmatpush1.bf16.msra.mxu0 0
        %5727 = vmatprep.subr.bf16.mxu0 0
        %5728 = vmatpush1.bf16.msra.mxu0 0
        %5729 = vmatprep.subr.bf16.mxu0 0
        %5730 = vmatpush1.bf16.msra.mxu0 0
        %5731 = vmatprep.subr.bf16.mxu0 0
        %5732 = vmatpush1.bf16.msra.mxu0 0
        %5733 = vmatprep.subr.bf16.mxu0 0
        %5734 = vmatpush1.bf16.msra.mxu0 0
        %5735 = vmatprep.subr.bf16.mxu0 0
        %5736 = vmatpush1.bf16.msra.mxu0 0
        %5737 = vmatprep.subr.bf16.mxu0 0
        %5738 = vmatpush1.bf16.msra.mxu0 0
        %5739 = vmatprep.subr.bf16.mxu0 0
        %5740 = vmatpush1.bf16.msra.mxu0 0
        %5741 = vmatprep.mubr.bf16.mxu0 0
        %5742 = vmatmul.mubr.bf16.gmra.mrb[0].mxu0 %v5707
        %v5743 = vpop.f32.mrb[0].mxu0
        %v5744 = vadd.f32 %v5692, %v5743
        %v5745 = vpop.f32.mrb[0].mxu0
        %v5746 = vpop.f32.mrb[0].mxu0
        %v5747 = vpop.f32.mrb[0].mxu0
        %5748 = vdwg.mxu0
        %s5749 = scalar_lea.vmem %s17, 64
        %v5750 = vld [vmem:[%s5749] sm:$0xf]
        %v5751 = vld [vmem:[%s5749 + $0x4] sm:$0xf]
        %v5752 = vld [vmem:[%s5749 + $0x8] sm:$0xf]
        %v5753 = vld [vmem:[%s5749 + $0xc] sm:$0xf]
        %s5754 = scalar_lea.vmem %s18, 4
        %v5755 = vld [vmem:[%s5754] sm:$0x1]
        %v5757 = vlaneseq
        %v5758 = vshrl.u32 %v5757, 7
        %v5759 = vsub.s32 0, %v5758
        %v5760 = vrot.slane %v5755, %v5759
        %v5766 = vunpack.c.l.b16 %v5750
        %v5767 = vunpack.c.l.b16 %v5751
        %v5768 = vunpack.c.l.b16 %v5752
        %v5769 = vunpack.c.l.b16 %v5753
        %v5770 = vpack.c.b16 %v5767, %v5766
        %v5771 = vpack.c.b16 %v5769, %v5768
        %5774 = vmatprep.subr.bf16.mxu0 0
        %5775 = vmatpush1.bf16.msra.mxu0 %v5770
        %5776 = vmatprep.subr.bf16.mxu0 0
        %5777 = vmatpush1.bf16.msra.mxu0 %v5771
        %5778 = vmatprep.subr.bf16.mxu0 0
        %5779 = vmatpush1.bf16.msra.mxu0 0
        %5780 = vmatprep.subr.bf16.mxu0 0
        %5781 = vmatpush1.bf16.msra.mxu0 0
        %5782 = vmatprep.subr.bf16.mxu0 0
        %5783 = vmatpush1.bf16.msra.mxu0 0
        %5784 = vmatprep.subr.bf16.mxu0 0
        %5785 = vmatpush1.bf16.msra.mxu0 0
        %5786 = vmatprep.subr.bf16.mxu0 0
        %5787 = vmatpush1.bf16.msra.mxu0 0
        %5788 = vmatprep.subr.bf16.mxu0 0
        %5789 = vmatpush1.bf16.msra.mxu0 0
        %5790 = vmatprep.subr.bf16.mxu0 0
        %5791 = vmatpush1.bf16.msra.mxu0 0
        %5792 = vmatprep.subr.bf16.mxu0 0
        %5793 = vmatpush1.bf16.msra.mxu0 0
        %5794 = vmatprep.subr.bf16.mxu0 0
        %5795 = vmatpush1.bf16.msra.mxu0 0
        %5796 = vmatprep.subr.bf16.mxu0 0
        %5797 = vmatpush1.bf16.msra.mxu0 0
        %5798 = vmatprep.subr.bf16.mxu0 0
        %5799 = vmatpush1.bf16.msra.mxu0 0
        %5800 = vmatprep.subr.bf16.mxu0 0
        %5801 = vmatpush1.bf16.msra.mxu0 0
        %5802 = vmatprep.subr.bf16.mxu0 0
        %5803 = vmatpush1.bf16.msra.mxu0 0
        %5804 = vmatprep.subr.bf16.mxu0 0
        %5805 = vmatpush1.bf16.msra.mxu0 0
        %5806 = vmatprep.mubr.bf16.mxu0 0
        %5807 = vmatmul.mubr.bf16.gmra.mrb[0].mxu0 %v2578
        %v5808 = vpop.f32.mrb[0].mxu0
        %v5809 = vadd.f32 %v5760, %v5808
        %v5810 = vpop.f32.mrb[0].mxu0
        %v5811 = vpop.f32.mrb[0].mxu0
        %v5812 = vadd.f32 %v5760, %v5811
        %v5813 = vpop.f32.mrb[0].mxu0
        %5814 = vdwg.mxu0
        %s5815 = scalar_lea.vmem %s19, 64
        %v5816 = vld [vmem:[%s5815] sm:$0xf]
        %v5817 = vld [vmem:[%s5815 + $0x4] sm:$0xf]
        %v5818 = vld [vmem:[%s5815 + $0x8] sm:$0xf]
        %v5819 = vld [vmem:[%s5815 + $0xc] sm:$0xf]
        %s5820 = scalar_lea.vmem %s20, 4
        %v5821 = vld [vmem:[%s5820] sm:$0x1]
        %v5823 = vlaneseq
        %v5824 = vshrl.u32 %v5823, 7
        %v5825 = vsub.s32 0, %v5824
        %v5826 = vrot.slane %v5821, %v5825
        %v5832 = vunpack.c.l.b16 %v5816
        %v5833 = vunpack.c.l.b16 %v5817
        %v5834 = vunpack.c.l.b16 %v5818
        %v5835 = vunpack.c.l.b16 %v5819
        %v5836 = vpack.c.b16 %v5833, %v5832
        %v5837 = vpack.c.b16 %v5835, %v5834
        %5840 = vmatprep.subr.bf16.mxu0 0
        %5841 = vmatpush1.bf16.msra.mxu0 %v5836
        %5842 = vmatprep.subr.bf16.mxu0 0
        %5843 = vmatpush1.bf16.msra.mxu0 %v5837
        %5844 = vmatprep.subr.bf16.mxu0 0
        %5845 = vmatpush1.bf16.msra.mxu0 0
        %5846 = vmatprep.subr.bf16.mxu0 0
        %5847 = vmatpush1.bf16.msra.mxu0 0
        %5848 = vmatprep.subr.bf16.mxu0 0
        %5849 = vmatpush1.bf16.msra.mxu0 0
        %5850 = vmatprep.subr.bf16.mxu0 0
        %5851 = vmatpush1.bf16.msra.mxu0 0
        %5852 = vmatprep.subr.bf16.mxu0 0
        %5853 = vmatpush1.bf16.msra.mxu0 0
        %5854 = vmatprep.subr.bf16.mxu0 0
        %5855 = vmatpush1.bf16.msra.mxu0 0
        %5856 = vmatprep.subr.bf16.mxu0 0
        %5857 = vmatpush1.bf16.msra.mxu0 0
        %5858 = vmatprep.subr.bf16.mxu0 0
        %5859 = vmatpush1.bf16.msra.mxu0 0
        %5860 = vmatprep.subr.bf16.mxu0 0
        %5861 = vmatpush1.bf16.msra.mxu0 0
        %5862 = vmatprep.subr.bf16.mxu0 0
        %5863 = vmatpush1.bf16.msra.mxu0 0
        %5864 = vmatprep.subr.bf16.mxu0 0
        %5865 = vmatpush1.bf16.msra.mxu0 0
        %5866 = vmatprep.subr.bf16.mxu0 0
        %5867 = vmatpush1.bf16.msra.mxu0 0
        %5868 = vmatprep.subr.bf16.mxu0 0
        %5869 = vmatpush1.bf16.msra.mxu0 0
        %5870 = vmatprep.subr.bf16.mxu0 0
        %5871 = vmatpush1.bf16.msra.mxu0 0
        %5872 = vmatprep.mubr.bf16.mxu0 0
        %5873 = vmatmul.mubr.bf16.gmra.mrb[0].mxu0 %v2578
        %v5874 = vpop.f32.mrb[0].mxu0
        %v5875 = vadd.f32 %v5826, %v5874
        %v5876 = vpop.f32.mrb[0].mxu0
        %v5877 = vpop.f32.mrb[0].mxu0
        %v5878 = vadd.f32 %v5826, %v5877
        %v5879 = vpop.f32.mrb[0].mxu0
        %5880 = vdwg.mxu0
        %v5881 = vmul.f32 %v5744, 0.35355338
        %v5882 = vpack.c.bf16 %v5881, %v5881
        %v5883 = vpack.c.bf16 %v5812, %v5809
        %v5885 = vsel %vm1159, %v5882, 0
        %v5888 = vsel %vm1159, %v5883, 0
        %5890 = vmatprep.subr.bf16.mxu0 0
        %5891 = vmatpush1.bf16.xpose.msra.mxu0 %v5888
        %5892 = vmatprep.subr.bf16.mxu0 0
        %5893 = vmatpush1.bf16.xpose.msra.mxu0 0
        %5894 = vmatprep.subr.bf16.mxu0 0
        %5895 = vmatpush1.bf16.xpose.msra.mxu0 0
        %5896 = vmatprep.subr.bf16.mxu0 0
        %5897 = vmatpush1.bf16.xpose.msra.mxu0 0
        %5898 = vmatprep.subr.bf16.mxu0 0
        %5899 = vmatpush1.bf16.xpose.msra.mxu0 0
        %5900 = vmatprep.subr.bf16.mxu0 0
        %5901 = vmatpush1.bf16.xpose.msra.mxu0 0
        %5902 = vmatprep.subr.bf16.mxu0 0
        %5903 = vmatpush1.bf16.xpose.msra.mxu0 0
        %5904 = vmatprep.subr.bf16.mxu0 0
        %5905 = vmatpush1.bf16.xpose.msra.mxu0 0
        %5906 = vmatprep.subr.bf16.mxu0 0
        %5907 = vmatpush1.bf16.xpose.msra.mxu0 0
        %5908 = vmatprep.subr.bf16.mxu0 0
        %5909 = vmatpush1.bf16.xpose.msra.mxu0 0
        %5910 = vmatprep.subr.bf16.mxu0 0
        %5911 = vmatpush1.bf16.xpose.msra.mxu0 0
        %5912 = vmatprep.subr.bf16.mxu0 0
        %5913 = vmatpush1.bf16.xpose.msra.mxu0 0
        %5914 = vmatprep.subr.bf16.mxu0 0
        %5915 = vmatpush1.bf16.xpose.msra.mxu0 0
        %5916 = vmatprep.subr.bf16.mxu0 0
        %5917 = vmatpush1.bf16.xpose.msra.mxu0 0
        %5918 = vmatprep.subr.bf16.mxu0 0
        %5919 = vmatpush1.bf16.xpose.msra.mxu0 0
        %5920 = vmatprep.subr.bf16.mxu0 0
        %5921 = vmatpush1.bf16.xpose.msra.mxu0 0
        %5922 = vmatprep.mubr.bf16.mxu0 0
        %5923 = vmatmul.mubr.bf16.gmra.mrb[0].mxu0 %v5885
        %v5924 = vpop.f32.mrb[0].mxu0
        %v5925 = vadd.f32 0.0, %v5924
        %v5926 = vpop.f32.mrb[0].mxu0
        %v5927 = vpop.f32.mrb[0].mxu0
        %v5928 = vpop.f32.mrb[0].mxu0
        %5929 = vdwg.mxu0
        %v5930 = vsel %vm2736, %v5925, -inf
        %5931 = vmax.xlane.f32.xlu0 %v5930
        %v5932 = vpop.xlane.xlu0 %5931
        %v5933 = vsub.f32 %v5925, %v5932
        %v5934 = vmul.f32 %v5933, 1.442695
        %v5935 = vpow.pop %v5934
        %v5936 = vsel %vm2736, %v5935, 0.0
        %5937 = vadd.xlane.f32.xlu0 %v5936
        %v5938 = vpop.xlane.xlu0 %5937
        %v5939 = vrcp.pop %v5938
        %v5940 = vmul.f32 %v5935, %v5939
        %v5941 = vpack.c.bf16 %v5940, %v5940
        %v5942 = vpack.c.bf16 %v5878, %v5875
        %v5944 = vsel %vm2736, %v5941, 0
        %5946 = vmatprep.subr.bf16.mxu0 0
        %5947 = vmatpush1.bf16.msra.mxu0 %v5942
        %5948 = vmatprep.subr.bf16.mxu0 0
        %5949 = vmatpush1.bf16.msra.mxu0 0
        %5950 = vmatprep.subr.bf16.mxu0 0
        %5951 = vmatpush1.bf16.msra.mxu0 0
        %5952 = vmatprep.subr.bf16.mxu0 0
        %5953 = vmatpush1.bf16.msra.mxu0 0
        %5954 = vmatprep.subr.bf16.mxu0 0
        %5955 = vmatpush1.bf16.msra.mxu0 0
        %5956 = vmatprep.subr.bf16.mxu0 0
        %5957 = vmatpush1.bf16.msra.mxu0 0
        %5958 = vmatprep.subr.bf16.mxu0 0
        %5959 = vmatpush1.bf16.msra.mxu0 0
        %5960 = vmatprep.subr.bf16.mxu0 0
        %5961 = vmatpush1.bf16.msra.mxu0 0
        %5962 = vmatprep.subr.bf16.mxu0 0
        %5963 = vmatpush1.bf16.msra.mxu0 0
        %5964 = vmatprep.subr.bf16.mxu0 0
        %5965 = vmatpush1.bf16.msra.mxu0 0
        %5966 = vmatprep.subr.bf16.mxu0 0
        %5967 = vmatpush1.bf16.msra.mxu0 0
        %5968 = vmatprep.subr.bf16.mxu0 0
        %5969 = vmatpush1.bf16.msra.mxu0 0
        %5970 = vmatprep.subr.bf16.mxu0 0
        %5971 = vmatpush1.bf16.msra.mxu0 0
        %5972 = vmatprep.subr.bf16.mxu0 0
        %5973 = vmatpush1.bf16.msra.mxu0 0
        %5974 = vmatprep.subr.bf16.mxu0 0
        %5975 = vmatpush1.bf16.msra.mxu0 0
        %5976 = vmatprep.subr.bf16.mxu0 0
        %5977 = vmatpush1.bf16.msra.mxu0 0
        %5978 = vmatprep.mubr.bf16.mxu0 0
        %5979 = vmatmul.mubr.bf16.gmra.mrb[0].mxu0 %v5944
        %v5980 = vpop.f32.mrb[0].mxu0
        %v5981 = vadd.f32 0.0, %v5980
        %v5982 = vpop.f32.mrb[0].mxu0
        %v5983 = vpop.f32.mrb[0].mxu0
        %v5984 = vpop.f32.mrb[0].mxu0
        %5985 = vdwg.mxu0
        %s5986 = scalar_lea.vmem %s21, 16
        %v5987 = vld [vmem:[%s5986] sm:$0xf]
        %v5988 = vpack.c.bf16 %v5981, %v5981
        %s5989 = scalar_lea.vmem %s15, 80
        %v5990 = vld [vmem:[%s5989] sm:$0xf]
        %v5991 = vld [vmem:[%s5989 + $0x4] sm:$0xf]
        %v5992 = vld [vmem:[%s5989 + $0x8] sm:$0xf]
        %v5993 = vld [vmem:[%s5989 + $0xc] sm:$0xf]
        %s5994 = scalar_lea.vmem %s16, 5
        %v5995 = vld [vmem:[%s5994] sm:$0x1]
        %v5997 = vlaneseq
        %v5998 = vshrl.u32 %v5997, 7
        %v5999 = vsub.s32 0, %v5998
        %v6000 = vrot.slane %v5995, %v5999
        %v6006 = vunpack.c.l.b16 %v5990
        %v6007 = vunpack.c.l.b16 %v5991
        %v6008 = vunpack.c.l.b16 %v5992
        %v6009 = vunpack.c.l.b16 %v5993
        %v6010 = vpack.c.b16 %v6007, %v6006
        %v6011 = vpack.c.b16 %v6009, %v6008
        %6014 = vmatprep.subr.bf16.mxu0 0
        %6015 = vmatpush1.bf16.msra.mxu0 %v6010
        %6016 = vmatprep.subr.bf16.mxu0 0
        %6017 = vmatpush1.bf16.msra.mxu0 %v6011
        %6018 = vmatprep.subr.bf16.mxu0 0
        %6019 = vmatpush1.bf16.msra.mxu0 0
        %6020 = vmatprep.subr.bf16.mxu0 0
        %6021 = vmatpush1.bf16.msra.mxu0 0
        %6022 = vmatprep.subr.bf16.mxu0 0
        %6023 = vmatpush1.bf16.msra.mxu0 0
        %6024 = vmatprep.subr.bf16.mxu0 0
        %6025 = vmatpush1.bf16.msra.mxu0 0
        %6026 = vmatprep.subr.bf16.mxu0 0
        %6027 = vmatpush1.bf16.msra.mxu0 0
        %6028 = vmatprep.subr.bf16.mxu0 0
        %6029 = vmatpush1.bf16.msra.mxu0 0
        %6030 = vmatprep.subr.bf16.mxu0 0
        %6031 = vmatpush1.bf16.msra.mxu0 0
        %6032 = vmatprep.subr.bf16.mxu0 0
        %6033 = vmatpush1.bf16.msra.mxu0 0
        %6034 = vmatprep.subr.bf16.mxu0 0
        %6035 = vmatpush1.bf16.msra.mxu0 0
        %6036 = vmatprep.subr.bf16.mxu0 0
        %6037 = vmatpush1.bf16.msra.mxu0 0
        %6038 = vmatprep.subr.bf16.mxu0 0
        %6039 = vmatpush1.bf16.msra.mxu0 0
        %6040 = vmatprep.subr.bf16.mxu0 0
        %6041 = vmatpush1.bf16.msra.mxu0 0
        %6042 = vmatprep.subr.bf16.mxu0 0
        %6043 = vmatpush1.bf16.msra.mxu0 0
        %6044 = vmatprep.subr.bf16.mxu0 0
        %6045 = vmatpush1.bf16.msra.mxu0 0
        %6046 = vmatprep.mubr.bf16.mxu0 0
        %6047 = vmatmul.mubr.bf16.gmra.mrb[0].mxu0 %v5707
        %v6048 = vpop.f32.mrb[0].mxu0
        %v6049 = vadd.f32 %v6000, %v6048
        %v6050 = vpop.f32.mrb[0].mxu0
        %v6051 = vpop.f32.mrb[0].mxu0
        %v6052 = vpop.f32.mrb[0].mxu0
        %6053 = vdwg.mxu0
        %s6054 = scalar_lea.vmem %s17, 80
        %v6055 = vld [vmem:[%s6054] sm:$0xf]
        %v6056 = vld [vmem:[%s6054 + $0x4] sm:$0xf]
        %v6057 = vld [vmem:[%s6054 + $0x8] sm:$0xf]
        %v6058 = vld [vmem:[%s6054 + $0xc] sm:$0xf]
        %s6059 = scalar_lea.vmem %s18, 5
        %v6060 = vld [vmem:[%s6059] sm:$0x1]
        %v6062 = vlaneseq
        %v6063 = vshrl.u32 %v6062, 7
        %v6064 = vsub.s32 0, %v6063
        %v6065 = vrot.slane %v6060, %v6064
        %v6071 = vunpack.c.l.b16 %v6055
        %v6072 = vunpack.c.l.b16 %v6056
        %v6073 = vunpack.c.l.b16 %v6057
        %v6074 = vunpack.c.l.b16 %v6058
        %v6075 = vpack.c.b16 %v6072, %v6071
        %v6076 = vpack.c.b16 %v6074, %v6073
        %6079 = vmatprep.subr.bf16.mxu0 0
        %6080 = vmatpush1.bf16.msra.mxu0 %v6075
        %6081 = vmatprep.subr.bf16.mxu0 0
        %6082 = vmatpush1.bf16.msra.mxu0 %v6076
        %6083 = vmatprep.subr.bf16.mxu0 0
        %6084 = vmatpush1.bf16.msra.mxu0 0
        %6085 = vmatprep.subr.bf16.mxu0 0
        %6086 = vmatpush1.bf16.msra.mxu0 0
        %6087 = vmatprep.subr.bf16.mxu0 0
        %6088 = vmatpush1.bf16.msra.mxu0 0
        %6089 = vmatprep.subr.bf16.mxu0 0
        %6090 = vmatpush1.bf16.msra.mxu0 0
        %6091 = vmatprep.subr.bf16.mxu0 0
        %6092 = vmatpush1.bf16.msra.mxu0 0
        %6093 = vmatprep.subr.bf16.mxu0 0
        %6094 = vmatpush1.bf16.msra.mxu0 0
        %6095 = vmatprep.subr.bf16.mxu0 0
        %6096 = vmatpush1.bf16.msra.mxu0 0
        %6097 = vmatprep.subr.bf16.mxu0 0
        %6098 = vmatpush1.bf16.msra.mxu0 0
        %6099 = vmatprep.subr.bf16.mxu0 0
        %6100 = vmatpush1.bf16.msra.mxu0 0
        %6101 = vmatprep.subr.bf16.mxu0 0
        %6102 = vmatpush1.bf16.msra.mxu0 0
        %6103 = vmatprep.subr.bf16.mxu0 0
        %6104 = vmatpush1.bf16.msra.mxu0 0
        %6105 = vmatprep.subr.bf16.mxu0 0
        %6106 = vmatpush1.bf16.msra.mxu0 0
        %6107 = vmatprep.subr.bf16.mxu0 0
        %6108 = vmatpush1.bf16.msra.mxu0 0
        %6109 = vmatprep.subr.bf16.mxu0 0
        %6110 = vmatpush1.bf16.msra.mxu0 0
        %6111 = vmatprep.mubr.bf16.mxu0 0
        %6112 = vmatmul.mubr.bf16.gmra.mrb[0].mxu0 %v2578
        %v6113 = vpop.f32.mrb[0].mxu0
        %v6114 = vadd.f32 %v6065, %v6113
        %v6115 = vpop.f32.mrb[0].mxu0
        %v6116 = vpop.f32.mrb[0].mxu0
        %v6117 = vadd.f32 %v6065, %v6116
        %v6118 = vpop.f32.mrb[0].mxu0
        %6119 = vdwg.mxu0
        %s6120 = scalar_lea.vmem %s19, 80
        %v6121 = vld [vmem:[%s6120] sm:$0xf]
        %v6122 = vld [vmem:[%s6120 + $0x4] sm:$0xf]
        %v6123 = vld [vmem:[%s6120 + $0x8] sm:$0xf]
        %v6124 = vld [vmem:[%s6120 + $0xc] sm:$0xf]
        %s6125 = scalar_lea.vmem %s20, 5
        %v6126 = vld [vmem:[%s6125] sm:$0x1]
        %v6128 = vlaneseq
        %v6129 = vshrl.u32 %v6128, 7
        %v6130 = vsub.s32 0, %v6129
        %v6131 = vrot.slane %v6126, %v6130
        %v6137 = vunpack.c.l.b16 %v6121
        %v6138 = vunpack.c.l.b16 %v6122
        %v6139 = vunpack.c.l.b16 %v6123
        %v6140 = vunpack.c.l.b16 %v6124
        %v6141 = vpack.c.b16 %v6138, %v6137
        %v6142 = vpack.c.b16 %v6140, %v6139
        %6145 = vmatprep.subr.bf16.mxu0 0
        %6146 = vmatpush1.bf16.msra.mxu0 %v6141
        %6147 = vmatprep.subr.bf16.mxu0 0
        %6148 = vmatpush1.bf16.msra.mxu0 %v6142
        %6149 = vmatprep.subr.bf16.mxu0 0
        %6150 = vmatpush1.bf16.msra.mxu0 0
        %6151 = vmatprep.subr.bf16.mxu0 0
        %6152 = vmatpush1.bf16.msra.mxu0 0
        %6153 = vmatprep.subr.bf16.mxu0 0
        %6154 = vmatpush1.bf16.msra.mxu0 0
        %6155 = vmatprep.subr.bf16.mxu0 0
        %6156 = vmatpush1.bf16.msra.mxu0 0
        %6157 = vmatprep.subr.bf16.mxu0 0
        %6158 = vmatpush1.bf16.msra.mxu0 0
        %6159 = vmatprep.subr.bf16.mxu0 0
        %6160 = vmatpush1.bf16.msra.mxu0 0
        %6161 = vmatprep.subr.bf16.mxu0 0
        %6162 = vmatpush1.bf16.msra.mxu0 0
        %6163 = vmatprep.subr.bf16.mxu0 0
        %6164 = vmatpush1.bf16.msra.mxu0 0
        %6165 = vmatprep.subr.bf16.mxu0 0
        %6166 = vmatpush1.bf16.msra.mxu0 0
        %6167 = vmatprep.subr.bf16.mxu0 0
        %6168 = vmatpush1.bf16.msra.mxu0 0
        %6169 = vmatprep.subr.bf16.mxu0 0
        %6170 = vmatpush1.bf16.msra.mxu0 0
        %6171 = vmatprep.subr.bf16.mxu0 0
        %6172 = vmatpush1.bf16.msra.mxu0 0
        %6173 = vmatprep.subr.bf16.mxu0 0
        %6174 = vmatpush1.bf16.msra.mxu0 0
        %6175 = vmatprep.subr.bf16.mxu0 0
        %6176 = vmatpush1.bf16.msra.mxu0 0
        %6177 = vmatprep.mubr.bf16.mxu0 0
        %6178 = vmatmul.mubr.bf16.gmra.mrb[0].mxu0 %v2578
        %v6179 = vpop.f32.mrb[0].mxu0
        %v6180 = vadd.f32 %v6131, %v6179
        %v6181 = vpop.f32.mrb[0].mxu0
        %v6182 = vpop.f32.mrb[0].mxu0
        %v6183 = vadd.f32 %v6131, %v6182
        %v6184 = vpop.f32.mrb[0].mxu0
        %6185 = vdwg.mxu0
        %v6186 = vmul.f32 %v6049, 0.35355338
        %v6187 = vpack.c.bf16 %v6186, %v6186
        %v6188 = vpack.c.bf16 %v6117, %v6114
        %v6190 = vsel %vm1159, %v6187, 0
        %v6193 = vsel %vm1159, %v6188, 0
        %6195 = vmatprep.subr.bf16.mxu0 0
        %6196 = vmatpush1.bf16.xpose.msra.mxu0 %v6193
        %6197 = vmatprep.subr.bf16.mxu0 0
        %6198 = vmatpush1.bf16.xpose.msra.mxu0 0
        %6199 = vmatprep.subr.bf16.mxu0 0
        %6200 = vmatpush1.bf16.xpose.msra.mxu0 0
        %6201 = vmatprep.subr.bf16.mxu0 0
        %6202 = vmatpush1.bf16.xpose.msra.mxu0 0
        %6203 = vmatprep.subr.bf16.mxu0 0
        %6204 = vmatpush1.bf16.xpose.msra.mxu0 0
        %6205 = vmatprep.subr.bf16.mxu0 0
        %6206 = vmatpush1.bf16.xpose.msra.mxu0 0
        %6207 = vmatprep.subr.bf16.mxu0 0
        %6208 = vmatpush1.bf16.xpose.msra.mxu0 0
        %6209 = vmatprep.subr.bf16.mxu0 0
        %6210 = vmatpush1.bf16.xpose.msra.mxu0 0
        %6211 = vmatprep.subr.bf16.mxu0 0
        %6212 = vmatpush1.bf16.xpose.msra.mxu0 0
        %6213 = vmatprep.subr.bf16.mxu0 0
        %6214 = vmatpush1.bf16.xpose.msra.mxu0 0
        %6215 = vmatprep.subr.bf16.mxu0 0
        %6216 = vmatpush1.bf16.xpose.msra.mxu0 0
        %6217 = vmatprep.subr.bf16.mxu0 0
        %6218 = vmatpush1.bf16.xpose.msra.mxu0 0
        %6219 = vmatprep.subr.bf16.mxu0 0
        %6220 = vmatpush1.bf16.xpose.msra.mxu0 0
        %6221 = vmatprep.subr.bf16.mxu0 0
        %6222 = vmatpush1.bf16.xpose.msra.mxu0 0
        %6223 = vmatprep.subr.bf16.mxu0 0
        %6224 = vmatpush1.bf16.xpose.msra.mxu0 0
        %6225 = vmatprep.subr.bf16.mxu0 0
        %6226 = vmatpush1.bf16.xpose.msra.mxu0 0
        %6227 = vmatprep.mubr.bf16.mxu0 0
        %6228 = vmatmul.mubr.bf16.gmra.mrb[0].mxu0 %v6190
        %v6229 = vpop.f32.mrb[0].mxu0
        %v6230 = vadd.f32 0.0, %v6229
        %v6231 = vpop.f32.mrb[0].mxu0
        %v6232 = vpop.f32.mrb[0].mxu0
        %v6233 = vpop.f32.mrb[0].mxu0
        %6234 = vdwg.mxu0
        %v6235 = vsel %vm2736, %v6230, -inf
        %6236 = vmax.xlane.f32.xlu0 %v6235
        %v6237 = vpop.xlane.xlu0 %6236
        %v6238 = vsub.f32 %v6230, %v6237
        %v6239 = vmul.f32 %v6238, 1.442695
        %v6240 = vpow.pop %v6239
        %v6241 = vsel %vm2736, %v6240, 0.0
        %6242 = vadd.xlane.f32.xlu0 %v6241
        %v6243 = vpop.xlane.xlu0 %6242
        %v6244 = vrcp.pop %v6243
        %v6245 = vmul.f32 %v6240, %v6244
        %v6246 = vpack.c.bf16 %v6245, %v6245
        %v6247 = vpack.c.bf16 %v6183, %v6180
        %v6249 = vsel %vm2736, %v6246, 0
        %6251 = vmatprep.subr.bf16.mxu0 0
        %6252 = vmatpush1.bf16.msra.mxu0 %v6247
        %6253 = vmatprep.subr.bf16.mxu0 0
        %6254 = vmatpush1.bf16.msra.mxu0 0
        %6255 = vmatprep.subr.bf16.mxu0 0
        %6256 = vmatpush1.bf16.msra.mxu0 0
        %6257 = vmatprep.subr.bf16.mxu0 0
        %6258 = vmatpush1.bf16.msra.mxu0 0
        %6259 = vmatprep.subr.bf16.mxu0 0
        %6260 = vmatpush1.bf16.msra.mxu0 0
        %6261 = vmatprep.subr.bf16.mxu0 0
        %6262 = vmatpush1.bf16.msra.mxu0 0
        %6263 = vmatprep.subr.bf16.mxu0 0
        %6264 = vmatpush1.bf16.msra.mxu0 0
        %6265 = vmatprep.subr.bf16.mxu0 0
        %6266 = vmatpush1.bf16.msra.mxu0 0
        %6267 = vmatprep.subr.bf16.mxu0 0
        %6268 = vmatpush1.bf16.msra.mxu0 0
        %6269 = vmatprep.subr.bf16.mxu0 0
        %6270 = vmatpush1.bf16.msra.mxu0 0
        %6271 = vmatprep.subr.bf16.mxu0 0
        %6272 = vmatpush1.bf16.msra.mxu0 0
        %6273 = vmatprep.subr.bf16.mxu0 0
        %6274 = vmatpush1.bf16.msra.mxu0 0
        %6275 = vmatprep.subr.bf16.mxu0 0
        %6276 = vmatpush1.bf16.msra.mxu0 0
        %6277 = vmatprep.subr.bf16.mxu0 0
        %6278 = vmatpush1.bf16.msra.mxu0 0
        %6279 = vmatprep.subr.bf16.mxu0 0
        %6280 = vmatpush1.bf16.msra.mxu0 0
        %6281 = vmatprep.subr.bf16.mxu0 0
        %6282 = vmatpush1.bf16.msra.mxu0 0
        %6283 = vmatprep.mubr.bf16.mxu0 0
        %6284 = vmatmul.mubr.bf16.gmra.mrb[0].mxu0 %v6249
        %v6285 = vpop.f32.mrb[0].mxu0
        %v6286 = vadd.f32 0.0, %v6285
        %v6287 = vpop.f32.mrb[0].mxu0
        %v6288 = vpop.f32.mrb[0].mxu0
        %v6289 = vpop.f32.mrb[0].mxu0
        %6290 = vdwg.mxu0
        %s6291 = scalar_lea.vmem %s21, 20
        %v6292 = vld [vmem:[%s6291] sm:$0xf]
        %v6293 = vpack.c.bf16 %v6286, %v6286
        %v6295 = vsel %vm1159, %v6293, 0
        %v6298 = vsel %vm1234, %v6292, 0
        %6300 = vmatprep.subr.bf16.mxu0 0
        %6301 = vmatpush1.bf16.msra.mxu0 %v6298
        %6302 = vmatprep.subr.bf16.mxu0 0
        %6303 = vmatpush1.bf16.msra.mxu0 0
        %6304 = vmatprep.subr.bf16.mxu0 0
        %6305 = vmatpush1.bf16.msra.mxu0 0
        %6306 = vmatprep.subr.bf16.mxu0 0
        %6307 = vmatpush1.bf16.msra.mxu0 0
        %6308 = vmatprep.subr.bf16.mxu0 0
        %6309 = vmatpush1.bf16.msra.mxu0 0
        %6310 = vmatprep.subr.bf16.mxu0 0
        %6311 = vmatpush1.bf16.msra.mxu0 0
        %6312 = vmatprep.subr.bf16.mxu0 0
        %6313 = vmatpush1.bf16.msra.mxu0 0
        %6314 = vmatprep.subr.bf16.mxu0 0
        %6315 = vmatpush1.bf16.msra.mxu0 0
        %6316 = vmatprep.subr.bf16.mxu0 0
        %6317 = vmatpush1.bf16.msra.mxu0 0
        %6318 = vmatprep.subr.bf16.mxu0 0
        %6319 = vmatpush1.bf16.msra.mxu0 0
        %6320 = vmatprep.subr.bf16.mxu0 0
        %6321 = vmatpush1.bf16.msra.mxu0 0
        %6322 = vmatprep.subr.bf16.mxu0 0
        %6323 = vmatpush1.bf16.msra.mxu0 0
        %6324 = vmatprep.subr.bf16.mxu0 0
        %6325 = vmatpush1.bf16.msra.mxu0 0
        %6326 = vmatprep.subr.bf16.mxu0 0
        %6327 = vmatpush1.bf16.msra.mxu0 0
        %6328 = vmatprep.subr.bf16.mxu0 0
        %6329 = vmatpush1.bf16.msra.mxu0 0
        %6330 = vmatprep.subr.bf16.mxu0 0
        %6331 = vmatpush1.bf16.msra.mxu0 0
        %6332 = vmatprep.mubr.bf16.mxu0 0
        %6333 = vmatmul.mubr.bf16.gmra.mrb[0].mxu0 %v6295
        %v6334 = vpop.f32.mrb[0].mxu0
        %v6335 = vadd.f32 0.0, %v6334
        %v6336 = vpop.f32.mrb[0].mxu0
        %v6337 = vpop.f32.mrb[0].mxu0
        %v6338 = vpop.f32.mrb[0].mxu0
        %6339 = vdwg.mxu0
        %v6341 = vsel %vm1159, %v5988, 0
        %v6344 = vsel %vm1234, %v5987, 0
        %6346 = vmatprep.subr.bf16.mxu0 0
        %6347 = vmatpush1.bf16.msra.mxu0 %v6344
        %6348 = vmatprep.subr.bf16.mxu0 0
        %6349 = vmatpush1.bf16.msra.mxu0 0
        %6350 = vmatprep.subr.bf16.mxu0 0
        %6351 = vmatpush1.bf16.msra.mxu0 0
        %6352 = vmatprep.subr.bf16.mxu0 0
        %6353 = vmatpush1.bf16.msra.mxu0 0
        %6354 = vmatprep.subr.bf16.mxu0 0
        %6355 = vmatpush1.bf16.msra.mxu0 0
        %6356 = vmatprep.subr.bf16.mxu0 0
        %6357 = vmatpush1.bf16.msra.mxu0 0
        %6358 = vmatprep.subr.bf16.mxu0 0
        %6359 = vmatpush1.bf16.msra.mxu0 0
        %6360 = vmatprep.subr.bf16.mxu0 0
        %6361 = vmatpush1.bf16.msra.mxu0 0
        %6362 = vmatprep.subr.bf16.mxu0 0
        %6363 = vmatpush1.bf16.msra.mxu0 0
        %6364 = vmatprep.subr.bf16.mxu0 0
        %6365 = vmatpush1.bf16.msra.mxu0 0
        %6366 = vmatprep.subr.bf16.mxu0 0
        %6367 = vmatpush1.bf16.msra.mxu0 0
        %6368 = vmatprep.subr.bf16.mxu0 0
        %6369 = vmatpush1.bf16.msra.mxu0 0
        %6370 = vmatprep.subr.bf16.mxu0 0
        %6371 = vmatpush1.bf16.msra.mxu0 0
        %6372 = vmatprep.subr.bf16.mxu0 0
        %6373 = vmatpush1.bf16.msra.mxu0 0
        %6374 = vmatprep.subr.bf16.mxu0 0
        %6375 = vmatpush1.bf16.msra.mxu0 0
        %6376 = vmatprep.subr.bf16.mxu0 0
        %6377 = vmatpush1.bf16.msra.mxu0 0
        %6378 = vmatprep.mubr.bf16.mxu0 0
        %6379 = vmatmul.mubr.bf16.gmra.mrb[0].mxu0 %v6341
        %v6380 = vpop.f32.mrb[0].mxu0
        %v6381 = vadd.f32 %v6335, %v6380
        %v6382 = vpop.f32.mrb[0].mxu0
        %v6383 = vpop.f32.mrb[0].mxu0
        %v6384 = vpop.f32.mrb[0].mxu0
        %6385 = vdwg.mxu0
        %s6386 = scalar_lea.vmem %s15, 96
        %v6387 = vld [vmem:[%s6386] sm:$0xf]
        %v6388 = vld [vmem:[%s6386 + $0x4] sm:$0xf]
        %v6389 = vld [vmem:[%s6386 + $0x8] sm:$0xf]
        %v6390 = vld [vmem:[%s6386 + $0xc] sm:$0xf]
        %s6391 = scalar_lea.vmem %s16, 6
        %v6392 = vld [vmem:[%s6391] sm:$0x1]
        %v6394 = vlaneseq
        %v6395 = vshrl.u32 %v6394, 7
        %v6396 = vsub.s32 0, %v6395
        %v6397 = vrot.slane %v6392, %v6396
        %v6403 = vunpack.c.l.b16 %v6387
        %v6404 = vunpack.c.l.b16 %v6388
        %v6405 = vunpack.c.l.b16 %v6389
        %v6406 = vunpack.c.l.b16 %v6390
        %v6407 = vpack.c.b16 %v6404, %v6403
        %v6408 = vpack.c.b16 %v6406, %v6405
        %6411 = vmatprep.subr.bf16.mxu0 0
        %6412 = vmatpush1.bf16.msra.mxu0 %v6407
        %6413 = vmatprep.subr.bf16.mxu0 0
        %6414 = vmatpush1.bf16.msra.mxu0 %v6408
        %6415 = vmatprep.subr.bf16.mxu0 0
        %6416 = vmatpush1.bf16.msra.mxu0 0
        %6417 = vmatprep.subr.bf16.mxu0 0
        %6418 = vmatpush1.bf16.msra.mxu0 0
        %6419 = vmatprep.subr.bf16.mxu0 0
        %6420 = vmatpush1.bf16.msra.mxu0 0
        %6421 = vmatprep.subr.bf16.mxu0 0
        %6422 = vmatpush1.bf16.msra.mxu0 0
        %6423 = vmatprep.subr.bf16.mxu0 0
        %6424 = vmatpush1.bf16.msra.mxu0 0
        %6425 = vmatprep.subr.bf16.mxu0 0
        %6426 = vmatpush1.bf16.msra.mxu0 0
        %6427 = vmatprep.subr.bf16.mxu0 0
        %6428 = vmatpush1.bf16.msra.mxu0 0
        %6429 = vmatprep.subr.bf16.mxu0 0
        %6430 = vmatpush1.bf16.msra.mxu0 0
        %6431 = vmatprep.subr.bf16.mxu0 0
        %6432 = vmatpush1.bf16.msra.mxu0 0
        %6433 = vmatprep.subr.bf16.mxu0 0
        %6434 = vmatpush1.bf16.msra.mxu0 0
        %6435 = vmatprep.subr.bf16.mxu0 0
        %6436 = vmatpush1.bf16.msra.mxu0 0
        %6437 = vmatprep.subr.bf16.mxu0 0
        %6438 = vmatpush1.bf16.msra.mxu0 0
        %6439 = vmatprep.subr.bf16.mxu0 0
        %6440 = vmatpush1.bf16.msra.mxu0 0
        %6441 = vmatprep.subr.bf16.mxu0 0
        %6442 = vmatpush1.bf16.msra.mxu0 0
        %6443 = vmatprep.mubr.bf16.mxu0 0
        %6444 = vmatmul.mubr.bf16.gmra.mrb[0].mxu0 %v5707
        %v6445 = vpop.f32.mrb[0].mxu0
        %v6446 = vadd.f32 %v6397, %v6445
        %v6447 = vpop.f32.mrb[0].mxu0
        %v6448 = vpop.f32.mrb[0].mxu0
        %v6449 = vpop.f32.mrb[0].mxu0
        %6450 = vdwg.mxu0
        %s6451 = scalar_lea.vmem %s17, 96
        %v6452 = vld [vmem:[%s6451] sm:$0xf]
        %v6453 = vld [vmem:[%s6451 + $0x4] sm:$0xf]
        %v6454 = vld [vmem:[%s6451 + $0x8] sm:$0xf]
        %v6455 = vld [vmem:[%s6451 + $0xc] sm:$0xf]
        %s6456 = scalar_lea.vmem %s18, 6
        %v6457 = vld [vmem:[%s6456] sm:$0x1]
        %v6459 = vlaneseq
        %v6460 = vshrl.u32 %v6459, 7
        %v6461 = vsub.s32 0, %v6460
        %v6462 = vrot.slane %v6457, %v6461
        %v6468 = vunpack.c.l.b16 %v6452
        %v6469 = vunpack.c.l.b16 %v6453
        %v6470 = vunpack.c.l.b16 %v6454
        %v6471 = vunpack.c.l.b16 %v6455
        %v6472 = vpack.c.b16 %v6469, %v6468
        %v6473 = vpack.c.b16 %v6471, %v6470
        %6476 = vmatprep.subr.bf16.mxu0 0
        %6477 = vmatpush1.bf16.msra.mxu0 %v6472
        %6478 = vmatprep.subr.bf16.mxu0 0
        %6479 = vmatpush1.bf16.msra.mxu0 %v6473
        %6480 = vmatprep.subr.bf16.mxu0 0
        %6481 = vmatpush1.bf16.msra.mxu0 0
        %6482 = vmatprep.subr.bf16.mxu0 0
        %6483 = vmatpush1.bf16.msra.mxu0 0
        %6484 = vmatprep.subr.bf16.mxu0 0
        %6485 = vmatpush1.bf16.msra.mxu0 0
        %6486 = vmatprep.subr.bf16.mxu0 0
        %6487 = vmatpush1.bf16.msra.mxu0 0
        %6488 = vmatprep.subr.bf16.mxu0 0
        %6489 = vmatpush1.bf16.msra.mxu0 0
        %6490 = vmatprep.subr.bf16.mxu0 0
        %6491 = vmatpush1.bf16.msra.mxu0 0
        %6492 = vmatprep.subr.bf16.mxu0 0
        %6493 = vmatpush1.bf16.msra.mxu0 0
        %6494 = vmatprep.subr.bf16.mxu0 0
        %6495 = vmatpush1.bf16.msra.mxu0 0
        %6496 = vmatprep.subr.bf16.mxu0 0
        %6497 = vmatpush1.bf16.msra.mxu0 0
        %6498 = vmatprep.subr.bf16.mxu0 0
        %6499 = vmatpush1.bf16.msra.mxu0 0
        %6500 = vmatprep.subr.bf16.mxu0 0
        %6501 = vmatpush1.bf16.msra.mxu0 0
        %6502 = vmatprep.subr.bf16.mxu0 0
        %6503 = vmatpush1.bf16.msra.mxu0 0
        %6504 = vmatprep.subr.bf16.mxu0 0
        %6505 = vmatpush1.bf16.msra.mxu0 0
        %6506 = vmatprep.subr.bf16.mxu0 0
        %6507 = vmatpush1.bf16.msra.mxu0 0
        %6508 = vmatprep.mubr.bf16.mxu0 0
        %6509 = vmatmul.mubr.bf16.gmra.mrb[0].mxu0 %v2578
        %v6510 = vpop.f32.mrb[0].mxu0
        %v6511 = vadd.f32 %v6462, %v6510
        %v6512 = vpop.f32.mrb[0].mxu0
        %v6513 = vpop.f32.mrb[0].mxu0
        %v6514 = vadd.f32 %v6462, %v6513
        %v6515 = vpop.f32.mrb[0].mxu0
        %6516 = vdwg.mxu0
        %s6517 = scalar_lea.vmem %s19, 96
        %v6518 = vld [vmem:[%s6517] sm:$0xf]
        %v6519 = vld [vmem:[%s6517 + $0x4] sm:$0xf]
        %v6520 = vld [vmem:[%s6517 + $0x8] sm:$0xf]
        %v6521 = vld [vmem:[%s6517 + $0xc] sm:$0xf]
        %s6522 = scalar_lea.vmem %s20, 6
        %v6523 = vld [vmem:[%s6522] sm:$0x1]
        %v6525 = vlaneseq
        %v6526 = vshrl.u32 %v6525, 7
        %v6527 = vsub.s32 0, %v6526
        %v6528 = vrot.slane %v6523, %v6527
        %v6534 = vunpack.c.l.b16 %v6518
        %v6535 = vunpack.c.l.b16 %v6519
        %v6536 = vunpack.c.l.b16 %v6520
        %v6537 = vunpack.c.l.b16 %v6521
        %v6538 = vpack.c.b16 %v6535, %v6534
        %v6539 = vpack.c.b16 %v6537, %v6536
        %6542 = vmatprep.subr.bf16.mxu0 0
        %6543 = vmatpush1.bf16.msra.mxu0 %v6538
        %6544 = vmatprep.subr.bf16.mxu0 0
        %6545 = vmatpush1.bf16.msra.mxu0 %v6539
        %6546 = vmatprep.subr.bf16.mxu0 0
        %6547 = vmatpush1.bf16.msra.mxu0 0
        %6548 = vmatprep.subr.bf16.mxu0 0
        %6549 = vmatpush1.bf16.msra.mxu0 0
        %6550 = vmatprep.subr.bf16.mxu0 0
        %6551 = vmatpush1.bf16.msra.mxu0 0
        %6552 = vmatprep.subr.bf16.mxu0 0
        %6553 = vmatpush1.bf16.msra.mxu0 0
        %6554 = vmatprep.subr.bf16.mxu0 0
        %6555 = vmatpush1.bf16.msra.mxu0 0
        %6556 = vmatprep.subr.bf16.mxu0 0
        %6557 = vmatpush1.bf16.msra.mxu0 0
        %6558 = vmatprep.subr.bf16.mxu0 0
        %6559 = vmatpush1.bf16.msra.mxu0 0
        %6560 = vmatprep.subr.bf16.mxu0 0
        %6561 = vmatpush1.bf16.msra.mxu0 0
        %6562 = vmatprep.subr.bf16.mxu0 0
        %6563 = vmatpush1.bf16.msra.mxu0 0
        %6564 = vmatprep.subr.bf16.mxu0 0
        %6565 = vmatpush1.bf16.msra.mxu0 0
        %6566 = vmatprep.subr.bf16.mxu0 0
        %6567 = vmatpush1.bf16.msra.mxu0 0
        %6568 = vmatprep.subr.bf16.mxu0 0
        %6569 = vmatpush1.bf16.msra.mxu0 0
        %6570 = vmatprep.subr.bf16.mxu0 0
        %6571 = vmatpush1.bf16.msra.mxu0 0
        %6572 = vmatprep.subr.bf16.mxu0 0
        %6573 = vmatpush1.bf16.msra.mxu0 0
        %6574 = vmatprep.mubr.bf16.mxu0 0
        %6575 = vmatmul.mubr.bf16.gmra.mrb[0].mxu0 %v2578
        %v6576 = vpop.f32.mrb[0].mxu0
        %v6577 = vadd.f32 %v6528, %v6576
        %v6578 = vpop.f32.mrb[0].mxu0
        %v6579 = vpop.f32.mrb[0].mxu0
        %v6580 = vadd.f32 %v6528, %v6579
        %v6581 = vpop.f32.mrb[0].mxu0
        %6582 = vdwg.mxu0
        %v6583 = vmul.f32 %v6446, 0.35355338
        %v6584 = vpack.c.bf16 %v6583, %v6583
        %v6585 = vpack.c.bf16 %v6514, %v6511
        %v6587 = vsel %vm1159, %v6584, 0
        %v6590 = vsel %vm1159, %v6585, 0
        %6592 = vmatprep.subr.bf16.mxu0 0
        %6593 = vmatpush1.bf16.xpose.msra.mxu0 %v6590
        %6594 = vmatprep.subr.bf16.mxu0 0
        %6595 = vmatpush1.bf16.xpose.msra.mxu0 0
        %6596 = vmatprep.subr.bf16.mxu0 0
        %6597 = vmatpush1.bf16.xpose.msra.mxu0 0
        %6598 = vmatprep.subr.bf16.mxu0 0
        %6599 = vmatpush1.bf16.xpose.msra.mxu0 0
        %6600 = vmatprep.subr.bf16.mxu0 0
        %6601 = vmatpush1.bf16.xpose.msra.mxu0 0
        %6602 = vmatprep.subr.bf16.mxu0 0
        %6603 = vmatpush1.bf16.xpose.msra.mxu0 0
        %6604 = vmatprep.subr.bf16.mxu0 0
        %6605 = vmatpush1.bf16.xpose.msra.mxu0 0
        %6606 = vmatprep.subr.bf16.mxu0 0
        %6607 = vmatpush1.bf16.xpose.msra.mxu0 0
        %6608 = vmatprep.subr.bf16.mxu0 0
        %6609 = vmatpush1.bf16.xpose.msra.mxu0 0
        %6610 = vmatprep.subr.bf16.mxu0 0
        %6611 = vmatpush1.bf16.xpose.msra.mxu0 0
        %6612 = vmatprep.subr.bf16.mxu0 0
        %6613 = vmatpush1.bf16.xpose.msra.mxu0 0
        %6614 = vmatprep.subr.bf16.mxu0 0
        %6615 = vmatpush1.bf16.xpose.msra.mxu0 0
        %6616 = vmatprep.subr.bf16.mxu0 0
        %6617 = vmatpush1.bf16.xpose.msra.mxu0 0
        %6618 = vmatprep.subr.bf16.mxu0 0
        %6619 = vmatpush1.bf16.xpose.msra.mxu0 0
        %6620 = vmatprep.subr.bf16.mxu0 0
        %6621 = vmatpush1.bf16.xpose.msra.mxu0 0
        %6622 = vmatprep.subr.bf16.mxu0 0
        %6623 = vmatpush1.bf16.xpose.msra.mxu0 0
        %6624 = vmatprep.mubr.bf16.mxu0 0
        %6625 = vmatmul.mubr.bf16.gmra.mrb[0].mxu0 %v6587
        %v6626 = vpop.f32.mrb[0].mxu0
        %v6627 = vadd.f32 0.0, %v6626
        %v6628 = vpop.f32.mrb[0].mxu0
        %v6629 = vpop.f32.mrb[0].mxu0
        %v6630 = vpop.f32.mrb[0].mxu0
        %6631 = vdwg.mxu0
        %v6632 = vsel %vm2736, %v6627, -inf
        %6633 = vmax.xlane.f32.xlu0 %v6632
        %v6634 = vpop.xlane.xlu0 %6633
        %v6635 = vsub.f32 %v6627, %v6634
        %v6636 = vmul.f32 %v6635, 1.442695
        %v6637 = vpow.pop %v6636
        %v6638 = vsel %vm2736, %v6637, 0.0
        %6639 = vadd.xlane.f32.xlu0 %v6638
        %v6640 = vpop.xlane.xlu0 %6639
        %v6641 = vrcp.pop %v6640
        %v6642 = vmul.f32 %v6637, %v6641
        %v6643 = vpack.c.bf16 %v6642, %v6642
        %v6644 = vpack.c.bf16 %v6580, %v6577
        %v6646 = vsel %vm2736, %v6643, 0
        %6648 = vmatprep.subr.bf16.mxu0 0
        %6649 = vmatpush1.bf16.msra.mxu0 %v6644
        %6650 = vmatprep.subr.bf16.mxu0 0
        %6651 = vmatpush1.bf16.msra.mxu0 0
        %6652 = vmatprep.subr.bf16.mxu0 0
        %6653 = vmatpush1.bf16.msra.mxu0 0
        %6654 = vmatprep.subr.bf16.mxu0 0
        %6655 = vmatpush1.bf16.msra.mxu0 0
        %6656 = vmatprep.subr.bf16.mxu0 0
        %6657 = vmatpush1.bf16.msra.mxu0 0
        %6658 = vmatprep.subr.bf16.mxu0 0
        %6659 = vmatpush1.bf16.msra.mxu0 0
        %6660 = vmatprep.subr.bf16.mxu0 0
        %6661 = vmatpush1.bf16.msra.mxu0 0
        %6662 = vmatprep.subr.bf16.mxu0 0
        %6663 = vmatpush1.bf16.msra.mxu0 0
        %6664 = vmatprep.subr.bf16.mxu0 0
        %6665 = vmatpush1.bf16.msra.mxu0 0
        %6666 = vmatprep.subr.bf16.mxu0 0
        %6667 = vmatpush1.bf16.msra.mxu0 0
        %6668 = vmatprep.subr.bf16.mxu0 0
        %6669 = vmatpush1.bf16.msra.mxu0 0
        %6670 = vmatprep.subr.bf16.mxu0 0
        %6671 = vmatpush1.bf16.msra.mxu0 0
        %6672 = vmatprep.subr.bf16.mxu0 0
        %6673 = vmatpush1.bf16.msra.mxu0 0
        %6674 = vmatprep.subr.bf16.mxu0 0
        %6675 = vmatpush1.bf16.msra.mxu0 0
        %6676 = vmatprep.subr.bf16.mxu0 0
        %6677 = vmatpush1.bf16.msra.mxu0 0
        %6678 = vmatprep.subr.bf16.mxu0 0
        %6679 = vmatpush1.bf16.msra.mxu0 0
        %6680 = vmatprep.mubr.bf16.mxu0 0
        %6681 = vmatmul.mubr.bf16.gmra.mrb[0].mxu0 %v6646
        %v6682 = vpop.f32.mrb[0].mxu0
        %v6683 = vadd.f32 0.0, %v6682
        %v6684 = vpop.f32.mrb[0].mxu0
        %v6685 = vpop.f32.mrb[0].mxu0
        %v6686 = vpop.f32.mrb[0].mxu0
        %6687 = vdwg.mxu0
        %s6688 = scalar_lea.vmem %s21, 24
        %v6689 = vld [vmem:[%s6688] sm:$0xf]
        %v6690 = vpack.c.bf16 %v6683, %v6683
        %v6692 = vsel %vm1159, %v6690, 0
        %v6695 = vsel %vm1234, %v6689, 0
        %6697 = vmatprep.subr.bf16.mxu0 0
        %6698 = vmatpush1.bf16.msra.mxu0 %v6695
        %6699 = vmatprep.subr.bf16.mxu0 0
        %6700 = vmatpush1.bf16.msra.mxu0 0
        %6701 = vmatprep.subr.bf16.mxu0 0
        %6702 = vmatpush1.bf16.msra.mxu0 0
        %6703 = vmatprep.subr.bf16.mxu0 0
        %6704 = vmatpush1.bf16.msra.mxu0 0
        %6705 = vmatprep.subr.bf16.mxu0 0
        %6706 = vmatpush1.bf16.msra.mxu0 0
        %6707 = vmatprep.subr.bf16.mxu0 0
        %6708 = vmatpush1.bf16.msra.mxu0 0
        %6709 = vmatprep.subr.bf16.mxu0 0
        %6710 = vmatpush1.bf16.msra.mxu0 0
        %6711 = vmatprep.subr.bf16.mxu0 0
        %6712 = vmatpush1.bf16.msra.mxu0 0
        %6713 = vmatprep.subr.bf16.mxu0 0
        %6714 = vmatpush1.bf16.msra.mxu0 0
        %6715 = vmatprep.subr.bf16.mxu0 0
        %6716 = vmatpush1.bf16.msra.mxu0 0
        %6717 = vmatprep.subr.bf16.mxu0 0
        %6718 = vmatpush1.bf16.msra.mxu0 0
        %6719 = vmatprep.subr.bf16.mxu0 0
        %6720 = vmatpush1.bf16.msra.mxu0 0
        %6721 = vmatprep.subr.bf16.mxu0 0
        %6722 = vmatpush1.bf16.msra.mxu0 0
        %6723 = vmatprep.subr.bf16.mxu0 0
        %6724 = vmatpush1.bf16.msra.mxu0 0
        %6725 = vmatprep.subr.bf16.mxu0 0
        %6726 = vmatpush1.bf16.msra.mxu0 0
        %6727 = vmatprep.subr.bf16.mxu0 0
        %6728 = vmatpush1.bf16.msra.mxu0 0
        %6729 = vmatprep.mubr.bf16.mxu0 0
        %6730 = vmatmul.mubr.bf16.gmra.mrb[0].mxu0 %v6692
        %v6731 = vpop.f32.mrb[0].mxu0
        %v6732 = vadd.f32 0.0, %v6731
        %v6733 = vpop.f32.mrb[0].mxu0
        %v6734 = vpop.f32.mrb[0].mxu0
        %v6735 = vpop.f32.mrb[0].mxu0
        %6736 = vdwg.mxu0
        %v6737 = vadd.f32 %v6381, %v6732
        %s6738 = scalar_lea.vmem %s15, 112
        %v6739 = vld [vmem:[%s6738] sm:$0xf]
        %v6740 = vld [vmem:[%s6738 + $0x4] sm:$0xf]
        %v6741 = vld [vmem:[%s6738 + $0x8] sm:$0xf]
        %v6742 = vld [vmem:[%s6738 + $0xc] sm:$0xf]
        %s6743 = scalar_lea.vmem %s16, 7
        %v6744 = vld [vmem:[%s6743] sm:$0x1]
        %v6746 = vlaneseq
        %v6747 = vshrl.u32 %v6746, 7
        %v6748 = vsub.s32 0, %v6747
        %v6749 = vrot.slane %v6744, %v6748
        %v6755 = vunpack.c.l.b16 %v6739
        %v6756 = vunpack.c.l.b16 %v6740
        %v6757 = vunpack.c.l.b16 %v6741
        %v6758 = vunpack.c.l.b16 %v6742
        %v6759 = vpack.c.b16 %v6756, %v6755
        %v6760 = vpack.c.b16 %v6758, %v6757
        %6763 = vmatprep.subr.bf16.mxu0 0
        %6764 = vmatpush1.bf16.msra.mxu0 %v6759
        %6765 = vmatprep.subr.bf16.mxu0 0
        %6766 = vmatpush1.bf16.msra.mxu0 %v6760
        %6767 = vmatprep.subr.bf16.mxu0 0
        %6768 = vmatpush1.bf16.msra.mxu0 0
        %6769 = vmatprep.subr.bf16.mxu0 0
        %6770 = vmatpush1.bf16.msra.mxu0 0
        %6771 = vmatprep.subr.bf16.mxu0 0
        %6772 = vmatpush1.bf16.msra.mxu0 0
        %6773 = vmatprep.subr.bf16.mxu0 0
        %6774 = vmatpush1.bf16.msra.mxu0 0
        %6775 = vmatprep.subr.bf16.mxu0 0
        %6776 = vmatpush1.bf16.msra.mxu0 0
        %6777 = vmatprep.subr.bf16.mxu0 0
        %6778 = vmatpush1.bf16.msra.mxu0 0
        %6779 = vmatprep.subr.bf16.mxu0 0
        %6780 = vmatpush1.bf16.msra.mxu0 0
        %6781 = vmatprep.subr.bf16.mxu0 0
        %6782 = vmatpush1.bf16.msra.mxu0 0
        %6783 = vmatprep.subr.bf16.mxu0 0
        %6784 = vmatpush1.bf16.msra.mxu0 0
        %6785 = vmatprep.subr.bf16.mxu0 0
        %6786 = vmatpush1.bf16.msra.mxu0 0
        %6787 = vmatprep.subr.bf16.mxu0 0
        %6788 = vmatpush1.bf16.msra.mxu0 0
        %6789 = vmatprep.subr.bf16.mxu0 0
        %6790 = vmatpush1.bf16.msra.mxu0 0
        %6791 = vmatprep.subr.bf16.mxu0 0
        %6792 = vmatpush1.bf16.msra.mxu0 0
        %6793 = vmatprep.subr.bf16.mxu0 0
        %6794 = vmatpush1.bf16.msra.mxu0 0
        %6795 = vmatprep.mubr.bf16.mxu0 0
        %6796 = vmatmul.mubr.bf16.gmra.mrb[0].mxu0 %v5707
        %v6797 = vpop.f32.mrb[0].mxu0
        %v6798 = vadd.f32 %v6749, %v6797
        %v6799 = vpop.f32.mrb[0].mxu0
        %v6800 = vpop.f32.mrb[0].mxu0
        %v6801 = vpop.f32.mrb[0].mxu0
        %6802 = vdwg.mxu0
        %s6803 = scalar_lea.vmem %s17, 112
        %v6804 = vld [vmem:[%s6803] sm:$0xf]
        %v6805 = vld [vmem:[%s6803 + $0x4] sm:$0xf]
        %v6806 = vld [vmem:[%s6803 + $0x8] sm:$0xf]
        %v6807 = vld [vmem:[%s6803 + $0xc] sm:$0xf]
        %s6808 = scalar_lea.vmem %s18, 7
        %v6809 = vld [vmem:[%s6808] sm:$0x1]
        %v6811 = vlaneseq
        %v6812 = vshrl.u32 %v6811, 7
        %v6813 = vsub.s32 0, %v6812
        %v6814 = vrot.slane %v6809, %v6813
        %v6820 = vunpack.c.l.b16 %v6804
        %v6821 = vunpack.c.l.b16 %v6805
        %v6822 = vunpack.c.l.b16 %v6806
        %v6823 = vunpack.c.l.b16 %v6807
        %v6824 = vpack.c.b16 %v6821, %v6820
        %v6825 = vpack.c.b16 %v6823, %v6822
        %6828 = vmatprep.subr.bf16.mxu0 0
        %6829 = vmatpush1.bf16.msra.mxu0 %v6824
        %6830 = vmatprep.subr.bf16.mxu0 0
        %6831 = vmatpush1.bf16.msra.mxu0 %v6825
        %6832 = vmatprep.subr.bf16.mxu0 0
        %6833 = vmatpush1.bf16.msra.mxu0 0
        %6834 = vmatprep.subr.bf16.mxu0 0
        %6835 = vmatpush1.bf16.msra.mxu0 0
        %6836 = vmatprep.subr.bf16.mxu0 0
        %6837 = vmatpush1.bf16.msra.mxu0 0
        %6838 = vmatprep.subr.bf16.mxu0 0
        %6839 = vmatpush1.bf16.msra.mxu0 0
        %6840 = vmatprep.subr.bf16.mxu0 0
        %6841 = vmatpush1.bf16.msra.mxu0 0
        %6842 = vmatprep.subr.bf16.mxu0 0
        %6843 = vmatpush1.bf16.msra.mxu0 0
        %6844 = vmatprep.subr.bf16.mxu0 0
        %6845 = vmatpush1.bf16.msra.mxu0 0
        %6846 = vmatprep.subr.bf16.mxu0 0
        %6847 = vmatpush1.bf16.msra.mxu0 0
        %6848 = vmatprep.subr.bf16.mxu0 0
        %6849 = vmatpush1.bf16.msra.mxu0 0
        %6850 = vmatprep.subr.bf16.mxu0 0
        %6851 = vmatpush1.bf16.msra.mxu0 0
        %6852 = vmatprep.subr.bf16.mxu0 0
        %6853 = vmatpush1.bf16.msra.mxu0 0
        %6854 = vmatprep.subr.bf16.mxu0 0
        %6855 = vmatpush1.bf16.msra.mxu0 0
        %6856 = vmatprep.subr.bf16.mxu0 0
        %6857 = vmatpush1.bf16.msra.mxu0 0
        %6858 = vmatprep.subr.bf16.mxu0 0
        %6859 = vmatpush1.bf16.msra.mxu0 0
        %6860 = vmatprep.mubr.bf16.mxu0 0
        %6861 = vmatmul.mubr.bf16.gmra.mrb[0].mxu0 %v2578
        %v6862 = vpop.f32.mrb[0].mxu0
        %v6863 = vadd.f32 %v6814, %v6862
        %v6864 = vpop.f32.mrb[0].mxu0
        %v6865 = vpop.f32.mrb[0].mxu0
        %v6866 = vadd.f32 %v6814, %v6865
        %v6867 = vpop.f32.mrb[0].mxu0
        %6868 = vdwg.mxu0
        %s6869 = scalar_lea.vmem %s19, 112
        %v6870 = vld [vmem:[%s6869] sm:$0xf]
        %v6871 = vld [vmem:[%s6869 + $0x4] sm:$0xf]
        %v6872 = vld [vmem:[%s6869 + $0x8] sm:$0xf]
        %v6873 = vld [vmem:[%s6869 + $0xc] sm:$0xf]
        %s6874 = scalar_lea.vmem %s20, 7
        %v6875 = vld [vmem:[%s6874] sm:$0x1]
        %v6877 = vlaneseq
        %v6878 = vshrl.u32 %v6877, 7
        %v6879 = vsub.s32 0, %v6878
        %v6880 = vrot.slane %v6875, %v6879
        %v6886 = vunpack.c.l.b16 %v6870
        %v6887 = vunpack.c.l.b16 %v6871
        %v6888 = vunpack.c.l.b16 %v6872
        %v6889 = vunpack.c.l.b16 %v6873
        %v6890 = vpack.c.b16 %v6887, %v6886
        %v6891 = vpack.c.b16 %v6889, %v6888
        %6894 = vmatprep.subr.bf16.mxu0 0
        %6895 = vmatpush1.bf16.msra.mxu0 %v6890
        %6896 = vmatprep.subr.bf16.mxu0 0
        %6897 = vmatpush1.bf16.msra.mxu0 %v6891
        %6898 = vmatprep.subr.bf16.mxu0 0
        %6899 = vmatpush1.bf16.msra.mxu0 0
        %6900 = vmatprep.subr.bf16.mxu0 0
        %6901 = vmatpush1.bf16.msra.mxu0 0
        %6902 = vmatprep.subr.bf16.mxu0 0
        %6903 = vmatpush1.bf16.msra.mxu0 0
        %6904 = vmatprep.subr.bf16.mxu0 0
        %6905 = vmatpush1.bf16.msra.mxu0 0
        %6906 = vmatprep.subr.bf16.mxu0 0
        %6907 = vmatpush1.bf16.msra.mxu0 0
        %6908 = vmatprep.subr.bf16.mxu0 0
        %6909 = vmatpush1.bf16.msra.mxu0 0
        %6910 = vmatprep.subr.bf16.mxu0 0
        %6911 = vmatpush1.bf16.msra.mxu0 0
        %6912 = vmatprep.subr.bf16.mxu0 0
        %6913 = vmatpush1.bf16.msra.mxu0 0
        %6914 = vmatprep.subr.bf16.mxu0 0
        %6915 = vmatpush1.bf16.msra.mxu0 0
        %6916 = vmatprep.subr.bf16.mxu0 0
        %6917 = vmatpush1.bf16.msra.mxu0 0
        %6918 = vmatprep.subr.bf16.mxu0 0
        %6919 = vmatpush1.bf16.msra.mxu0 0
        %6920 = vmatprep.subr.bf16.mxu0 0
        %6921 = vmatpush1.bf16.msra.mxu0 0
        %6922 = vmatprep.subr.bf16.mxu0 0
        %6923 = vmatpush1.bf16.msra.mxu0 0
        %6924 = vmatprep.subr.bf16.mxu0 0
        %6925 = vmatpush1.bf16.msra.mxu0 0
        %6926 = vmatprep.mubr.bf16.mxu0 0
        %6927 = vmatmul.mubr.bf16.gmra.mrb[0].mxu0 %v2578
        %v6928 = vpop.f32.mrb[0].mxu0
        %v6929 = vadd.f32 %v6880, %v6928
        %v6930 = vpop.f32.mrb[0].mxu0
        %v6931 = vpop.f32.mrb[0].mxu0
        %v6932 = vadd.f32 %v6880, %v6931
        %v6933 = vpop.f32.mrb[0].mxu0
        %6934 = vdwg.mxu0
        %v6935 = vmul.f32 %v6798, 0.35355338
        %v6936 = vpack.c.bf16 %v6935, %v6935
        %v6937 = vpack.c.bf16 %v6866, %v6863
        %v6939 = vsel %vm1159, %v6936, 0
        %v6942 = vsel %vm1159, %v6937, 0
        %6944 = vmatprep.subr.bf16.mxu0 0
        %6945 = vmatpush1.bf16.xpose.msra.mxu0 %v6942
        %6946 = vmatprep.subr.bf16.mxu0 0
        %6947 = vmatpush1.bf16.xpose.msra.mxu0 0
        %6948 = vmatprep.subr.bf16.mxu0 0
        %6949 = vmatpush1.bf16.xpose.msra.mxu0 0
        %6950 = vmatprep.subr.bf16.mxu0 0
        %6951 = vmatpush1.bf16.xpose.msra.mxu0 0
        %6952 = vmatprep.subr.bf16.mxu0 0
        %6953 = vmatpush1.bf16.xpose.msra.mxu0 0
        %6954 = vmatprep.subr.bf16.mxu0 0
        %6955 = vmatpush1.bf16.xpose.msra.mxu0 0
        %6956 = vmatprep.subr.bf16.mxu0 0
        %6957 = vmatpush1.bf16.xpose.msra.mxu0 0
        %6958 = vmatprep.subr.bf16.mxu0 0
        %6959 = vmatpush1.bf16.xpose.msra.mxu0 0
        %6960 = vmatprep.subr.bf16.mxu0 0
        %6961 = vmatpush1.bf16.xpose.msra.mxu0 0
        %6962 = vmatprep.subr.bf16.mxu0 0
        %6963 = vmatpush1.bf16.xpose.msra.mxu0 0
        %6964 = vmatprep.subr.bf16.mxu0 0
        %6965 = vmatpush1.bf16.xpose.msra.mxu0 0
        %6966 = vmatprep.subr.bf16.mxu0 0
        %6967 = vmatpush1.bf16.xpose.msra.mxu0 0
        %6968 = vmatprep.subr.bf16.mxu0 0
        %6969 = vmatpush1.bf16.xpose.msra.mxu0 0
        %6970 = vmatprep.subr.bf16.mxu0 0
        %6971 = vmatpush1.bf16.xpose.msra.mxu0 0
        %6972 = vmatprep.subr.bf16.mxu0 0
        %6973 = vmatpush1.bf16.xpose.msra.mxu0 0
        %6974 = vmatprep.subr.bf16.mxu0 0
        %6975 = vmatpush1.bf16.xpose.msra.mxu0 0
        %6976 = vmatprep.mubr.bf16.mxu0 0
        %6977 = vmatmul.mubr.bf16.gmra.mrb[0].mxu0 %v6939
        %v6978 = vpop.f32.mrb[0].mxu0
        %v6979 = vadd.f32 0.0, %v6978
        %v6980 = vpop.f32.mrb[0].mxu0
        %v6981 = vpop.f32.mrb[0].mxu0
        %v6982 = vpop.f32.mrb[0].mxu0
        %6983 = vdwg.mxu0
        %v6984 = vsel %vm2736, %v6979, -inf
        %6985 = vmax.xlane.f32.xlu0 %v6984
        %v6986 = vpop.xlane.xlu0 %6985
        %v6987 = vsub.f32 %v6979, %v6986
        %v6988 = vmul.f32 %v6987, 1.442695
        %v6989 = vpow.pop %v6988
        %v6990 = vsel %vm2736, %v6989, 0.0
        %6991 = vadd.xlane.f32.xlu0 %v6990
        %v6992 = vpop.xlane.xlu0 %6991
        %v6993 = vrcp.pop %v6992
        %v6994 = vmul.f32 %v6989, %v6993
        %v6995 = vpack.c.bf16 %v6994, %v6994
        %v6996 = vpack.c.bf16 %v6932, %v6929
        %v6998 = vsel %vm2736, %v6995, 0
        %7000 = vmatprep.subr.bf16.mxu0 0
        %7001 = vmatpush1.bf16.msra.mxu0 %v6996
        %7002 = vmatprep.subr.bf16.mxu0 0
        %7003 = vmatpush1.bf16.msra.mxu0 0
        %7004 = vmatprep.subr.bf16.mxu0 0
        %7005 = vmatpush1.bf16.msra.mxu0 0
        %7006 = vmatprep.subr.bf16.mxu0 0
        %7007 = vmatpush1.bf16.msra.mxu0 0
        %7008 = vmatprep.subr.bf16.mxu0 0
        %7009 = vmatpush1.bf16.msra.mxu0 0
        %7010 = vmatprep.subr.bf16.mxu0 0
        %7011 = vmatpush1.bf16.msra.mxu0 0
        %7012 = vmatprep.subr.bf16.mxu0 0
        %7013 = vmatpush1.bf16.msra.mxu0 0
        %7014 = vmatprep.subr.bf16.mxu0 0
        %7015 = vmatpush1.bf16.msra.mxu0 0
        %7016 = vmatprep.subr.bf16.mxu0 0
        %7017 = vmatpush1.bf16.msra.mxu0 0
        %7018 = vmatprep.subr.bf16.mxu0 0
        %7019 = vmatpush1.bf16.msra.mxu0 0
        %7020 = vmatprep.subr.bf16.mxu0 0
        %7021 = vmatpush1.bf16.msra.mxu0 0
        %7022 = vmatprep.subr.bf16.mxu0 0
        %7023 = vmatpush1.bf16.msra.mxu0 0
        %7024 = vmatprep.subr.bf16.mxu0 0
        %7025 = vmatpush1.bf16.msra.mxu0 0
        %7026 = vmatprep.subr.bf16.mxu0 0
        %7027 = vmatpush1.bf16.msra.mxu0 0
        %7028 = vmatprep.subr.bf16.mxu0 0
        %7029 = vmatpush1.bf16.msra.mxu0 0
        %7030 = vmatprep.subr.bf16.mxu0 0
        %7031 = vmatpush1.bf16.msra.mxu0 0
        %7032 = vmatprep.mubr.bf16.mxu0 0
        %7033 = vmatmul.mubr.bf16.gmra.mrb[0].mxu0 %v6998
        %v7034 = vpop.f32.mrb[0].mxu0
        %v7035 = vadd.f32 0.0, %v7034
        %v7036 = vpop.f32.mrb[0].mxu0
        %v7037 = vpop.f32.mrb[0].mxu0
        %v7038 = vpop.f32.mrb[0].mxu0
        %7039 = vdwg.mxu0
        %s7040 = scalar_lea.vmem %s21, 28
        %v7041 = vld [vmem:[%s7040] sm:$0xf]
        %v7042 = vpack.c.bf16 %v7035, %v7035
        %v7044 = vsel %vm1159, %v7042, 0
        %v7047 = vsel %vm1234, %v7041, 0
        %7049 = vmatprep.subr.bf16.mxu0 0
        %7050 = vmatpush1.bf16.msra.mxu0 %v7047
        %7051 = vmatprep.subr.bf16.mxu0 0
        %7052 = vmatpush1.bf16.msra.mxu0 0
        %7053 = vmatprep.subr.bf16.mxu0 0
        %7054 = vmatpush1.bf16.msra.mxu0 0
        %7055 = vmatprep.subr.bf16.mxu0 0
        %7056 = vmatpush1.bf16.msra.mxu0 0
        %7057 = vmatprep.subr.bf16.mxu0 0
        %7058 = vmatpush1.bf16.msra.mxu0 0
        %7059 = vmatprep.subr.bf16.mxu0 0
        %7060 = vmatpush1.bf16.msra.mxu0 0
        %7061 = vmatprep.subr.bf16.mxu0 0
        %7062 = vmatpush1.bf16.msra.mxu0 0
        %7063 = vmatprep.subr.bf16.mxu0 0
        %7064 = vmatpush1.bf16.msra.mxu0 0
        %7065 = vmatprep.subr.bf16.mxu0 0
        %7066 = vmatpush1.bf16.msra.mxu0 0
        %7067 = vmatprep.subr.bf16.mxu0 0
        %7068 = vmatpush1.bf16.msra.mxu0 0
        %7069 = vmatprep.subr.bf16.mxu0 0
        %7070 = vmatpush1.bf16.msra.mxu0 0
        %7071 = vmatprep.subr.bf16.mxu0 0
        %7072 = vmatpush1.bf16.msra.mxu0 0
        %7073 = vmatprep.subr.bf16.mxu0 0
        %7074 = vmatpush1.bf16.msra.mxu0 0
        %7075 = vmatprep.subr.bf16.mxu0 0
        %7076 = vmatpush1.bf16.msra.mxu0 0
        %7077 = vmatprep.subr.bf16.mxu0 0
        %7078 = vmatpush1.bf16.msra.mxu0 0
        %7079 = vmatprep.subr.bf16.mxu0 0
        %7080 = vmatpush1.bf16.msra.mxu0 0
        %7081 = vmatprep.mubr.bf16.mxu0 0
        %7082 = vmatmul.mubr.bf16.gmra.mrb[0].mxu0 %v7044
        %v7083 = vpop.f32.mrb[0].mxu0
        %v7084 = vadd.f32 0.0, %v7083
        %v7085 = vpop.f32.mrb[0].mxu0
        %v7086 = vpop.f32.mrb[0].mxu0
        %v7087 = vpop.f32.mrb[0].mxu0
        %7088 = vdwg.mxu0
        %v7089 = vadd.f32 %v6737, %v7084
        %s7090 = scalar_lea.vmem %s22, 1
        %v7091 = vld [vmem:[%s7090] sm:$0x1]
        %v7093 = vlaneseq
        %v7094 = vshrl.u32 %v7093, 7
        %v7095 = vsub.s32 0, %v7094
        %v7096 = vrot.slane %v7091, %v7095
        %v7098 = vadd.f32 %v7089, %v7096
        %v7099 = vadd.f32 %v5656, %v7098
        %v7100 = vsel %vm909, %v7099, 0.0
        %7101 = vadd.xlane.f32.xlu0 %v7100
        %v7102 = vpop.xlane.xlu0 %7101
        %v7103 = vmul.f32 %v7102, %v913
        %v7104 = vsub.f32 %v7099, %v7103
        %v7105 = vmul.f32 %v7104, %v7104
        %v7106 = vsel %vm909, %v7105, 0.0
        %7107 = vadd.xlane.f32.xlu0 %v7106
        %v7108 = vpop.xlane.xlu0 %7107
        %v7109 = vmul.f32 %v7108, %v913
        %v7110 = vadd.f32 %v7109, 1e-05
        %v7111 = vrsqrt.pop %v7110
        %v7112 = vmul.f32 %v7104, %v7111
        %v7113 = vlaneseq
        %v7114 = vshrl.u32 %v7113, 7
        %v7115 = vsub.s32 6, %v7114
        %v7116 = vrot.slane %v4182, %v7115
        %v7117 = vmul.f32 %v7112, %v7116
        %v7118 = vlaneseq
        %v7119 = vshrl.u32 %v7118, 7
        %v7120 = vsub.s32 7, %v7119
        %v7121 = vrot.slane %v4182, %v7120
        %v7122 = vadd.f32 %v7117, %v7121
        %s7123 = scalar_lea.vmem %s23, 16
        %v7124 = vld [vmem:[%s7123] sm:$0xf]
        %v7125 = vld [vmem:[%s7123 + $0x4] sm:$0xf]
        %v7126 = vld [vmem:[%s7123 + $0x8] sm:$0xf]
        %v7127 = vld [vmem:[%s7123 + $0xc] sm:$0xf]
        %v7128 = vpack.c.bf16 %v7122, %v7122
        %s7129 = scalar_lea.vmem %s24, 1
        %v7130 = vld [vmem:[%s7129] sm:$0x1]
        %v7132 = vlaneseq
        %v7133 = vshrl.u32 %v7132, 7
        %v7134 = vsub.s32 0, %v7133
        %v7135 = vrot.slane %v7130, %v7134
        %v7141 = vunpack.c.l.b16 %v7124
        %v7142 = vunpack.c.l.b16 %v7125
        %v7143 = vunpack.c.l.b16 %v7126
        %v7144 = vunpack.c.l.b16 %v7127
        %v7145 = vpack.c.b16 %v7142, %v7141
        %v7146 = vpack.c.b16 %v7144, %v7143
        %v7150 = vsel %vm909, %v7128, 0
        %7152 = vmatprep.subr.bf16.mxu0 0
        %7153 = vmatpush1.bf16.msra.mxu0 %v7145
        %7154 = vmatprep.subr.bf16.mxu0 0
        %7155 = vmatpush1.bf16.msra.mxu0 %v7146
        %7156 = vmatprep.subr.bf16.mxu0 0
        %7157 = vmatpush1.bf16.msra.mxu0 0
        %7158 = vmatprep.subr.bf16.mxu0 0
        %7159 = vmatpush1.bf16.msra.mxu0 0
        %7160 = vmatprep.subr.bf16.mxu0 0
        %7161 = vmatpush1.bf16.msra.mxu0 0
        %7162 = vmatprep.subr.bf16.mxu0 0
        %7163 = vmatpush1.bf16.msra.mxu0 0
        %7164 = vmatprep.subr.bf16.mxu0 0
        %7165 = vmatpush1.bf16.msra.mxu0 0
        %7166 = vmatprep.subr.bf16.mxu0 0
        %7167 = vmatpush1.bf16.msra.mxu0 0
        %7168 = vmatprep.subr.bf16.mxu0 0
        %7169 = vmatpush1.bf16.msra.mxu0 0
        %7170 = vmatprep.subr.bf16.mxu0 0
        %7171 = vmatpush1.bf16.msra.mxu0 0
        %7172 = vmatprep.subr.bf16.mxu0 0
        %7173 = vmatpush1.bf16.msra.mxu0 0
        %7174 = vmatprep.subr.bf16.mxu0 0
        %7175 = vmatpush1.bf16.msra.mxu0 0
        %7176 = vmatprep.subr.bf16.mxu0 0
        %7177 = vmatpush1.bf16.msra.mxu0 0
        %7178 = vmatprep.subr.bf16.mxu0 0
        %7179 = vmatpush1.bf16.msra.mxu0 0
        %7180 = vmatprep.subr.bf16.mxu0 0
        %7181 = vmatpush1.bf16.msra.mxu0 0
        %7182 = vmatprep.subr.bf16.mxu0 0
        %7183 = vmatpush1.bf16.msra.mxu0 0
        %7184 = vmatprep.mubr.bf16.mxu0 0
        %7185 = vmatmul.mubr.bf16.gmra.mrb[0].mxu0 %v7150
        %v7186 = vpop.f32.mrb[0].mxu0
        %v7187 = vadd.f32 %v7135, %v7186
        %v7188 = vpop.f32.mrb[0].mxu0
        %v7189 = vpop.f32.mrb[0].mxu0
        %v7190 = vpop.f32.mrb[0].mxu0
        %7191 = vdwg.mxu0
        %v7192 = vmul.f32 %v7187, 0.5
        %v7193 = vmul.f32 %v7187, 0.044715
        %v7194 = vmul.f32 %v7193, %v7187
        %v7195 = vmul.f32 %v7194, %v7187
        %v7196 = vadd.f32 %v7187, %v7195
        %v7197 = vmul.f32 %v7196, 0.7978846
        %v7198 = vtanh.pop %v7197
        %v7199 = vadd.f32 %v7198, 1.0
        %v7200 = vmul.f32 %v7192, %v7199
        %s7201 = scalar_lea.vmem %s25, 32
        %v7202 = vld [vmem:[%s7201] sm:$0xf]
        %v7203 = vld [vmem:[%s7201 + $0x4] sm:$0xf]
        %v7204 = vld [vmem:[%s7201 + $0x8] sm:$0xf]
        %v7205 = vld [vmem:[%s7201 + $0xc] sm:$0xf]
        %v7206 = vld [vmem:[%s7201 + $0x10] sm:$0xf]
        %v7207 = vld [vmem:[%s7201 + $0x14] sm:$0xf]
        %v7208 = vld [vmem:[%s7201 + $0x18] sm:$0xf]
        %v7209 = vld [vmem:[%s7201 + $0x1c] sm:$0xf]
        %v7210 = vpack.c.bf16 %v7200, %v7200
        %s7211 = scalar_lea.vmem %s26, 1
        %v7212 = vld [vmem:[%s7211] sm:$0x1]
        %v7214 = vlaneseq
        %v7215 = vshrl.u32 %v7214, 7
        %v7216 = vsub.s32 0, %v7215
        %v7217 = vrot.slane %v7212, %v7216
        %v7227 = vunpack.c.l.b16 %v7202
        %v7228 = vunpack.c.l.b16 %v7203
        %v7229 = vunpack.c.l.b16 %v7204
        %v7230 = vunpack.c.l.b16 %v7205
        %v7231 = vunpack.c.l.b16 %v7206
        %v7232 = vunpack.c.l.b16 %v7207
        %v7233 = vunpack.c.l.b16 %v7208
        %v7234 = vunpack.c.l.b16 %v7209
        %v7235 = vpack.c.b16 %v7228, %v7227
        %v7236 = vpack.c.b16 %v7230, %v7229
        %v7237 = vpack.c.b16 %v7232, %v7231
        %v7238 = vpack.c.b16 %v7234, %v7233
        %v7244 = vsel %vm4134, %v7210, 0
        %7246 = vmatprep.subr.bf16.mxu0 0
        %7247 = vmatpush1.bf16.msra.mxu0 %v7235
        %7248 = vmatprep.subr.bf16.mxu0 0
        %7249 = vmatpush1.bf16.msra.mxu0 %v7236
        %7250 = vmatprep.subr.bf16.mxu0 0
        %7251 = vmatpush1.bf16.msra.mxu0 %v7237
        %7252 = vmatprep.subr.bf16.mxu0 0
        %7253 = vmatpush1.bf16.msra.mxu0 %v7238
        %7254 = vmatprep.subr.bf16.mxu0 0
        %7255 = vmatpush1.bf16.msra.mxu0 0
        %7256 = vmatprep.subr.bf16.mxu0 0
        %7257 = vmatpush1.bf16.msra.mxu0 0
        %7258 = vmatprep.subr.bf16.mxu0 0
        %7259 = vmatpush1.bf16.msra.mxu0 0
        %7260 = vmatprep.subr.bf16.mxu0 0
        %7261 = vmatpush1.bf16.msra.mxu0 0
        %7262 = vmatprep.subr.bf16.mxu0 0
        %7263 = vmatpush1.bf16.msra.mxu0 0
        %7264 = vmatprep.subr.bf16.mxu0 0
        %7265 = vmatpush1.bf16.msra.mxu0 0
        %7266 = vmatprep.subr.bf16.mxu0 0
        %7267 = vmatpush1.bf16.msra.mxu0 0
        %7268 = vmatprep.subr.bf16.mxu0 0
        %7269 = vmatpush1.bf16.msra.mxu0 0
        %7270 = vmatprep.subr.bf16.mxu0 0
        %7271 = vmatpush1.bf16.msra.mxu0 0
        %7272 = vmatprep.subr.bf16.mxu0 0
        %7273 = vmatpush1.bf16.msra.mxu0 0
        %7274 = vmatprep.subr.bf16.mxu0 0
        %7275 = vmatpush1.bf16.msra.mxu0 0
        %7276 = vmatprep.subr.bf16.mxu0 0
        %7277 = vmatpush1.bf16.msra.mxu0 0
        %7278 = vmatprep.mubr.bf16.mxu0 0
        %7279 = vmatmul.mubr.bf16.gmra.mrb[0].mxu0 %v7244
        %v7280 = vpop.f32.mrb[0].mxu0
        %v7281 = vadd.f32 %v7217, %v7280
        %v7282 = vpop.f32.mrb[0].mxu0
        %v7283 = vpop.f32.mrb[0].mxu0
        %v7284 = vpop.f32.mrb[0].mxu0
        %7285 = vdwg.mxu0
        %v7286 = vadd.f32 %v7099, %v7281
        %v7287 = vld [vmem:[%s27] sm:$0x1]
        %v7288 = vld [vmem:[%s27 + $0x1] sm:$0x1]
        %v7289 = vsel %vm909, %v7286, 0.0
        %7290 = vadd.xlane.f32.xlu0 %v7289
        %v7291 = vpop.xlane.xlu0 %7290
        %v7292 = vmul.f32 %v7291, %v913
        %v7293 = vsub.f32 %v7286, %v7292
        %v7294 = vmul.f32 %v7293, %v7293
        %v7295 = vsel %vm909, %v7294, 0.0
        %7296 = vadd.xlane.f32.xlu0 %v7295
        %v7297 = vpop.xlane.xlu0 %7296
        %v7298 = vmul.f32 %v7297, %v913
        %v7299 = vadd.f32 %v7298, 1e-05
        %v7300 = vrsqrt.pop %v7299
        %v7301 = vmul.f32 %v7293, %v7300
        %v7302 = vlaneseq
        %v7303 = vshrl.u32 %v7302, 7
        %v7304 = vsub.s32 0, %v7303
        %v7305 = vrot.slane %v7287, %v7304
        %v7306 = vmul.f32 %v7301, %v7305
        %v7307 = vlaneseq
        %v7308 = vshrl.u32 %v7307, 7
        %v7309 = vsub.s32 0, %v7308
        %v7310 = vrot.slane %v7288, %v7309
        %v7311 = vadd.f32 %v7306, %v7310
        %7312 = vst.msk [vmem:[%s875] sm:$0xff] %vm909, %v7311
        %s7313 = sand.u32 %s658, 1
        %s7314 = scalar_lea.sflag [#allocation3], %s7313
        %s7315 = sand.u32 %s658, 1
        %s7316 = smul.addr %s7315, 8
        %s7317 = scalar_lea.vmem [#allocation2], %s7316
        // Predicated region
        $region133: #{run.1} parent=131 // pred_check
          %p7318 = pneg %p668
        $region134: #{run.1} parent=131 // pred_check_branch
          %7320 = sbr.rel (%p7318) target = $region136
        $region135: #{run.1} parent=131 // pred_region
          %s7322 = ssub.s32 128, 128
          %7323 = vsyncadd %s7314, %s7322
          %s7324 = smul.addr %s42, 128
          %s7325 = scalar_lea.hbm %s28, %s7324
          %s7327 = sshll.u32 %s7317, 4
          %s7328 = int_to_ptr.vmem [resolvable:$true] %s7327
          %7330 = dma.vmem_to_hbm [thread:$0]  %s7328, 128, %s7325, %s7314
        $region136: #{run.1} parent=131 // pred_fallthru
          _
      $region132: #{run.1} parent=5 // pred_fallthru
        _
      %p7331 = scmp.le.s32.totalorder 2, %s37
      // Predicated region
      $region137: #{run.1} parent=5 // pred_check
        %p7332 = pneg %p7331
      $region138: #{run.1} parent=5 // pred_check_branch
        %7334 = sbr.rel (%p7332) target = $region140
      $region139: #{run.1} parent=5 // pred_region
        %s7335 = ssub.s32 %s37, 2
        // Predicated region
        $region141: #{run.1} parent=139 // pred_check
          %p7336 = pneg %p674
        $region142: #{run.1} parent=139 // pred_check_branch
          %7338 = sbr.rel (%p7336) target = $region144
        $region143: #{run.1} parent=139 // pred_region
          %s7339 = sand.u32 %s659, 1
          %s7340 = scalar_lea.sflag [#allocation3], %s7339
          %s7341 = sand.u32 %s659, 1
          %s7342 = smul.addr %s7341, 8
          %s7343 = scalar_lea.vmem [#allocation2], %s7342
          %7344 = dma.done %s7340, 128
        $region144: #{run.1} parent=139 // pred_fallthru
          _
      $region140: #{run.1} parent=5 // pred_fallthru
        _
    $region6: #{run.1} parent=1 // loop_footer
      %s41 = sadd.s32 1, %s37
    $region7: #{run.1} parent=1 // loop_footer_branch
      %36 = sbr.rel target = $region3
    $region8: #{run.1} parent=1 // loop_exit
      _
    %7345 = vsyncpa [#allocation3], 1
    %s7346 = scalar_lea.sflag [#allocation3], 1
    %7347 = vsyncpa %s7346, 1

</llo_original>
